<compile_context>
chip_gen: v7x
topology: tpu7x:2x2x1
jax: 0.10.0
libtpu: 0.0.40
codegen_flags: <defaults>
</compile_context>

<pallas_src>
import jax
import jax.numpy as jnp
from jax.experimental import pallas as pl
from jax.experimental.pallas import tpu as pltpu

IN_FEATURES = 12288   # 3 * 64 * 64
H1 = 128              # fc_1 out
H2 = 256              # fc_2 out
OUT = 96              # classifier out


def nn5_kernel(x_ref, w1_ref, b1_ref, w2_ref, b2_ref, w3_ref, b3_ref,
               o_ref, acc_ref):
    """Grid iterates over the K (=12288) reduction axis of fc_1 (1 step by default).

    acc_ref (VMEM scratch, f32) holds the fc_1 pre-activation. It is seeded with the
    fc_1 bias at k==0; on the last reduction step the full epilogue
    (relu -> fc_2 -> relu -> classifier) runs on resident bf16 weights with f32 accumulation.
    """
    k = pl.program_id(0)

    @pl.when(k == 0)
    def _():
        acc_ref[...] = jnp.broadcast_to(b1_ref[...], acc_ref.shape)

    # Cast the (small) f32 x tile to bf16 on the VPU; w1 is already bf16 in HBM.
    x_bf16 = x_ref[...].astype(jnp.bfloat16)
    acc_ref[...] += jnp.dot(
        x_bf16, w1_ref[...], preferred_element_type=jnp.float32
    )

    @pl.when(k == pl.num_programs(0) - 1)
    def _():
        h1 = jnp.maximum(acc_ref[...], 0.0).astype(jnp.bfloat16)            # relu
        h2 = jnp.dot(h1, w2_ref[...],
                     preferred_element_type=jnp.float32) + b2_ref[...]      # fc_2
        h2 = jnp.maximum(h2, 0.0).astype(jnp.bfloat16)                      # relu
        out = jnp.dot(h2, w3_ref[...],
                      preferred_element_type=jnp.float32) + b3_ref[...]     # classifier
        o_ref[...] = out.astype(o_ref.dtype)


def prepare_params(w1, b1, w2, b2, w3, b3):
    """One-time conversion to the kernel's persistent streaming dtypes/layouts.

    Call ONCE at model setup (not per forward): weights -> bf16, biases -> (1, N) f32.
    """
    return (w1.astype(jnp.bfloat16), b1.reshape(1, -1).astype(jnp.float32),
            w2.astype(jnp.bfloat16), b2.reshape(1, -1).astype(jnp.float32),
            w3.astype(jnp.bfloat16), b3.reshape(1, -1).astype(jnp.float32))


def nn5_forward(x, w1_bf16, b1_2d, w2_bf16, b2_2d, w3_bf16, b3_2d, *, tk=IN_FEATURES):
    """x: (B, C, H, W) float32. Params from prepare_params(). Returns (B, 96) float32."""
    B = x.shape[0]
    x2d = x.reshape(B, -1)                 # torch.nn.Flatten semantics (C*H*W order)
    K, h1 = w1_bf16.shape                  # (12288, 128)
    _, h2 = w2_bf16.shape                  # (128, 256)
    _, out_f = w3_bf16.shape               # (256, 96)
    assert K % tk == 0, "tk must divide 12288 (e.g. 3072/6144/12288)"

    cost = pl.CostEstimate(
        flops=2 * B * (K * h1 + h1 * h2 + h2 * out_f),
        transcendentals=0,
        bytes_accessed=(B * K * 4                          # f32 x
                        + K * h1 * 2                       # bf16 w1 (dominant stream)
                        + h1 * h2 * 2 + h2 * out_f * 2     # bf16 w2, w3
                        + (h1 + h2 + out_f) * 4            # f32 biases
                        + B * out_f * 4),                  # f32 output
    )

    return pl.pallas_call(
        nn5_kernel,
        out_shape=jax.ShapeDtypeStruct((B, out_f), jnp.float32),
        grid_spec=pltpu.PrefetchScalarGridSpec(
            num_scalar_prefetch=0,
            grid=(K // tk,),
            in_specs=[
                pl.BlockSpec((B, tk), lambda k: (0, k)),     # x (f32) k-tile
                pl.BlockSpec((tk, h1), lambda k: (k, 0)),    # fc_1 weight (bf16) k-tile
                pl.BlockSpec((1, h1), lambda k: (0, 0)),     # fc_1 bias (resident)
                pl.BlockSpec((h1, h2), lambda k: (0, 0)),    # fc_2 weight (resident, bf16)
                pl.BlockSpec((1, h2), lambda k: (0, 0)),     # fc_2 bias (resident)
                pl.BlockSpec((h2, out_f), lambda k: (0, 0)), # classifier weight (resident, bf16)
                pl.BlockSpec((1, out_f), lambda k: (0, 0)),  # classifier bias (resident)
            ],
            out_specs=pl.BlockSpec((B, out_f), lambda k: (0, 0)),  # accumulator-style output
            scratch_shapes=[pltpu.VMEM((B, h1), jnp.float32)],
        ),
        compiler_params=pltpu.CompilerParams(
            dimension_semantics=("arbitrary",),
        ),
        cost_estimate=cost,
    )(x2d, w1_bf16, b1_2d, w2_bf16, b2_2d, w3_bf16, b3_2d)


def init_params(key):
    """Deterministic f32 init mimicking torch.nn.Linear (uniform +/- 1/sqrt(fan_in)).

    Weights are stored as (in_features, out_features), i.e. transposed vs torch.
    """
    k1, k2, k3, k4, k5, k6 = jax.random.split(key, 6)
    lim1 = 1.0 / jnp.sqrt(jnp.float32(IN_FEATURES))
    lim2 = 1.0 / jnp.sqrt(jnp.float32(H1))
    lim3 = 1.0 / jnp.sqrt(jnp.float32(H2))
    w1 = jax.random.uniform(k1, (IN_FEATURES, H1), jnp.float32, -lim1, lim1)
    b1 = jax.random.uniform(k2, (H1,), jnp.float32, -lim1, lim1)
    w2 = jax.random.uniform(k3, (H1, H2), jnp.float32, -lim2, lim2)
    b2 = jax.random.uniform(k4, (H2,), jnp.float32, -lim2, lim2)
    w3 = jax.random.uniform(k5, (H2, OUT), jnp.float32, -lim3, lim3)
    b3 = jax.random.uniform(k6, (OUT,), jnp.float32, -lim3, lim3)
    return w1, b1, w2, b2, w3, b3


def nn5_reference_f32(x, w1, b1, w2, b2, w3, b3):
    """Full-f32 reference matching the torch module."""
    x2d = x.reshape(x.shape[0], -1)
    h = jnp.maximum(x2d @ w1 + b1, 0.0)
    h = jnp.maximum(h @ w2 + b2, 0.0)
    return h @ w3 + b3


def nn5_reference_bf16(x, w1_bf16, b1_2d, w2_bf16, b2_2d, w3_bf16, b3_2d):
    """Reference that replicates the kernel's dtype choices (bf16 streams, f32 acc)."""
    x2d = x.reshape(x.shape[0], -1).astype(jnp.bfloat16)
    h = jnp.dot(x2d, w1_bf16, preferred_element_type=jnp.float32) + b1_2d
    h = jnp.maximum(h, 0.0).astype(jnp.bfloat16)
    h = jnp.dot(h, w2_bf16, preferred_element_type=jnp.float32) + b2_2d
    h = jnp.maximum(h, 0.0).astype(jnp.bfloat16)
    return jnp.dot(h, w3_bf16, preferred_element_type=jnp.float32) + b3_2d


if __name__ == "__main__":
    key = jax.random.PRNGKey(0)
    kx, kp = jax.random.split(key)

    # 12288 = 3 * 64 * 64  -> NCHW input (B, 3, 64, 64)
    B = 2
    x = jax.random.normal(kx, (B, 3, 64, 64), jnp.float32)

    params_f32 = init_params(kp)
    params = prepare_params(*params_f32)   # one-time conversion, outside the hot path

    out = jax.block_until_ready(nn5_forward(x, *params))
    assert out.shape == (B, OUT)

    # Tight check against a reference that matches the kernel's bf16 streaming exactly.
    ref_bf16 = nn5_reference_bf16(x, *params)
    assert jnp.allclose(out, ref_bf16, atol=2e-3, rtol=2e-3), \
        "mismatch vs bf16-matched reference"

    # Loose sanity check against the full-f32 torch-equivalent reference.
    ref_f32 = nn5_reference_f32(x, *params_f32)
    assert jnp.allclose(out, ref_f32, atol=5e-2, rtol=5e-2), "mismatch vs f32 reference"

    print("KERNEL_OK")
</pallas_src>

<mosaic_0001>
module attributes {stable_mosaic.version = 11 : i64} {
  func.func @nn5_kernel(%arg0: i32, %arg1: memref<2x12288xf32, #tpu.memory_space<vmem>>, %arg2: memref<12288x128xbf16, #tpu.memory_space<vmem>>, %arg3: memref<1x128xf32, #tpu.memory_space<vmem>>, %arg4: memref<128x256xbf16, #tpu.memory_space<vmem>>, %arg5: memref<1x256xf32, #tpu.memory_space<vmem>>, %arg6: memref<256x96xbf16, #tpu.memory_space<vmem>>, %arg7: memref<1x96xf32, #tpu.memory_space<vmem>>, %arg8: memref<2x96xf32, #tpu.memory_space<vmem>>, %arg9: memref<2x128xf32, #tpu.memory_space<vmem>>) attributes {dimension_semantics = [#tpu.dimension_semantics<arbitrary>], iteration_bounds = array<i64: 1>, scalar_prefetch = 0 : i64, scratch_operands = 1 : i64, tpu.core_type = #tpu.core_type<tc>, window_params = [{transform_indices = @transform_0, window_bounds = array<i64: 2, 12288>}, {transform_indices = @transform_1, window_bounds = array<i64: 12288, 128>}, {pipeline_mode = #tpu.pipeline_mode<synchronous>, transform_indices = @transform_2, window_bounds = array<i64: 1, 128>}, {pipeline_mode = #tpu.pipeline_mode<synchronous>, transform_indices = @transform_3, window_bounds = array<i64: 128, 256>}, {pipeline_mode = #tpu.pipeline_mode<synchronous>, transform_indices = @transform_4, window_bounds = array<i64: 1, 256>}, {pipeline_mode = #tpu.pipeline_mode<synchronous>, transform_indices = @transform_5, window_bounds = array<i64: 256, 96>}, {pipeline_mode = #tpu.pipeline_mode<synchronous>, transform_indices = @transform_6, window_bounds = array<i64: 1, 96>}, {pipeline_mode = #tpu.pipeline_mode<synchronous>, transform_indices = @transform_7, window_bounds = array<i64: 2, 96>}]} {
    %c0_i32 = arith.constant 0 : i32
    %0 = arith.cmpi eq, %arg0, %c0_i32 : i32
    %1 = arith.extui %0 : i1 to i32
    %c0_i32_0 = arith.constant 0 : i32
    %2 = arith.cmpi ne, %1, %c0_i32_0 : i32
    scf.if %2 {
      %c0_10 = arith.constant 0 : index
      %c0_11 = arith.constant 0 : index
      %13 = vector.load %arg3[%c0_10, %c0_11] : memref<1x128xf32, #tpu.memory_space<vmem>>, vector<1x128xf32>
      %14 = vector.shape_cast %13 : vector<1x128xf32> to vector<1x128xf32>
      %15 = vector.broadcast %14 : vector<1x128xf32> to vector<2x128xf32>
      %c0_12 = arith.constant 0 : index
      %c0_13 = arith.constant 0 : index
      %16 = vector.load %arg9[%c0_12, %c0_13] : memref<2x128xf32, #tpu.memory_space<vmem>>, vector<2x128xf32>
      tpu.vector_store %arg9[%c0_12, %c0_13], %15 {strides = array<i32>} : memref<2x128xf32, #tpu.memory_space<vmem>>, vector<2x128xf32>,
    } else {
    }
    %c0 = arith.constant 0 : index
    %c0_1 = arith.constant 0 : index
    %3 = vector.load %arg1[%c0, %c0_1] : memref<2x12288xf32, #tpu.memory_space<vmem>>, vector<2x12288xf32>
    %4 = arith.truncf %3 : vector<2x12288xf32> to vector<2x12288xbf16>
    %c0_2 = arith.constant 0 : index
    %c0_3 = arith.constant 0 : index
    %5 = vector.load %arg9[%c0_2, %c0_3] : memref<2x128xf32, #tpu.memory_space<vmem>>, vector<2x128xf32>
    %c0_4 = arith.constant 0 : index
    %c0_5 = arith.constant 0 : index
    %6 = vector.load %arg2[%c0_4, %c0_5] : memref<12288x128xbf16, #tpu.memory_space<vmem>>, vector<12288x128xbf16>
    %cst = arith.constant dense<0.000000e+00> : vector<2x128xf32>
    %7 = tpu.matmul %4, %6, %cst {dimension_numbers = #tpu.dot_dimension_numbers<[1], [0], [0], [1], [0, 0, 1, 1], [], []>} : vector<2x12288xbf16>, vector<12288x128xbf16>, vector<2x128xf32> -> vector<2x128xf32>
    %8 = arith.addf %5, %7 : vector<2x128xf32>
    %c0_6 = arith.constant 0 : index
    %c0_7 = arith.constant 0 : index
    %9 = vector.load %arg9[%c0_6, %c0_7] : memref<2x128xf32, #tpu.memory_space<vmem>>, vector<2x128xf32>
    tpu.vector_store %arg9[%c0_6, %c0_7], %8 {strides = array<i32>} : memref<2x128xf32, #tpu.memory_space<vmem>>, vector<2x128xf32>,
    %c0_i32_8 = arith.constant 0 : i32
    %10 = arith.cmpi eq, %arg0, %c0_i32_8 : i32
    %11 = arith.extui %10 : i1 to i32
    %c0_i32_9 = arith.constant 0 : i32
    %12 = arith.cmpi ne, %11, %c0_i32_9 : i32
    scf.if %12 {
      %c0_10 = arith.constant 0 : index
      %c0_11 = arith.constant 0 : index
      %13 = vector.load %arg9[%c0_10, %c0_11] : memref<2x128xf32, #tpu.memory_space<vmem>>, vector<2x128xf32>
      %cst_12 = arith.constant 0.000000e+00 : f32
      %14 = vector.broadcast %cst_12 : f32 to vector<2x128xf32>
      %15 = arith.maximumf %13, %14 : vector<2x128xf32>
      %16 = arith.truncf %15 : vector<2x128xf32> to vector<2x128xbf16>
      %c0_13 = arith.constant 0 : index
      %c0_14 = arith.constant 0 : index
      %17 = vector.load %arg4[%c0_13, %c0_14] : memref<128x256xbf16, #tpu.memory_space<vmem>>, vector<128x256xbf16>
      %cst_15 = arith.constant dense<0.000000e+00> : vector<2x256xf32>
      %18 = tpu.matmul %16, %17, %cst_15 {dimension_numbers = #tpu.dot_dimension_numbers<[1], [0], [0], [1], [0, 0, 1, 1], [], []>} : vector<2x128xbf16>, vector<128x256xbf16>, vector<2x256xf32> -> vector<2x256xf32>
      %c0_16 = arith.constant 0 : index
      %c0_17 = arith.constant 0 : index
      %19 = vector.load %arg5[%c0_16, %c0_17] : memref<1x256xf32, #tpu.memory_space<vmem>>, vector<1x256xf32>
      %20 = vector.broadcast %19 : vector<1x256xf32> to vector<2x256xf32>
      %21 = arith.addf %18, %20 : vector<2x256xf32>
      %cst_18 = arith.constant 0.000000e+00 : f32
      %22 = vector.broadcast %cst_18 : f32 to vector<2x256xf32>
      %23 = arith.maximumf %21, %22 : vector<2x256xf32>
      %24 = arith.truncf %23 : vector<2x256xf32> to vector<2x256xbf16>
      %c0_19 = arith.constant 0 : index
      %c0_20 = arith.constant 0 : index
      %25 = vector.load %arg6[%c0_19, %c0_20] : memref<256x96xbf16, #tpu.memory_space<vmem>>, vector<256x96xbf16>
      %cst_21 = arith.constant dense<0.000000e+00> : vector<2x96xf32>
      %26 = tpu.matmul %24, %25, %cst_21 {dimension_numbers = #tpu.dot_dimension_numbers<[1], [0], [0], [1], [0, 0, 1, 1], [], []>} : vector<2x256xbf16>, vector<256x96xbf16>, vector<2x96xf32> -> vector<2x96xf32>
      %c0_22 = arith.constant 0 : index
      %c0_23 = arith.constant 0 : index
      %27 = vector.load %arg7[%c0_22, %c0_23] : memref<1x96xf32, #tpu.memory_space<vmem>>, vector<1x96xf32>
      %28 = vector.broadcast %27 : vector<1x96xf32> to vector<2x96xf32>
      %29 = arith.addf %26, %28 : vector<2x96xf32>
      %c0_24 = arith.constant 0 : index
      %c0_25 = arith.constant 0 : index
      %30 = vector.load %arg8[%c0_24, %c0_25] : memref<2x96xf32, #tpu.memory_space<vmem>>, vector<2x96xf32>
      tpu.vector_store %arg8[%c0_24, %c0_25], %29 {strides = array<i32>} : memref<2x96xf32, #tpu.memory_space<vmem>>, vector<2x96xf32>,
    } else {
    }
    return
  }
  func.func @transform_0(%arg0: i32) -> (i32, i32) {
    %c0_i32 = arith.constant 0 : i32
    %c0_i32_0 = arith.constant 0 : i32
    return %c0_i32, %arg0 : i32, i32
  }
  func.func @transform_1(%arg0: i32) -> (i32, i32) {
    %c0_i32 = arith.constant 0 : i32
    %c0_i32_0 = arith.constant 0 : i32
    return %arg0, %c0_i32 : i32, i32
  }
  func.func @transform_2(%arg0: i32) -> (i32, i32) {
    %c0_i32 = arith.constant 0 : i32
    %c0_i32_0 = arith.constant 0 : i32
    %c0_i32_1 = arith.constant 0 : i32
    return %c0_i32, %c0_i32_0 : i32, i32
  }
  func.func @transform_3(%arg0: i32) -> (i32, i32) {
    %c0_i32 = arith.constant 0 : i32
    %c0_i32_0 = arith.constant 0 : i32
    %c0_i32_1 = arith.constant 0 : i32
    return %c0_i32, %c0_i32_0 : i32, i32
  }
  func.func @transform_4(%arg0: i32) -> (i32, i32) {
    %c0_i32 = arith.constant 0 : i32
    %c0_i32_0 = arith.constant 0 : i32
    %c0_i32_1 = arith.constant 0 : i32
    return %c0_i32, %c0_i32_0 : i32, i32
  }
  func.func @transform_5(%arg0: i32) -> (i32, i32) {
    %c0_i32 = arith.constant 0 : i32
    %c0_i32_0 = arith.constant 0 : i32
    %c0_i32_1 = arith.constant 0 : i32
    return %c0_i32, %c0_i32_0 : i32, i32
  }
  func.func @transform_6(%arg0: i32) -> (i32, i32) {
    %c0_i32 = arith.constant 0 : i32
    %c0_i32_0 = arith.constant 0 : i32
    %c0_i32_1 = arith.constant 0 : i32
    return %c0_i32, %c0_i32_0 : i32, i32
  }
  func.func @transform_7(%arg0: i32) -> (i32, i32) {
    %c0_i32 = arith.constant 0 : i32
    %c0_i32_0 = arith.constant 0 : i32
    %c0_i32_1 = arith.constant 0 : i32
    return %c0_i32, %c0_i32_0 : i32, i32
  }
}

</mosaic_0001>

<llo_original>
// kernel: tpu_custom_call.1
$region0: #{tpu_custom_call.1}
  #allocation0 [shape = 'u32[]', space=smem, size = 0x4, offset = 0x4, fixed_abs, tag = 'smem constant byte address 0x4 - core index']
  #allocation1 [shape = 'u32[144,128]{1,0:T(1,128)}', space=vmem, size = 0x12000, scoped, tag = 'internal scratch']
  #allocation2 [shape = 'f32[2,128]{1,0:T(2,128)}', space=vmem, size = 0x400, scoped, tag = 'scratch operand']
  %s0 = inlined_call_operand.hbm [shape: f32[2,12288], index: 0, kind: input, shape index: {}]
  %s1 = inlined_call_operand.hbm [shape: bf16[12288,128], index: 1, kind: input, shape index: {}]
  %s2 = inlined_call_operand.hbm [shape: f32[1,128], index: 2, kind: input, shape index: {}]
  %s3 = inlined_call_operand.hbm [shape: bf16[128,256], index: 3, kind: input, shape index: {}]
  %s4 = inlined_call_operand.hbm [shape: f32[1,256], index: 4, kind: input, shape index: {}]
  %s5 = inlined_call_operand.vmem [shape: bf16[256,96], index: 5, kind: input, shape index: {}]
  %s6 = inlined_call_operand.hbm [shape: f32[1,96], index: 6, kind: input, shape index: {}]
  %s7 = inlined_call_operand.hbm [shape: f32[2,96], index: 7, kind: output, shape index: {}]
  %s8 = sld [smem:[#allocation0]]
  $region70: #{tpu_custom_call.1} parent=0
    _
  %s10 = ssub.s32 1, %s8
  %s11 = scalar_select 0, %s10, %s8
  $region1: #{tpu_custom_call.1} parent=0
    #allocation3 [shape = 'u8[98304]{0}', space=vmem, size = 0x18000, scoped, tag = 'input window, operand 0, single buffered']
    #allocation4 [shape = 's32[1]{0}', space=sflag, size = 0x4, scoped, tag = 'scoped memory for tpu_custom_call.1']
    #allocation5 [shape = 's32[1]{0}', space=sflag, size = 0x4, scoped, tag = 'scoped memory for tpu_custom_call.1']
    #allocation6 [shape = 'u8[3145728]{0}', space=vmem, size = 0x300000, scoped, tag = 'input window, operand 1, single buffered']
    #allocation7 [shape = 's32[1]{0}', space=sflag, size = 0x4, scoped, tag = 'scoped memory for tpu_custom_call.1']
    #allocation8 [shape = 'u8[512]{0}', space=vmem, size = 0x400, scoped, tag = 'input window, operand 2, single buffered']
    #allocation9 [shape = 'u8[65536]{0}', space=vmem, size = 0x10000, scoped, tag = 'input window, operand 3, single buffered']
    #allocation10 [shape = 's32[1]{0}', space=sflag, size = 0x4, scoped, tag = 'scoped memory for tpu_custom_call.1']
    #allocation11 [shape = 'u8[1024]{0}', space=vmem, size = 0x400, scoped, tag = 'input window, operand 4, single buffered']
    #allocation12 [shape = 'u8[512]{0}', space=vmem, size = 0x400, scoped, tag = 'input window, operand 6, single buffered']
    #allocation13 [shape = 's32[1]{0}', space=sflag, size = 0x4, scoped, tag = 'scoped memory for tpu_custom_call.1']
    #allocation14 [shape = 'u8[1024]{0}', space=vmem, size = 0x400, scoped, tag = 'output window, operand 0, single buffered']
    %12 = vsyncpa [#allocation4], 0
    %13 = vsyncpa [#allocation7], 0
    %14 = vsyncpa [#allocation10], 0
    %15 = vsyncpa [#allocation13], 0
    %16 = vsyncpa [#allocation5], 0
    // Predicated region
    $region2: #{tpu_custom_call.1} parent=1 // pred_check
      _
    $region3: #{tpu_custom_call.1} parent=1 // pred_check_branch
      %18 = sbr.rel (0) target = $region5
    $region4: #{tpu_custom_call.1} parent=1 // pred_region
      %s20 = ssub.s32 3072, 3072
      %21 = vsyncadd [#allocation4], %s20
      %s23 = sshll.u32 [#allocation3], 4
      %s24 = int_to_ptr.vmem [resolvable:$true] %s23
      %26 = dma.hbm_to_vmem [thread:$0]  %s0, 3072, %s24, [#allocation4]
    $region5: #{tpu_custom_call.1} parent=1 // pred_fallthru
      _
    // Predicated region
    $region6: #{tpu_custom_call.1} parent=1 // pred_check
      _
    $region7: #{tpu_custom_call.1} parent=1 // pred_check_branch
      %28 = sbr.rel (0) target = $region9
    $region8: #{tpu_custom_call.1} parent=1 // pred_region
      %s30 = ssub.s32 98304, 98304
      %31 = vsyncadd [#allocation7], %s30
      %s32 = sshll.u32 [#allocation6], 4
      %s33 = int_to_ptr.vmem [resolvable:$true] %s32
      %38 = dma.hbm_to_vmem [thread:$0]  %s1, 98304, %s33, [#allocation7], 64, 64, 4
    $region9: #{tpu_custom_call.1} parent=1 // pred_fallthru
      _
    // Predicated region
    $region10: #{tpu_custom_call.1} parent=1 // pred_check
      _
    $region11: #{tpu_custom_call.1} parent=1 // pred_check_branch
      %40 = sbr.rel (0) target = $region13
    $region12: #{tpu_custom_call.1} parent=1 // pred_region
      %s42 = ssub.s32 16, 16
      %43 = vsyncadd [#allocation7], %s42
      %s45 = sshll.u32 [#allocation8], 4
      %s46 = int_to_ptr.vmem [resolvable:$true] %s45
      %48 = dma.hbm_to_vmem [thread:$0]  %s2, 16, %s46, [#allocation7]
    $region13: #{tpu_custom_call.1} parent=1 // pred_fallthru
      _
    // Predicated region
    $region14: #{tpu_custom_call.1} parent=1 // pred_check
      _
    $region15: #{tpu_custom_call.1} parent=1 // pred_check_branch
      %50 = sbr.rel (0) target = $region17
    $region16: #{tpu_custom_call.1} parent=1 // pred_region
      %s52 = ssub.s32 2048, 2048
      %53 = vsyncadd [#allocation10], %s52
      %s54 = sshll.u32 [#allocation9], 4
      %s55 = int_to_ptr.vmem [resolvable:$true] %s54
      %60 = dma.hbm_to_vmem [thread:$0]  %s3, 2048, %s55, [#allocation10], 128, 128, 8
    $region17: #{tpu_custom_call.1} parent=1 // pred_fallthru
      _
    // Predicated region
    $region18: #{tpu_custom_call.1} parent=1 // pred_check
      _
    $region19: #{tpu_custom_call.1} parent=1 // pred_check_branch
      %62 = sbr.rel (0) target = $region21
    $region20: #{tpu_custom_call.1} parent=1 // pred_region
      %s64 = ssub.s32 32, 32
      %65 = vsyncadd [#allocation10], %s64
      %s67 = sshll.u32 [#allocation11], 4
      %s68 = int_to_ptr.vmem [resolvable:$true] %s67
      %70 = dma.hbm_to_vmem [thread:$0]  %s4, 32, %s68, [#allocation10]
    $region21: #{tpu_custom_call.1} parent=1 // pred_fallthru
      _
    // Predicated region
    $region22: #{tpu_custom_call.1} parent=1 // pred_check
      _
    $region23: #{tpu_custom_call.1} parent=1 // pred_check_branch
      %72 = sbr.rel (0) target = $region25
    $region24: #{tpu_custom_call.1} parent=1 // pred_region
      _
    $region25: #{tpu_custom_call.1} parent=1 // pred_fallthru
      _
    // Predicated region
    $region26: #{tpu_custom_call.1} parent=1 // pred_check
      _
    $region27: #{tpu_custom_call.1} parent=1 // pred_check_branch
      %74 = sbr.rel (0) target = $region29
    $region28: #{tpu_custom_call.1} parent=1 // pred_region
      %s76 = ssub.s32 16, 16
      %77 = vsyncadd [#allocation13], %s76
      %s79 = sshll.u32 [#allocation12], 4
      %s80 = int_to_ptr.vmem [resolvable:$true] %s79
      %82 = dma.hbm_to_vmem [thread:$0]  %s6, 16, %s80, [#allocation13]
    $region29: #{tpu_custom_call.1} parent=1 // pred_fallthru
      _
    // Predicated region
    $region30: #{tpu_custom_call.1} parent=1 // pred_check
      _
    $region31: #{tpu_custom_call.1} parent=1 // pred_check_branch
      %84 = sbr.rel (0) target = $region33
    $region32: #{tpu_custom_call.1} parent=1 // pred_region
      %85 = dma.done [#allocation4], 3072
    $region33: #{tpu_custom_call.1} parent=1 // pred_fallthru
      _
    // Predicated region
    $region34: #{tpu_custom_call.1} parent=1 // pred_check
      _
    $region35: #{tpu_custom_call.1} parent=1 // pred_check_branch
      %87 = sbr.rel (0) target = $region37
    $region36: #{tpu_custom_call.1} parent=1 // pred_region
      %88 = dma.done [#allocation7], 98304
    $region37: #{tpu_custom_call.1} parent=1 // pred_fallthru
      _
    // Predicated region
    $region38: #{tpu_custom_call.1} parent=1 // pred_check
      _
    $region39: #{tpu_custom_call.1} parent=1 // pred_check_branch
      %90 = sbr.rel (0) target = $region41
    $region40: #{tpu_custom_call.1} parent=1 // pred_region
      %91 = dma.done [#allocation7], 16
    $region41: #{tpu_custom_call.1} parent=1 // pred_fallthru
      _
    // Predicated region
    $region42: #{tpu_custom_call.1} parent=1 // pred_check
      _
    $region43: #{tpu_custom_call.1} parent=1 // pred_check_branch
      %93 = sbr.rel (0) target = $region45
    $region44: #{tpu_custom_call.1} parent=1 // pred_region
      %94 = dma.done [#allocation10], 2048
    $region45: #{tpu_custom_call.1} parent=1 // pred_fallthru
      _
    // Predicated region
    $region46: #{tpu_custom_call.1} parent=1 // pred_check
      _
    $region47: #{tpu_custom_call.1} parent=1 // pred_check_branch
      %96 = sbr.rel (0) target = $region49
    $region48: #{tpu_custom_call.1} parent=1 // pred_region
      %97 = dma.done [#allocation10], 32
    $region49: #{tpu_custom_call.1} parent=1 // pred_fallthru
      _
    // Predicated region
    $region50: #{tpu_custom_call.1} parent=1 // pred_check
      _
    $region51: #{tpu_custom_call.1} parent=1 // pred_check_branch
      %99 = sbr.rel (0) target = $region53
    $region52: #{tpu_custom_call.1} parent=1 // pred_region
      %100 = dma.done [#allocation13], 16
    $region53: #{tpu_custom_call.1} parent=1 // pred_fallthru
      _
    %p102 = scmp.eq.s32.totalorder 0, 0
    // Predicated region
    $region54: #{tpu_custom_call.1} parent=1 // pred_check
      %p103 = pneg %p102
    $region55: #{tpu_custom_call.1} parent=1 // pred_check_branch
      %105 = sbr.rel (%p103) target = $region57
    $region56: #{tpu_custom_call.1} parent=1 // pred_region
      %v106 = vld [vmem:[#allocation8] sm:$0x1]
      %v108 = vlaneseq
      %v109 = vshrl.u32 %v108, 7
      %v110 = vsub.s32 0, %v109
      %v111 = vrot.slane %v106, %v110
      %113 = vst [vmem:[#allocation2] sm:$0x3] %v111
    $region57: #{tpu_custom_call.1} parent=1 // pred_fallthru
      _
    %v114 = vld [vmem:[#allocation3] sm:$0xff]
    %v115 = vld [vmem:[#allocation3 + $0x8] sm:$0xff]
    %v116 = vld [vmem:[#allocation3 + $0x10] sm:$0xff]
    %v117 = vld [vmem:[#allocation3 + $0x18] sm:$0xff]
    %v118 = vld [vmem:[#allocation3 + $0x20] sm:$0xff]
    %v119 = vld [vmem:[#allocation3 + $0x28] sm:$0xff]
    %v120 = vld [vmem:[#allocation3 + $0x30] sm:$0xff]
    %v121 = vld [vmem:[#allocation3 + $0x38] sm:$0xff]
    %v122 = vld [vmem:[#allocation3 + $0x40] sm:$0xff]
    %v123 = vld [vmem:[#allocation3 + $0x48] sm:$0xff]
    %v124 = vld [vmem:[#allocation3 + $0x50] sm:$0xff]
    %v125 = vld [vmem:[#allocation3 + $0x58] sm:$0xff]
    %v126 = vld [vmem:[#allocation3 + $0x60] sm:$0xff]
    %v127 = vld [vmem:[#allocation3 + $0x68] sm:$0xff]
    %v128 = vld [vmem:[#allocation3 + $0x70] sm:$0xff]
    %v129 = vld [vmem:[#allocation3 + $0x78] sm:$0xff]
    %v130 = vld [vmem:[#allocation3 + $0x80] sm:$0xff]
    %v131 = vld [vmem:[#allocation3 + $0x88] sm:$0xff]
    %v132 = vld [vmem:[#allocation3 + $0x90] sm:$0xff]
    %v133 = vld [vmem:[#allocation3 + $0x98] sm:$0xff]
    %v134 = vld [vmem:[#allocation3 + $0xa0] sm:$0xff]
    %v135 = vld [vmem:[#allocation3 + $0xa8] sm:$0xff]
    %v136 = vld [vmem:[#allocation3 + $0xb0] sm:$0xff]
    %v137 = vld [vmem:[#allocation3 + $0xb8] sm:$0xff]
    %v162 = vcombine.high %v114, %v114
    %v164 = vunpack.c.l.s4 1983009808
    %v165 = vunpack.c.0.s8 %v164
    %v166 = vlaneseq
    %v167 = vshrl.u32 %v166, 7
    %v168 = vsub.s32 %v165, %v167
    %v169 = vrot.slane %v114, %v168
    %v171 = vunpack.c.l.s4 1983009808
    %v172 = vunpack.c.0.s8 %v171
    %v173 = vlaneseq
    %v174 = vshrl.u32 %v173, 7
    %v175 = vsub.s32 %v172, %v174
    %v176 = vrot.slane %v162, %v175
    %v177 = vcombine.high %v169, %v169
    %v178 = vcombine.high %v176, %v176
    %v179 = vcombine.high %v115, %v115
    %v181 = vunpack.c.l.s4 1983009808
    %v182 = vunpack.c.0.s8 %v181
    %v183 = vlaneseq
    %v184 = vshrl.u32 %v183, 7
    %v185 = vsub.s32 %v182, %v184
    %v186 = vrot.slane %v115, %v185
    %v188 = vunpack.c.l.s4 1983009808
    %v189 = vunpack.c.0.s8 %v188
    %v190 = vlaneseq
    %v191 = vshrl.u32 %v190, 7
    %v192 = vsub.s32 %v189, %v191
    %v193 = vrot.slane %v179, %v192
    %v194 = vcombine.high %v186, %v186
    %v195 = vcombine.high %v193, %v193
    %v196 = vcombine.high %v116, %v116
    %v198 = vunpack.c.l.s4 1983009808
    %v199 = vunpack.c.0.s8 %v198
    %v200 = vlaneseq
    %v201 = vshrl.u32 %v200, 7
    %v202 = vsub.s32 %v199, %v201
    %v203 = vrot.slane %v116, %v202
    %v205 = vunpack.c.l.s4 1983009808
    %v206 = vunpack.c.0.s8 %v205
    %v207 = vlaneseq
    %v208 = vshrl.u32 %v207, 7
    %v209 = vsub.s32 %v206, %v208
    %v210 = vrot.slane %v196, %v209
    %v211 = vcombine.high %v203, %v203
    %v212 = vcombine.high %v210, %v210
    %v213 = vcombine.high %v117, %v117
    %v215 = vunpack.c.l.s4 1983009808
    %v216 = vunpack.c.0.s8 %v215
    %v217 = vlaneseq
    %v218 = vshrl.u32 %v217, 7
    %v219 = vsub.s32 %v216, %v218
    %v220 = vrot.slane %v117, %v219
    %v222 = vunpack.c.l.s4 1983009808
    %v223 = vunpack.c.0.s8 %v222
    %v224 = vlaneseq
    %v225 = vshrl.u32 %v224, 7
    %v226 = vsub.s32 %v223, %v225
    %v227 = vrot.slane %v213, %v226
    %v228 = vcombine.high %v220, %v220
    %v229 = vcombine.high %v227, %v227
    %v230 = vcombine.high %v118, %v118
    %v232 = vunpack.c.l.s4 1983009808
    %v233 = vunpack.c.0.s8 %v232
    %v234 = vlaneseq
    %v235 = vshrl.u32 %v234, 7
    %v236 = vsub.s32 %v233, %v235
    %v237 = vrot.slane %v118, %v236
    %v239 = vunpack.c.l.s4 1983009808
    %v240 = vunpack.c.0.s8 %v239
    %v241 = vlaneseq
    %v242 = vshrl.u32 %v241, 7
    %v243 = vsub.s32 %v240, %v242
    %v244 = vrot.slane %v230, %v243
    %v245 = vcombine.high %v237, %v237
    %v246 = vcombine.high %v244, %v244
    %v247 = vcombine.high %v119, %v119
    %v249 = vunpack.c.l.s4 1983009808
    %v250 = vunpack.c.0.s8 %v249
    %v251 = vlaneseq
    %v252 = vshrl.u32 %v251, 7
    %v253 = vsub.s32 %v250, %v252
    %v254 = vrot.slane %v119, %v253
    %v256 = vunpack.c.l.s4 1983009808
    %v257 = vunpack.c.0.s8 %v256
    %v258 = vlaneseq
    %v259 = vshrl.u32 %v258, 7
    %v260 = vsub.s32 %v257, %v259
    %v261 = vrot.slane %v247, %v260
    %v262 = vcombine.high %v254, %v254
    %v263 = vcombine.high %v261, %v261
    %v264 = vcombine.high %v120, %v120
    %v266 = vunpack.c.l.s4 1983009808
    %v267 = vunpack.c.0.s8 %v266
    %v268 = vlaneseq
    %v269 = vshrl.u32 %v268, 7
    %v270 = vsub.s32 %v267, %v269
    %v271 = vrot.slane %v120, %v270
    %v273 = vunpack.c.l.s4 1983009808
    %v274 = vunpack.c.0.s8 %v273
    %v275 = vlaneseq
    %v276 = vshrl.u32 %v275, 7
    %v277 = vsub.s32 %v274, %v276
    %v278 = vrot.slane %v264, %v277
    %v279 = vcombine.high %v271, %v271
    %v280 = vcombine.high %v278, %v278
    %v281 = vcombine.high %v121, %v121
    %v283 = vunpack.c.l.s4 1983009808
    %v284 = vunpack.c.0.s8 %v283
    %v285 = vlaneseq
    %v286 = vshrl.u32 %v285, 7
    %v287 = vsub.s32 %v284, %v286
    %v288 = vrot.slane %v121, %v287
    %v290 = vunpack.c.l.s4 1983009808
    %v291 = vunpack.c.0.s8 %v290
    %v292 = vlaneseq
    %v293 = vshrl.u32 %v292, 7
    %v294 = vsub.s32 %v291, %v293
    %v295 = vrot.slane %v281, %v294
    %v296 = vcombine.high %v288, %v288
    %v297 = vcombine.high %v295, %v295
    %v298 = vcombine.high %v122, %v122
    %v300 = vunpack.c.l.s4 1983009808
    %v301 = vunpack.c.0.s8 %v300
    %v302 = vlaneseq
    %v303 = vshrl.u32 %v302, 7
    %v304 = vsub.s32 %v301, %v303
    %v305 = vrot.slane %v122, %v304
    %v307 = vunpack.c.l.s4 1983009808
    %v308 = vunpack.c.0.s8 %v307
    %v309 = vlaneseq
    %v310 = vshrl.u32 %v309, 7
    %v311 = vsub.s32 %v308, %v310
    %v312 = vrot.slane %v298, %v311
    %v313 = vcombine.high %v305, %v305
    %v314 = vcombine.high %v312, %v312
    %v315 = vcombine.high %v123, %v123
    %v317 = vunpack.c.l.s4 1983009808
    %v318 = vunpack.c.0.s8 %v317
    %v319 = vlaneseq
    %v320 = vshrl.u32 %v319, 7
    %v321 = vsub.s32 %v318, %v320
    %v322 = vrot.slane %v123, %v321
    %v324 = vunpack.c.l.s4 1983009808
    %v325 = vunpack.c.0.s8 %v324
    %v326 = vlaneseq
    %v327 = vshrl.u32 %v326, 7
    %v328 = vsub.s32 %v325, %v327
    %v329 = vrot.slane %v315, %v328
    %v330 = vcombine.high %v322, %v322
    %v331 = vcombine.high %v329, %v329
    %v332 = vcombine.high %v124, %v124
    %v334 = vunpack.c.l.s4 1983009808
    %v335 = vunpack.c.0.s8 %v334
    %v336 = vlaneseq
    %v337 = vshrl.u32 %v336, 7
    %v338 = vsub.s32 %v335, %v337
    %v339 = vrot.slane %v124, %v338
    %v341 = vunpack.c.l.s4 1983009808
    %v342 = vunpack.c.0.s8 %v341
    %v343 = vlaneseq
    %v344 = vshrl.u32 %v343, 7
    %v345 = vsub.s32 %v342, %v344
    %v346 = vrot.slane %v332, %v345
    %v347 = vcombine.high %v339, %v339
    %v348 = vcombine.high %v346, %v346
    %v349 = vcombine.high %v125, %v125
    %v351 = vunpack.c.l.s4 1983009808
    %v352 = vunpack.c.0.s8 %v351
    %v353 = vlaneseq
    %v354 = vshrl.u32 %v353, 7
    %v355 = vsub.s32 %v352, %v354
    %v356 = vrot.slane %v125, %v355
    %v358 = vunpack.c.l.s4 1983009808
    %v359 = vunpack.c.0.s8 %v358
    %v360 = vlaneseq
    %v361 = vshrl.u32 %v360, 7
    %v362 = vsub.s32 %v359, %v361
    %v363 = vrot.slane %v349, %v362
    %v364 = vcombine.high %v356, %v356
    %v365 = vcombine.high %v363, %v363
    %v366 = vcombine.high %v126, %v126
    %v368 = vunpack.c.l.s4 1983009808
    %v369 = vunpack.c.0.s8 %v368
    %v370 = vlaneseq
    %v371 = vshrl.u32 %v370, 7
    %v372 = vsub.s32 %v369, %v371
    %v373 = vrot.slane %v126, %v372
    %v375 = vunpack.c.l.s4 1983009808
    %v376 = vunpack.c.0.s8 %v375
    %v377 = vlaneseq
    %v378 = vshrl.u32 %v377, 7
    %v379 = vsub.s32 %v376, %v378
    %v380 = vrot.slane %v366, %v379
    %v381 = vcombine.high %v373, %v373
    %v382 = vcombine.high %v380, %v380
    %v383 = vcombine.high %v127, %v127
    %v385 = vunpack.c.l.s4 1983009808
    %v386 = vunpack.c.0.s8 %v385
    %v387 = vlaneseq
    %v388 = vshrl.u32 %v387, 7
    %v389 = vsub.s32 %v386, %v388
    %v390 = vrot.slane %v127, %v389
    %v392 = vunpack.c.l.s4 1983009808
    %v393 = vunpack.c.0.s8 %v392
    %v394 = vlaneseq
    %v395 = vshrl.u32 %v394, 7
    %v396 = vsub.s32 %v393, %v395
    %v397 = vrot.slane %v383, %v396
    %v398 = vcombine.high %v390, %v390
    %v399 = vcombine.high %v397, %v397
    %v400 = vcombine.high %v128, %v128
    %v402 = vunpack.c.l.s4 1983009808
    %v403 = vunpack.c.0.s8 %v402
    %v404 = vlaneseq
    %v405 = vshrl.u32 %v404, 7
    %v406 = vsub.s32 %v403, %v405
    %v407 = vrot.slane %v128, %v406
    %v409 = vunpack.c.l.s4 1983009808
    %v410 = vunpack.c.0.s8 %v409
    %v411 = vlaneseq
    %v412 = vshrl.u32 %v411, 7
    %v413 = vsub.s32 %v410, %v412
    %v414 = vrot.slane %v400, %v413
    %v415 = vcombine.high %v407, %v407
    %v416 = vcombine.high %v414, %v414
    %v417 = vcombine.high %v129, %v129
    %v419 = vunpack.c.l.s4 1983009808
    %v420 = vunpack.c.0.s8 %v419
    %v421 = vlaneseq
    %v422 = vshrl.u32 %v421, 7
    %v423 = vsub.s32 %v420, %v422
    %v424 = vrot.slane %v129, %v423
    %v426 = vunpack.c.l.s4 1983009808
    %v427 = vunpack.c.0.s8 %v426
    %v428 = vlaneseq
    %v429 = vshrl.u32 %v428, 7
    %v430 = vsub.s32 %v427, %v429
    %v431 = vrot.slane %v417, %v430
    %v432 = vcombine.high %v424, %v424
    %v433 = vcombine.high %v431, %v431
    %v434 = vcombine.high %v130, %v130
    %v436 = vunpack.c.l.s4 1983009808
    %v437 = vunpack.c.0.s8 %v436
    %v438 = vlaneseq
    %v439 = vshrl.u32 %v438, 7
    %v440 = vsub.s32 %v437, %v439
    %v441 = vrot.slane %v130, %v440
    %v443 = vunpack.c.l.s4 1983009808
    %v444 = vunpack.c.0.s8 %v443
    %v445 = vlaneseq
    %v446 = vshrl.u32 %v445, 7
    %v447 = vsub.s32 %v444, %v446
    %v448 = vrot.slane %v434, %v447
    %v449 = vcombine.high %v441, %v441
    %v450 = vcombine.high %v448, %v448
    %v451 = vcombine.high %v131, %v131
    %v453 = vunpack.c.l.s4 1983009808
    %v454 = vunpack.c.0.s8 %v453
    %v455 = vlaneseq
    %v456 = vshrl.u32 %v455, 7
    %v457 = vsub.s32 %v454, %v456
    %v458 = vrot.slane %v131, %v457
    %v460 = vunpack.c.l.s4 1983009808
    %v461 = vunpack.c.0.s8 %v460
    %v462 = vlaneseq
    %v463 = vshrl.u32 %v462, 7
    %v464 = vsub.s32 %v461, %v463
    %v465 = vrot.slane %v451, %v464
    %v466 = vcombine.high %v458, %v458
    %v467 = vcombine.high %v465, %v465
    %v468 = vcombine.high %v132, %v132
    %v470 = vunpack.c.l.s4 1983009808
    %v471 = vunpack.c.0.s8 %v470
    %v472 = vlaneseq
    %v473 = vshrl.u32 %v472, 7
    %v474 = vsub.s32 %v471, %v473
    %v475 = vrot.slane %v132, %v474
    %v477 = vunpack.c.l.s4 1983009808
    %v478 = vunpack.c.0.s8 %v477
    %v479 = vlaneseq
    %v480 = vshrl.u32 %v479, 7
    %v481 = vsub.s32 %v478, %v480
    %v482 = vrot.slane %v468, %v481
    %v483 = vcombine.high %v475, %v475
    %v484 = vcombine.high %v482, %v482
    %v485 = vcombine.high %v133, %v133
    %v487 = vunpack.c.l.s4 1983009808
    %v488 = vunpack.c.0.s8 %v487
    %v489 = vlaneseq
    %v490 = vshrl.u32 %v489, 7
    %v491 = vsub.s32 %v488, %v490
    %v492 = vrot.slane %v133, %v491
    %v494 = vunpack.c.l.s4 1983009808
    %v495 = vunpack.c.0.s8 %v494
    %v496 = vlaneseq
    %v497 = vshrl.u32 %v496, 7
    %v498 = vsub.s32 %v495, %v497
    %v499 = vrot.slane %v485, %v498
    %v500 = vcombine.high %v492, %v492
    %v501 = vcombine.high %v499, %v499
    %v502 = vcombine.high %v134, %v134
    %v504 = vunpack.c.l.s4 1983009808
    %v505 = vunpack.c.0.s8 %v504
    %v506 = vlaneseq
    %v507 = vshrl.u32 %v506, 7
    %v508 = vsub.s32 %v505, %v507
    %v509 = vrot.slane %v134, %v508
    %v511 = vunpack.c.l.s4 1983009808
    %v512 = vunpack.c.0.s8 %v511
    %v513 = vlaneseq
    %v514 = vshrl.u32 %v513, 7
    %v515 = vsub.s32 %v512, %v514
    %v516 = vrot.slane %v502, %v515
    %v517 = vcombine.high %v509, %v509
    %v518 = vcombine.high %v516, %v516
    %v519 = vcombine.high %v135, %v135
    %v521 = vunpack.c.l.s4 1983009808
    %v522 = vunpack.c.0.s8 %v521
    %v523 = vlaneseq
    %v524 = vshrl.u32 %v523, 7
    %v525 = vsub.s32 %v522, %v524
    %v526 = vrot.slane %v135, %v525
    %v528 = vunpack.c.l.s4 1983009808
    %v529 = vunpack.c.0.s8 %v528
    %v530 = vlaneseq
    %v531 = vshrl.u32 %v530, 7
    %v532 = vsub.s32 %v529, %v531
    %v533 = vrot.slane %v519, %v532
    %v534 = vcombine.high %v526, %v526
    %v535 = vcombine.high %v533, %v533
    %v536 = vcombine.high %v136, %v136
    %v538 = vunpack.c.l.s4 1983009808
    %v539 = vunpack.c.0.s8 %v538
    %v540 = vlaneseq
    %v541 = vshrl.u32 %v540, 7
    %v542 = vsub.s32 %v539, %v541
    %v543 = vrot.slane %v136, %v542
    %v545 = vunpack.c.l.s4 1983009808
    %v546 = vunpack.c.0.s8 %v545
    %v547 = vlaneseq
    %v548 = vshrl.u32 %v547, 7
    %v549 = vsub.s32 %v546, %v548
    %v550 = vrot.slane %v536, %v549
    %v551 = vcombine.high %v543, %v543
    %v552 = vcombine.high %v550, %v550
    %v553 = vcombine.high %v137, %v137
    %v555 = vunpack.c.l.s4 1983009808
    %v556 = vunpack.c.0.s8 %v555
    %v557 = vlaneseq
    %v558 = vshrl.u32 %v557, 7
    %v559 = vsub.s32 %v556, %v558
    %v560 = vrot.slane %v137, %v559
    %v562 = vunpack.c.l.s4 1983009808
    %v563 = vunpack.c.0.s8 %v562
    %v564 = vlaneseq
    %v565 = vshrl.u32 %v564, 7
    %v566 = vsub.s32 %v563, %v565
    %v567 = vrot.slane %v553, %v566
    %v568 = vcombine.high %v560, %v560
    %v569 = vcombine.high %v567, %v567
    %v666 = vpack.c.bf16 %v169, %v169
    %v667 = vpack.c.bf16 %v177, %v177
    %v668 = vpack.c.bf16 %v176, %v176
    %v669 = vpack.c.bf16 %v178, %v178
    %v670 = vpack.c.bf16 %v186, %v186
    %v671 = vpack.c.bf16 %v194, %v194
    %v672 = vpack.c.bf16 %v193, %v193
    %v673 = vpack.c.bf16 %v195, %v195
    %v674 = vpack.c.bf16 %v203, %v203
    %v675 = vpack.c.bf16 %v211, %v211
    %v676 = vpack.c.bf16 %v210, %v210
    %v677 = vpack.c.bf16 %v212, %v212
    %v678 = vpack.c.bf16 %v220, %v220
    %v679 = vpack.c.bf16 %v228, %v228
    %v680 = vpack.c.bf16 %v227, %v227
    %v681 = vpack.c.bf16 %v229, %v229
    %v682 = vpack.c.bf16 %v237, %v237
    %v683 = vpack.c.bf16 %v245, %v245
    %v684 = vpack.c.bf16 %v244, %v244
    %v685 = vpack.c.bf16 %v246, %v246
    %v686 = vpack.c.bf16 %v254, %v254
    %v687 = vpack.c.bf16 %v262, %v262
    %v688 = vpack.c.bf16 %v261, %v261
    %v689 = vpack.c.bf16 %v263, %v263
    %v690 = vpack.c.bf16 %v271, %v271
    %v691 = vpack.c.bf16 %v279, %v279
    %v692 = vpack.c.bf16 %v278, %v278
    %v693 = vpack.c.bf16 %v280, %v280
    %v694 = vpack.c.bf16 %v288, %v288
    %v695 = vpack.c.bf16 %v296, %v296
    %v696 = vpack.c.bf16 %v295, %v295
    %v697 = vpack.c.bf16 %v297, %v297
    %v698 = vpack.c.bf16 %v305, %v305
    %v699 = vpack.c.bf16 %v313, %v313
    %v700 = vpack.c.bf16 %v312, %v312
    %v701 = vpack.c.bf16 %v314, %v314
    %v702 = vpack.c.bf16 %v322, %v322
    %v703 = vpack.c.bf16 %v330, %v330
    %v704 = vpack.c.bf16 %v329, %v329
    %v705 = vpack.c.bf16 %v331, %v331
    %v706 = vpack.c.bf16 %v339, %v339
    %v707 = vpack.c.bf16 %v347, %v347
    %v708 = vpack.c.bf16 %v346, %v346
    %v709 = vpack.c.bf16 %v348, %v348
    %v710 = vpack.c.bf16 %v356, %v356
    %v711 = vpack.c.bf16 %v364, %v364
    %v712 = vpack.c.bf16 %v363, %v363
    %v713 = vpack.c.bf16 %v365, %v365
    %v714 = vpack.c.bf16 %v373, %v373
    %v715 = vpack.c.bf16 %v381, %v381
    %v716 = vpack.c.bf16 %v380, %v380
    %v717 = vpack.c.bf16 %v382, %v382
    %v718 = vpack.c.bf16 %v390, %v390
    %v719 = vpack.c.bf16 %v398, %v398
    %v720 = vpack.c.bf16 %v397, %v397
    %v721 = vpack.c.bf16 %v399, %v399
    %v722 = vpack.c.bf16 %v407, %v407
    %v723 = vpack.c.bf16 %v415, %v415
    %v724 = vpack.c.bf16 %v414, %v414
    %v725 = vpack.c.bf16 %v416, %v416
    %v726 = vpack.c.bf16 %v424, %v424
    %v727 = vpack.c.bf16 %v432, %v432
    %v728 = vpack.c.bf16 %v431, %v431
    %v729 = vpack.c.bf16 %v433, %v433
    %v730 = vpack.c.bf16 %v441, %v441
    %v731 = vpack.c.bf16 %v449, %v449
    %v732 = vpack.c.bf16 %v448, %v448
    %v733 = vpack.c.bf16 %v450, %v450
    %v734 = vpack.c.bf16 %v458, %v458
    %v735 = vpack.c.bf16 %v466, %v466
    %v736 = vpack.c.bf16 %v465, %v465
    %v737 = vpack.c.bf16 %v467, %v467
    %v738 = vpack.c.bf16 %v475, %v475
    %v739 = vpack.c.bf16 %v483, %v483
    %v740 = vpack.c.bf16 %v482, %v482
    %v741 = vpack.c.bf16 %v484, %v484
    %v742 = vpack.c.bf16 %v492, %v492
    %v743 = vpack.c.bf16 %v500, %v500
    %v744 = vpack.c.bf16 %v499, %v499
    %v745 = vpack.c.bf16 %v501, %v501
    %v746 = vpack.c.bf16 %v509, %v509
    %v747 = vpack.c.bf16 %v517, %v517
    %v748 = vpack.c.bf16 %v516, %v516
    %v749 = vpack.c.bf16 %v518, %v518
    %v750 = vpack.c.bf16 %v526, %v526
    %v751 = vpack.c.bf16 %v534, %v534
    %v752 = vpack.c.bf16 %v533, %v533
    %v753 = vpack.c.bf16 %v535, %v535
    %v754 = vpack.c.bf16 %v543, %v543
    %v755 = vpack.c.bf16 %v551, %v551
    %v756 = vpack.c.bf16 %v550, %v550
    %v757 = vpack.c.bf16 %v552, %v552
    %v758 = vpack.c.bf16 %v560, %v560
    %v759 = vpack.c.bf16 %v568, %v568
    %v760 = vpack.c.bf16 %v567, %v567
    %v761 = vpack.c.bf16 %v569, %v569
    %v762 = vld [vmem:[#allocation2] sm:$0x3]
    %v763 = vld [vmem:[#allocation6] sm:$0xf]
    %v764 = vld [vmem:[#allocation6 + $0x4] sm:$0xf]
    %v765 = vld [vmem:[#allocation6 + $0x8] sm:$0xf]
    %v766 = vld [vmem:[#allocation6 + $0xc] sm:$0xf]
    %v767 = vld [vmem:[#allocation6 + $0x10] sm:$0xf]
    %v768 = vld [vmem:[#allocation6 + $0x14] sm:$0xf]
    %v769 = vld [vmem:[#allocation6 + $0x18] sm:$0xf]
    %v770 = vld [vmem:[#allocation6 + $0x1c] sm:$0xf]
    %v771 = vld [vmem:[#allocation6 + $0x20] sm:$0xf]
    %v772 = vld [vmem:[#allocation6 + $0x24] sm:$0xf]
    %v773 = vld [vmem:[#allocation6 + $0x28] sm:$0xf]
    %v774 = vld [vmem:[#allocation6 + $0x2c] sm:$0xf]
    %v775 = vld [vmem:[#allocation6 + $0x30] sm:$0xf]
    %v776 = vld [vmem:[#allocation6 + $0x34] sm:$0xf]
    %v777 = vld [vmem:[#allocation6 + $0x38] sm:$0xf]
    %v778 = vld [vmem:[#allocation6 + $0x3c] sm:$0xf]
    %v779 = vld [vmem:[#allocation6 + $0x40] sm:$0xf]
    %v780 = vld [vmem:[#allocation6 + $0x44] sm:$0xf]
    %v781 = vld [vmem:[#allocation6 + $0x48] sm:$0xf]
    %v782 = vld [vmem:[#allocation6 + $0x4c] sm:$0xf]
    %v783 = vld [vmem:[#allocation6 + $0x50] sm:$0xf]
    %v784 = vld [vmem:[#allocation6 + $0x54] sm:$0xf]
    %v785 = vld [vmem:[#allocation6 + $0x58] sm:$0xf]
    %v786 = vld [vmem:[#allocation6 + $0x5c] sm:$0xf]
    %v787 = vld [vmem:[#allocation6 + $0x60] sm:$0xf]
    %v788 = vld [vmem:[#allocation6 + $0x64] sm:$0xf]
    %v789 = vld [vmem:[#allocation6 + $0x68] sm:$0xf]
    %v790 = vld [vmem:[#allocation6 + $0x6c] sm:$0xf]
    %v791 = vld [vmem:[#allocation6 + $0x70] sm:$0xf]
    %v792 = vld [vmem:[#allocation6 + $0x74] sm:$0xf]
    %v793 = vld [vmem:[#allocation6 + $0x78] sm:$0xf]
    %v794 = vld [vmem:[#allocation6 + $0x7c] sm:$0xf]
    %v795 = vld [vmem:[#allocation6 + $0x80] sm:$0xf]
    %v796 = vld [vmem:[#allocation6 + $0x84] sm:$0xf]
    %v797 = vld [vmem:[#allocation6 + $0x88] sm:$0xf]
    %v798 = vld [vmem:[#allocation6 + $0x8c] sm:$0xf]
    %v799 = vld [vmem:[#allocation6 + $0x90] sm:$0xf]
    %v800 = vld [vmem:[#allocation6 + $0x94] sm:$0xf]
    %v801 = vld [vmem:[#allocation6 + $0x98] sm:$0xf]
    %v802 = vld [vmem:[#allocation6 + $0x9c] sm:$0xf]
    %v803 = vld [vmem:[#allocation6 + $0xa0] sm:$0xf]
    %v804 = vld [vmem:[#allocation6 + $0xa4] sm:$0xf]
    %v805 = vld [vmem:[#allocation6 + $0xa8] sm:$0xf]
    %v806 = vld [vmem:[#allocation6 + $0xac] sm:$0xf]
    %v807 = vld [vmem:[#allocation6 + $0xb0] sm:$0xf]
    %v808 = vld [vmem:[#allocation6 + $0xb4] sm:$0xf]
    %v809 = vld [vmem:[#allocation6 + $0xb8] sm:$0xf]
    %v810 = vld [vmem:[#allocation6 + $0xbc] sm:$0xf]
    %v811 = vld [vmem:[#allocation6 + $0xc0] sm:$0xf]
    %v812 = vld [vmem:[#allocation6 + $0xc4] sm:$0xf]
    %v813 = vld [vmem:[#allocation6 + $0xc8] sm:$0xf]
    %v814 = vld [vmem:[#allocation6 + $0xcc] sm:$0xf]
    %v815 = vld [vmem:[#allocation6 + $0xd0] sm:$0xf]
    %v816 = vld [vmem:[#allocation6 + $0xd4] sm:$0xf]
    %v817 = vld [vmem:[#allocation6 + $0xd8] sm:$0xf]
    %v818 = vld [vmem:[#allocation6 + $0xdc] sm:$0xf]
    %v819 = vld [vmem:[#allocation6 + $0xe0] sm:$0xf]
    %v820 = vld [vmem:[#allocation6 + $0xe4] sm:$0xf]
    %v821 = vld [vmem:[#allocation6 + $0xe8] sm:$0xf]
    %v822 = vld [vmem:[#allocation6 + $0xec] sm:$0xf]
    %v823 = vld [vmem:[#allocation6 + $0xf0] sm:$0xf]
    %v824 = vld [vmem:[#allocation6 + $0xf4] sm:$0xf]
    %v825 = vld [vmem:[#allocation6 + $0xf8] sm:$0xf]
    %v826 = vld [vmem:[#allocation6 + $0xfc] sm:$0xf]
    %v827 = vld [vmem:[#allocation6 + $0x100] sm:$0xf]
    %v828 = vld [vmem:[#allocation6 + $0x104] sm:$0xf]
    %v829 = vld [vmem:[#allocation6 + $0x108] sm:$0xf]
    %v830 = vld [vmem:[#allocation6 + $0x10c] sm:$0xf]
    %v831 = vld [vmem:[#allocation6 + $0x110] sm:$0xf]
    %v832 = vld [vmem:[#allocation6 + $0x114] sm:$0xf]
    %v833 = vld [vmem:[#allocation6 + $0x118] sm:$0xf]
    %v834 = vld [vmem:[#allocation6 + $0x11c] sm:$0xf]
    %v835 = vld [vmem:[#allocation6 + $0x120] sm:$0xf]
    %v836 = vld [vmem:[#allocation6 + $0x124] sm:$0xf]
    %v837 = vld [vmem:[#allocation6 + $0x128] sm:$0xf]
    %v838 = vld [vmem:[#allocation6 + $0x12c] sm:$0xf]
    %v839 = vld [vmem:[#allocation6 + $0x130] sm:$0xf]
    %v840 = vld [vmem:[#allocation6 + $0x134] sm:$0xf]
    %v841 = vld [vmem:[#allocation6 + $0x138] sm:$0xf]
    %v842 = vld [vmem:[#allocation6 + $0x13c] sm:$0xf]
    %v843 = vld [vmem:[#allocation6 + $0x140] sm:$0xf]
    %v844 = vld [vmem:[#allocation6 + $0x144] sm:$0xf]
    %v845 = vld [vmem:[#allocation6 + $0x148] sm:$0xf]
    %v846 = vld [vmem:[#allocation6 + $0x14c] sm:$0xf]
    %v847 = vld [vmem:[#allocation6 + $0x150] sm:$0xf]
    %v848 = vld [vmem:[#allocation6 + $0x154] sm:$0xf]
    %v849 = vld [vmem:[#allocation6 + $0x158] sm:$0xf]
    %v850 = vld [vmem:[#allocation6 + $0x15c] sm:$0xf]
    %v851 = vld [vmem:[#allocation6 + $0x160] sm:$0xf]
    %v852 = vld [vmem:[#allocation6 + $0x164] sm:$0xf]
    %v853 = vld [vmem:[#allocation6 + $0x168] sm:$0xf]
    %v854 = vld [vmem:[#allocation6 + $0x16c] sm:$0xf]
    %v855 = vld [vmem:[#allocation6 + $0x170] sm:$0xf]
    %v856 = vld [vmem:[#allocation6 + $0x174] sm:$0xf]
    %v857 = vld [vmem:[#allocation6 + $0x178] sm:$0xf]
    %v858 = vld [vmem:[#allocation6 + $0x17c] sm:$0xf]
    %v859 = vld [vmem:[#allocation6 + $0x180] sm:$0xf]
    %v860 = vld [vmem:[#allocation6 + $0x184] sm:$0xf]
    %v861 = vld [vmem:[#allocation6 + $0x188] sm:$0xf]
    %v862 = vld [vmem:[#allocation6 + $0x18c] sm:$0xf]
    %v863 = vld [vmem:[#allocation6 + $0x190] sm:$0xf]
    %v864 = vld [vmem:[#allocation6 + $0x194] sm:$0xf]
    %v865 = vld [vmem:[#allocation6 + $0x198] sm:$0xf]
    %v866 = vld [vmem:[#allocation6 + $0x19c] sm:$0xf]
    %v867 = vld [vmem:[#allocation6 + $0x1a0] sm:$0xf]
    %v868 = vld [vmem:[#allocation6 + $0x1a4] sm:$0xf]
    %v869 = vld [vmem:[#allocation6 + $0x1a8] sm:$0xf]
    %v870 = vld [vmem:[#allocation6 + $0x1ac] sm:$0xf]
    %v871 = vld [vmem:[#allocation6 + $0x1b0] sm:$0xf]
    %v872 = vld [vmem:[#allocation6 + $0x1b4] sm:$0xf]
    %v873 = vld [vmem:[#allocation6 + $0x1b8] sm:$0xf]
    %v874 = vld [vmem:[#allocation6 + $0x1bc] sm:$0xf]
    %v875 = vld [vmem:[#allocation6 + $0x1c0] sm:$0xf]
    %v876 = vld [vmem:[#allocation6 + $0x1c4] sm:$0xf]
    %v877 = vld [vmem:[#allocation6 + $0x1c8] sm:$0xf]
    %v878 = vld [vmem:[#allocation6 + $0x1cc] sm:$0xf]
    %v879 = vld [vmem:[#allocation6 + $0x1d0] sm:$0xf]
    %v880 = vld [vmem:[#allocation6 + $0x1d4] sm:$0xf]
    %v881 = vld [vmem:[#allocation6 + $0x1d8] sm:$0xf]
    %v882 = vld [vmem:[#allocation6 + $0x1dc] sm:$0xf]
    %v883 = vld [vmem:[#allocation6 + $0x1e0] sm:$0xf]
    %v884 = vld [vmem:[#allocation6 + $0x1e4] sm:$0xf]
    %v885 = vld [vmem:[#allocation6 + $0x1e8] sm:$0xf]
    %v886 = vld [vmem:[#allocation6 + $0x1ec] sm:$0xf]
    %v887 = vld [vmem:[#allocation6 + $0x1f0] sm:$0xf]
    %v888 = vld [vmem:[#allocation6 + $0x1f4] sm:$0xf]
    %v889 = vld [vmem:[#allocation6 + $0x1f8] sm:$0xf]
    %v890 = vld [vmem:[#allocation6 + $0x1fc] sm:$0xf]
    %v891 = vld [vmem:[#allocation6 + $0x200] sm:$0xf]
    %v892 = vld [vmem:[#allocation6 + $0x204] sm:$0xf]
    %v893 = vld [vmem:[#allocation6 + $0x208] sm:$0xf]
    %v894 = vld [vmem:[#allocation6 + $0x20c] sm:$0xf]
    %v895 = vld [vmem:[#allocation6 + $0x210] sm:$0xf]
    %v896 = vld [vmem:[#allocation6 + $0x214] sm:$0xf]
    %v897 = vld [vmem:[#allocation6 + $0x218] sm:$0xf]
    %v898 = vld [vmem:[#allocation6 + $0x21c] sm:$0xf]
    %v899 = vld [vmem:[#allocation6 + $0x220] sm:$0xf]
    %v900 = vld [vmem:[#allocation6 + $0x224] sm:$0xf]
    %v901 = vld [vmem:[#allocation6 + $0x228] sm:$0xf]
    %v902 = vld [vmem:[#allocation6 + $0x22c] sm:$0xf]
    %v903 = vld [vmem:[#allocation6 + $0x230] sm:$0xf]
    %v904 = vld [vmem:[#allocation6 + $0x234] sm:$0xf]
    %v905 = vld [vmem:[#allocation6 + $0x238] sm:$0xf]
    %v906 = vld [vmem:[#allocation6 + $0x23c] sm:$0xf]
    %v907 = vld [vmem:[#allocation6 + $0x240] sm:$0xf]
    %v908 = vld [vmem:[#allocation6 + $0x244] sm:$0xf]
    %v909 = vld [vmem:[#allocation6 + $0x248] sm:$0xf]
    %v910 = vld [vmem:[#allocation6 + $0x24c] sm:$0xf]
    %v911 = vld [vmem:[#allocation6 + $0x250] sm:$0xf]
    %v912 = vld [vmem:[#allocation6 + $0x254] sm:$0xf]
    %v913 = vld [vmem:[#allocation6 + $0x258] sm:$0xf]
    %v914 = vld [vmem:[#allocation6 + $0x25c] sm:$0xf]
    %v915 = vld [vmem:[#allocation6 + $0x260] sm:$0xf]
    %v916 = vld [vmem:[#allocation6 + $0x264] sm:$0xf]
    %v917 = vld [vmem:[#allocation6 + $0x268] sm:$0xf]
    %v918 = vld [vmem:[#allocation6 + $0x26c] sm:$0xf]
    %v919 = vld [vmem:[#allocation6 + $0x270] sm:$0xf]
    %v920 = vld [vmem:[#allocation6 + $0x274] sm:$0xf]
    %v921 = vld [vmem:[#allocation6 + $0x278] sm:$0xf]
    %v922 = vld [vmem:[#allocation6 + $0x27c] sm:$0xf]
    %v923 = vld [vmem:[#allocation6 + $0x280] sm:$0xf]
    %v924 = vld [vmem:[#allocation6 + $0x284] sm:$0xf]
    %v925 = vld [vmem:[#allocation6 + $0x288] sm:$0xf]
    %v926 = vld [vmem:[#allocation6 + $0x28c] sm:$0xf]
    %v927 = vld [vmem:[#allocation6 + $0x290] sm:$0xf]
    %v928 = vld [vmem:[#allocation6 + $0x294] sm:$0xf]
    %v929 = vld [vmem:[#allocation6 + $0x298] sm:$0xf]
    %v930 = vld [vmem:[#allocation6 + $0x29c] sm:$0xf]
    %v931 = vld [vmem:[#allocation6 + $0x2a0] sm:$0xf]
    %v932 = vld [vmem:[#allocation6 + $0x2a4] sm:$0xf]
    %v933 = vld [vmem:[#allocation6 + $0x2a8] sm:$0xf]
    %v934 = vld [vmem:[#allocation6 + $0x2ac] sm:$0xf]
    %v935 = vld [vmem:[#allocation6 + $0x2b0] sm:$0xf]
    %v936 = vld [vmem:[#allocation6 + $0x2b4] sm:$0xf]
    %v937 = vld [vmem:[#allocation6 + $0x2b8] sm:$0xf]
    %v938 = vld [vmem:[#allocation6 + $0x2bc] sm:$0xf]
    %v939 = vld [vmem:[#allocation6 + $0x2c0] sm:$0xf]
    %v940 = vld [vmem:[#allocation6 + $0x2c4] sm:$0xf]
    %v941 = vld [vmem:[#allocation6 + $0x2c8] sm:$0xf]
    %v942 = vld [vmem:[#allocation6 + $0x2cc] sm:$0xf]
    %v943 = vld [vmem:[#allocation6 + $0x2d0] sm:$0xf]
    %v944 = vld [vmem:[#allocation6 + $0x2d4] sm:$0xf]
    %v945 = vld [vmem:[#allocation6 + $0x2d8] sm:$0xf]
    %v946 = vld [vmem:[#allocation6 + $0x2dc] sm:$0xf]
    %v947 = vld [vmem:[#allocation6 + $0x2e0] sm:$0xf]
    %v948 = vld [vmem:[#allocation6 + $0x2e4] sm:$0xf]
    %v949 = vld [vmem:[#allocation6 + $0x2e8] sm:$0xf]
    %v950 = vld [vmem:[#allocation6 + $0x2ec] sm:$0xf]
    %v951 = vld [vmem:[#allocation6 + $0x2f0] sm:$0xf]
    %v952 = vld [vmem:[#allocation6 + $0x2f4] sm:$0xf]
    %v953 = vld [vmem:[#allocation6 + $0x2f8] sm:$0xf]
    %v954 = vld [vmem:[#allocation6 + $0x2fc] sm:$0xf]
    %v955 = vld [vmem:[#allocation6 + $0x300] sm:$0xf]
    %v956 = vld [vmem:[#allocation6 + $0x304] sm:$0xf]
    %v957 = vld [vmem:[#allocation6 + $0x308] sm:$0xf]
    %v958 = vld [vmem:[#allocation6 + $0x30c] sm:$0xf]
    %v959 = vld [vmem:[#allocation6 + $0x310] sm:$0xf]
    %v960 = vld [vmem:[#allocation6 + $0x314] sm:$0xf]
    %v961 = vld [vmem:[#allocation6 + $0x318] sm:$0xf]
    %v962 = vld [vmem:[#allocation6 + $0x31c] sm:$0xf]
    %v963 = vld [vmem:[#allocation6 + $0x320] sm:$0xf]
    %v964 = vld [vmem:[#allocation6 + $0x324] sm:$0xf]
    %v965 = vld [vmem:[#allocation6 + $0x328] sm:$0xf]
    %v966 = vld [vmem:[#allocation6 + $0x32c] sm:$0xf]
    %v967 = vld [vmem:[#allocation6 + $0x330] sm:$0xf]
    %v968 = vld [vmem:[#allocation6 + $0x334] sm:$0xf]
    %v969 = vld [vmem:[#allocation6 + $0x338] sm:$0xf]
    %v970 = vld [vmem:[#allocation6 + $0x33c] sm:$0xf]
    %v971 = vld [vmem:[#allocation6 + $0x340] sm:$0xf]
    %v972 = vld [vmem:[#allocation6 + $0x344] sm:$0xf]
    %v973 = vld [vmem:[#allocation6 + $0x348] sm:$0xf]
    %v974 = vld [vmem:[#allocation6 + $0x34c] sm:$0xf]
    %v975 = vld [vmem:[#allocation6 + $0x350] sm:$0xf]
    %v976 = vld [vmem:[#allocation6 + $0x354] sm:$0xf]
    %v977 = vld [vmem:[#allocation6 + $0x358] sm:$0xf]
    %v978 = vld [vmem:[#allocation6 + $0x35c] sm:$0xf]
    %v979 = vld [vmem:[#allocation6 + $0x360] sm:$0xf]
    %v980 = vld [vmem:[#allocation6 + $0x364] sm:$0xf]
    %v981 = vld [vmem:[#allocation6 + $0x368] sm:$0xf]
    %v982 = vld [vmem:[#allocation6 + $0x36c] sm:$0xf]
    %v983 = vld [vmem:[#allocation6 + $0x370] sm:$0xf]
    %v984 = vld [vmem:[#allocation6 + $0x374] sm:$0xf]
    %v985 = vld [vmem:[#allocation6 + $0x378] sm:$0xf]
    %v986 = vld [vmem:[#allocation6 + $0x37c] sm:$0xf]
    %v987 = vld [vmem:[#allocation6 + $0x380] sm:$0xf]
    %v988 = vld [vmem:[#allocation6 + $0x384] sm:$0xf]
    %v989 = vld [vmem:[#allocation6 + $0x388] sm:$0xf]
    %v990 = vld [vmem:[#allocation6 + $0x38c] sm:$0xf]
    %v991 = vld [vmem:[#allocation6 + $0x390] sm:$0xf]
    %v992 = vld [vmem:[#allocation6 + $0x394] sm:$0xf]
    %v993 = vld [vmem:[#allocation6 + $0x398] sm:$0xf]
    %v994 = vld [vmem:[#allocation6 + $0x39c] sm:$0xf]
    %v995 = vld [vmem:[#allocation6 + $0x3a0] sm:$0xf]
    %v996 = vld [vmem:[#allocation6 + $0x3a4] sm:$0xf]
    %v997 = vld [vmem:[#allocation6 + $0x3a8] sm:$0xf]
    %v998 = vld [vmem:[#allocation6 + $0x3ac] sm:$0xf]
    %v999 = vld [vmem:[#allocation6 + $0x3b0] sm:$0xf]
    %v1000 = vld [vmem:[#allocation6 + $0x3b4] sm:$0xf]
    %v1001 = vld [vmem:[#allocation6 + $0x3b8] sm:$0xf]
    %v1002 = vld [vmem:[#allocation6 + $0x3bc] sm:$0xf]
    %v1003 = vld [vmem:[#allocation6 + $0x3c0] sm:$0xf]
    %v1004 = vld [vmem:[#allocation6 + $0x3c4] sm:$0xf]
    %v1005 = vld [vmem:[#allocation6 + $0x3c8] sm:$0xf]
    %v1006 = vld [vmem:[#allocation6 + $0x3cc] sm:$0xf]
    %v1007 = vld [vmem:[#allocation6 + $0x3d0] sm:$0xf]
    %v1008 = vld [vmem:[#allocation6 + $0x3d4] sm:$0xf]
    %v1009 = vld [vmem:[#allocation6 + $0x3d8] sm:$0xf]
    %v1010 = vld [vmem:[#allocation6 + $0x3dc] sm:$0xf]
    %v1011 = vld [vmem:[#allocation6 + $0x3e0] sm:$0xf]
    %v1012 = vld [vmem:[#allocation6 + $0x3e4] sm:$0xf]
    %v1013 = vld [vmem:[#allocation6 + $0x3e8] sm:$0xf]
    %v1014 = vld [vmem:[#allocation6 + $0x3ec] sm:$0xf]
    %v1015 = vld [vmem:[#allocation6 + $0x3f0] sm:$0xf]
    %v1016 = vld [vmem:[#allocation6 + $0x3f4] sm:$0xf]
    %v1017 = vld [vmem:[#allocation6 + $0x3f8] sm:$0xf]
    %v1018 = vld [vmem:[#allocation6 + $0x3fc] sm:$0xf]
    %v1019 = vld [vmem:[#allocation6 + $0x400] sm:$0xf]
    %v1020 = vld [vmem:[#allocation6 + $0x404] sm:$0xf]
    %v1021 = vld [vmem:[#allocation6 + $0x408] sm:$0xf]
    %v1022 = vld [vmem:[#allocation6 + $0x40c] sm:$0xf]
    %v1023 = vld [vmem:[#allocation6 + $0x410] sm:$0xf]
    %v1024 = vld [vmem:[#allocation6 + $0x414] sm:$0xf]
    %v1025 = vld [vmem:[#allocation6 + $0x418] sm:$0xf]
    %v1026 = vld [vmem:[#allocation6 + $0x41c] sm:$0xf]
    %v1027 = vld [vmem:[#allocation6 + $0x420] sm:$0xf]
    %v1028 = vld [vmem:[#allocation6 + $0x424] sm:$0xf]
    %v1029 = vld [vmem:[#allocation6 + $0x428] sm:$0xf]
    %v1030 = vld [vmem:[#allocation6 + $0x42c] sm:$0xf]
    %v1031 = vld [vmem:[#allocation6 + $0x430] sm:$0xf]
    %v1032 = vld [vmem:[#allocation6 + $0x434] sm:$0xf]
    %v1033 = vld [vmem:[#allocation6 + $0x438] sm:$0xf]
    %v1034 = vld [vmem:[#allocation6 + $0x43c] sm:$0xf]
    %v1035 = vld [vmem:[#allocation6 + $0x440] sm:$0xf]
    %v1036 = vld [vmem:[#allocation6 + $0x444] sm:$0xf]
    %v1037 = vld [vmem:[#allocation6 + $0x448] sm:$0xf]
    %v1038 = vld [vmem:[#allocation6 + $0x44c] sm:$0xf]
    %v1039 = vld [vmem:[#allocation6 + $0x450] sm:$0xf]
    %v1040 = vld [vmem:[#allocation6 + $0x454] sm:$0xf]
    %v1041 = vld [vmem:[#allocation6 + $0x458] sm:$0xf]
    %v1042 = vld [vmem:[#allocation6 + $0x45c] sm:$0xf]
    %v1043 = vld [vmem:[#allocation6 + $0x460] sm:$0xf]
    %v1044 = vld [vmem:[#allocation6 + $0x464] sm:$0xf]
    %v1045 = vld [vmem:[#allocation6 + $0x468] sm:$0xf]
    %v1046 = vld [vmem:[#allocation6 + $0x46c] sm:$0xf]
    %v1047 = vld [vmem:[#allocation6 + $0x470] sm:$0xf]
    %v1048 = vld [vmem:[#allocation6 + $0x474] sm:$0xf]
    %v1049 = vld [vmem:[#allocation6 + $0x478] sm:$0xf]
    %v1050 = vld [vmem:[#allocation6 + $0x47c] sm:$0xf]
    %v1051 = vld [vmem:[#allocation6 + $0x480] sm:$0xf]
    %v1052 = vld [vmem:[#allocation6 + $0x484] sm:$0xf]
    %v1053 = vld [vmem:[#allocation6 + $0x488] sm:$0xf]
    %v1054 = vld [vmem:[#allocation6 + $0x48c] sm:$0xf]
    %v1055 = vld [vmem:[#allocation6 + $0x490] sm:$0xf]
    %v1056 = vld [vmem:[#allocation6 + $0x494] sm:$0xf]
    %v1057 = vld [vmem:[#allocation6 + $0x498] sm:$0xf]
    %v1058 = vld [vmem:[#allocation6 + $0x49c] sm:$0xf]
    %v1059 = vld [vmem:[#allocation6 + $0x4a0] sm:$0xf]
    %v1060 = vld [vmem:[#allocation6 + $0x4a4] sm:$0xf]
    %v1061 = vld [vmem:[#allocation6 + $0x4a8] sm:$0xf]
    %v1062 = vld [vmem:[#allocation6 + $0x4ac] sm:$0xf]
    %v1063 = vld [vmem:[#allocation6 + $0x4b0] sm:$0xf]
    %v1064 = vld [vmem:[#allocation6 + $0x4b4] sm:$0xf]
    %v1065 = vld [vmem:[#allocation6 + $0x4b8] sm:$0xf]
    %v1066 = vld [vmem:[#allocation6 + $0x4bc] sm:$0xf]
    %v1067 = vld [vmem:[#allocation6 + $0x4c0] sm:$0xf]
    %v1068 = vld [vmem:[#allocation6 + $0x4c4] sm:$0xf]
    %v1069 = vld [vmem:[#allocation6 + $0x4c8] sm:$0xf]
    %v1070 = vld [vmem:[#allocation6 + $0x4cc] sm:$0xf]
    %v1071 = vld [vmem:[#allocation6 + $0x4d0] sm:$0xf]
    %v1072 = vld [vmem:[#allocation6 + $0x4d4] sm:$0xf]
    %v1073 = vld [vmem:[#allocation6 + $0x4d8] sm:$0xf]
    %v1074 = vld [vmem:[#allocation6 + $0x4dc] sm:$0xf]
    %v1075 = vld [vmem:[#allocation6 + $0x4e0] sm:$0xf]
    %v1076 = vld [vmem:[#allocation6 + $0x4e4] sm:$0xf]
    %v1077 = vld [vmem:[#allocation6 + $0x4e8] sm:$0xf]
    %v1078 = vld [vmem:[#allocation6 + $0x4ec] sm:$0xf]
    %v1079 = vld [vmem:[#allocation6 + $0x4f0] sm:$0xf]
    %v1080 = vld [vmem:[#allocation6 + $0x4f4] sm:$0xf]
    %v1081 = vld [vmem:[#allocation6 + $0x4f8] sm:$0xf]
    %v1082 = vld [vmem:[#allocation6 + $0x4fc] sm:$0xf]
    %v1083 = vld [vmem:[#allocation6 + $0x500] sm:$0xf]
    %v1084 = vld [vmem:[#allocation6 + $0x504] sm:$0xf]
    %v1085 = vld [vmem:[#allocation6 + $0x508] sm:$0xf]
    %v1086 = vld [vmem:[#allocation6 + $0x50c] sm:$0xf]
    %v1087 = vld [vmem:[#allocation6 + $0x510] sm:$0xf]
    %v1088 = vld [vmem:[#allocation6 + $0x514] sm:$0xf]
    %v1089 = vld [vmem:[#allocation6 + $0x518] sm:$0xf]
    %v1090 = vld [vmem:[#allocation6 + $0x51c] sm:$0xf]
    %v1091 = vld [vmem:[#allocation6 + $0x520] sm:$0xf]
    %v1092 = vld [vmem:[#allocation6 + $0x524] sm:$0xf]
    %v1093 = vld [vmem:[#allocation6 + $0x528] sm:$0xf]
    %v1094 = vld [vmem:[#allocation6 + $0x52c] sm:$0xf]
    %v1095 = vld [vmem:[#allocation6 + $0x530] sm:$0xf]
    %v1096 = vld [vmem:[#allocation6 + $0x534] sm:$0xf]
    %v1097 = vld [vmem:[#allocation6 + $0x538] sm:$0xf]
    %v1098 = vld [vmem:[#allocation6 + $0x53c] sm:$0xf]
    %v1099 = vld [vmem:[#allocation6 + $0x540] sm:$0xf]
    %v1100 = vld [vmem:[#allocation6 + $0x544] sm:$0xf]
    %v1101 = vld [vmem:[#allocation6 + $0x548] sm:$0xf]
    %v1102 = vld [vmem:[#allocation6 + $0x54c] sm:$0xf]
    %v1103 = vld [vmem:[#allocation6 + $0x550] sm:$0xf]
    %v1104 = vld [vmem:[#allocation6 + $0x554] sm:$0xf]
    %v1105 = vld [vmem:[#allocation6 + $0x558] sm:$0xf]
    %v1106 = vld [vmem:[#allocation6 + $0x55c] sm:$0xf]
    %v1107 = vld [vmem:[#allocation6 + $0x560] sm:$0xf]
    %v1108 = vld [vmem:[#allocation6 + $0x564] sm:$0xf]
    %v1109 = vld [vmem:[#allocation6 + $0x568] sm:$0xf]
    %v1110 = vld [vmem:[#allocation6 + $0x56c] sm:$0xf]
    %v1111 = vld [vmem:[#allocation6 + $0x570] sm:$0xf]
    %v1112 = vld [vmem:[#allocation6 + $0x574] sm:$0xf]
    %v1113 = vld [vmem:[#allocation6 + $0x578] sm:$0xf]
    %v1114 = vld [vmem:[#allocation6 + $0x57c] sm:$0xf]
    %v1115 = vld [vmem:[#allocation6 + $0x580] sm:$0xf]
    %v1116 = vld [vmem:[#allocation6 + $0x584] sm:$0xf]
    %v1117 = vld [vmem:[#allocation6 + $0x588] sm:$0xf]
    %v1118 = vld [vmem:[#allocation6 + $0x58c] sm:$0xf]
    %v1119 = vld [vmem:[#allocation6 + $0x590] sm:$0xf]
    %v1120 = vld [vmem:[#allocation6 + $0x594] sm:$0xf]
    %v1121 = vld [vmem:[#allocation6 + $0x598] sm:$0xf]
    %v1122 = vld [vmem:[#allocation6 + $0x59c] sm:$0xf]
    %v1123 = vld [vmem:[#allocation6 + $0x5a0] sm:$0xf]
    %v1124 = vld [vmem:[#allocation6 + $0x5a4] sm:$0xf]
    %v1125 = vld [vmem:[#allocation6 + $0x5a8] sm:$0xf]
    %v1126 = vld [vmem:[#allocation6 + $0x5ac] sm:$0xf]
    %v1127 = vld [vmem:[#allocation6 + $0x5b0] sm:$0xf]
    %v1128 = vld [vmem:[#allocation6 + $0x5b4] sm:$0xf]
    %v1129 = vld [vmem:[#allocation6 + $0x5b8] sm:$0xf]
    %v1130 = vld [vmem:[#allocation6 + $0x5bc] sm:$0xf]
    %v1131 = vld [vmem:[#allocation6 + $0x5c0] sm:$0xf]
    %v1132 = vld [vmem:[#allocation6 + $0x5c4] sm:$0xf]
    %v1133 = vld [vmem:[#allocation6 + $0x5c8] sm:$0xf]
    %v1134 = vld [vmem:[#allocation6 + $0x5cc] sm:$0xf]
    %v1135 = vld [vmem:[#allocation6 + $0x5d0] sm:$0xf]
    %v1136 = vld [vmem:[#allocation6 + $0x5d4] sm:$0xf]
    %v1137 = vld [vmem:[#allocation6 + $0x5d8] sm:$0xf]
    %v1138 = vld [vmem:[#allocation6 + $0x5dc] sm:$0xf]
    %v1139 = vld [vmem:[#allocation6 + $0x5e0] sm:$0xf]
    %v1140 = vld [vmem:[#allocation6 + $0x5e4] sm:$0xf]
    %v1141 = vld [vmem:[#allocation6 + $0x5e8] sm:$0xf]
    %v1142 = vld [vmem:[#allocation6 + $0x5ec] sm:$0xf]
    %v1143 = vld [vmem:[#allocation6 + $0x5f0] sm:$0xf]
    %v1144 = vld [vmem:[#allocation6 + $0x5f4] sm:$0xf]
    %v1145 = vld [vmem:[#allocation6 + $0x5f8] sm:$0xf]
    %v1146 = vld [vmem:[#allocation6 + $0x5fc] sm:$0xf]
    %v1147 = vld [vmem:[#allocation6 + $0x600] sm:$0xf]
    %v1148 = vld [vmem:[#allocation6 + $0x604] sm:$0xf]
    %v1149 = vld [vmem:[#allocation6 + $0x608] sm:$0xf]
    %v1150 = vld [vmem:[#allocation6 + $0x60c] sm:$0xf]
    %v1151 = vld [vmem:[#allocation6 + $0x610] sm:$0xf]
    %v1152 = vld [vmem:[#allocation6 + $0x614] sm:$0xf]
    %v1153 = vld [vmem:[#allocation6 + $0x618] sm:$0xf]
    %v1154 = vld [vmem:[#allocation6 + $0x61c] sm:$0xf]
    %v1155 = vld [vmem:[#allocation6 + $0x620] sm:$0xf]
    %v1156 = vld [vmem:[#allocation6 + $0x624] sm:$0xf]
    %v1157 = vld [vmem:[#allocation6 + $0x628] sm:$0xf]
    %v1158 = vld [vmem:[#allocation6 + $0x62c] sm:$0xf]
    %v1159 = vld [vmem:[#allocation6 + $0x630] sm:$0xf]
    %v1160 = vld [vmem:[#allocation6 + $0x634] sm:$0xf]
    %v1161 = vld [vmem:[#allocation6 + $0x638] sm:$0xf]
    %v1162 = vld [vmem:[#allocation6 + $0x63c] sm:$0xf]
    %v1163 = vld [vmem:[#allocation6 + $0x640] sm:$0xf]
    %v1164 = vld [vmem:[#allocation6 + $0x644] sm:$0xf]
    %v1165 = vld [vmem:[#allocation6 + $0x648] sm:$0xf]
    %v1166 = vld [vmem:[#allocation6 + $0x64c] sm:$0xf]
    %v1167 = vld [vmem:[#allocation6 + $0x650] sm:$0xf]
    %v1168 = vld [vmem:[#allocation6 + $0x654] sm:$0xf]
    %v1169 = vld [vmem:[#allocation6 + $0x658] sm:$0xf]
    %v1170 = vld [vmem:[#allocation6 + $0x65c] sm:$0xf]
    %v1171 = vld [vmem:[#allocation6 + $0x660] sm:$0xf]
    %v1172 = vld [vmem:[#allocation6 + $0x664] sm:$0xf]
    %v1173 = vld [vmem:[#allocation6 + $0x668] sm:$0xf]
    %v1174 = vld [vmem:[#allocation6 + $0x66c] sm:$0xf]
    %v1175 = vld [vmem:[#allocation6 + $0x670] sm:$0xf]
    %v1176 = vld [vmem:[#allocation6 + $0x674] sm:$0xf]
    %v1177 = vld [vmem:[#allocation6 + $0x678] sm:$0xf]
    %v1178 = vld [vmem:[#allocation6 + $0x67c] sm:$0xf]
    %v1179 = vld [vmem:[#allocation6 + $0x680] sm:$0xf]
    %v1180 = vld [vmem:[#allocation6 + $0x684] sm:$0xf]
    %v1181 = vld [vmem:[#allocation6 + $0x688] sm:$0xf]
    %v1182 = vld [vmem:[#allocation6 + $0x68c] sm:$0xf]
    %v1183 = vld [vmem:[#allocation6 + $0x690] sm:$0xf]
    %v1184 = vld [vmem:[#allocation6 + $0x694] sm:$0xf]
    %v1185 = vld [vmem:[#allocation6 + $0x698] sm:$0xf]
    %v1186 = vld [vmem:[#allocation6 + $0x69c] sm:$0xf]
    %v1187 = vld [vmem:[#allocation6 + $0x6a0] sm:$0xf]
    %v1188 = vld [vmem:[#allocation6 + $0x6a4] sm:$0xf]
    %v1189 = vld [vmem:[#allocation6 + $0x6a8] sm:$0xf]
    %v1190 = vld [vmem:[#allocation6 + $0x6ac] sm:$0xf]
    %v1191 = vld [vmem:[#allocation6 + $0x6b0] sm:$0xf]
    %v1192 = vld [vmem:[#allocation6 + $0x6b4] sm:$0xf]
    %v1193 = vld [vmem:[#allocation6 + $0x6b8] sm:$0xf]
    %v1194 = vld [vmem:[#allocation6 + $0x6bc] sm:$0xf]
    %v1195 = vld [vmem:[#allocation6 + $0x6c0] sm:$0xf]
    %v1196 = vld [vmem:[#allocation6 + $0x6c4] sm:$0xf]
    %v1197 = vld [vmem:[#allocation6 + $0x6c8] sm:$0xf]
    %v1198 = vld [vmem:[#allocation6 + $0x6cc] sm:$0xf]
    %v1199 = vld [vmem:[#allocation6 + $0x6d0] sm:$0xf]
    %v1200 = vld [vmem:[#allocation6 + $0x6d4] sm:$0xf]
    %v1201 = vld [vmem:[#allocation6 + $0x6d8] sm:$0xf]
    %v1202 = vld [vmem:[#allocation6 + $0x6dc] sm:$0xf]
    %v1203 = vld [vmem:[#allocation6 + $0x6e0] sm:$0xf]
    %v1204 = vld [vmem:[#allocation6 + $0x6e4] sm:$0xf]
    %v1205 = vld [vmem:[#allocation6 + $0x6e8] sm:$0xf]
    %v1206 = vld [vmem:[#allocation6 + $0x6ec] sm:$0xf]
    %v1207 = vld [vmem:[#allocation6 + $0x6f0] sm:$0xf]
    %v1208 = vld [vmem:[#allocation6 + $0x6f4] sm:$0xf]
    %v1209 = vld [vmem:[#allocation6 + $0x6f8] sm:$0xf]
    %v1210 = vld [vmem:[#allocation6 + $0x6fc] sm:$0xf]
    %v1211 = vld [vmem:[#allocation6 + $0x700] sm:$0xf]
    %v1212 = vld [vmem:[#allocation6 + $0x704] sm:$0xf]
    %v1213 = vld [vmem:[#allocation6 + $0x708] sm:$0xf]
    %v1214 = vld [vmem:[#allocation6 + $0x70c] sm:$0xf]
    %v1215 = vld [vmem:[#allocation6 + $0x710] sm:$0xf]
    %v1216 = vld [vmem:[#allocation6 + $0x714] sm:$0xf]
    %v1217 = vld [vmem:[#allocation6 + $0x718] sm:$0xf]
    %v1218 = vld [vmem:[#allocation6 + $0x71c] sm:$0xf]
    %v1219 = vld [vmem:[#allocation6 + $0x720] sm:$0xf]
    %v1220 = vld [vmem:[#allocation6 + $0x724] sm:$0xf]
    %v1221 = vld [vmem:[#allocation6 + $0x728] sm:$0xf]
    %v1222 = vld [vmem:[#allocation6 + $0x72c] sm:$0xf]
    %v1223 = vld [vmem:[#allocation6 + $0x730] sm:$0xf]
    %v1224 = vld [vmem:[#allocation6 + $0x734] sm:$0xf]
    %v1225 = vld [vmem:[#allocation6 + $0x738] sm:$0xf]
    %v1226 = vld [vmem:[#allocation6 + $0x73c] sm:$0xf]
    %v1227 = vld [vmem:[#allocation6 + $0x740] sm:$0xf]
    %v1228 = vld [vmem:[#allocation6 + $0x744] sm:$0xf]
    %v1229 = vld [vmem:[#allocation6 + $0x748] sm:$0xf]
    %v1230 = vld [vmem:[#allocation6 + $0x74c] sm:$0xf]
    %v1231 = vld [vmem:[#allocation6 + $0x750] sm:$0xf]
    %v1232 = vld [vmem:[#allocation6 + $0x754] sm:$0xf]
    %v1233 = vld [vmem:[#allocation6 + $0x758] sm:$0xf]
    %v1234 = vld [vmem:[#allocation6 + $0x75c] sm:$0xf]
    %v1235 = vld [vmem:[#allocation6 + $0x760] sm:$0xf]
    %v1236 = vld [vmem:[#allocation6 + $0x764] sm:$0xf]
    %v1237 = vld [vmem:[#allocation6 + $0x768] sm:$0xf]
    %v1238 = vld [vmem:[#allocation6 + $0x76c] sm:$0xf]
    %v1239 = vld [vmem:[#allocation6 + $0x770] sm:$0xf]
    %v1240 = vld [vmem:[#allocation6 + $0x774] sm:$0xf]
    %v1241 = vld [vmem:[#allocation6 + $0x778] sm:$0xf]
    %v1242 = vld [vmem:[#allocation6 + $0x77c] sm:$0xf]
    %v1243 = vld [vmem:[#allocation6 + $0x780] sm:$0xf]
    %v1244 = vld [vmem:[#allocation6 + $0x784] sm:$0xf]
    %v1245 = vld [vmem:[#allocation6 + $0x788] sm:$0xf]
    %v1246 = vld [vmem:[#allocation6 + $0x78c] sm:$0xf]
    %v1247 = vld [vmem:[#allocation6 + $0x790] sm:$0xf]
    %v1248 = vld [vmem:[#allocation6 + $0x794] sm:$0xf]
    %v1249 = vld [vmem:[#allocation6 + $0x798] sm:$0xf]
    %v1250 = vld [vmem:[#allocation6 + $0x79c] sm:$0xf]
    %v1251 = vld [vmem:[#allocation6 + $0x7a0] sm:$0xf]
    %v1252 = vld [vmem:[#allocation6 + $0x7a4] sm:$0xf]
    %v1253 = vld [vmem:[#allocation6 + $0x7a8] sm:$0xf]
    %v1254 = vld [vmem:[#allocation6 + $0x7ac] sm:$0xf]
    %v1255 = vld [vmem:[#allocation6 + $0x7b0] sm:$0xf]
    %v1256 = vld [vmem:[#allocation6 + $0x7b4] sm:$0xf]
    %v1257 = vld [vmem:[#allocation6 + $0x7b8] sm:$0xf]
    %v1258 = vld [vmem:[#allocation6 + $0x7bc] sm:$0xf]
    %v1259 = vld [vmem:[#allocation6 + $0x7c0] sm:$0xf]
    %v1260 = vld [vmem:[#allocation6 + $0x7c4] sm:$0xf]
    %v1261 = vld [vmem:[#allocation6 + $0x7c8] sm:$0xf]
    %v1262 = vld [vmem:[#allocation6 + $0x7cc] sm:$0xf]
    %v1263 = vld [vmem:[#allocation6 + $0x7d0] sm:$0xf]
    %v1264 = vld [vmem:[#allocation6 + $0x7d4] sm:$0xf]
    %v1265 = vld [vmem:[#allocation6 + $0x7d8] sm:$0xf]
    %v1266 = vld [vmem:[#allocation6 + $0x7dc] sm:$0xf]
    %v1267 = vld [vmem:[#allocation6 + $0x7e0] sm:$0xf]
    %v1268 = vld [vmem:[#allocation6 + $0x7e4] sm:$0xf]
    %v1269 = vld [vmem:[#allocation6 + $0x7e8] sm:$0xf]
    %v1270 = vld [vmem:[#allocation6 + $0x7ec] sm:$0xf]
    %v1271 = vld [vmem:[#allocation6 + $0x7f0] sm:$0xf]
    %v1272 = vld [vmem:[#allocation6 + $0x7f4] sm:$0xf]
    %v1273 = vld [vmem:[#allocation6 + $0x7f8] sm:$0xf]
    %v1274 = vld [vmem:[#allocation6 + $0x7fc] sm:$0xf]
    %v1275 = vld [vmem:[#allocation6 + $0x800] sm:$0xf]
    %v1276 = vld [vmem:[#allocation6 + $0x804] sm:$0xf]
    %v1277 = vld [vmem:[#allocation6 + $0x808] sm:$0xf]
    %v1278 = vld [vmem:[#allocation6 + $0x80c] sm:$0xf]
    %v1279 = vld [vmem:[#allocation6 + $0x810] sm:$0xf]
    %v1280 = vld [vmem:[#allocation6 + $0x814] sm:$0xf]
    %v1281 = vld [vmem:[#allocation6 + $0x818] sm:$0xf]
    %v1282 = vld [vmem:[#allocation6 + $0x81c] sm:$0xf]
    %v1283 = vld [vmem:[#allocation6 + $0x820] sm:$0xf]
    %v1284 = vld [vmem:[#allocation6 + $0x824] sm:$0xf]
    %v1285 = vld [vmem:[#allocation6 + $0x828] sm:$0xf]
    %v1286 = vld [vmem:[#allocation6 + $0x82c] sm:$0xf]
    %v1287 = vld [vmem:[#allocation6 + $0x830] sm:$0xf]
    %v1288 = vld [vmem:[#allocation6 + $0x834] sm:$0xf]
    %v1289 = vld [vmem:[#allocation6 + $0x838] sm:$0xf]
    %v1290 = vld [vmem:[#allocation6 + $0x83c] sm:$0xf]
    %v1291 = vld [vmem:[#allocation6 + $0x840] sm:$0xf]
    %v1292 = vld [vmem:[#allocation6 + $0x844] sm:$0xf]
    %v1293 = vld [vmem:[#allocation6 + $0x848] sm:$0xf]
    %v1294 = vld [vmem:[#allocation6 + $0x84c] sm:$0xf]
    %v1295 = vld [vmem:[#allocation6 + $0x850] sm:$0xf]
    %v1296 = vld [vmem:[#allocation6 + $0x854] sm:$0xf]
    %v1297 = vld [vmem:[#allocation6 + $0x858] sm:$0xf]
    %v1298 = vld [vmem:[#allocation6 + $0x85c] sm:$0xf]
    %v1299 = vld [vmem:[#allocation6 + $0x860] sm:$0xf]
    %v1300 = vld [vmem:[#allocation6 + $0x864] sm:$0xf]
    %v1301 = vld [vmem:[#allocation6 + $0x868] sm:$0xf]
    %v1302 = vld [vmem:[#allocation6 + $0x86c] sm:$0xf]
    %v1303 = vld [vmem:[#allocation6 + $0x870] sm:$0xf]
    %v1304 = vld [vmem:[#allocation6 + $0x874] sm:$0xf]
    %v1305 = vld [vmem:[#allocation6 + $0x878] sm:$0xf]
    %v1306 = vld [vmem:[#allocation6 + $0x87c] sm:$0xf]
    %v1307 = vld [vmem:[#allocation6 + $0x880] sm:$0xf]
    %v1308 = vld [vmem:[#allocation6 + $0x884] sm:$0xf]
    %v1309 = vld [vmem:[#allocation6 + $0x888] sm:$0xf]
    %v1310 = vld [vmem:[#allocation6 + $0x88c] sm:$0xf]
    %v1311 = vld [vmem:[#allocation6 + $0x890] sm:$0xf]
    %v1312 = vld [vmem:[#allocation6 + $0x894] sm:$0xf]
    %v1313 = vld [vmem:[#allocation6 + $0x898] sm:$0xf]
    %v1314 = vld [vmem:[#allocation6 + $0x89c] sm:$0xf]
    %v1315 = vld [vmem:[#allocation6 + $0x8a0] sm:$0xf]
    %v1316 = vld [vmem:[#allocation6 + $0x8a4] sm:$0xf]
    %v1317 = vld [vmem:[#allocation6 + $0x8a8] sm:$0xf]
    %v1318 = vld [vmem:[#allocation6 + $0x8ac] sm:$0xf]
    %v1319 = vld [vmem:[#allocation6 + $0x8b0] sm:$0xf]
    %v1320 = vld [vmem:[#allocation6 + $0x8b4] sm:$0xf]
    %v1321 = vld [vmem:[#allocation6 + $0x8b8] sm:$0xf]
    %v1322 = vld [vmem:[#allocation6 + $0x8bc] sm:$0xf]
    %v1323 = vld [vmem:[#allocation6 + $0x8c0] sm:$0xf]
    %v1324 = vld [vmem:[#allocation6 + $0x8c4] sm:$0xf]
    %v1325 = vld [vmem:[#allocation6 + $0x8c8] sm:$0xf]
    %v1326 = vld [vmem:[#allocation6 + $0x8cc] sm:$0xf]
    %v1327 = vld [vmem:[#allocation6 + $0x8d0] sm:$0xf]
    %v1328 = vld [vmem:[#allocation6 + $0x8d4] sm:$0xf]
    %v1329 = vld [vmem:[#allocation6 + $0x8d8] sm:$0xf]
    %v1330 = vld [vmem:[#allocation6 + $0x8dc] sm:$0xf]
    %v1331 = vld [vmem:[#allocation6 + $0x8e0] sm:$0xf]
    %v1332 = vld [vmem:[#allocation6 + $0x8e4] sm:$0xf]
    %v1333 = vld [vmem:[#allocation6 + $0x8e8] sm:$0xf]
    %v1334 = vld [vmem:[#allocation6 + $0x8ec] sm:$0xf]
    %v1335 = vld [vmem:[#allocation6 + $0x8f0] sm:$0xf]
    %v1336 = vld [vmem:[#allocation6 + $0x8f4] sm:$0xf]
    %v1337 = vld [vmem:[#allocation6 + $0x8f8] sm:$0xf]
    %v1338 = vld [vmem:[#allocation6 + $0x8fc] sm:$0xf]
    %v1339 = vld [vmem:[#allocation6 + $0x900] sm:$0xf]
    %v1340 = vld [vmem:[#allocation6 + $0x904] sm:$0xf]
    %v1341 = vld [vmem:[#allocation6 + $0x908] sm:$0xf]
    %v1342 = vld [vmem:[#allocation6 + $0x90c] sm:$0xf]
    %v1343 = vld [vmem:[#allocation6 + $0x910] sm:$0xf]
    %v1344 = vld [vmem:[#allocation6 + $0x914] sm:$0xf]
    %v1345 = vld [vmem:[#allocation6 + $0x918] sm:$0xf]
    %v1346 = vld [vmem:[#allocation6 + $0x91c] sm:$0xf]
    %v1347 = vld [vmem:[#allocation6 + $0x920] sm:$0xf]
    %v1348 = vld [vmem:[#allocation6 + $0x924] sm:$0xf]
    %v1349 = vld [vmem:[#allocation6 + $0x928] sm:$0xf]
    %v1350 = vld [vmem:[#allocation6 + $0x92c] sm:$0xf]
    %v1351 = vld [vmem:[#allocation6 + $0x930] sm:$0xf]
    %v1352 = vld [vmem:[#allocation6 + $0x934] sm:$0xf]
    %v1353 = vld [vmem:[#allocation6 + $0x938] sm:$0xf]
    %v1354 = vld [vmem:[#allocation6 + $0x93c] sm:$0xf]
    %v1355 = vld [vmem:[#allocation6 + $0x940] sm:$0xf]
    %v1356 = vld [vmem:[#allocation6 + $0x944] sm:$0xf]
    %v1357 = vld [vmem:[#allocation6 + $0x948] sm:$0xf]
    %v1358 = vld [vmem:[#allocation6 + $0x94c] sm:$0xf]
    %v1359 = vld [vmem:[#allocation6 + $0x950] sm:$0xf]
    %v1360 = vld [vmem:[#allocation6 + $0x954] sm:$0xf]
    %v1361 = vld [vmem:[#allocation6 + $0x958] sm:$0xf]
    %v1362 = vld [vmem:[#allocation6 + $0x95c] sm:$0xf]
    %v1363 = vld [vmem:[#allocation6 + $0x960] sm:$0xf]
    %v1364 = vld [vmem:[#allocation6 + $0x964] sm:$0xf]
    %v1365 = vld [vmem:[#allocation6 + $0x968] sm:$0xf]
    %v1366 = vld [vmem:[#allocation6 + $0x96c] sm:$0xf]
    %v1367 = vld [vmem:[#allocation6 + $0x970] sm:$0xf]
    %v1368 = vld [vmem:[#allocation6 + $0x974] sm:$0xf]
    %v1369 = vld [vmem:[#allocation6 + $0x978] sm:$0xf]
    %v1370 = vld [vmem:[#allocation6 + $0x97c] sm:$0xf]
    %v1371 = vld [vmem:[#allocation6 + $0x980] sm:$0xf]
    %v1372 = vld [vmem:[#allocation6 + $0x984] sm:$0xf]
    %v1373 = vld [vmem:[#allocation6 + $0x988] sm:$0xf]
    %v1374 = vld [vmem:[#allocation6 + $0x98c] sm:$0xf]
    %v1375 = vld [vmem:[#allocation6 + $0x990] sm:$0xf]
    %v1376 = vld [vmem:[#allocation6 + $0x994] sm:$0xf]
    %v1377 = vld [vmem:[#allocation6 + $0x998] sm:$0xf]
    %v1378 = vld [vmem:[#allocation6 + $0x99c] sm:$0xf]
    %v1379 = vld [vmem:[#allocation6 + $0x9a0] sm:$0xf]
    %v1380 = vld [vmem:[#allocation6 + $0x9a4] sm:$0xf]
    %v1381 = vld [vmem:[#allocation6 + $0x9a8] sm:$0xf]
    %v1382 = vld [vmem:[#allocation6 + $0x9ac] sm:$0xf]
    %v1383 = vld [vmem:[#allocation6 + $0x9b0] sm:$0xf]
    %v1384 = vld [vmem:[#allocation6 + $0x9b4] sm:$0xf]
    %v1385 = vld [vmem:[#allocation6 + $0x9b8] sm:$0xf]
    %v1386 = vld [vmem:[#allocation6 + $0x9bc] sm:$0xf]
    %v1387 = vld [vmem:[#allocation6 + $0x9c0] sm:$0xf]
    %v1388 = vld [vmem:[#allocation6 + $0x9c4] sm:$0xf]
    %v1389 = vld [vmem:[#allocation6 + $0x9c8] sm:$0xf]
    %v1390 = vld [vmem:[#allocation6 + $0x9cc] sm:$0xf]
    %v1391 = vld [vmem:[#allocation6 + $0x9d0] sm:$0xf]
    %v1392 = vld [vmem:[#allocation6 + $0x9d4] sm:$0xf]
    %v1393 = vld [vmem:[#allocation6 + $0x9d8] sm:$0xf]
    %v1394 = vld [vmem:[#allocation6 + $0x9dc] sm:$0xf]
    %v1395 = vld [vmem:[#allocation6 + $0x9e0] sm:$0xf]
    %v1396 = vld [vmem:[#allocation6 + $0x9e4] sm:$0xf]
    %v1397 = vld [vmem:[#allocation6 + $0x9e8] sm:$0xf]
    %v1398 = vld [vmem:[#allocation6 + $0x9ec] sm:$0xf]
    %v1399 = vld [vmem:[#allocation6 + $0x9f0] sm:$0xf]
    %v1400 = vld [vmem:[#allocation6 + $0x9f4] sm:$0xf]
    %v1401 = vld [vmem:[#allocation6 + $0x9f8] sm:$0xf]
    %v1402 = vld [vmem:[#allocation6 + $0x9fc] sm:$0xf]
    %v1403 = vld [vmem:[#allocation6 + $0xa00] sm:$0xf]
    %v1404 = vld [vmem:[#allocation6 + $0xa04] sm:$0xf]
    %v1405 = vld [vmem:[#allocation6 + $0xa08] sm:$0xf]
    %v1406 = vld [vmem:[#allocation6 + $0xa0c] sm:$0xf]
    %v1407 = vld [vmem:[#allocation6 + $0xa10] sm:$0xf]
    %v1408 = vld [vmem:[#allocation6 + $0xa14] sm:$0xf]
    %v1409 = vld [vmem:[#allocation6 + $0xa18] sm:$0xf]
    %v1410 = vld [vmem:[#allocation6 + $0xa1c] sm:$0xf]
    %v1411 = vld [vmem:[#allocation6 + $0xa20] sm:$0xf]
    %v1412 = vld [vmem:[#allocation6 + $0xa24] sm:$0xf]
    %v1413 = vld [vmem:[#allocation6 + $0xa28] sm:$0xf]
    %v1414 = vld [vmem:[#allocation6 + $0xa2c] sm:$0xf]
    %v1415 = vld [vmem:[#allocation6 + $0xa30] sm:$0xf]
    %v1416 = vld [vmem:[#allocation6 + $0xa34] sm:$0xf]
    %v1417 = vld [vmem:[#allocation6 + $0xa38] sm:$0xf]
    %v1418 = vld [vmem:[#allocation6 + $0xa3c] sm:$0xf]
    %v1419 = vld [vmem:[#allocation6 + $0xa40] sm:$0xf]
    %v1420 = vld [vmem:[#allocation6 + $0xa44] sm:$0xf]
    %v1421 = vld [vmem:[#allocation6 + $0xa48] sm:$0xf]
    %v1422 = vld [vmem:[#allocation6 + $0xa4c] sm:$0xf]
    %v1423 = vld [vmem:[#allocation6 + $0xa50] sm:$0xf]
    %v1424 = vld [vmem:[#allocation6 + $0xa54] sm:$0xf]
    %v1425 = vld [vmem:[#allocation6 + $0xa58] sm:$0xf]
    %v1426 = vld [vmem:[#allocation6 + $0xa5c] sm:$0xf]
    %v1427 = vld [vmem:[#allocation6 + $0xa60] sm:$0xf]
    %v1428 = vld [vmem:[#allocation6 + $0xa64] sm:$0xf]
    %v1429 = vld [vmem:[#allocation6 + $0xa68] sm:$0xf]
    %v1430 = vld [vmem:[#allocation6 + $0xa6c] sm:$0xf]
    %v1431 = vld [vmem:[#allocation6 + $0xa70] sm:$0xf]
    %v1432 = vld [vmem:[#allocation6 + $0xa74] sm:$0xf]
    %v1433 = vld [vmem:[#allocation6 + $0xa78] sm:$0xf]
    %v1434 = vld [vmem:[#allocation6 + $0xa7c] sm:$0xf]
    %v1435 = vld [vmem:[#allocation6 + $0xa80] sm:$0xf]
    %v1436 = vld [vmem:[#allocation6 + $0xa84] sm:$0xf]
    %v1437 = vld [vmem:[#allocation6 + $0xa88] sm:$0xf]
    %v1438 = vld [vmem:[#allocation6 + $0xa8c] sm:$0xf]
    %v1439 = vld [vmem:[#allocation6 + $0xa90] sm:$0xf]
    %v1440 = vld [vmem:[#allocation6 + $0xa94] sm:$0xf]
    %v1441 = vld [vmem:[#allocation6 + $0xa98] sm:$0xf]
    %v1442 = vld [vmem:[#allocation6 + $0xa9c] sm:$0xf]
    %v1443 = vld [vmem:[#allocation6 + $0xaa0] sm:$0xf]
    %v1444 = vld [vmem:[#allocation6 + $0xaa4] sm:$0xf]
    %v1445 = vld [vmem:[#allocation6 + $0xaa8] sm:$0xf]
    %v1446 = vld [vmem:[#allocation6 + $0xaac] sm:$0xf]
    %v1447 = vld [vmem:[#allocation6 + $0xab0] sm:$0xf]
    %v1448 = vld [vmem:[#allocation6 + $0xab4] sm:$0xf]
    %v1449 = vld [vmem:[#allocation6 + $0xab8] sm:$0xf]
    %v1450 = vld [vmem:[#allocation6 + $0xabc] sm:$0xf]
    %v1451 = vld [vmem:[#allocation6 + $0xac0] sm:$0xf]
    %v1452 = vld [vmem:[#allocation6 + $0xac4] sm:$0xf]
    %v1453 = vld [vmem:[#allocation6 + $0xac8] sm:$0xf]
    %v1454 = vld [vmem:[#allocation6 + $0xacc] sm:$0xf]
    %v1455 = vld [vmem:[#allocation6 + $0xad0] sm:$0xf]
    %v1456 = vld [vmem:[#allocation6 + $0xad4] sm:$0xf]
    %v1457 = vld [vmem:[#allocation6 + $0xad8] sm:$0xf]
    %v1458 = vld [vmem:[#allocation6 + $0xadc] sm:$0xf]
    %v1459 = vld [vmem:[#allocation6 + $0xae0] sm:$0xf]
    %v1460 = vld [vmem:[#allocation6 + $0xae4] sm:$0xf]
    %v1461 = vld [vmem:[#allocation6 + $0xae8] sm:$0xf]
    %v1462 = vld [vmem:[#allocation6 + $0xaec] sm:$0xf]
    %v1463 = vld [vmem:[#allocation6 + $0xaf0] sm:$0xf]
    %v1464 = vld [vmem:[#allocation6 + $0xaf4] sm:$0xf]
    %v1465 = vld [vmem:[#allocation6 + $0xaf8] sm:$0xf]
    %v1466 = vld [vmem:[#allocation6 + $0xafc] sm:$0xf]
    %v1467 = vld [vmem:[#allocation6 + $0xb00] sm:$0xf]
    %v1468 = vld [vmem:[#allocation6 + $0xb04] sm:$0xf]
    %v1469 = vld [vmem:[#allocation6 + $0xb08] sm:$0xf]
    %v1470 = vld [vmem:[#allocation6 + $0xb0c] sm:$0xf]
    %v1471 = vld [vmem:[#allocation6 + $0xb10] sm:$0xf]
    %v1472 = vld [vmem:[#allocation6 + $0xb14] sm:$0xf]
    %v1473 = vld [vmem:[#allocation6 + $0xb18] sm:$0xf]
    %v1474 = vld [vmem:[#allocation6 + $0xb1c] sm:$0xf]
    %v1475 = vld [vmem:[#allocation6 + $0xb20] sm:$0xf]
    %v1476 = vld [vmem:[#allocation6 + $0xb24] sm:$0xf]
    %v1477 = vld [vmem:[#allocation6 + $0xb28] sm:$0xf]
    %v1478 = vld [vmem:[#allocation6 + $0xb2c] sm:$0xf]
    %v1479 = vld [vmem:[#allocation6 + $0xb30] sm:$0xf]
    %v1480 = vld [vmem:[#allocation6 + $0xb34] sm:$0xf]
    %v1481 = vld [vmem:[#allocation6 + $0xb38] sm:$0xf]
    %v1482 = vld [vmem:[#allocation6 + $0xb3c] sm:$0xf]
    %v1483 = vld [vmem:[#allocation6 + $0xb40] sm:$0xf]
    %v1484 = vld [vmem:[#allocation6 + $0xb44] sm:$0xf]
    %v1485 = vld [vmem:[#allocation6 + $0xb48] sm:$0xf]
    %v1486 = vld [vmem:[#allocation6 + $0xb4c] sm:$0xf]
    %v1487 = vld [vmem:[#allocation6 + $0xb50] sm:$0xf]
    %v1488 = vld [vmem:[#allocation6 + $0xb54] sm:$0xf]
    %v1489 = vld [vmem:[#allocation6 + $0xb58] sm:$0xf]
    %v1490 = vld [vmem:[#allocation6 + $0xb5c] sm:$0xf]
    %v1491 = vld [vmem:[#allocation6 + $0xb60] sm:$0xf]
    %v1492 = vld [vmem:[#allocation6 + $0xb64] sm:$0xf]
    %v1493 = vld [vmem:[#allocation6 + $0xb68] sm:$0xf]
    %v1494 = vld [vmem:[#allocation6 + $0xb6c] sm:$0xf]
    %v1495 = vld [vmem:[#allocation6 + $0xb70] sm:$0xf]
    %v1496 = vld [vmem:[#allocation6 + $0xb74] sm:$0xf]
    %v1497 = vld [vmem:[#allocation6 + $0xb78] sm:$0xf]
    %v1498 = vld [vmem:[#allocation6 + $0xb7c] sm:$0xf]
    %v1499 = vld [vmem:[#allocation6 + $0xb80] sm:$0xf]
    %v1500 = vld [vmem:[#allocation6 + $0xb84] sm:$0xf]
    %v1501 = vld [vmem:[#allocation6 + $0xb88] sm:$0xf]
    %v1502 = vld [vmem:[#allocation6 + $0xb8c] sm:$0xf]
    %v1503 = vld [vmem:[#allocation6 + $0xb90] sm:$0xf]
    %v1504 = vld [vmem:[#allocation6 + $0xb94] sm:$0xf]
    %v1505 = vld [vmem:[#allocation6 + $0xb98] sm:$0xf]
    %v1506 = vld [vmem:[#allocation6 + $0xb9c] sm:$0xf]
    %v1507 = vld [vmem:[#allocation6 + $0xba0] sm:$0xf]
    %v1508 = vld [vmem:[#allocation6 + $0xba4] sm:$0xf]
    %v1509 = vld [vmem:[#allocation6 + $0xba8] sm:$0xf]
    %v1510 = vld [vmem:[#allocation6 + $0xbac] sm:$0xf]
    %v1511 = vld [vmem:[#allocation6 + $0xbb0] sm:$0xf]
    %v1512 = vld [vmem:[#allocation6 + $0xbb4] sm:$0xf]
    %v1513 = vld [vmem:[#allocation6 + $0xbb8] sm:$0xf]
    %v1514 = vld [vmem:[#allocation6 + $0xbbc] sm:$0xf]
    %v1515 = vld [vmem:[#allocation6 + $0xbc0] sm:$0xf]
    %v1516 = vld [vmem:[#allocation6 + $0xbc4] sm:$0xf]
    %v1517 = vld [vmem:[#allocation6 + $0xbc8] sm:$0xf]
    %v1518 = vld [vmem:[#allocation6 + $0xbcc] sm:$0xf]
    %v1519 = vld [vmem:[#allocation6 + $0xbd0] sm:$0xf]
    %v1520 = vld [vmem:[#allocation6 + $0xbd4] sm:$0xf]
    %v1521 = vld [vmem:[#allocation6 + $0xbd8] sm:$0xf]
    %v1522 = vld [vmem:[#allocation6 + $0xbdc] sm:$0xf]
    %v1523 = vld [vmem:[#allocation6 + $0xbe0] sm:$0xf]
    %v1524 = vld [vmem:[#allocation6 + $0xbe4] sm:$0xf]
    %v1525 = vld [vmem:[#allocation6 + $0xbe8] sm:$0xf]
    %v1526 = vld [vmem:[#allocation6 + $0xbec] sm:$0xf]
    %v1527 = vld [vmem:[#allocation6 + $0xbf0] sm:$0xf]
    %v1528 = vld [vmem:[#allocation6 + $0xbf4] sm:$0xf]
    %v1529 = vld [vmem:[#allocation6 + $0xbf8] sm:$0xf]
    %v1530 = vld [vmem:[#allocation6 + $0xbfc] sm:$0xf]
    %v1531 = vld [vmem:[#allocation6 + $0xc00] sm:$0xf]
    %v1532 = vld [vmem:[#allocation6 + $0xc04] sm:$0xf]
    %v1533 = vld [vmem:[#allocation6 + $0xc08] sm:$0xf]
    %v1534 = vld [vmem:[#allocation6 + $0xc0c] sm:$0xf]
    %v1535 = vld [vmem:[#allocation6 + $0xc10] sm:$0xf]
    %v1536 = vld [vmem:[#allocation6 + $0xc14] sm:$0xf]
    %v1537 = vld [vmem:[#allocation6 + $0xc18] sm:$0xf]
    %v1538 = vld [vmem:[#allocation6 + $0xc1c] sm:$0xf]
    %v1539 = vld [vmem:[#allocation6 + $0xc20] sm:$0xf]
    %v1540 = vld [vmem:[#allocation6 + $0xc24] sm:$0xf]
    %v1541 = vld [vmem:[#allocation6 + $0xc28] sm:$0xf]
    %v1542 = vld [vmem:[#allocation6 + $0xc2c] sm:$0xf]
    %v1543 = vld [vmem:[#allocation6 + $0xc30] sm:$0xf]
    %v1544 = vld [vmem:[#allocation6 + $0xc34] sm:$0xf]
    %v1545 = vld [vmem:[#allocation6 + $0xc38] sm:$0xf]
    %v1546 = vld [vmem:[#allocation6 + $0xc3c] sm:$0xf]
    %v1547 = vld [vmem:[#allocation6 + $0xc40] sm:$0xf]
    %v1548 = vld [vmem:[#allocation6 + $0xc44] sm:$0xf]
    %v1549 = vld [vmem:[#allocation6 + $0xc48] sm:$0xf]
    %v1550 = vld [vmem:[#allocation6 + $0xc4c] sm:$0xf]
    %v1551 = vld [vmem:[#allocation6 + $0xc50] sm:$0xf]
    %v1552 = vld [vmem:[#allocation6 + $0xc54] sm:$0xf]
    %v1553 = vld [vmem:[#allocation6 + $0xc58] sm:$0xf]
    %v1554 = vld [vmem:[#allocation6 + $0xc5c] sm:$0xf]
    %v1555 = vld [vmem:[#allocation6 + $0xc60] sm:$0xf]
    %v1556 = vld [vmem:[#allocation6 + $0xc64] sm:$0xf]
    %v1557 = vld [vmem:[#allocation6 + $0xc68] sm:$0xf]
    %v1558 = vld [vmem:[#allocation6 + $0xc6c] sm:$0xf]
    %v1559 = vld [vmem:[#allocation6 + $0xc70] sm:$0xf]
    %v1560 = vld [vmem:[#allocation6 + $0xc74] sm:$0xf]
    %v1561 = vld [vmem:[#allocation6 + $0xc78] sm:$0xf]
    %v1562 = vld [vmem:[#allocation6 + $0xc7c] sm:$0xf]
    %v1563 = vld [vmem:[#allocation6 + $0xc80] sm:$0xf]
    %v1564 = vld [vmem:[#allocation6 + $0xc84] sm:$0xf]
    %v1565 = vld [vmem:[#allocation6 + $0xc88] sm:$0xf]
    %v1566 = vld [vmem:[#allocation6 + $0xc8c] sm:$0xf]
    %v1567 = vld [vmem:[#allocation6 + $0xc90] sm:$0xf]
    %v1568 = vld [vmem:[#allocation6 + $0xc94] sm:$0xf]
    %v1569 = vld [vmem:[#allocation6 + $0xc98] sm:$0xf]
    %v1570 = vld [vmem:[#allocation6 + $0xc9c] sm:$0xf]
    %v1571 = vld [vmem:[#allocation6 + $0xca0] sm:$0xf]
    %v1572 = vld [vmem:[#allocation6 + $0xca4] sm:$0xf]
    %v1573 = vld [vmem:[#allocation6 + $0xca8] sm:$0xf]
    %v1574 = vld [vmem:[#allocation6 + $0xcac] sm:$0xf]
    %v1575 = vld [vmem:[#allocation6 + $0xcb0] sm:$0xf]
    %v1576 = vld [vmem:[#allocation6 + $0xcb4] sm:$0xf]
    %v1577 = vld [vmem:[#allocation6 + $0xcb8] sm:$0xf]
    %v1578 = vld [vmem:[#allocation6 + $0xcbc] sm:$0xf]
    %v1579 = vld [vmem:[#allocation6 + $0xcc0] sm:$0xf]
    %v1580 = vld [vmem:[#allocation6 + $0xcc4] sm:$0xf]
    %v1581 = vld [vmem:[#allocation6 + $0xcc8] sm:$0xf]
    %v1582 = vld [vmem:[#allocation6 + $0xccc] sm:$0xf]
    %v1583 = vld [vmem:[#allocation6 + $0xcd0] sm:$0xf]
    %v1584 = vld [vmem:[#allocation6 + $0xcd4] sm:$0xf]
    %v1585 = vld [vmem:[#allocation6 + $0xcd8] sm:$0xf]
    %v1586 = vld [vmem:[#allocation6 + $0xcdc] sm:$0xf]
    %v1587 = vld [vmem:[#allocation6 + $0xce0] sm:$0xf]
    %v1588 = vld [vmem:[#allocation6 + $0xce4] sm:$0xf]
    %v1589 = vld [vmem:[#allocation6 + $0xce8] sm:$0xf]
    %v1590 = vld [vmem:[#allocation6 + $0xcec] sm:$0xf]
    %v1591 = vld [vmem:[#allocation6 + $0xcf0] sm:$0xf]
    %v1592 = vld [vmem:[#allocation6 + $0xcf4] sm:$0xf]
    %v1593 = vld [vmem:[#allocation6 + $0xcf8] sm:$0xf]
    %v1594 = vld [vmem:[#allocation6 + $0xcfc] sm:$0xf]
    %v1595 = vld [vmem:[#allocation6 + $0xd00] sm:$0xf]
    %v1596 = vld [vmem:[#allocation6 + $0xd04] sm:$0xf]
    %v1597 = vld [vmem:[#allocation6 + $0xd08] sm:$0xf]
    %v1598 = vld [vmem:[#allocation6 + $0xd0c] sm:$0xf]
    %v1599 = vld [vmem:[#allocation6 + $0xd10] sm:$0xf]
    %v1600 = vld [vmem:[#allocation6 + $0xd14] sm:$0xf]
    %v1601 = vld [vmem:[#allocation6 + $0xd18] sm:$0xf]
    %v1602 = vld [vmem:[#allocation6 + $0xd1c] sm:$0xf]
    %v1603 = vld [vmem:[#allocation6 + $0xd20] sm:$0xf]
    %v1604 = vld [vmem:[#allocation6 + $0xd24] sm:$0xf]
    %v1605 = vld [vmem:[#allocation6 + $0xd28] sm:$0xf]
    %v1606 = vld [vmem:[#allocation6 + $0xd2c] sm:$0xf]
    %v1607 = vld [vmem:[#allocation6 + $0xd30] sm:$0xf]
    %v1608 = vld [vmem:[#allocation6 + $0xd34] sm:$0xf]
    %v1609 = vld [vmem:[#allocation6 + $0xd38] sm:$0xf]
    %v1610 = vld [vmem:[#allocation6 + $0xd3c] sm:$0xf]
    %v1611 = vld [vmem:[#allocation6 + $0xd40] sm:$0xf]
    %v1612 = vld [vmem:[#allocation6 + $0xd44] sm:$0xf]
    %v1613 = vld [vmem:[#allocation6 + $0xd48] sm:$0xf]
    %v1614 = vld [vmem:[#allocation6 + $0xd4c] sm:$0xf]
    %v1615 = vld [vmem:[#allocation6 + $0xd50] sm:$0xf]
    %v1616 = vld [vmem:[#allocation6 + $0xd54] sm:$0xf]
    %v1617 = vld [vmem:[#allocation6 + $0xd58] sm:$0xf]
    %v1618 = vld [vmem:[#allocation6 + $0xd5c] sm:$0xf]
    %v1619 = vld [vmem:[#allocation6 + $0xd60] sm:$0xf]
    %v1620 = vld [vmem:[#allocation6 + $0xd64] sm:$0xf]
    %v1621 = vld [vmem:[#allocation6 + $0xd68] sm:$0xf]
    %v1622 = vld [vmem:[#allocation6 + $0xd6c] sm:$0xf]
    %v1623 = vld [vmem:[#allocation6 + $0xd70] sm:$0xf]
    %v1624 = vld [vmem:[#allocation6 + $0xd74] sm:$0xf]
    %v1625 = vld [vmem:[#allocation6 + $0xd78] sm:$0xf]
    %v1626 = vld [vmem:[#allocation6 + $0xd7c] sm:$0xf]
    %v1627 = vld [vmem:[#allocation6 + $0xd80] sm:$0xf]
    %v1628 = vld [vmem:[#allocation6 + $0xd84] sm:$0xf]
    %v1629 = vld [vmem:[#allocation6 + $0xd88] sm:$0xf]
    %v1630 = vld [vmem:[#allocation6 + $0xd8c] sm:$0xf]
    %v1631 = vld [vmem:[#allocation6 + $0xd90] sm:$0xf]
    %v1632 = vld [vmem:[#allocation6 + $0xd94] sm:$0xf]
    %v1633 = vld [vmem:[#allocation6 + $0xd98] sm:$0xf]
    %v1634 = vld [vmem:[#allocation6 + $0xd9c] sm:$0xf]
    %v1635 = vld [vmem:[#allocation6 + $0xda0] sm:$0xf]
    %v1636 = vld [vmem:[#allocation6 + $0xda4] sm:$0xf]
    %v1637 = vld [vmem:[#allocation6 + $0xda8] sm:$0xf]
    %v1638 = vld [vmem:[#allocation6 + $0xdac] sm:$0xf]
    %v1639 = vld [vmem:[#allocation6 + $0xdb0] sm:$0xf]
    %v1640 = vld [vmem:[#allocation6 + $0xdb4] sm:$0xf]
    %v1641 = vld [vmem:[#allocation6 + $0xdb8] sm:$0xf]
    %v1642 = vld [vmem:[#allocation6 + $0xdbc] sm:$0xf]
    %v1643 = vld [vmem:[#allocation6 + $0xdc0] sm:$0xf]
    %v1644 = vld [vmem:[#allocation6 + $0xdc4] sm:$0xf]
    %v1645 = vld [vmem:[#allocation6 + $0xdc8] sm:$0xf]
    %v1646 = vld [vmem:[#allocation6 + $0xdcc] sm:$0xf]
    %v1647 = vld [vmem:[#allocation6 + $0xdd0] sm:$0xf]
    %v1648 = vld [vmem:[#allocation6 + $0xdd4] sm:$0xf]
    %v1649 = vld [vmem:[#allocation6 + $0xdd8] sm:$0xf]
    %v1650 = vld [vmem:[#allocation6 + $0xddc] sm:$0xf]
    %v1651 = vld [vmem:[#allocation6 + $0xde0] sm:$0xf]
    %v1652 = vld [vmem:[#allocation6 + $0xde4] sm:$0xf]
    %v1653 = vld [vmem:[#allocation6 + $0xde8] sm:$0xf]
    %v1654 = vld [vmem:[#allocation6 + $0xdec] sm:$0xf]
    %v1655 = vld [vmem:[#allocation6 + $0xdf0] sm:$0xf]
    %v1656 = vld [vmem:[#allocation6 + $0xdf4] sm:$0xf]
    %v1657 = vld [vmem:[#allocation6 + $0xdf8] sm:$0xf]
    %v1658 = vld [vmem:[#allocation6 + $0xdfc] sm:$0xf]
    %v1659 = vld [vmem:[#allocation6 + $0xe00] sm:$0xf]
    %v1660 = vld [vmem:[#allocation6 + $0xe04] sm:$0xf]
    %v1661 = vld [vmem:[#allocation6 + $0xe08] sm:$0xf]
    %v1662 = vld [vmem:[#allocation6 + $0xe0c] sm:$0xf]
    %v1663 = vld [vmem:[#allocation6 + $0xe10] sm:$0xf]
    %v1664 = vld [vmem:[#allocation6 + $0xe14] sm:$0xf]
    %v1665 = vld [vmem:[#allocation6 + $0xe18] sm:$0xf]
    %v1666 = vld [vmem:[#allocation6 + $0xe1c] sm:$0xf]
    %v1667 = vld [vmem:[#allocation6 + $0xe20] sm:$0xf]
    %v1668 = vld [vmem:[#allocation6 + $0xe24] sm:$0xf]
    %v1669 = vld [vmem:[#allocation6 + $0xe28] sm:$0xf]
    %v1670 = vld [vmem:[#allocation6 + $0xe2c] sm:$0xf]
    %v1671 = vld [vmem:[#allocation6 + $0xe30] sm:$0xf]
    %v1672 = vld [vmem:[#allocation6 + $0xe34] sm:$0xf]
    %v1673 = vld [vmem:[#allocation6 + $0xe38] sm:$0xf]
    %v1674 = vld [vmem:[#allocation6 + $0xe3c] sm:$0xf]
    %v1675 = vld [vmem:[#allocation6 + $0xe40] sm:$0xf]
    %v1676 = vld [vmem:[#allocation6 + $0xe44] sm:$0xf]
    %v1677 = vld [vmem:[#allocation6 + $0xe48] sm:$0xf]
    %v1678 = vld [vmem:[#allocation6 + $0xe4c] sm:$0xf]
    %v1679 = vld [vmem:[#allocation6 + $0xe50] sm:$0xf]
    %v1680 = vld [vmem:[#allocation6 + $0xe54] sm:$0xf]
    %v1681 = vld [vmem:[#allocation6 + $0xe58] sm:$0xf]
    %v1682 = vld [vmem:[#allocation6 + $0xe5c] sm:$0xf]
    %v1683 = vld [vmem:[#allocation6 + $0xe60] sm:$0xf]
    %v1684 = vld [vmem:[#allocation6 + $0xe64] sm:$0xf]
    %v1685 = vld [vmem:[#allocation6 + $0xe68] sm:$0xf]
    %v1686 = vld [vmem:[#allocation6 + $0xe6c] sm:$0xf]
    %v1687 = vld [vmem:[#allocation6 + $0xe70] sm:$0xf]
    %v1688 = vld [vmem:[#allocation6 + $0xe74] sm:$0xf]
    %v1689 = vld [vmem:[#allocation6 + $0xe78] sm:$0xf]
    %v1690 = vld [vmem:[#allocation6 + $0xe7c] sm:$0xf]
    %v1691 = vld [vmem:[#allocation6 + $0xe80] sm:$0xf]
    %v1692 = vld [vmem:[#allocation6 + $0xe84] sm:$0xf]
    %v1693 = vld [vmem:[#allocation6 + $0xe88] sm:$0xf]
    %v1694 = vld [vmem:[#allocation6 + $0xe8c] sm:$0xf]
    %v1695 = vld [vmem:[#allocation6 + $0xe90] sm:$0xf]
    %v1696 = vld [vmem:[#allocation6 + $0xe94] sm:$0xf]
    %v1697 = vld [vmem:[#allocation6 + $0xe98] sm:$0xf]
    %v1698 = vld [vmem:[#allocation6 + $0xe9c] sm:$0xf]
    %v1699 = vld [vmem:[#allocation6 + $0xea0] sm:$0xf]
    %v1700 = vld [vmem:[#allocation6 + $0xea4] sm:$0xf]
    %v1701 = vld [vmem:[#allocation6 + $0xea8] sm:$0xf]
    %v1702 = vld [vmem:[#allocation6 + $0xeac] sm:$0xf]
    %v1703 = vld [vmem:[#allocation6 + $0xeb0] sm:$0xf]
    %v1704 = vld [vmem:[#allocation6 + $0xeb4] sm:$0xf]
    %v1705 = vld [vmem:[#allocation6 + $0xeb8] sm:$0xf]
    %v1706 = vld [vmem:[#allocation6 + $0xebc] sm:$0xf]
    %v1707 = vld [vmem:[#allocation6 + $0xec0] sm:$0xf]
    %v1708 = vld [vmem:[#allocation6 + $0xec4] sm:$0xf]
    %v1709 = vld [vmem:[#allocation6 + $0xec8] sm:$0xf]
    %v1710 = vld [vmem:[#allocation6 + $0xecc] sm:$0xf]
    %v1711 = vld [vmem:[#allocation6 + $0xed0] sm:$0xf]
    %v1712 = vld [vmem:[#allocation6 + $0xed4] sm:$0xf]
    %v1713 = vld [vmem:[#allocation6 + $0xed8] sm:$0xf]
    %v1714 = vld [vmem:[#allocation6 + $0xedc] sm:$0xf]
    %v1715 = vld [vmem:[#allocation6 + $0xee0] sm:$0xf]
    %v1716 = vld [vmem:[#allocation6 + $0xee4] sm:$0xf]
    %v1717 = vld [vmem:[#allocation6 + $0xee8] sm:$0xf]
    %v1718 = vld [vmem:[#allocation6 + $0xeec] sm:$0xf]
    %v1719 = vld [vmem:[#allocation6 + $0xef0] sm:$0xf]
    %v1720 = vld [vmem:[#allocation6 + $0xef4] sm:$0xf]
    %v1721 = vld [vmem:[#allocation6 + $0xef8] sm:$0xf]
    %v1722 = vld [vmem:[#allocation6 + $0xefc] sm:$0xf]
    %v1723 = vld [vmem:[#allocation6 + $0xf00] sm:$0xf]
    %v1724 = vld [vmem:[#allocation6 + $0xf04] sm:$0xf]
    %v1725 = vld [vmem:[#allocation6 + $0xf08] sm:$0xf]
    %v1726 = vld [vmem:[#allocation6 + $0xf0c] sm:$0xf]
    %v1727 = vld [vmem:[#allocation6 + $0xf10] sm:$0xf]
    %v1728 = vld [vmem:[#allocation6 + $0xf14] sm:$0xf]
    %v1729 = vld [vmem:[#allocation6 + $0xf18] sm:$0xf]
    %v1730 = vld [vmem:[#allocation6 + $0xf1c] sm:$0xf]
    %v1731 = vld [vmem:[#allocation6 + $0xf20] sm:$0xf]
    %v1732 = vld [vmem:[#allocation6 + $0xf24] sm:$0xf]
    %v1733 = vld [vmem:[#allocation6 + $0xf28] sm:$0xf]
    %v1734 = vld [vmem:[#allocation6 + $0xf2c] sm:$0xf]
    %v1735 = vld [vmem:[#allocation6 + $0xf30] sm:$0xf]
    %v1736 = vld [vmem:[#allocation6 + $0xf34] sm:$0xf]
    %v1737 = vld [vmem:[#allocation6 + $0xf38] sm:$0xf]
    %v1738 = vld [vmem:[#allocation6 + $0xf3c] sm:$0xf]
    %v1739 = vld [vmem:[#allocation6 + $0xf40] sm:$0xf]
    %v1740 = vld [vmem:[#allocation6 + $0xf44] sm:$0xf]
    %v1741 = vld [vmem:[#allocation6 + $0xf48] sm:$0xf]
    %v1742 = vld [vmem:[#allocation6 + $0xf4c] sm:$0xf]
    %v1743 = vld [vmem:[#allocation6 + $0xf50] sm:$0xf]
    %v1744 = vld [vmem:[#allocation6 + $0xf54] sm:$0xf]
    %v1745 = vld [vmem:[#allocation6 + $0xf58] sm:$0xf]
    %v1746 = vld [vmem:[#allocation6 + $0xf5c] sm:$0xf]
    %v1747 = vld [vmem:[#allocation6 + $0xf60] sm:$0xf]
    %v1748 = vld [vmem:[#allocation6 + $0xf64] sm:$0xf]
    %v1749 = vld [vmem:[#allocation6 + $0xf68] sm:$0xf]
    %v1750 = vld [vmem:[#allocation6 + $0xf6c] sm:$0xf]
    %v1751 = vld [vmem:[#allocation6 + $0xf70] sm:$0xf]
    %v1752 = vld [vmem:[#allocation6 + $0xf74] sm:$0xf]
    %v1753 = vld [vmem:[#allocation6 + $0xf78] sm:$0xf]
    %v1754 = vld [vmem:[#allocation6 + $0xf7c] sm:$0xf]
    %v1755 = vld [vmem:[#allocation6 + $0xf80] sm:$0xf]
    %v1756 = vld [vmem:[#allocation6 + $0xf84] sm:$0xf]
    %v1757 = vld [vmem:[#allocation6 + $0xf88] sm:$0xf]
    %v1758 = vld [vmem:[#allocation6 + $0xf8c] sm:$0xf]
    %v1759 = vld [vmem:[#allocation6 + $0xf90] sm:$0xf]
    %v1760 = vld [vmem:[#allocation6 + $0xf94] sm:$0xf]
    %v1761 = vld [vmem:[#allocation6 + $0xf98] sm:$0xf]
    %v1762 = vld [vmem:[#allocation6 + $0xf9c] sm:$0xf]
    %v1763 = vld [vmem:[#allocation6 + $0xfa0] sm:$0xf]
    %v1764 = vld [vmem:[#allocation6 + $0xfa4] sm:$0xf]
    %v1765 = vld [vmem:[#allocation6 + $0xfa8] sm:$0xf]
    %v1766 = vld [vmem:[#allocation6 + $0xfac] sm:$0xf]
    %v1767 = vld [vmem:[#allocation6 + $0xfb0] sm:$0xf]
    %v1768 = vld [vmem:[#allocation6 + $0xfb4] sm:$0xf]
    %v1769 = vld [vmem:[#allocation6 + $0xfb8] sm:$0xf]
    %v1770 = vld [vmem:[#allocation6 + $0xfbc] sm:$0xf]
    %v1771 = vld [vmem:[#allocation6 + $0xfc0] sm:$0xf]
    %v1772 = vld [vmem:[#allocation6 + $0xfc4] sm:$0xf]
    %v1773 = vld [vmem:[#allocation6 + $0xfc8] sm:$0xf]
    %v1774 = vld [vmem:[#allocation6 + $0xfcc] sm:$0xf]
    %v1775 = vld [vmem:[#allocation6 + $0xfd0] sm:$0xf]
    %v1776 = vld [vmem:[#allocation6 + $0xfd4] sm:$0xf]
    %v1777 = vld [vmem:[#allocation6 + $0xfd8] sm:$0xf]
    %v1778 = vld [vmem:[#allocation6 + $0xfdc] sm:$0xf]
    %v1779 = vld [vmem:[#allocation6 + $0xfe0] sm:$0xf]
    %v1780 = vld [vmem:[#allocation6 + $0xfe4] sm:$0xf]
    %v1781 = vld [vmem:[#allocation6 + $0xfe8] sm:$0xf]
    %v1782 = vld [vmem:[#allocation6 + $0xfec] sm:$0xf]
    %v1783 = vld [vmem:[#allocation6 + $0xff0] sm:$0xf]
    %v1784 = vld [vmem:[#allocation6 + $0xff4] sm:$0xf]
    %v1785 = vld [vmem:[#allocation6 + $0xff8] sm:$0xf]
    %v1786 = vld [vmem:[#allocation6 + $0xffc] sm:$0xf]
    %v1787 = vld [vmem:[#allocation6 + $0x1000] sm:$0xf]
    %v1788 = vld [vmem:[#allocation6 + $0x1004] sm:$0xf]
    %v1789 = vld [vmem:[#allocation6 + $0x1008] sm:$0xf]
    %v1790 = vld [vmem:[#allocation6 + $0x100c] sm:$0xf]
    %v1791 = vld [vmem:[#allocation6 + $0x1010] sm:$0xf]
    %v1792 = vld [vmem:[#allocation6 + $0x1014] sm:$0xf]
    %v1793 = vld [vmem:[#allocation6 + $0x1018] sm:$0xf]
    %v1794 = vld [vmem:[#allocation6 + $0x101c] sm:$0xf]
    %v1795 = vld [vmem:[#allocation6 + $0x1020] sm:$0xf]
    %v1796 = vld [vmem:[#allocation6 + $0x1024] sm:$0xf]
    %v1797 = vld [vmem:[#allocation6 + $0x1028] sm:$0xf]
    %v1798 = vld [vmem:[#allocation6 + $0x102c] sm:$0xf]
    %v1799 = vld [vmem:[#allocation6 + $0x1030] sm:$0xf]
    %v1800 = vld [vmem:[#allocation6 + $0x1034] sm:$0xf]
    %v1801 = vld [vmem:[#allocation6 + $0x1038] sm:$0xf]
    %v1802 = vld [vmem:[#allocation6 + $0x103c] sm:$0xf]
    %v1803 = vld [vmem:[#allocation6 + $0x1040] sm:$0xf]
    %v1804 = vld [vmem:[#allocation6 + $0x1044] sm:$0xf]
    %v1805 = vld [vmem:[#allocation6 + $0x1048] sm:$0xf]
    %v1806 = vld [vmem:[#allocation6 + $0x104c] sm:$0xf]
    %v1807 = vld [vmem:[#allocation6 + $0x1050] sm:$0xf]
    %v1808 = vld [vmem:[#allocation6 + $0x1054] sm:$0xf]
    %v1809 = vld [vmem:[#allocation6 + $0x1058] sm:$0xf]
    %v1810 = vld [vmem:[#allocation6 + $0x105c] sm:$0xf]
    %v1811 = vld [vmem:[#allocation6 + $0x1060] sm:$0xf]
    %v1812 = vld [vmem:[#allocation6 + $0x1064] sm:$0xf]
    %v1813 = vld [vmem:[#allocation6 + $0x1068] sm:$0xf]
    %v1814 = vld [vmem:[#allocation6 + $0x106c] sm:$0xf]
    %v1815 = vld [vmem:[#allocation6 + $0x1070] sm:$0xf]
    %v1816 = vld [vmem:[#allocation6 + $0x1074] sm:$0xf]
    %v1817 = vld [vmem:[#allocation6 + $0x1078] sm:$0xf]
    %v1818 = vld [vmem:[#allocation6 + $0x107c] sm:$0xf]
    %v1819 = vld [vmem:[#allocation6 + $0x1080] sm:$0xf]
    %v1820 = vld [vmem:[#allocation6 + $0x1084] sm:$0xf]
    %v1821 = vld [vmem:[#allocation6 + $0x1088] sm:$0xf]
    %v1822 = vld [vmem:[#allocation6 + $0x108c] sm:$0xf]
    %v1823 = vld [vmem:[#allocation6 + $0x1090] sm:$0xf]
    %v1824 = vld [vmem:[#allocation6 + $0x1094] sm:$0xf]
    %v1825 = vld [vmem:[#allocation6 + $0x1098] sm:$0xf]
    %v1826 = vld [vmem:[#allocation6 + $0x109c] sm:$0xf]
    %v1827 = vld [vmem:[#allocation6 + $0x10a0] sm:$0xf]
    %v1828 = vld [vmem:[#allocation6 + $0x10a4] sm:$0xf]
    %v1829 = vld [vmem:[#allocation6 + $0x10a8] sm:$0xf]
    %v1830 = vld [vmem:[#allocation6 + $0x10ac] sm:$0xf]
    %v1831 = vld [vmem:[#allocation6 + $0x10b0] sm:$0xf]
    %v1832 = vld [vmem:[#allocation6 + $0x10b4] sm:$0xf]
    %v1833 = vld [vmem:[#allocation6 + $0x10b8] sm:$0xf]
    %v1834 = vld [vmem:[#allocation6 + $0x10bc] sm:$0xf]
    %v1835 = vld [vmem:[#allocation6 + $0x10c0] sm:$0xf]
    %v1836 = vld [vmem:[#allocation6 + $0x10c4] sm:$0xf]
    %v1837 = vld [vmem:[#allocation6 + $0x10c8] sm:$0xf]
    %v1838 = vld [vmem:[#allocation6 + $0x10cc] sm:$0xf]
    %v1839 = vld [vmem:[#allocation6 + $0x10d0] sm:$0xf]
    %v1840 = vld [vmem:[#allocation6 + $0x10d4] sm:$0xf]
    %v1841 = vld [vmem:[#allocation6 + $0x10d8] sm:$0xf]
    %v1842 = vld [vmem:[#allocation6 + $0x10dc] sm:$0xf]
    %v1843 = vld [vmem:[#allocation6 + $0x10e0] sm:$0xf]
    %v1844 = vld [vmem:[#allocation6 + $0x10e4] sm:$0xf]
    %v1845 = vld [vmem:[#allocation6 + $0x10e8] sm:$0xf]
    %v1846 = vld [vmem:[#allocation6 + $0x10ec] sm:$0xf]
    %v1847 = vld [vmem:[#allocation6 + $0x10f0] sm:$0xf]
    %v1848 = vld [vmem:[#allocation6 + $0x10f4] sm:$0xf]
    %v1849 = vld [vmem:[#allocation6 + $0x10f8] sm:$0xf]
    %v1850 = vld [vmem:[#allocation6 + $0x10fc] sm:$0xf]
    %v1851 = vld [vmem:[#allocation6 + $0x1100] sm:$0xf]
    %v1852 = vld [vmem:[#allocation6 + $0x1104] sm:$0xf]
    %v1853 = vld [vmem:[#allocation6 + $0x1108] sm:$0xf]
    %v1854 = vld [vmem:[#allocation6 + $0x110c] sm:$0xf]
    %v1855 = vld [vmem:[#allocation6 + $0x1110] sm:$0xf]
    %v1856 = vld [vmem:[#allocation6 + $0x1114] sm:$0xf]
    %v1857 = vld [vmem:[#allocation6 + $0x1118] sm:$0xf]
    %v1858 = vld [vmem:[#allocation6 + $0x111c] sm:$0xf]
    %v1859 = vld [vmem:[#allocation6 + $0x1120] sm:$0xf]
    %v1860 = vld [vmem:[#allocation6 + $0x1124] sm:$0xf]
    %v1861 = vld [vmem:[#allocation6 + $0x1128] sm:$0xf]
    %v1862 = vld [vmem:[#allocation6 + $0x112c] sm:$0xf]
    %v1863 = vld [vmem:[#allocation6 + $0x1130] sm:$0xf]
    %v1864 = vld [vmem:[#allocation6 + $0x1134] sm:$0xf]
    %v1865 = vld [vmem:[#allocation6 + $0x1138] sm:$0xf]
    %v1866 = vld [vmem:[#allocation6 + $0x113c] sm:$0xf]
    %v1867 = vld [vmem:[#allocation6 + $0x1140] sm:$0xf]
    %v1868 = vld [vmem:[#allocation6 + $0x1144] sm:$0xf]
    %v1869 = vld [vmem:[#allocation6 + $0x1148] sm:$0xf]
    %v1870 = vld [vmem:[#allocation6 + $0x114c] sm:$0xf]
    %v1871 = vld [vmem:[#allocation6 + $0x1150] sm:$0xf]
    %v1872 = vld [vmem:[#allocation6 + $0x1154] sm:$0xf]
    %v1873 = vld [vmem:[#allocation6 + $0x1158] sm:$0xf]
    %v1874 = vld [vmem:[#allocation6 + $0x115c] sm:$0xf]
    %v1875 = vld [vmem:[#allocation6 + $0x1160] sm:$0xf]
    %v1876 = vld [vmem:[#allocation6 + $0x1164] sm:$0xf]
    %v1877 = vld [vmem:[#allocation6 + $0x1168] sm:$0xf]
    %v1878 = vld [vmem:[#allocation6 + $0x116c] sm:$0xf]
    %v1879 = vld [vmem:[#allocation6 + $0x1170] sm:$0xf]
    %v1880 = vld [vmem:[#allocation6 + $0x1174] sm:$0xf]
    %v1881 = vld [vmem:[#allocation6 + $0x1178] sm:$0xf]
    %v1882 = vld [vmem:[#allocation6 + $0x117c] sm:$0xf]
    %v1883 = vld [vmem:[#allocation6 + $0x1180] sm:$0xf]
    %v1884 = vld [vmem:[#allocation6 + $0x1184] sm:$0xf]
    %v1885 = vld [vmem:[#allocation6 + $0x1188] sm:$0xf]
    %v1886 = vld [vmem:[#allocation6 + $0x118c] sm:$0xf]
    %v1887 = vld [vmem:[#allocation6 + $0x1190] sm:$0xf]
    %v1888 = vld [vmem:[#allocation6 + $0x1194] sm:$0xf]
    %v1889 = vld [vmem:[#allocation6 + $0x1198] sm:$0xf]
    %v1890 = vld [vmem:[#allocation6 + $0x119c] sm:$0xf]
    %v1891 = vld [vmem:[#allocation6 + $0x11a0] sm:$0xf]
    %v1892 = vld [vmem:[#allocation6 + $0x11a4] sm:$0xf]
    %v1893 = vld [vmem:[#allocation6 + $0x11a8] sm:$0xf]
    %v1894 = vld [vmem:[#allocation6 + $0x11ac] sm:$0xf]
    %v1895 = vld [vmem:[#allocation6 + $0x11b0] sm:$0xf]
    %v1896 = vld [vmem:[#allocation6 + $0x11b4] sm:$0xf]
    %v1897 = vld [vmem:[#allocation6 + $0x11b8] sm:$0xf]
    %v1898 = vld [vmem:[#allocation6 + $0x11bc] sm:$0xf]
    %v1899 = vld [vmem:[#allocation6 + $0x11c0] sm:$0xf]
    %v1900 = vld [vmem:[#allocation6 + $0x11c4] sm:$0xf]
    %v1901 = vld [vmem:[#allocation6 + $0x11c8] sm:$0xf]
    %v1902 = vld [vmem:[#allocation6 + $0x11cc] sm:$0xf]
    %v1903 = vld [vmem:[#allocation6 + $0x11d0] sm:$0xf]
    %v1904 = vld [vmem:[#allocation6 + $0x11d4] sm:$0xf]
    %v1905 = vld [vmem:[#allocation6 + $0x11d8] sm:$0xf]
    %v1906 = vld [vmem:[#allocation6 + $0x11dc] sm:$0xf]
    %v1907 = vld [vmem:[#allocation6 + $0x11e0] sm:$0xf]
    %v1908 = vld [vmem:[#allocation6 + $0x11e4] sm:$0xf]
    %v1909 = vld [vmem:[#allocation6 + $0x11e8] sm:$0xf]
    %v1910 = vld [vmem:[#allocation6 + $0x11ec] sm:$0xf]
    %v1911 = vld [vmem:[#allocation6 + $0x11f0] sm:$0xf]
    %v1912 = vld [vmem:[#allocation6 + $0x11f4] sm:$0xf]
    %v1913 = vld [vmem:[#allocation6 + $0x11f8] sm:$0xf]
    %v1914 = vld [vmem:[#allocation6 + $0x11fc] sm:$0xf]
    %v1915 = vld [vmem:[#allocation6 + $0x1200] sm:$0xf]
    %v1916 = vld [vmem:[#allocation6 + $0x1204] sm:$0xf]
    %v1917 = vld [vmem:[#allocation6 + $0x1208] sm:$0xf]
    %v1918 = vld [vmem:[#allocation6 + $0x120c] sm:$0xf]
    %v1919 = vld [vmem:[#allocation6 + $0x1210] sm:$0xf]
    %v1920 = vld [vmem:[#allocation6 + $0x1214] sm:$0xf]
    %v1921 = vld [vmem:[#allocation6 + $0x1218] sm:$0xf]
    %v1922 = vld [vmem:[#allocation6 + $0x121c] sm:$0xf]
    %v1923 = vld [vmem:[#allocation6 + $0x1220] sm:$0xf]
    %v1924 = vld [vmem:[#allocation6 + $0x1224] sm:$0xf]
    %v1925 = vld [vmem:[#allocation6 + $0x1228] sm:$0xf]
    %v1926 = vld [vmem:[#allocation6 + $0x122c] sm:$0xf]
    %v1927 = vld [vmem:[#allocation6 + $0x1230] sm:$0xf]
    %v1928 = vld [vmem:[#allocation6 + $0x1234] sm:$0xf]
    %v1929 = vld [vmem:[#allocation6 + $0x1238] sm:$0xf]
    %v1930 = vld [vmem:[#allocation6 + $0x123c] sm:$0xf]
    %v1931 = vld [vmem:[#allocation6 + $0x1240] sm:$0xf]
    %v1932 = vld [vmem:[#allocation6 + $0x1244] sm:$0xf]
    %v1933 = vld [vmem:[#allocation6 + $0x1248] sm:$0xf]
    %v1934 = vld [vmem:[#allocation6 + $0x124c] sm:$0xf]
    %v1935 = vld [vmem:[#allocation6 + $0x1250] sm:$0xf]
    %v1936 = vld [vmem:[#allocation6 + $0x1254] sm:$0xf]
    %v1937 = vld [vmem:[#allocation6 + $0x1258] sm:$0xf]
    %v1938 = vld [vmem:[#allocation6 + $0x125c] sm:$0xf]
    %v1939 = vld [vmem:[#allocation6 + $0x1260] sm:$0xf]
    %v1940 = vld [vmem:[#allocation6 + $0x1264] sm:$0xf]
    %v1941 = vld [vmem:[#allocation6 + $0x1268] sm:$0xf]
    %v1942 = vld [vmem:[#allocation6 + $0x126c] sm:$0xf]
    %v1943 = vld [vmem:[#allocation6 + $0x1270] sm:$0xf]
    %v1944 = vld [vmem:[#allocation6 + $0x1274] sm:$0xf]
    %v1945 = vld [vmem:[#allocation6 + $0x1278] sm:$0xf]
    %v1946 = vld [vmem:[#allocation6 + $0x127c] sm:$0xf]
    %v1947 = vld [vmem:[#allocation6 + $0x1280] sm:$0xf]
    %v1948 = vld [vmem:[#allocation6 + $0x1284] sm:$0xf]
    %v1949 = vld [vmem:[#allocation6 + $0x1288] sm:$0xf]
    %v1950 = vld [vmem:[#allocation6 + $0x128c] sm:$0xf]
    %v1951 = vld [vmem:[#allocation6 + $0x1290] sm:$0xf]
    %v1952 = vld [vmem:[#allocation6 + $0x1294] sm:$0xf]
    %v1953 = vld [vmem:[#allocation6 + $0x1298] sm:$0xf]
    %v1954 = vld [vmem:[#allocation6 + $0x129c] sm:$0xf]
    %v1955 = vld [vmem:[#allocation6 + $0x12a0] sm:$0xf]
    %v1956 = vld [vmem:[#allocation6 + $0x12a4] sm:$0xf]
    %v1957 = vld [vmem:[#allocation6 + $0x12a8] sm:$0xf]
    %v1958 = vld [vmem:[#allocation6 + $0x12ac] sm:$0xf]
    %v1959 = vld [vmem:[#allocation6 + $0x12b0] sm:$0xf]
    %v1960 = vld [vmem:[#allocation6 + $0x12b4] sm:$0xf]
    %v1961 = vld [vmem:[#allocation6 + $0x12b8] sm:$0xf]
    %v1962 = vld [vmem:[#allocation6 + $0x12bc] sm:$0xf]
    %v1963 = vld [vmem:[#allocation6 + $0x12c0] sm:$0xf]
    %v1964 = vld [vmem:[#allocation6 + $0x12c4] sm:$0xf]
    %v1965 = vld [vmem:[#allocation6 + $0x12c8] sm:$0xf]
    %v1966 = vld [vmem:[#allocation6 + $0x12cc] sm:$0xf]
    %v1967 = vld [vmem:[#allocation6 + $0x12d0] sm:$0xf]
    %v1968 = vld [vmem:[#allocation6 + $0x12d4] sm:$0xf]
    %v1969 = vld [vmem:[#allocation6 + $0x12d8] sm:$0xf]
    %v1970 = vld [vmem:[#allocation6 + $0x12dc] sm:$0xf]
    %v1971 = vld [vmem:[#allocation6 + $0x12e0] sm:$0xf]
    %v1972 = vld [vmem:[#allocation6 + $0x12e4] sm:$0xf]
    %v1973 = vld [vmem:[#allocation6 + $0x12e8] sm:$0xf]
    %v1974 = vld [vmem:[#allocation6 + $0x12ec] sm:$0xf]
    %v1975 = vld [vmem:[#allocation6 + $0x12f0] sm:$0xf]
    %v1976 = vld [vmem:[#allocation6 + $0x12f4] sm:$0xf]
    %v1977 = vld [vmem:[#allocation6 + $0x12f8] sm:$0xf]
    %v1978 = vld [vmem:[#allocation6 + $0x12fc] sm:$0xf]
    %v1979 = vld [vmem:[#allocation6 + $0x1300] sm:$0xf]
    %v1980 = vld [vmem:[#allocation6 + $0x1304] sm:$0xf]
    %v1981 = vld [vmem:[#allocation6 + $0x1308] sm:$0xf]
    %v1982 = vld [vmem:[#allocation6 + $0x130c] sm:$0xf]
    %v1983 = vld [vmem:[#allocation6 + $0x1310] sm:$0xf]
    %v1984 = vld [vmem:[#allocation6 + $0x1314] sm:$0xf]
    %v1985 = vld [vmem:[#allocation6 + $0x1318] sm:$0xf]
    %v1986 = vld [vmem:[#allocation6 + $0x131c] sm:$0xf]
    %v1987 = vld [vmem:[#allocation6 + $0x1320] sm:$0xf]
    %v1988 = vld [vmem:[#allocation6 + $0x1324] sm:$0xf]
    %v1989 = vld [vmem:[#allocation6 + $0x1328] sm:$0xf]
    %v1990 = vld [vmem:[#allocation6 + $0x132c] sm:$0xf]
    %v1991 = vld [vmem:[#allocation6 + $0x1330] sm:$0xf]
    %v1992 = vld [vmem:[#allocation6 + $0x1334] sm:$0xf]
    %v1993 = vld [vmem:[#allocation6 + $0x1338] sm:$0xf]
    %v1994 = vld [vmem:[#allocation6 + $0x133c] sm:$0xf]
    %v1995 = vld [vmem:[#allocation6 + $0x1340] sm:$0xf]
    %v1996 = vld [vmem:[#allocation6 + $0x1344] sm:$0xf]
    %v1997 = vld [vmem:[#allocation6 + $0x1348] sm:$0xf]
    %v1998 = vld [vmem:[#allocation6 + $0x134c] sm:$0xf]
    %v1999 = vld [vmem:[#allocation6 + $0x1350] sm:$0xf]
    %v2000 = vld [vmem:[#allocation6 + $0x1354] sm:$0xf]
    %v2001 = vld [vmem:[#allocation6 + $0x1358] sm:$0xf]
    %v2002 = vld [vmem:[#allocation6 + $0x135c] sm:$0xf]
    %v2003 = vld [vmem:[#allocation6 + $0x1360] sm:$0xf]
    %v2004 = vld [vmem:[#allocation6 + $0x1364] sm:$0xf]
    %v2005 = vld [vmem:[#allocation6 + $0x1368] sm:$0xf]
    %v2006 = vld [vmem:[#allocation6 + $0x136c] sm:$0xf]
    %v2007 = vld [vmem:[#allocation6 + $0x1370] sm:$0xf]
    %v2008 = vld [vmem:[#allocation6 + $0x1374] sm:$0xf]
    %v2009 = vld [vmem:[#allocation6 + $0x1378] sm:$0xf]
    %v2010 = vld [vmem:[#allocation6 + $0x137c] sm:$0xf]
    %v2011 = vld [vmem:[#allocation6 + $0x1380] sm:$0xf]
    %v2012 = vld [vmem:[#allocation6 + $0x1384] sm:$0xf]
    %v2013 = vld [vmem:[#allocation6 + $0x1388] sm:$0xf]
    %v2014 = vld [vmem:[#allocation6 + $0x138c] sm:$0xf]
    %v2015 = vld [vmem:[#allocation6 + $0x1390] sm:$0xf]
    %v2016 = vld [vmem:[#allocation6 + $0x1394] sm:$0xf]
    %v2017 = vld [vmem:[#allocation6 + $0x1398] sm:$0xf]
    %v2018 = vld [vmem:[#allocation6 + $0x139c] sm:$0xf]
    %v2019 = vld [vmem:[#allocation6 + $0x13a0] sm:$0xf]
    %v2020 = vld [vmem:[#allocation6 + $0x13a4] sm:$0xf]
    %v2021 = vld [vmem:[#allocation6 + $0x13a8] sm:$0xf]
    %v2022 = vld [vmem:[#allocation6 + $0x13ac] sm:$0xf]
    %v2023 = vld [vmem:[#allocation6 + $0x13b0] sm:$0xf]
    %v2024 = vld [vmem:[#allocation6 + $0x13b4] sm:$0xf]
    %v2025 = vld [vmem:[#allocation6 + $0x13b8] sm:$0xf]
    %v2026 = vld [vmem:[#allocation6 + $0x13bc] sm:$0xf]
    %v2027 = vld [vmem:[#allocation6 + $0x13c0] sm:$0xf]
    %v2028 = vld [vmem:[#allocation6 + $0x13c4] sm:$0xf]
    %v2029 = vld [vmem:[#allocation6 + $0x13c8] sm:$0xf]
    %v2030 = vld [vmem:[#allocation6 + $0x13cc] sm:$0xf]
    %v2031 = vld [vmem:[#allocation6 + $0x13d0] sm:$0xf]
    %v2032 = vld [vmem:[#allocation6 + $0x13d4] sm:$0xf]
    %v2033 = vld [vmem:[#allocation6 + $0x13d8] sm:$0xf]
    %v2034 = vld [vmem:[#allocation6 + $0x13dc] sm:$0xf]
    %v2035 = vld [vmem:[#allocation6 + $0x13e0] sm:$0xf]
    %v2036 = vld [vmem:[#allocation6 + $0x13e4] sm:$0xf]
    %v2037 = vld [vmem:[#allocation6 + $0x13e8] sm:$0xf]
    %v2038 = vld [vmem:[#allocation6 + $0x13ec] sm:$0xf]
    %v2039 = vld [vmem:[#allocation6 + $0x13f0] sm:$0xf]
    %v2040 = vld [vmem:[#allocation6 + $0x13f4] sm:$0xf]
    %v2041 = vld [vmem:[#allocation6 + $0x13f8] sm:$0xf]
    %v2042 = vld [vmem:[#allocation6 + $0x13fc] sm:$0xf]
    %v2043 = vld [vmem:[#allocation6 + $0x1400] sm:$0xf]
    %v2044 = vld [vmem:[#allocation6 + $0x1404] sm:$0xf]
    %v2045 = vld [vmem:[#allocation6 + $0x1408] sm:$0xf]
    %v2046 = vld [vmem:[#allocation6 + $0x140c] sm:$0xf]
    %v2047 = vld [vmem:[#allocation6 + $0x1410] sm:$0xf]
    %v2048 = vld [vmem:[#allocation6 + $0x1414] sm:$0xf]
    %v2049 = vld [vmem:[#allocation6 + $0x1418] sm:$0xf]
    %v2050 = vld [vmem:[#allocation6 + $0x141c] sm:$0xf]
    %v2051 = vld [vmem:[#allocation6 + $0x1420] sm:$0xf]
    %v2052 = vld [vmem:[#allocation6 + $0x1424] sm:$0xf]
    %v2053 = vld [vmem:[#allocation6 + $0x1428] sm:$0xf]
    %v2054 = vld [vmem:[#allocation6 + $0x142c] sm:$0xf]
    %v2055 = vld [vmem:[#allocation6 + $0x1430] sm:$0xf]
    %v2056 = vld [vmem:[#allocation6 + $0x1434] sm:$0xf]
    %v2057 = vld [vmem:[#allocation6 + $0x1438] sm:$0xf]
    %v2058 = vld [vmem:[#allocation6 + $0x143c] sm:$0xf]
    %v2059 = vld [vmem:[#allocation6 + $0x1440] sm:$0xf]
    %v2060 = vld [vmem:[#allocation6 + $0x1444] sm:$0xf]
    %v2061 = vld [vmem:[#allocation6 + $0x1448] sm:$0xf]
    %v2062 = vld [vmem:[#allocation6 + $0x144c] sm:$0xf]
    %v2063 = vld [vmem:[#allocation6 + $0x1450] sm:$0xf]
    %v2064 = vld [vmem:[#allocation6 + $0x1454] sm:$0xf]
    %v2065 = vld [vmem:[#allocation6 + $0x1458] sm:$0xf]
    %v2066 = vld [vmem:[#allocation6 + $0x145c] sm:$0xf]
    %v2067 = vld [vmem:[#allocation6 + $0x1460] sm:$0xf]
    %v2068 = vld [vmem:[#allocation6 + $0x1464] sm:$0xf]
    %v2069 = vld [vmem:[#allocation6 + $0x1468] sm:$0xf]
    %v2070 = vld [vmem:[#allocation6 + $0x146c] sm:$0xf]
    %v2071 = vld [vmem:[#allocation6 + $0x1470] sm:$0xf]
    %v2072 = vld [vmem:[#allocation6 + $0x1474] sm:$0xf]
    %v2073 = vld [vmem:[#allocation6 + $0x1478] sm:$0xf]
    %v2074 = vld [vmem:[#allocation6 + $0x147c] sm:$0xf]
    %v2075 = vld [vmem:[#allocation6 + $0x1480] sm:$0xf]
    %v2076 = vld [vmem:[#allocation6 + $0x1484] sm:$0xf]
    %v2077 = vld [vmem:[#allocation6 + $0x1488] sm:$0xf]
    %v2078 = vld [vmem:[#allocation6 + $0x148c] sm:$0xf]
    %v2079 = vld [vmem:[#allocation6 + $0x1490] sm:$0xf]
    %v2080 = vld [vmem:[#allocation6 + $0x1494] sm:$0xf]
    %v2081 = vld [vmem:[#allocation6 + $0x1498] sm:$0xf]
    %v2082 = vld [vmem:[#allocation6 + $0x149c] sm:$0xf]
    %v2083 = vld [vmem:[#allocation6 + $0x14a0] sm:$0xf]
    %v2084 = vld [vmem:[#allocation6 + $0x14a4] sm:$0xf]
    %v2085 = vld [vmem:[#allocation6 + $0x14a8] sm:$0xf]
    %v2086 = vld [vmem:[#allocation6 + $0x14ac] sm:$0xf]
    %v2087 = vld [vmem:[#allocation6 + $0x14b0] sm:$0xf]
    %v2088 = vld [vmem:[#allocation6 + $0x14b4] sm:$0xf]
    %v2089 = vld [vmem:[#allocation6 + $0x14b8] sm:$0xf]
    %v2090 = vld [vmem:[#allocation6 + $0x14bc] sm:$0xf]
    %v2091 = vld [vmem:[#allocation6 + $0x14c0] sm:$0xf]
    %v2092 = vld [vmem:[#allocation6 + $0x14c4] sm:$0xf]
    %v2093 = vld [vmem:[#allocation6 + $0x14c8] sm:$0xf]
    %v2094 = vld [vmem:[#allocation6 + $0x14cc] sm:$0xf]
    %v2095 = vld [vmem:[#allocation6 + $0x14d0] sm:$0xf]
    %v2096 = vld [vmem:[#allocation6 + $0x14d4] sm:$0xf]
    %v2097 = vld [vmem:[#allocation6 + $0x14d8] sm:$0xf]
    %v2098 = vld [vmem:[#allocation6 + $0x14dc] sm:$0xf]
    %v2099 = vld [vmem:[#allocation6 + $0x14e0] sm:$0xf]
    %v2100 = vld [vmem:[#allocation6 + $0x14e4] sm:$0xf]
    %v2101 = vld [vmem:[#allocation6 + $0x14e8] sm:$0xf]
    %v2102 = vld [vmem:[#allocation6 + $0x14ec] sm:$0xf]
    %v2103 = vld [vmem:[#allocation6 + $0x14f0] sm:$0xf]
    %v2104 = vld [vmem:[#allocation6 + $0x14f4] sm:$0xf]
    %v2105 = vld [vmem:[#allocation6 + $0x14f8] sm:$0xf]
    %v2106 = vld [vmem:[#allocation6 + $0x14fc] sm:$0xf]
    %v2107 = vld [vmem:[#allocation6 + $0x1500] sm:$0xf]
    %v2108 = vld [vmem:[#allocation6 + $0x1504] sm:$0xf]
    %v2109 = vld [vmem:[#allocation6 + $0x1508] sm:$0xf]
    %v2110 = vld [vmem:[#allocation6 + $0x150c] sm:$0xf]
    %v2111 = vld [vmem:[#allocation6 + $0x1510] sm:$0xf]
    %v2112 = vld [vmem:[#allocation6 + $0x1514] sm:$0xf]
    %v2113 = vld [vmem:[#allocation6 + $0x1518] sm:$0xf]
    %v2114 = vld [vmem:[#allocation6 + $0x151c] sm:$0xf]
    %v2115 = vld [vmem:[#allocation6 + $0x1520] sm:$0xf]
    %v2116 = vld [vmem:[#allocation6 + $0x1524] sm:$0xf]
    %v2117 = vld [vmem:[#allocation6 + $0x1528] sm:$0xf]
    %v2118 = vld [vmem:[#allocation6 + $0x152c] sm:$0xf]
    %v2119 = vld [vmem:[#allocation6 + $0x1530] sm:$0xf]
    %v2120 = vld [vmem:[#allocation6 + $0x1534] sm:$0xf]
    %v2121 = vld [vmem:[#allocation6 + $0x1538] sm:$0xf]
    %v2122 = vld [vmem:[#allocation6 + $0x153c] sm:$0xf]
    %v2123 = vld [vmem:[#allocation6 + $0x1540] sm:$0xf]
    %v2124 = vld [vmem:[#allocation6 + $0x1544] sm:$0xf]
    %v2125 = vld [vmem:[#allocation6 + $0x1548] sm:$0xf]
    %v2126 = vld [vmem:[#allocation6 + $0x154c] sm:$0xf]
    %v2127 = vld [vmem:[#allocation6 + $0x1550] sm:$0xf]
    %v2128 = vld [vmem:[#allocation6 + $0x1554] sm:$0xf]
    %v2129 = vld [vmem:[#allocation6 + $0x1558] sm:$0xf]
    %v2130 = vld [vmem:[#allocation6 + $0x155c] sm:$0xf]
    %v2131 = vld [vmem:[#allocation6 + $0x1560] sm:$0xf]
    %v2132 = vld [vmem:[#allocation6 + $0x1564] sm:$0xf]
    %v2133 = vld [vmem:[#allocation6 + $0x1568] sm:$0xf]
    %v2134 = vld [vmem:[#allocation6 + $0x156c] sm:$0xf]
    %v2135 = vld [vmem:[#allocation6 + $0x1570] sm:$0xf]
    %v2136 = vld [vmem:[#allocation6 + $0x1574] sm:$0xf]
    %v2137 = vld [vmem:[#allocation6 + $0x1578] sm:$0xf]
    %v2138 = vld [vmem:[#allocation6 + $0x157c] sm:$0xf]
    %v2139 = vld [vmem:[#allocation6 + $0x1580] sm:$0xf]
    %v2140 = vld [vmem:[#allocation6 + $0x1584] sm:$0xf]
    %v2141 = vld [vmem:[#allocation6 + $0x1588] sm:$0xf]
    %v2142 = vld [vmem:[#allocation6 + $0x158c] sm:$0xf]
    %v2143 = vld [vmem:[#allocation6 + $0x1590] sm:$0xf]
    %v2144 = vld [vmem:[#allocation6 + $0x1594] sm:$0xf]
    %v2145 = vld [vmem:[#allocation6 + $0x1598] sm:$0xf]
    %v2146 = vld [vmem:[#allocation6 + $0x159c] sm:$0xf]
    %v2147 = vld [vmem:[#allocation6 + $0x15a0] sm:$0xf]
    %v2148 = vld [vmem:[#allocation6 + $0x15a4] sm:$0xf]
    %v2149 = vld [vmem:[#allocation6 + $0x15a8] sm:$0xf]
    %v2150 = vld [vmem:[#allocation6 + $0x15ac] sm:$0xf]
    %v2151 = vld [vmem:[#allocation6 + $0x15b0] sm:$0xf]
    %v2152 = vld [vmem:[#allocation6 + $0x15b4] sm:$0xf]
    %v2153 = vld [vmem:[#allocation6 + $0x15b8] sm:$0xf]
    %v2154 = vld [vmem:[#allocation6 + $0x15bc] sm:$0xf]
    %v2155 = vld [vmem:[#allocation6 + $0x15c0] sm:$0xf]
    %v2156 = vld [vmem:[#allocation6 + $0x15c4] sm:$0xf]
    %v2157 = vld [vmem:[#allocation6 + $0x15c8] sm:$0xf]
    %v2158 = vld [vmem:[#allocation6 + $0x15cc] sm:$0xf]
    %v2159 = vld [vmem:[#allocation6 + $0x15d0] sm:$0xf]
    %v2160 = vld [vmem:[#allocation6 + $0x15d4] sm:$0xf]
    %v2161 = vld [vmem:[#allocation6 + $0x15d8] sm:$0xf]
    %v2162 = vld [vmem:[#allocation6 + $0x15dc] sm:$0xf]
    %v2163 = vld [vmem:[#allocation6 + $0x15e0] sm:$0xf]
    %v2164 = vld [vmem:[#allocation6 + $0x15e4] sm:$0xf]
    %v2165 = vld [vmem:[#allocation6 + $0x15e8] sm:$0xf]
    %v2166 = vld [vmem:[#allocation6 + $0x15ec] sm:$0xf]
    %v2167 = vld [vmem:[#allocation6 + $0x15f0] sm:$0xf]
    %v2168 = vld [vmem:[#allocation6 + $0x15f4] sm:$0xf]
    %v2169 = vld [vmem:[#allocation6 + $0x15f8] sm:$0xf]
    %v2170 = vld [vmem:[#allocation6 + $0x15fc] sm:$0xf]
    %v2171 = vld [vmem:[#allocation6 + $0x1600] sm:$0xf]
    %v2172 = vld [vmem:[#allocation6 + $0x1604] sm:$0xf]
    %v2173 = vld [vmem:[#allocation6 + $0x1608] sm:$0xf]
    %v2174 = vld [vmem:[#allocation6 + $0x160c] sm:$0xf]
    %v2175 = vld [vmem:[#allocation6 + $0x1610] sm:$0xf]
    %v2176 = vld [vmem:[#allocation6 + $0x1614] sm:$0xf]
    %v2177 = vld [vmem:[#allocation6 + $0x1618] sm:$0xf]
    %v2178 = vld [vmem:[#allocation6 + $0x161c] sm:$0xf]
    %v2179 = vld [vmem:[#allocation6 + $0x1620] sm:$0xf]
    %v2180 = vld [vmem:[#allocation6 + $0x1624] sm:$0xf]
    %v2181 = vld [vmem:[#allocation6 + $0x1628] sm:$0xf]
    %v2182 = vld [vmem:[#allocation6 + $0x162c] sm:$0xf]
    %v2183 = vld [vmem:[#allocation6 + $0x1630] sm:$0xf]
    %v2184 = vld [vmem:[#allocation6 + $0x1634] sm:$0xf]
    %v2185 = vld [vmem:[#allocation6 + $0x1638] sm:$0xf]
    %v2186 = vld [vmem:[#allocation6 + $0x163c] sm:$0xf]
    %v2187 = vld [vmem:[#allocation6 + $0x1640] sm:$0xf]
    %v2188 = vld [vmem:[#allocation6 + $0x1644] sm:$0xf]
    %v2189 = vld [vmem:[#allocation6 + $0x1648] sm:$0xf]
    %v2190 = vld [vmem:[#allocation6 + $0x164c] sm:$0xf]
    %v2191 = vld [vmem:[#allocation6 + $0x1650] sm:$0xf]
    %v2192 = vld [vmem:[#allocation6 + $0x1654] sm:$0xf]
    %v2193 = vld [vmem:[#allocation6 + $0x1658] sm:$0xf]
    %v2194 = vld [vmem:[#allocation6 + $0x165c] sm:$0xf]
    %v2195 = vld [vmem:[#allocation6 + $0x1660] sm:$0xf]
    %v2196 = vld [vmem:[#allocation6 + $0x1664] sm:$0xf]
    %v2197 = vld [vmem:[#allocation6 + $0x1668] sm:$0xf]
    %v2198 = vld [vmem:[#allocation6 + $0x166c] sm:$0xf]
    %v2199 = vld [vmem:[#allocation6 + $0x1670] sm:$0xf]
    %v2200 = vld [vmem:[#allocation6 + $0x1674] sm:$0xf]
    %v2201 = vld [vmem:[#allocation6 + $0x1678] sm:$0xf]
    %v2202 = vld [vmem:[#allocation6 + $0x167c] sm:$0xf]
    %v2203 = vld [vmem:[#allocation6 + $0x1680] sm:$0xf]
    %v2204 = vld [vmem:[#allocation6 + $0x1684] sm:$0xf]
    %v2205 = vld [vmem:[#allocation6 + $0x1688] sm:$0xf]
    %v2206 = vld [vmem:[#allocation6 + $0x168c] sm:$0xf]
    %v2207 = vld [vmem:[#allocation6 + $0x1690] sm:$0xf]
    %v2208 = vld [vmem:[#allocation6 + $0x1694] sm:$0xf]
    %v2209 = vld [vmem:[#allocation6 + $0x1698] sm:$0xf]
    %v2210 = vld [vmem:[#allocation6 + $0x169c] sm:$0xf]
    %v2211 = vld [vmem:[#allocation6 + $0x16a0] sm:$0xf]
    %v2212 = vld [vmem:[#allocation6 + $0x16a4] sm:$0xf]
    %v2213 = vld [vmem:[#allocation6 + $0x16a8] sm:$0xf]
    %v2214 = vld [vmem:[#allocation6 + $0x16ac] sm:$0xf]
    %v2215 = vld [vmem:[#allocation6 + $0x16b0] sm:$0xf]
    %v2216 = vld [vmem:[#allocation6 + $0x16b4] sm:$0xf]
    %v2217 = vld [vmem:[#allocation6 + $0x16b8] sm:$0xf]
    %v2218 = vld [vmem:[#allocation6 + $0x16bc] sm:$0xf]
    %v2219 = vld [vmem:[#allocation6 + $0x16c0] sm:$0xf]
    %v2220 = vld [vmem:[#allocation6 + $0x16c4] sm:$0xf]
    %v2221 = vld [vmem:[#allocation6 + $0x16c8] sm:$0xf]
    %v2222 = vld [vmem:[#allocation6 + $0x16cc] sm:$0xf]
    %v2223 = vld [vmem:[#allocation6 + $0x16d0] sm:$0xf]
    %v2224 = vld [vmem:[#allocation6 + $0x16d4] sm:$0xf]
    %v2225 = vld [vmem:[#allocation6 + $0x16d8] sm:$0xf]
    %v2226 = vld [vmem:[#allocation6 + $0x16dc] sm:$0xf]
    %v2227 = vld [vmem:[#allocation6 + $0x16e0] sm:$0xf]
    %v2228 = vld [vmem:[#allocation6 + $0x16e4] sm:$0xf]
    %v2229 = vld [vmem:[#allocation6 + $0x16e8] sm:$0xf]
    %v2230 = vld [vmem:[#allocation6 + $0x16ec] sm:$0xf]
    %v2231 = vld [vmem:[#allocation6 + $0x16f0] sm:$0xf]
    %v2232 = vld [vmem:[#allocation6 + $0x16f4] sm:$0xf]
    %v2233 = vld [vmem:[#allocation6 + $0x16f8] sm:$0xf]
    %v2234 = vld [vmem:[#allocation6 + $0x16fc] sm:$0xf]
    %v2235 = vld [vmem:[#allocation6 + $0x1700] sm:$0xf]
    %v2236 = vld [vmem:[#allocation6 + $0x1704] sm:$0xf]
    %v2237 = vld [vmem:[#allocation6 + $0x1708] sm:$0xf]
    %v2238 = vld [vmem:[#allocation6 + $0x170c] sm:$0xf]
    %v2239 = vld [vmem:[#allocation6 + $0x1710] sm:$0xf]
    %v2240 = vld [vmem:[#allocation6 + $0x1714] sm:$0xf]
    %v2241 = vld [vmem:[#allocation6 + $0x1718] sm:$0xf]
    %v2242 = vld [vmem:[#allocation6 + $0x171c] sm:$0xf]
    %v2243 = vld [vmem:[#allocation6 + $0x1720] sm:$0xf]
    %v2244 = vld [vmem:[#allocation6 + $0x1724] sm:$0xf]
    %v2245 = vld [vmem:[#allocation6 + $0x1728] sm:$0xf]
    %v2246 = vld [vmem:[#allocation6 + $0x172c] sm:$0xf]
    %v2247 = vld [vmem:[#allocation6 + $0x1730] sm:$0xf]
    %v2248 = vld [vmem:[#allocation6 + $0x1734] sm:$0xf]
    %v2249 = vld [vmem:[#allocation6 + $0x1738] sm:$0xf]
    %v2250 = vld [vmem:[#allocation6 + $0x173c] sm:$0xf]
    %v2251 = vld [vmem:[#allocation6 + $0x1740] sm:$0xf]
    %v2252 = vld [vmem:[#allocation6 + $0x1744] sm:$0xf]
    %v2253 = vld [vmem:[#allocation6 + $0x1748] sm:$0xf]
    %v2254 = vld [vmem:[#allocation6 + $0x174c] sm:$0xf]
    %v2255 = vld [vmem:[#allocation6 + $0x1750] sm:$0xf]
    %v2256 = vld [vmem:[#allocation6 + $0x1754] sm:$0xf]
    %v2257 = vld [vmem:[#allocation6 + $0x1758] sm:$0xf]
    %v2258 = vld [vmem:[#allocation6 + $0x175c] sm:$0xf]
    %v2259 = vld [vmem:[#allocation6 + $0x1760] sm:$0xf]
    %v2260 = vld [vmem:[#allocation6 + $0x1764] sm:$0xf]
    %v2261 = vld [vmem:[#allocation6 + $0x1768] sm:$0xf]
    %v2262 = vld [vmem:[#allocation6 + $0x176c] sm:$0xf]
    %v2263 = vld [vmem:[#allocation6 + $0x1770] sm:$0xf]
    %v2264 = vld [vmem:[#allocation6 + $0x1774] sm:$0xf]
    %v2265 = vld [vmem:[#allocation6 + $0x1778] sm:$0xf]
    %v2266 = vld [vmem:[#allocation6 + $0x177c] sm:$0xf]
    %v2267 = vld [vmem:[#allocation6 + $0x1780] sm:$0xf]
    %v2268 = vld [vmem:[#allocation6 + $0x1784] sm:$0xf]
    %v2269 = vld [vmem:[#allocation6 + $0x1788] sm:$0xf]
    %v2270 = vld [vmem:[#allocation6 + $0x178c] sm:$0xf]
    %v2271 = vld [vmem:[#allocation6 + $0x1790] sm:$0xf]
    %v2272 = vld [vmem:[#allocation6 + $0x1794] sm:$0xf]
    %v2273 = vld [vmem:[#allocation6 + $0x1798] sm:$0xf]
    %v2274 = vld [vmem:[#allocation6 + $0x179c] sm:$0xf]
    %v2275 = vld [vmem:[#allocation6 + $0x17a0] sm:$0xf]
    %v2276 = vld [vmem:[#allocation6 + $0x17a4] sm:$0xf]
    %v2277 = vld [vmem:[#allocation6 + $0x17a8] sm:$0xf]
    %v2278 = vld [vmem:[#allocation6 + $0x17ac] sm:$0xf]
    %v2279 = vld [vmem:[#allocation6 + $0x17b0] sm:$0xf]
    %v2280 = vld [vmem:[#allocation6 + $0x17b4] sm:$0xf]
    %v2281 = vld [vmem:[#allocation6 + $0x17b8] sm:$0xf]
    %v2282 = vld [vmem:[#allocation6 + $0x17bc] sm:$0xf]
    %v2283 = vld [vmem:[#allocation6 + $0x17c0] sm:$0xf]
    %v2284 = vld [vmem:[#allocation6 + $0x17c4] sm:$0xf]
    %v2285 = vld [vmem:[#allocation6 + $0x17c8] sm:$0xf]
    %v2286 = vld [vmem:[#allocation6 + $0x17cc] sm:$0xf]
    %v2287 = vld [vmem:[#allocation6 + $0x17d0] sm:$0xf]
    %v2288 = vld [vmem:[#allocation6 + $0x17d4] sm:$0xf]
    %v2289 = vld [vmem:[#allocation6 + $0x17d8] sm:$0xf]
    %v2290 = vld [vmem:[#allocation6 + $0x17dc] sm:$0xf]
    %v2291 = vld [vmem:[#allocation6 + $0x17e0] sm:$0xf]
    %v2292 = vld [vmem:[#allocation6 + $0x17e4] sm:$0xf]
    %v2293 = vld [vmem:[#allocation6 + $0x17e8] sm:$0xf]
    %v2294 = vld [vmem:[#allocation6 + $0x17ec] sm:$0xf]
    %v2295 = vld [vmem:[#allocation6 + $0x17f0] sm:$0xf]
    %v2296 = vld [vmem:[#allocation6 + $0x17f4] sm:$0xf]
    %v2297 = vld [vmem:[#allocation6 + $0x17f8] sm:$0xf]
    %v2298 = vld [vmem:[#allocation6 + $0x17fc] sm:$0xf]
    %v3835 = vunpack.c.l.b16 %v763
    %v3836 = vunpack.c.l.b16 %v764
    %v3837 = vunpack.c.l.b16 %v765
    %v3838 = vunpack.c.l.b16 %v766
    %v3839 = vunpack.c.l.b16 %v767
    %v3840 = vunpack.c.l.b16 %v768
    %v3841 = vunpack.c.l.b16 %v769
    %v3842 = vunpack.c.l.b16 %v770
    %v3843 = vunpack.c.l.b16 %v771
    %v3844 = vunpack.c.l.b16 %v772
    %v3845 = vunpack.c.l.b16 %v773
    %v3846 = vunpack.c.l.b16 %v774
    %v3847 = vunpack.c.l.b16 %v775
    %v3848 = vunpack.c.l.b16 %v776
    %v3849 = vunpack.c.l.b16 %v777
    %v3850 = vunpack.c.l.b16 %v778
    %v3851 = vunpack.c.l.b16 %v779
    %v3852 = vunpack.c.l.b16 %v780
    %v3853 = vunpack.c.l.b16 %v781
    %v3854 = vunpack.c.l.b16 %v782
    %v3855 = vunpack.c.l.b16 %v783
    %v3856 = vunpack.c.l.b16 %v784
    %v3857 = vunpack.c.l.b16 %v785
    %v3858 = vunpack.c.l.b16 %v786
    %v3859 = vunpack.c.l.b16 %v787
    %v3860 = vunpack.c.l.b16 %v788
    %v3861 = vunpack.c.l.b16 %v789
    %v3862 = vunpack.c.l.b16 %v790
    %v3863 = vunpack.c.l.b16 %v791
    %v3864 = vunpack.c.l.b16 %v792
    %v3865 = vunpack.c.l.b16 %v793
    %v3866 = vunpack.c.l.b16 %v794
    %v3867 = vunpack.c.l.b16 %v795
    %v3868 = vunpack.c.l.b16 %v796
    %v3869 = vunpack.c.l.b16 %v797
    %v3870 = vunpack.c.l.b16 %v798
    %v3871 = vunpack.c.l.b16 %v799
    %v3872 = vunpack.c.l.b16 %v800
    %v3873 = vunpack.c.l.b16 %v801
    %v3874 = vunpack.c.l.b16 %v802
    %v3875 = vunpack.c.l.b16 %v803
    %v3876 = vunpack.c.l.b16 %v804
    %v3877 = vunpack.c.l.b16 %v805
    %v3878 = vunpack.c.l.b16 %v806
    %v3879 = vunpack.c.l.b16 %v807
    %v3880 = vunpack.c.l.b16 %v808
    %v3881 = vunpack.c.l.b16 %v809
    %v3882 = vunpack.c.l.b16 %v810
    %v3883 = vunpack.c.l.b16 %v811
    %v3884 = vunpack.c.l.b16 %v812
    %v3885 = vunpack.c.l.b16 %v813
    %v3886 = vunpack.c.l.b16 %v814
    %v3887 = vunpack.c.l.b16 %v815
    %v3888 = vunpack.c.l.b16 %v816
    %v3889 = vunpack.c.l.b16 %v817
    %v3890 = vunpack.c.l.b16 %v818
    %v3891 = vunpack.c.l.b16 %v819
    %v3892 = vunpack.c.l.b16 %v820
    %v3893 = vunpack.c.l.b16 %v821
    %v3894 = vunpack.c.l.b16 %v822
    %v3895 = vunpack.c.l.b16 %v823
    %v3896 = vunpack.c.l.b16 %v824
    %v3897 = vunpack.c.l.b16 %v825
    %v3898 = vunpack.c.l.b16 %v826
    %v3899 = vunpack.c.l.b16 %v827
    %v3900 = vunpack.c.l.b16 %v828
    %v3901 = vunpack.c.l.b16 %v829
    %v3902 = vunpack.c.l.b16 %v830
    %v3903 = vunpack.c.l.b16 %v831
    %v3904 = vunpack.c.l.b16 %v832
    %v3905 = vunpack.c.l.b16 %v833
    %v3906 = vunpack.c.l.b16 %v834
    %v3907 = vunpack.c.l.b16 %v835
    %v3908 = vunpack.c.l.b16 %v836
    %v3909 = vunpack.c.l.b16 %v837
    %v3910 = vunpack.c.l.b16 %v838
    %v3911 = vunpack.c.l.b16 %v839
    %v3912 = vunpack.c.l.b16 %v840
    %v3913 = vunpack.c.l.b16 %v841
    %v3914 = vunpack.c.l.b16 %v842
    %v3915 = vunpack.c.l.b16 %v843
    %v3916 = vunpack.c.l.b16 %v844
    %v3917 = vunpack.c.l.b16 %v845
    %v3918 = vunpack.c.l.b16 %v846
    %v3919 = vunpack.c.l.b16 %v847
    %v3920 = vunpack.c.l.b16 %v848
    %v3921 = vunpack.c.l.b16 %v849
    %v3922 = vunpack.c.l.b16 %v850
    %v3923 = vunpack.c.l.b16 %v851
    %v3924 = vunpack.c.l.b16 %v852
    %v3925 = vunpack.c.l.b16 %v853
    %v3926 = vunpack.c.l.b16 %v854
    %v3927 = vunpack.c.l.b16 %v855
    %v3928 = vunpack.c.l.b16 %v856
    %v3929 = vunpack.c.l.b16 %v857
    %v3930 = vunpack.c.l.b16 %v858
    %v3931 = vunpack.c.l.b16 %v859
    %v3932 = vunpack.c.l.b16 %v860
    %v3933 = vunpack.c.l.b16 %v861
    %v3934 = vunpack.c.l.b16 %v862
    %v3935 = vunpack.c.l.b16 %v863
    %v3936 = vunpack.c.l.b16 %v864
    %v3937 = vunpack.c.l.b16 %v865
    %v3938 = vunpack.c.l.b16 %v866
    %v3939 = vunpack.c.l.b16 %v867
    %v3940 = vunpack.c.l.b16 %v868
    %v3941 = vunpack.c.l.b16 %v869
    %v3942 = vunpack.c.l.b16 %v870
    %v3943 = vunpack.c.l.b16 %v871
    %v3944 = vunpack.c.l.b16 %v872
    %v3945 = vunpack.c.l.b16 %v873
    %v3946 = vunpack.c.l.b16 %v874
    %v3947 = vunpack.c.l.b16 %v875
    %v3948 = vunpack.c.l.b16 %v876
    %v3949 = vunpack.c.l.b16 %v877
    %v3950 = vunpack.c.l.b16 %v878
    %v3951 = vunpack.c.l.b16 %v879
    %v3952 = vunpack.c.l.b16 %v880
    %v3953 = vunpack.c.l.b16 %v881
    %v3954 = vunpack.c.l.b16 %v882
    %v3955 = vunpack.c.l.b16 %v883
    %v3956 = vunpack.c.l.b16 %v884
    %v3957 = vunpack.c.l.b16 %v885
    %v3958 = vunpack.c.l.b16 %v886
    %v3959 = vunpack.c.l.b16 %v887
    %v3960 = vunpack.c.l.b16 %v888
    %v3961 = vunpack.c.l.b16 %v889
    %v3962 = vunpack.c.l.b16 %v890
    %v3963 = vunpack.c.l.b16 %v891
    %v3964 = vunpack.c.l.b16 %v892
    %v3965 = vunpack.c.l.b16 %v893
    %v3966 = vunpack.c.l.b16 %v894
    %v3967 = vunpack.c.l.b16 %v895
    %v3968 = vunpack.c.l.b16 %v896
    %v3969 = vunpack.c.l.b16 %v897
    %v3970 = vunpack.c.l.b16 %v898
    %v3971 = vunpack.c.l.b16 %v899
    %v3972 = vunpack.c.l.b16 %v900
    %v3973 = vunpack.c.l.b16 %v901
    %v3974 = vunpack.c.l.b16 %v902
    %v3975 = vunpack.c.l.b16 %v903
    %v3976 = vunpack.c.l.b16 %v904
    %v3977 = vunpack.c.l.b16 %v905
    %v3978 = vunpack.c.l.b16 %v906
    %v3979 = vunpack.c.l.b16 %v907
    %v3980 = vunpack.c.l.b16 %v908
    %v3981 = vunpack.c.l.b16 %v909
    %v3982 = vunpack.c.l.b16 %v910
    %v3983 = vunpack.c.l.b16 %v911
    %v3984 = vunpack.c.l.b16 %v912
    %v3985 = vunpack.c.l.b16 %v913
    %v3986 = vunpack.c.l.b16 %v914
    %v3987 = vunpack.c.l.b16 %v915
    %v3988 = vunpack.c.l.b16 %v916
    %v3989 = vunpack.c.l.b16 %v917
    %v3990 = vunpack.c.l.b16 %v918
    %v3991 = vunpack.c.l.b16 %v919
    %v3992 = vunpack.c.l.b16 %v920
    %v3993 = vunpack.c.l.b16 %v921
    %v3994 = vunpack.c.l.b16 %v922
    %v3995 = vunpack.c.l.b16 %v923
    %v3996 = vunpack.c.l.b16 %v924
    %v3997 = vunpack.c.l.b16 %v925
    %v3998 = vunpack.c.l.b16 %v926
    %v3999 = vunpack.c.l.b16 %v927
    %v4000 = vunpack.c.l.b16 %v928
    %v4001 = vunpack.c.l.b16 %v929
    %v4002 = vunpack.c.l.b16 %v930
    %v4003 = vunpack.c.l.b16 %v931
    %v4004 = vunpack.c.l.b16 %v932
    %v4005 = vunpack.c.l.b16 %v933
    %v4006 = vunpack.c.l.b16 %v934
    %v4007 = vunpack.c.l.b16 %v935
    %v4008 = vunpack.c.l.b16 %v936
    %v4009 = vunpack.c.l.b16 %v937
    %v4010 = vunpack.c.l.b16 %v938
    %v4011 = vunpack.c.l.b16 %v939
    %v4012 = vunpack.c.l.b16 %v940
    %v4013 = vunpack.c.l.b16 %v941
    %v4014 = vunpack.c.l.b16 %v942
    %v4015 = vunpack.c.l.b16 %v943
    %v4016 = vunpack.c.l.b16 %v944
    %v4017 = vunpack.c.l.b16 %v945
    %v4018 = vunpack.c.l.b16 %v946
    %v4019 = vunpack.c.l.b16 %v947
    %v4020 = vunpack.c.l.b16 %v948
    %v4021 = vunpack.c.l.b16 %v949
    %v4022 = vunpack.c.l.b16 %v950
    %v4023 = vunpack.c.l.b16 %v951
    %v4024 = vunpack.c.l.b16 %v952
    %v4025 = vunpack.c.l.b16 %v953
    %v4026 = vunpack.c.l.b16 %v954
    %v4027 = vunpack.c.l.b16 %v955
    %v4028 = vunpack.c.l.b16 %v956
    %v4029 = vunpack.c.l.b16 %v957
    %v4030 = vunpack.c.l.b16 %v958
    %v4031 = vunpack.c.l.b16 %v959
    %v4032 = vunpack.c.l.b16 %v960
    %v4033 = vunpack.c.l.b16 %v961
    %v4034 = vunpack.c.l.b16 %v962
    %v4035 = vunpack.c.l.b16 %v963
    %v4036 = vunpack.c.l.b16 %v964
    %v4037 = vunpack.c.l.b16 %v965
    %v4038 = vunpack.c.l.b16 %v966
    %v4039 = vunpack.c.l.b16 %v967
    %v4040 = vunpack.c.l.b16 %v968
    %v4041 = vunpack.c.l.b16 %v969
    %v4042 = vunpack.c.l.b16 %v970
    %v4043 = vunpack.c.l.b16 %v971
    %v4044 = vunpack.c.l.b16 %v972
    %v4045 = vunpack.c.l.b16 %v973
    %v4046 = vunpack.c.l.b16 %v974
    %v4047 = vunpack.c.l.b16 %v975
    %v4048 = vunpack.c.l.b16 %v976
    %v4049 = vunpack.c.l.b16 %v977
    %v4050 = vunpack.c.l.b16 %v978
    %v4051 = vunpack.c.l.b16 %v979
    %v4052 = vunpack.c.l.b16 %v980
    %v4053 = vunpack.c.l.b16 %v981
    %v4054 = vunpack.c.l.b16 %v982
    %v4055 = vunpack.c.l.b16 %v983
    %v4056 = vunpack.c.l.b16 %v984
    %v4057 = vunpack.c.l.b16 %v985
    %v4058 = vunpack.c.l.b16 %v986
    %v4059 = vunpack.c.l.b16 %v987
    %v4060 = vunpack.c.l.b16 %v988
    %v4061 = vunpack.c.l.b16 %v989
    %v4062 = vunpack.c.l.b16 %v990
    %v4063 = vunpack.c.l.b16 %v991
    %v4064 = vunpack.c.l.b16 %v992
    %v4065 = vunpack.c.l.b16 %v993
    %v4066 = vunpack.c.l.b16 %v994
    %v4067 = vunpack.c.l.b16 %v995
    %v4068 = vunpack.c.l.b16 %v996
    %v4069 = vunpack.c.l.b16 %v997
    %v4070 = vunpack.c.l.b16 %v998
    %v4071 = vunpack.c.l.b16 %v999
    %v4072 = vunpack.c.l.b16 %v1000
    %v4073 = vunpack.c.l.b16 %v1001
    %v4074 = vunpack.c.l.b16 %v1002
    %v4075 = vunpack.c.l.b16 %v1003
    %v4076 = vunpack.c.l.b16 %v1004
    %v4077 = vunpack.c.l.b16 %v1005
    %v4078 = vunpack.c.l.b16 %v1006
    %v4079 = vunpack.c.l.b16 %v1007
    %v4080 = vunpack.c.l.b16 %v1008
    %v4081 = vunpack.c.l.b16 %v1009
    %v4082 = vunpack.c.l.b16 %v1010
    %v4083 = vunpack.c.l.b16 %v1011
    %v4084 = vunpack.c.l.b16 %v1012
    %v4085 = vunpack.c.l.b16 %v1013
    %v4086 = vunpack.c.l.b16 %v1014
    %v4087 = vunpack.c.l.b16 %v1015
    %v4088 = vunpack.c.l.b16 %v1016
    %v4089 = vunpack.c.l.b16 %v1017
    %v4090 = vunpack.c.l.b16 %v1018
    %v4091 = vunpack.c.l.b16 %v1019
    %v4092 = vunpack.c.l.b16 %v1020
    %v4093 = vunpack.c.l.b16 %v1021
    %v4094 = vunpack.c.l.b16 %v1022
    %v4095 = vunpack.c.l.b16 %v1023
    %v4096 = vunpack.c.l.b16 %v1024
    %v4097 = vunpack.c.l.b16 %v1025
    %v4098 = vunpack.c.l.b16 %v1026
    %v4099 = vunpack.c.l.b16 %v1027
    %v4100 = vunpack.c.l.b16 %v1028
    %v4101 = vunpack.c.l.b16 %v1029
    %v4102 = vunpack.c.l.b16 %v1030
    %v4103 = vunpack.c.l.b16 %v1031
    %v4104 = vunpack.c.l.b16 %v1032
    %v4105 = vunpack.c.l.b16 %v1033
    %v4106 = vunpack.c.l.b16 %v1034
    %v4107 = vunpack.c.l.b16 %v1035
    %v4108 = vunpack.c.l.b16 %v1036
    %v4109 = vunpack.c.l.b16 %v1037
    %v4110 = vunpack.c.l.b16 %v1038
    %v4111 = vunpack.c.l.b16 %v1039
    %v4112 = vunpack.c.l.b16 %v1040
    %v4113 = vunpack.c.l.b16 %v1041
    %v4114 = vunpack.c.l.b16 %v1042
    %v4115 = vunpack.c.l.b16 %v1043
    %v4116 = vunpack.c.l.b16 %v1044
    %v4117 = vunpack.c.l.b16 %v1045
    %v4118 = vunpack.c.l.b16 %v1046
    %v4119 = vunpack.c.l.b16 %v1047
    %v4120 = vunpack.c.l.b16 %v1048
    %v4121 = vunpack.c.l.b16 %v1049
    %v4122 = vunpack.c.l.b16 %v1050
    %v4123 = vunpack.c.l.b16 %v1051
    %v4124 = vunpack.c.l.b16 %v1052
    %v4125 = vunpack.c.l.b16 %v1053
    %v4126 = vunpack.c.l.b16 %v1054
    %v4127 = vunpack.c.l.b16 %v1055
    %v4128 = vunpack.c.l.b16 %v1056
    %v4129 = vunpack.c.l.b16 %v1057
    %v4130 = vunpack.c.l.b16 %v1058
    %v4131 = vunpack.c.l.b16 %v1059
    %v4132 = vunpack.c.l.b16 %v1060
    %v4133 = vunpack.c.l.b16 %v1061
    %v4134 = vunpack.c.l.b16 %v1062
    %v4135 = vunpack.c.l.b16 %v1063
    %v4136 = vunpack.c.l.b16 %v1064
    %v4137 = vunpack.c.l.b16 %v1065
    %v4138 = vunpack.c.l.b16 %v1066
    %v4139 = vunpack.c.l.b16 %v1067
    %v4140 = vunpack.c.l.b16 %v1068
    %v4141 = vunpack.c.l.b16 %v1069
    %v4142 = vunpack.c.l.b16 %v1070
    %v4143 = vunpack.c.l.b16 %v1071
    %v4144 = vunpack.c.l.b16 %v1072
    %v4145 = vunpack.c.l.b16 %v1073
    %v4146 = vunpack.c.l.b16 %v1074
    %v4147 = vunpack.c.l.b16 %v1075
    %v4148 = vunpack.c.l.b16 %v1076
    %v4149 = vunpack.c.l.b16 %v1077
    %v4150 = vunpack.c.l.b16 %v1078
    %v4151 = vunpack.c.l.b16 %v1079
    %v4152 = vunpack.c.l.b16 %v1080
    %v4153 = vunpack.c.l.b16 %v1081
    %v4154 = vunpack.c.l.b16 %v1082
    %v4155 = vunpack.c.l.b16 %v1083
    %v4156 = vunpack.c.l.b16 %v1084
    %v4157 = vunpack.c.l.b16 %v1085
    %v4158 = vunpack.c.l.b16 %v1086
    %v4159 = vunpack.c.l.b16 %v1087
    %v4160 = vunpack.c.l.b16 %v1088
    %v4161 = vunpack.c.l.b16 %v1089
    %v4162 = vunpack.c.l.b16 %v1090
    %v4163 = vunpack.c.l.b16 %v1091
    %v4164 = vunpack.c.l.b16 %v1092
    %v4165 = vunpack.c.l.b16 %v1093
    %v4166 = vunpack.c.l.b16 %v1094
    %v4167 = vunpack.c.l.b16 %v1095
    %v4168 = vunpack.c.l.b16 %v1096
    %v4169 = vunpack.c.l.b16 %v1097
    %v4170 = vunpack.c.l.b16 %v1098
    %v4171 = vunpack.c.l.b16 %v1099
    %v4172 = vunpack.c.l.b16 %v1100
    %v4173 = vunpack.c.l.b16 %v1101
    %v4174 = vunpack.c.l.b16 %v1102
    %v4175 = vunpack.c.l.b16 %v1103
    %v4176 = vunpack.c.l.b16 %v1104
    %v4177 = vunpack.c.l.b16 %v1105
    %v4178 = vunpack.c.l.b16 %v1106
    %v4179 = vunpack.c.l.b16 %v1107
    %v4180 = vunpack.c.l.b16 %v1108
    %v4181 = vunpack.c.l.b16 %v1109
    %v4182 = vunpack.c.l.b16 %v1110
    %v4183 = vunpack.c.l.b16 %v1111
    %v4184 = vunpack.c.l.b16 %v1112
    %v4185 = vunpack.c.l.b16 %v1113
    %v4186 = vunpack.c.l.b16 %v1114
    %v4187 = vunpack.c.l.b16 %v1115
    %v4188 = vunpack.c.l.b16 %v1116
    %v4189 = vunpack.c.l.b16 %v1117
    %v4190 = vunpack.c.l.b16 %v1118
    %v4191 = vunpack.c.l.b16 %v1119
    %v4192 = vunpack.c.l.b16 %v1120
    %v4193 = vunpack.c.l.b16 %v1121
    %v4194 = vunpack.c.l.b16 %v1122
    %v4195 = vunpack.c.l.b16 %v1123
    %v4196 = vunpack.c.l.b16 %v1124
    %v4197 = vunpack.c.l.b16 %v1125
    %v4198 = vunpack.c.l.b16 %v1126
    %v4199 = vunpack.c.l.b16 %v1127
    %v4200 = vunpack.c.l.b16 %v1128
    %v4201 = vunpack.c.l.b16 %v1129
    %v4202 = vunpack.c.l.b16 %v1130
    %v4203 = vunpack.c.l.b16 %v1131
    %v4204 = vunpack.c.l.b16 %v1132
    %v4205 = vunpack.c.l.b16 %v1133
    %v4206 = vunpack.c.l.b16 %v1134
    %v4207 = vunpack.c.l.b16 %v1135
    %v4208 = vunpack.c.l.b16 %v1136
    %v4209 = vunpack.c.l.b16 %v1137
    %v4210 = vunpack.c.l.b16 %v1138
    %v4211 = vunpack.c.l.b16 %v1139
    %v4212 = vunpack.c.l.b16 %v1140
    %v4213 = vunpack.c.l.b16 %v1141
    %v4214 = vunpack.c.l.b16 %v1142
    %v4215 = vunpack.c.l.b16 %v1143
    %v4216 = vunpack.c.l.b16 %v1144
    %v4217 = vunpack.c.l.b16 %v1145
    %v4218 = vunpack.c.l.b16 %v1146
    %v4219 = vunpack.c.l.b16 %v1147
    %v4220 = vunpack.c.l.b16 %v1148
    %v4221 = vunpack.c.l.b16 %v1149
    %v4222 = vunpack.c.l.b16 %v1150
    %v4223 = vunpack.c.l.b16 %v1151
    %v4224 = vunpack.c.l.b16 %v1152
    %v4225 = vunpack.c.l.b16 %v1153
    %v4226 = vunpack.c.l.b16 %v1154
    %v4227 = vunpack.c.l.b16 %v1155
    %v4228 = vunpack.c.l.b16 %v1156
    %v4229 = vunpack.c.l.b16 %v1157
    %v4230 = vunpack.c.l.b16 %v1158
    %v4231 = vunpack.c.l.b16 %v1159
    %v4232 = vunpack.c.l.b16 %v1160
    %v4233 = vunpack.c.l.b16 %v1161
    %v4234 = vunpack.c.l.b16 %v1162
    %v4235 = vunpack.c.l.b16 %v1163
    %v4236 = vunpack.c.l.b16 %v1164
    %v4237 = vunpack.c.l.b16 %v1165
    %v4238 = vunpack.c.l.b16 %v1166
    %v4239 = vunpack.c.l.b16 %v1167
    %v4240 = vunpack.c.l.b16 %v1168
    %v4241 = vunpack.c.l.b16 %v1169
    %v4242 = vunpack.c.l.b16 %v1170
    %v4243 = vunpack.c.l.b16 %v1171
    %v4244 = vunpack.c.l.b16 %v1172
    %v4245 = vunpack.c.l.b16 %v1173
    %v4246 = vunpack.c.l.b16 %v1174
    %v4247 = vunpack.c.l.b16 %v1175
    %v4248 = vunpack.c.l.b16 %v1176
    %v4249 = vunpack.c.l.b16 %v1177
    %v4250 = vunpack.c.l.b16 %v1178
    %v4251 = vunpack.c.l.b16 %v1179
    %v4252 = vunpack.c.l.b16 %v1180
    %v4253 = vunpack.c.l.b16 %v1181
    %v4254 = vunpack.c.l.b16 %v1182
    %v4255 = vunpack.c.l.b16 %v1183
    %v4256 = vunpack.c.l.b16 %v1184
    %v4257 = vunpack.c.l.b16 %v1185
    %v4258 = vunpack.c.l.b16 %v1186
    %v4259 = vunpack.c.l.b16 %v1187
    %v4260 = vunpack.c.l.b16 %v1188
    %v4261 = vunpack.c.l.b16 %v1189
    %v4262 = vunpack.c.l.b16 %v1190
    %v4263 = vunpack.c.l.b16 %v1191
    %v4264 = vunpack.c.l.b16 %v1192
    %v4265 = vunpack.c.l.b16 %v1193
    %v4266 = vunpack.c.l.b16 %v1194
    %v4267 = vunpack.c.l.b16 %v1195
    %v4268 = vunpack.c.l.b16 %v1196
    %v4269 = vunpack.c.l.b16 %v1197
    %v4270 = vunpack.c.l.b16 %v1198
    %v4271 = vunpack.c.l.b16 %v1199
    %v4272 = vunpack.c.l.b16 %v1200
    %v4273 = vunpack.c.l.b16 %v1201
    %v4274 = vunpack.c.l.b16 %v1202
    %v4275 = vunpack.c.l.b16 %v1203
    %v4276 = vunpack.c.l.b16 %v1204
    %v4277 = vunpack.c.l.b16 %v1205
    %v4278 = vunpack.c.l.b16 %v1206
    %v4279 = vunpack.c.l.b16 %v1207
    %v4280 = vunpack.c.l.b16 %v1208
    %v4281 = vunpack.c.l.b16 %v1209
    %v4282 = vunpack.c.l.b16 %v1210
    %v4283 = vunpack.c.l.b16 %v1211
    %v4284 = vunpack.c.l.b16 %v1212
    %v4285 = vunpack.c.l.b16 %v1213
    %v4286 = vunpack.c.l.b16 %v1214
    %v4287 = vunpack.c.l.b16 %v1215
    %v4288 = vunpack.c.l.b16 %v1216
    %v4289 = vunpack.c.l.b16 %v1217
    %v4290 = vunpack.c.l.b16 %v1218
    %v4291 = vunpack.c.l.b16 %v1219
    %v4292 = vunpack.c.l.b16 %v1220
    %v4293 = vunpack.c.l.b16 %v1221
    %v4294 = vunpack.c.l.b16 %v1222
    %v4295 = vunpack.c.l.b16 %v1223
    %v4296 = vunpack.c.l.b16 %v1224
    %v4297 = vunpack.c.l.b16 %v1225
    %v4298 = vunpack.c.l.b16 %v1226
    %v4299 = vunpack.c.l.b16 %v1227
    %v4300 = vunpack.c.l.b16 %v1228
    %v4301 = vunpack.c.l.b16 %v1229
    %v4302 = vunpack.c.l.b16 %v1230
    %v4303 = vunpack.c.l.b16 %v1231
    %v4304 = vunpack.c.l.b16 %v1232
    %v4305 = vunpack.c.l.b16 %v1233
    %v4306 = vunpack.c.l.b16 %v1234
    %v4307 = vunpack.c.l.b16 %v1235
    %v4308 = vunpack.c.l.b16 %v1236
    %v4309 = vunpack.c.l.b16 %v1237
    %v4310 = vunpack.c.l.b16 %v1238
    %v4311 = vunpack.c.l.b16 %v1239
    %v4312 = vunpack.c.l.b16 %v1240
    %v4313 = vunpack.c.l.b16 %v1241
    %v4314 = vunpack.c.l.b16 %v1242
    %v4315 = vunpack.c.l.b16 %v1243
    %v4316 = vunpack.c.l.b16 %v1244
    %v4317 = vunpack.c.l.b16 %v1245
    %v4318 = vunpack.c.l.b16 %v1246
    %v4319 = vunpack.c.l.b16 %v1247
    %v4320 = vunpack.c.l.b16 %v1248
    %v4321 = vunpack.c.l.b16 %v1249
    %v4322 = vunpack.c.l.b16 %v1250
    %v4323 = vunpack.c.l.b16 %v1251
    %v4324 = vunpack.c.l.b16 %v1252
    %v4325 = vunpack.c.l.b16 %v1253
    %v4326 = vunpack.c.l.b16 %v1254
    %v4327 = vunpack.c.l.b16 %v1255
    %v4328 = vunpack.c.l.b16 %v1256
    %v4329 = vunpack.c.l.b16 %v1257
    %v4330 = vunpack.c.l.b16 %v1258
    %v4331 = vunpack.c.l.b16 %v1259
    %v4332 = vunpack.c.l.b16 %v1260
    %v4333 = vunpack.c.l.b16 %v1261
    %v4334 = vunpack.c.l.b16 %v1262
    %v4335 = vunpack.c.l.b16 %v1263
    %v4336 = vunpack.c.l.b16 %v1264
    %v4337 = vunpack.c.l.b16 %v1265
    %v4338 = vunpack.c.l.b16 %v1266
    %v4339 = vunpack.c.l.b16 %v1267
    %v4340 = vunpack.c.l.b16 %v1268
    %v4341 = vunpack.c.l.b16 %v1269
    %v4342 = vunpack.c.l.b16 %v1270
    %v4343 = vunpack.c.l.b16 %v1271
    %v4344 = vunpack.c.l.b16 %v1272
    %v4345 = vunpack.c.l.b16 %v1273
    %v4346 = vunpack.c.l.b16 %v1274
    %v4347 = vunpack.c.l.b16 %v1275
    %v4348 = vunpack.c.l.b16 %v1276
    %v4349 = vunpack.c.l.b16 %v1277
    %v4350 = vunpack.c.l.b16 %v1278
    %v4351 = vunpack.c.l.b16 %v1279
    %v4352 = vunpack.c.l.b16 %v1280
    %v4353 = vunpack.c.l.b16 %v1281
    %v4354 = vunpack.c.l.b16 %v1282
    %v4355 = vunpack.c.l.b16 %v1283
    %v4356 = vunpack.c.l.b16 %v1284
    %v4357 = vunpack.c.l.b16 %v1285
    %v4358 = vunpack.c.l.b16 %v1286
    %v4359 = vunpack.c.l.b16 %v1287
    %v4360 = vunpack.c.l.b16 %v1288
    %v4361 = vunpack.c.l.b16 %v1289
    %v4362 = vunpack.c.l.b16 %v1290
    %v4363 = vunpack.c.l.b16 %v1291
    %v4364 = vunpack.c.l.b16 %v1292
    %v4365 = vunpack.c.l.b16 %v1293
    %v4366 = vunpack.c.l.b16 %v1294
    %v4367 = vunpack.c.l.b16 %v1295
    %v4368 = vunpack.c.l.b16 %v1296
    %v4369 = vunpack.c.l.b16 %v1297
    %v4370 = vunpack.c.l.b16 %v1298
    %v4371 = vunpack.c.l.b16 %v1299
    %v4372 = vunpack.c.l.b16 %v1300
    %v4373 = vunpack.c.l.b16 %v1301
    %v4374 = vunpack.c.l.b16 %v1302
    %v4375 = vunpack.c.l.b16 %v1303
    %v4376 = vunpack.c.l.b16 %v1304
    %v4377 = vunpack.c.l.b16 %v1305
    %v4378 = vunpack.c.l.b16 %v1306
    %v4379 = vunpack.c.l.b16 %v1307
    %v4380 = vunpack.c.l.b16 %v1308
    %v4381 = vunpack.c.l.b16 %v1309
    %v4382 = vunpack.c.l.b16 %v1310
    %v4383 = vunpack.c.l.b16 %v1311
    %v4384 = vunpack.c.l.b16 %v1312
    %v4385 = vunpack.c.l.b16 %v1313
    %v4386 = vunpack.c.l.b16 %v1314
    %v4387 = vunpack.c.l.b16 %v1315
    %v4388 = vunpack.c.l.b16 %v1316
    %v4389 = vunpack.c.l.b16 %v1317
    %v4390 = vunpack.c.l.b16 %v1318
    %v4391 = vunpack.c.l.b16 %v1319
    %v4392 = vunpack.c.l.b16 %v1320
    %v4393 = vunpack.c.l.b16 %v1321
    %v4394 = vunpack.c.l.b16 %v1322
    %v4395 = vunpack.c.l.b16 %v1323
    %v4396 = vunpack.c.l.b16 %v1324
    %v4397 = vunpack.c.l.b16 %v1325
    %v4398 = vunpack.c.l.b16 %v1326
    %v4399 = vunpack.c.l.b16 %v1327
    %v4400 = vunpack.c.l.b16 %v1328
    %v4401 = vunpack.c.l.b16 %v1329
    %v4402 = vunpack.c.l.b16 %v1330
    %v4403 = vunpack.c.l.b16 %v1331
    %v4404 = vunpack.c.l.b16 %v1332
    %v4405 = vunpack.c.l.b16 %v1333
    %v4406 = vunpack.c.l.b16 %v1334
    %v4407 = vunpack.c.l.b16 %v1335
    %v4408 = vunpack.c.l.b16 %v1336
    %v4409 = vunpack.c.l.b16 %v1337
    %v4410 = vunpack.c.l.b16 %v1338
    %v4411 = vunpack.c.l.b16 %v1339
    %v4412 = vunpack.c.l.b16 %v1340
    %v4413 = vunpack.c.l.b16 %v1341
    %v4414 = vunpack.c.l.b16 %v1342
    %v4415 = vunpack.c.l.b16 %v1343
    %v4416 = vunpack.c.l.b16 %v1344
    %v4417 = vunpack.c.l.b16 %v1345
    %v4418 = vunpack.c.l.b16 %v1346
    %v4419 = vunpack.c.l.b16 %v1347
    %v4420 = vunpack.c.l.b16 %v1348
    %v4421 = vunpack.c.l.b16 %v1349
    %v4422 = vunpack.c.l.b16 %v1350
    %v4423 = vunpack.c.l.b16 %v1351
    %v4424 = vunpack.c.l.b16 %v1352
    %v4425 = vunpack.c.l.b16 %v1353
    %v4426 = vunpack.c.l.b16 %v1354
    %v4427 = vunpack.c.l.b16 %v1355
    %v4428 = vunpack.c.l.b16 %v1356
    %v4429 = vunpack.c.l.b16 %v1357
    %v4430 = vunpack.c.l.b16 %v1358
    %v4431 = vunpack.c.l.b16 %v1359
    %v4432 = vunpack.c.l.b16 %v1360
    %v4433 = vunpack.c.l.b16 %v1361
    %v4434 = vunpack.c.l.b16 %v1362
    %v4435 = vunpack.c.l.b16 %v1363
    %v4436 = vunpack.c.l.b16 %v1364
    %v4437 = vunpack.c.l.b16 %v1365
    %v4438 = vunpack.c.l.b16 %v1366
    %v4439 = vunpack.c.l.b16 %v1367
    %v4440 = vunpack.c.l.b16 %v1368
    %v4441 = vunpack.c.l.b16 %v1369
    %v4442 = vunpack.c.l.b16 %v1370
    %v4443 = vunpack.c.l.b16 %v1371
    %v4444 = vunpack.c.l.b16 %v1372
    %v4445 = vunpack.c.l.b16 %v1373
    %v4446 = vunpack.c.l.b16 %v1374
    %v4447 = vunpack.c.l.b16 %v1375
    %v4448 = vunpack.c.l.b16 %v1376
    %v4449 = vunpack.c.l.b16 %v1377
    %v4450 = vunpack.c.l.b16 %v1378
    %v4451 = vunpack.c.l.b16 %v1379
    %v4452 = vunpack.c.l.b16 %v1380
    %v4453 = vunpack.c.l.b16 %v1381
    %v4454 = vunpack.c.l.b16 %v1382
    %v4455 = vunpack.c.l.b16 %v1383
    %v4456 = vunpack.c.l.b16 %v1384
    %v4457 = vunpack.c.l.b16 %v1385
    %v4458 = vunpack.c.l.b16 %v1386
    %v4459 = vunpack.c.l.b16 %v1387
    %v4460 = vunpack.c.l.b16 %v1388
    %v4461 = vunpack.c.l.b16 %v1389
    %v4462 = vunpack.c.l.b16 %v1390
    %v4463 = vunpack.c.l.b16 %v1391
    %v4464 = vunpack.c.l.b16 %v1392
    %v4465 = vunpack.c.l.b16 %v1393
    %v4466 = vunpack.c.l.b16 %v1394
    %v4467 = vunpack.c.l.b16 %v1395
    %v4468 = vunpack.c.l.b16 %v1396
    %v4469 = vunpack.c.l.b16 %v1397
    %v4470 = vunpack.c.l.b16 %v1398
    %v4471 = vunpack.c.l.b16 %v1399
    %v4472 = vunpack.c.l.b16 %v1400
    %v4473 = vunpack.c.l.b16 %v1401
    %v4474 = vunpack.c.l.b16 %v1402
    %v4475 = vunpack.c.l.b16 %v1403
    %v4476 = vunpack.c.l.b16 %v1404
    %v4477 = vunpack.c.l.b16 %v1405
    %v4478 = vunpack.c.l.b16 %v1406
    %v4479 = vunpack.c.l.b16 %v1407
    %v4480 = vunpack.c.l.b16 %v1408
    %v4481 = vunpack.c.l.b16 %v1409
    %v4482 = vunpack.c.l.b16 %v1410
    %v4483 = vunpack.c.l.b16 %v1411
    %v4484 = vunpack.c.l.b16 %v1412
    %v4485 = vunpack.c.l.b16 %v1413
    %v4486 = vunpack.c.l.b16 %v1414
    %v4487 = vunpack.c.l.b16 %v1415
    %v4488 = vunpack.c.l.b16 %v1416
    %v4489 = vunpack.c.l.b16 %v1417
    %v4490 = vunpack.c.l.b16 %v1418
    %v4491 = vunpack.c.l.b16 %v1419
    %v4492 = vunpack.c.l.b16 %v1420
    %v4493 = vunpack.c.l.b16 %v1421
    %v4494 = vunpack.c.l.b16 %v1422
    %v4495 = vunpack.c.l.b16 %v1423
    %v4496 = vunpack.c.l.b16 %v1424
    %v4497 = vunpack.c.l.b16 %v1425
    %v4498 = vunpack.c.l.b16 %v1426
    %v4499 = vunpack.c.l.b16 %v1427
    %v4500 = vunpack.c.l.b16 %v1428
    %v4501 = vunpack.c.l.b16 %v1429
    %v4502 = vunpack.c.l.b16 %v1430
    %v4503 = vunpack.c.l.b16 %v1431
    %v4504 = vunpack.c.l.b16 %v1432
    %v4505 = vunpack.c.l.b16 %v1433
    %v4506 = vunpack.c.l.b16 %v1434
    %v4507 = vunpack.c.l.b16 %v1435
    %v4508 = vunpack.c.l.b16 %v1436
    %v4509 = vunpack.c.l.b16 %v1437
    %v4510 = vunpack.c.l.b16 %v1438
    %v4511 = vunpack.c.l.b16 %v1439
    %v4512 = vunpack.c.l.b16 %v1440
    %v4513 = vunpack.c.l.b16 %v1441
    %v4514 = vunpack.c.l.b16 %v1442
    %v4515 = vunpack.c.l.b16 %v1443
    %v4516 = vunpack.c.l.b16 %v1444
    %v4517 = vunpack.c.l.b16 %v1445
    %v4518 = vunpack.c.l.b16 %v1446
    %v4519 = vunpack.c.l.b16 %v1447
    %v4520 = vunpack.c.l.b16 %v1448
    %v4521 = vunpack.c.l.b16 %v1449
    %v4522 = vunpack.c.l.b16 %v1450
    %v4523 = vunpack.c.l.b16 %v1451
    %v4524 = vunpack.c.l.b16 %v1452
    %v4525 = vunpack.c.l.b16 %v1453
    %v4526 = vunpack.c.l.b16 %v1454
    %v4527 = vunpack.c.l.b16 %v1455
    %v4528 = vunpack.c.l.b16 %v1456
    %v4529 = vunpack.c.l.b16 %v1457
    %v4530 = vunpack.c.l.b16 %v1458
    %v4531 = vunpack.c.l.b16 %v1459
    %v4532 = vunpack.c.l.b16 %v1460
    %v4533 = vunpack.c.l.b16 %v1461
    %v4534 = vunpack.c.l.b16 %v1462
    %v4535 = vunpack.c.l.b16 %v1463
    %v4536 = vunpack.c.l.b16 %v1464
    %v4537 = vunpack.c.l.b16 %v1465
    %v4538 = vunpack.c.l.b16 %v1466
    %v4539 = vunpack.c.l.b16 %v1467
    %v4540 = vunpack.c.l.b16 %v1468
    %v4541 = vunpack.c.l.b16 %v1469
    %v4542 = vunpack.c.l.b16 %v1470
    %v4543 = vunpack.c.l.b16 %v1471
    %v4544 = vunpack.c.l.b16 %v1472
    %v4545 = vunpack.c.l.b16 %v1473
    %v4546 = vunpack.c.l.b16 %v1474
    %v4547 = vunpack.c.l.b16 %v1475
    %v4548 = vunpack.c.l.b16 %v1476
    %v4549 = vunpack.c.l.b16 %v1477
    %v4550 = vunpack.c.l.b16 %v1478
    %v4551 = vunpack.c.l.b16 %v1479
    %v4552 = vunpack.c.l.b16 %v1480
    %v4553 = vunpack.c.l.b16 %v1481
    %v4554 = vunpack.c.l.b16 %v1482
    %v4555 = vunpack.c.l.b16 %v1483
    %v4556 = vunpack.c.l.b16 %v1484
    %v4557 = vunpack.c.l.b16 %v1485
    %v4558 = vunpack.c.l.b16 %v1486
    %v4559 = vunpack.c.l.b16 %v1487
    %v4560 = vunpack.c.l.b16 %v1488
    %v4561 = vunpack.c.l.b16 %v1489
    %v4562 = vunpack.c.l.b16 %v1490
    %v4563 = vunpack.c.l.b16 %v1491
    %v4564 = vunpack.c.l.b16 %v1492
    %v4565 = vunpack.c.l.b16 %v1493
    %v4566 = vunpack.c.l.b16 %v1494
    %v4567 = vunpack.c.l.b16 %v1495
    %v4568 = vunpack.c.l.b16 %v1496
    %v4569 = vunpack.c.l.b16 %v1497
    %v4570 = vunpack.c.l.b16 %v1498
    %v4571 = vunpack.c.l.b16 %v1499
    %v4572 = vunpack.c.l.b16 %v1500
    %v4573 = vunpack.c.l.b16 %v1501
    %v4574 = vunpack.c.l.b16 %v1502
    %v4575 = vunpack.c.l.b16 %v1503
    %v4576 = vunpack.c.l.b16 %v1504
    %v4577 = vunpack.c.l.b16 %v1505
    %v4578 = vunpack.c.l.b16 %v1506
    %v4579 = vunpack.c.l.b16 %v1507
    %v4580 = vunpack.c.l.b16 %v1508
    %v4581 = vunpack.c.l.b16 %v1509
    %v4582 = vunpack.c.l.b16 %v1510
    %v4583 = vunpack.c.l.b16 %v1511
    %v4584 = vunpack.c.l.b16 %v1512
    %v4585 = vunpack.c.l.b16 %v1513
    %v4586 = vunpack.c.l.b16 %v1514
    %v4587 = vunpack.c.l.b16 %v1515
    %v4588 = vunpack.c.l.b16 %v1516
    %v4589 = vunpack.c.l.b16 %v1517
    %v4590 = vunpack.c.l.b16 %v1518
    %v4591 = vunpack.c.l.b16 %v1519
    %v4592 = vunpack.c.l.b16 %v1520
    %v4593 = vunpack.c.l.b16 %v1521
    %v4594 = vunpack.c.l.b16 %v1522
    %v4595 = vunpack.c.l.b16 %v1523
    %v4596 = vunpack.c.l.b16 %v1524
    %v4597 = vunpack.c.l.b16 %v1525
    %v4598 = vunpack.c.l.b16 %v1526
    %v4599 = vunpack.c.l.b16 %v1527
    %v4600 = vunpack.c.l.b16 %v1528
    %v4601 = vunpack.c.l.b16 %v1529
    %v4602 = vunpack.c.l.b16 %v1530
    %v4603 = vunpack.c.l.b16 %v1531
    %v4604 = vunpack.c.l.b16 %v1532
    %v4605 = vunpack.c.l.b16 %v1533
    %v4606 = vunpack.c.l.b16 %v1534
    %v4607 = vunpack.c.l.b16 %v1535
    %v4608 = vunpack.c.l.b16 %v1536
    %v4609 = vunpack.c.l.b16 %v1537
    %v4610 = vunpack.c.l.b16 %v1538
    %v4611 = vunpack.c.l.b16 %v1539
    %v4612 = vunpack.c.l.b16 %v1540
    %v4613 = vunpack.c.l.b16 %v1541
    %v4614 = vunpack.c.l.b16 %v1542
    %v4615 = vunpack.c.l.b16 %v1543
    %v4616 = vunpack.c.l.b16 %v1544
    %v4617 = vunpack.c.l.b16 %v1545
    %v4618 = vunpack.c.l.b16 %v1546
    %v4619 = vunpack.c.l.b16 %v1547
    %v4620 = vunpack.c.l.b16 %v1548
    %v4621 = vunpack.c.l.b16 %v1549
    %v4622 = vunpack.c.l.b16 %v1550
    %v4623 = vunpack.c.l.b16 %v1551
    %v4624 = vunpack.c.l.b16 %v1552
    %v4625 = vunpack.c.l.b16 %v1553
    %v4626 = vunpack.c.l.b16 %v1554
    %v4627 = vunpack.c.l.b16 %v1555
    %v4628 = vunpack.c.l.b16 %v1556
    %v4629 = vunpack.c.l.b16 %v1557
    %v4630 = vunpack.c.l.b16 %v1558
    %v4631 = vunpack.c.l.b16 %v1559
    %v4632 = vunpack.c.l.b16 %v1560
    %v4633 = vunpack.c.l.b16 %v1561
    %v4634 = vunpack.c.l.b16 %v1562
    %v4635 = vunpack.c.l.b16 %v1563
    %v4636 = vunpack.c.l.b16 %v1564
    %v4637 = vunpack.c.l.b16 %v1565
    %v4638 = vunpack.c.l.b16 %v1566
    %v4639 = vunpack.c.l.b16 %v1567
    %v4640 = vunpack.c.l.b16 %v1568
    %v4641 = vunpack.c.l.b16 %v1569
    %v4642 = vunpack.c.l.b16 %v1570
    %v4643 = vunpack.c.l.b16 %v1571
    %v4644 = vunpack.c.l.b16 %v1572
    %v4645 = vunpack.c.l.b16 %v1573
    %v4646 = vunpack.c.l.b16 %v1574
    %v4647 = vunpack.c.l.b16 %v1575
    %v4648 = vunpack.c.l.b16 %v1576
    %v4649 = vunpack.c.l.b16 %v1577
    %v4650 = vunpack.c.l.b16 %v1578
    %v4651 = vunpack.c.l.b16 %v1579
    %v4652 = vunpack.c.l.b16 %v1580
    %v4653 = vunpack.c.l.b16 %v1581
    %v4654 = vunpack.c.l.b16 %v1582
    %v4655 = vunpack.c.l.b16 %v1583
    %v4656 = vunpack.c.l.b16 %v1584
    %v4657 = vunpack.c.l.b16 %v1585
    %v4658 = vunpack.c.l.b16 %v1586
    %v4659 = vunpack.c.l.b16 %v1587
    %v4660 = vunpack.c.l.b16 %v1588
    %v4661 = vunpack.c.l.b16 %v1589
    %v4662 = vunpack.c.l.b16 %v1590
    %v4663 = vunpack.c.l.b16 %v1591
    %v4664 = vunpack.c.l.b16 %v1592
    %v4665 = vunpack.c.l.b16 %v1593
    %v4666 = vunpack.c.l.b16 %v1594
    %v4667 = vunpack.c.l.b16 %v1595
    %v4668 = vunpack.c.l.b16 %v1596
    %v4669 = vunpack.c.l.b16 %v1597
    %v4670 = vunpack.c.l.b16 %v1598
    %v4671 = vunpack.c.l.b16 %v1599
    %v4672 = vunpack.c.l.b16 %v1600
    %v4673 = vunpack.c.l.b16 %v1601
    %v4674 = vunpack.c.l.b16 %v1602
    %v4675 = vunpack.c.l.b16 %v1603
    %v4676 = vunpack.c.l.b16 %v1604
    %v4677 = vunpack.c.l.b16 %v1605
    %v4678 = vunpack.c.l.b16 %v1606
    %v4679 = vunpack.c.l.b16 %v1607
    %v4680 = vunpack.c.l.b16 %v1608
    %v4681 = vunpack.c.l.b16 %v1609
    %v4682 = vunpack.c.l.b16 %v1610
    %v4683 = vunpack.c.l.b16 %v1611
    %v4684 = vunpack.c.l.b16 %v1612
    %v4685 = vunpack.c.l.b16 %v1613
    %v4686 = vunpack.c.l.b16 %v1614
    %v4687 = vunpack.c.l.b16 %v1615
    %v4688 = vunpack.c.l.b16 %v1616
    %v4689 = vunpack.c.l.b16 %v1617
    %v4690 = vunpack.c.l.b16 %v1618
    %v4691 = vunpack.c.l.b16 %v1619
    %v4692 = vunpack.c.l.b16 %v1620
    %v4693 = vunpack.c.l.b16 %v1621
    %v4694 = vunpack.c.l.b16 %v1622
    %v4695 = vunpack.c.l.b16 %v1623
    %v4696 = vunpack.c.l.b16 %v1624
    %v4697 = vunpack.c.l.b16 %v1625
    %v4698 = vunpack.c.l.b16 %v1626
    %v4699 = vunpack.c.l.b16 %v1627
    %v4700 = vunpack.c.l.b16 %v1628
    %v4701 = vunpack.c.l.b16 %v1629
    %v4702 = vunpack.c.l.b16 %v1630
    %v4703 = vunpack.c.l.b16 %v1631
    %v4704 = vunpack.c.l.b16 %v1632
    %v4705 = vunpack.c.l.b16 %v1633
    %v4706 = vunpack.c.l.b16 %v1634
    %v4707 = vunpack.c.l.b16 %v1635
    %v4708 = vunpack.c.l.b16 %v1636
    %v4709 = vunpack.c.l.b16 %v1637
    %v4710 = vunpack.c.l.b16 %v1638
    %v4711 = vunpack.c.l.b16 %v1639
    %v4712 = vunpack.c.l.b16 %v1640
    %v4713 = vunpack.c.l.b16 %v1641
    %v4714 = vunpack.c.l.b16 %v1642
    %v4715 = vunpack.c.l.b16 %v1643
    %v4716 = vunpack.c.l.b16 %v1644
    %v4717 = vunpack.c.l.b16 %v1645
    %v4718 = vunpack.c.l.b16 %v1646
    %v4719 = vunpack.c.l.b16 %v1647
    %v4720 = vunpack.c.l.b16 %v1648
    %v4721 = vunpack.c.l.b16 %v1649
    %v4722 = vunpack.c.l.b16 %v1650
    %v4723 = vunpack.c.l.b16 %v1651
    %v4724 = vunpack.c.l.b16 %v1652
    %v4725 = vunpack.c.l.b16 %v1653
    %v4726 = vunpack.c.l.b16 %v1654
    %v4727 = vunpack.c.l.b16 %v1655
    %v4728 = vunpack.c.l.b16 %v1656
    %v4729 = vunpack.c.l.b16 %v1657
    %v4730 = vunpack.c.l.b16 %v1658
    %v4731 = vunpack.c.l.b16 %v1659
    %v4732 = vunpack.c.l.b16 %v1660
    %v4733 = vunpack.c.l.b16 %v1661
    %v4734 = vunpack.c.l.b16 %v1662
    %v4735 = vunpack.c.l.b16 %v1663
    %v4736 = vunpack.c.l.b16 %v1664
    %v4737 = vunpack.c.l.b16 %v1665
    %v4738 = vunpack.c.l.b16 %v1666
    %v4739 = vunpack.c.l.b16 %v1667
    %v4740 = vunpack.c.l.b16 %v1668
    %v4741 = vunpack.c.l.b16 %v1669
    %v4742 = vunpack.c.l.b16 %v1670
    %v4743 = vunpack.c.l.b16 %v1671
    %v4744 = vunpack.c.l.b16 %v1672
    %v4745 = vunpack.c.l.b16 %v1673
    %v4746 = vunpack.c.l.b16 %v1674
    %v4747 = vunpack.c.l.b16 %v1675
    %v4748 = vunpack.c.l.b16 %v1676
    %v4749 = vunpack.c.l.b16 %v1677
    %v4750 = vunpack.c.l.b16 %v1678
    %v4751 = vunpack.c.l.b16 %v1679
    %v4752 = vunpack.c.l.b16 %v1680
    %v4753 = vunpack.c.l.b16 %v1681
    %v4754 = vunpack.c.l.b16 %v1682
    %v4755 = vunpack.c.l.b16 %v1683
    %v4756 = vunpack.c.l.b16 %v1684
    %v4757 = vunpack.c.l.b16 %v1685
    %v4758 = vunpack.c.l.b16 %v1686
    %v4759 = vunpack.c.l.b16 %v1687
    %v4760 = vunpack.c.l.b16 %v1688
    %v4761 = vunpack.c.l.b16 %v1689
    %v4762 = vunpack.c.l.b16 %v1690
    %v4763 = vunpack.c.l.b16 %v1691
    %v4764 = vunpack.c.l.b16 %v1692
    %v4765 = vunpack.c.l.b16 %v1693
    %v4766 = vunpack.c.l.b16 %v1694
    %v4767 = vunpack.c.l.b16 %v1695
    %v4768 = vunpack.c.l.b16 %v1696
    %v4769 = vunpack.c.l.b16 %v1697
    %v4770 = vunpack.c.l.b16 %v1698
    %v4771 = vunpack.c.l.b16 %v1699
    %v4772 = vunpack.c.l.b16 %v1700
    %v4773 = vunpack.c.l.b16 %v1701
    %v4774 = vunpack.c.l.b16 %v1702
    %v4775 = vunpack.c.l.b16 %v1703
    %v4776 = vunpack.c.l.b16 %v1704
    %v4777 = vunpack.c.l.b16 %v1705
    %v4778 = vunpack.c.l.b16 %v1706
    %v4779 = vunpack.c.l.b16 %v1707
    %v4780 = vunpack.c.l.b16 %v1708
    %v4781 = vunpack.c.l.b16 %v1709
    %v4782 = vunpack.c.l.b16 %v1710
    %v4783 = vunpack.c.l.b16 %v1711
    %v4784 = vunpack.c.l.b16 %v1712
    %v4785 = vunpack.c.l.b16 %v1713
    %v4786 = vunpack.c.l.b16 %v1714
    %v4787 = vunpack.c.l.b16 %v1715
    %v4788 = vunpack.c.l.b16 %v1716
    %v4789 = vunpack.c.l.b16 %v1717
    %v4790 = vunpack.c.l.b16 %v1718
    %v4791 = vunpack.c.l.b16 %v1719
    %v4792 = vunpack.c.l.b16 %v1720
    %v4793 = vunpack.c.l.b16 %v1721
    %v4794 = vunpack.c.l.b16 %v1722
    %v4795 = vunpack.c.l.b16 %v1723
    %v4796 = vunpack.c.l.b16 %v1724
    %v4797 = vunpack.c.l.b16 %v1725
    %v4798 = vunpack.c.l.b16 %v1726
    %v4799 = vunpack.c.l.b16 %v1727
    %v4800 = vunpack.c.l.b16 %v1728
    %v4801 = vunpack.c.l.b16 %v1729
    %v4802 = vunpack.c.l.b16 %v1730
    %v4803 = vunpack.c.l.b16 %v1731
    %v4804 = vunpack.c.l.b16 %v1732
    %v4805 = vunpack.c.l.b16 %v1733
    %v4806 = vunpack.c.l.b16 %v1734
    %v4807 = vunpack.c.l.b16 %v1735
    %v4808 = vunpack.c.l.b16 %v1736
    %v4809 = vunpack.c.l.b16 %v1737
    %v4810 = vunpack.c.l.b16 %v1738
    %v4811 = vunpack.c.l.b16 %v1739
    %v4812 = vunpack.c.l.b16 %v1740
    %v4813 = vunpack.c.l.b16 %v1741
    %v4814 = vunpack.c.l.b16 %v1742
    %v4815 = vunpack.c.l.b16 %v1743
    %v4816 = vunpack.c.l.b16 %v1744
    %v4817 = vunpack.c.l.b16 %v1745
    %v4818 = vunpack.c.l.b16 %v1746
    %v4819 = vunpack.c.l.b16 %v1747
    %v4820 = vunpack.c.l.b16 %v1748
    %v4821 = vunpack.c.l.b16 %v1749
    %v4822 = vunpack.c.l.b16 %v1750
    %v4823 = vunpack.c.l.b16 %v1751
    %v4824 = vunpack.c.l.b16 %v1752
    %v4825 = vunpack.c.l.b16 %v1753
    %v4826 = vunpack.c.l.b16 %v1754
    %v4827 = vunpack.c.l.b16 %v1755
    %v4828 = vunpack.c.l.b16 %v1756
    %v4829 = vunpack.c.l.b16 %v1757
    %v4830 = vunpack.c.l.b16 %v1758
    %v4831 = vunpack.c.l.b16 %v1759
    %v4832 = vunpack.c.l.b16 %v1760
    %v4833 = vunpack.c.l.b16 %v1761
    %v4834 = vunpack.c.l.b16 %v1762
    %v4835 = vunpack.c.l.b16 %v1763
    %v4836 = vunpack.c.l.b16 %v1764
    %v4837 = vunpack.c.l.b16 %v1765
    %v4838 = vunpack.c.l.b16 %v1766
    %v4839 = vunpack.c.l.b16 %v1767
    %v4840 = vunpack.c.l.b16 %v1768
    %v4841 = vunpack.c.l.b16 %v1769
    %v4842 = vunpack.c.l.b16 %v1770
    %v4843 = vunpack.c.l.b16 %v1771
    %v4844 = vunpack.c.l.b16 %v1772
    %v4845 = vunpack.c.l.b16 %v1773
    %v4846 = vunpack.c.l.b16 %v1774
    %v4847 = vunpack.c.l.b16 %v1775
    %v4848 = vunpack.c.l.b16 %v1776
    %v4849 = vunpack.c.l.b16 %v1777
    %v4850 = vunpack.c.l.b16 %v1778
    %v4851 = vunpack.c.l.b16 %v1779
    %v4852 = vunpack.c.l.b16 %v1780
    %v4853 = vunpack.c.l.b16 %v1781
    %v4854 = vunpack.c.l.b16 %v1782
    %v4855 = vunpack.c.l.b16 %v1783
    %v4856 = vunpack.c.l.b16 %v1784
    %v4857 = vunpack.c.l.b16 %v1785
    %v4858 = vunpack.c.l.b16 %v1786
    %v4859 = vunpack.c.l.b16 %v1787
    %v4860 = vunpack.c.l.b16 %v1788
    %v4861 = vunpack.c.l.b16 %v1789
    %v4862 = vunpack.c.l.b16 %v1790
    %v4863 = vunpack.c.l.b16 %v1791
    %v4864 = vunpack.c.l.b16 %v1792
    %v4865 = vunpack.c.l.b16 %v1793
    %v4866 = vunpack.c.l.b16 %v1794
    %v4867 = vunpack.c.l.b16 %v1795
    %v4868 = vunpack.c.l.b16 %v1796
    %v4869 = vunpack.c.l.b16 %v1797
    %v4870 = vunpack.c.l.b16 %v1798
    %v4871 = vunpack.c.l.b16 %v1799
    %v4872 = vunpack.c.l.b16 %v1800
    %v4873 = vunpack.c.l.b16 %v1801
    %v4874 = vunpack.c.l.b16 %v1802
    %v4875 = vunpack.c.l.b16 %v1803
    %v4876 = vunpack.c.l.b16 %v1804
    %v4877 = vunpack.c.l.b16 %v1805
    %v4878 = vunpack.c.l.b16 %v1806
    %v4879 = vunpack.c.l.b16 %v1807
    %v4880 = vunpack.c.l.b16 %v1808
    %v4881 = vunpack.c.l.b16 %v1809
    %v4882 = vunpack.c.l.b16 %v1810
    %v4883 = vunpack.c.l.b16 %v1811
    %v4884 = vunpack.c.l.b16 %v1812
    %v4885 = vunpack.c.l.b16 %v1813
    %v4886 = vunpack.c.l.b16 %v1814
    %v4887 = vunpack.c.l.b16 %v1815
    %v4888 = vunpack.c.l.b16 %v1816
    %v4889 = vunpack.c.l.b16 %v1817
    %v4890 = vunpack.c.l.b16 %v1818
    %v4891 = vunpack.c.l.b16 %v1819
    %v4892 = vunpack.c.l.b16 %v1820
    %v4893 = vunpack.c.l.b16 %v1821
    %v4894 = vunpack.c.l.b16 %v1822
    %v4895 = vunpack.c.l.b16 %v1823
    %v4896 = vunpack.c.l.b16 %v1824
    %v4897 = vunpack.c.l.b16 %v1825
    %v4898 = vunpack.c.l.b16 %v1826
    %v4899 = vunpack.c.l.b16 %v1827
    %v4900 = vunpack.c.l.b16 %v1828
    %v4901 = vunpack.c.l.b16 %v1829
    %v4902 = vunpack.c.l.b16 %v1830
    %v4903 = vunpack.c.l.b16 %v1831
    %v4904 = vunpack.c.l.b16 %v1832
    %v4905 = vunpack.c.l.b16 %v1833
    %v4906 = vunpack.c.l.b16 %v1834
    %v4907 = vunpack.c.l.b16 %v1835
    %v4908 = vunpack.c.l.b16 %v1836
    %v4909 = vunpack.c.l.b16 %v1837
    %v4910 = vunpack.c.l.b16 %v1838
    %v4911 = vunpack.c.l.b16 %v1839
    %v4912 = vunpack.c.l.b16 %v1840
    %v4913 = vunpack.c.l.b16 %v1841
    %v4914 = vunpack.c.l.b16 %v1842
    %v4915 = vunpack.c.l.b16 %v1843
    %v4916 = vunpack.c.l.b16 %v1844
    %v4917 = vunpack.c.l.b16 %v1845
    %v4918 = vunpack.c.l.b16 %v1846
    %v4919 = vunpack.c.l.b16 %v1847
    %v4920 = vunpack.c.l.b16 %v1848
    %v4921 = vunpack.c.l.b16 %v1849
    %v4922 = vunpack.c.l.b16 %v1850
    %v4923 = vunpack.c.l.b16 %v1851
    %v4924 = vunpack.c.l.b16 %v1852
    %v4925 = vunpack.c.l.b16 %v1853
    %v4926 = vunpack.c.l.b16 %v1854
    %v4927 = vunpack.c.l.b16 %v1855
    %v4928 = vunpack.c.l.b16 %v1856
    %v4929 = vunpack.c.l.b16 %v1857
    %v4930 = vunpack.c.l.b16 %v1858
    %v4931 = vunpack.c.l.b16 %v1859
    %v4932 = vunpack.c.l.b16 %v1860
    %v4933 = vunpack.c.l.b16 %v1861
    %v4934 = vunpack.c.l.b16 %v1862
    %v4935 = vunpack.c.l.b16 %v1863
    %v4936 = vunpack.c.l.b16 %v1864
    %v4937 = vunpack.c.l.b16 %v1865
    %v4938 = vunpack.c.l.b16 %v1866
    %v4939 = vunpack.c.l.b16 %v1867
    %v4940 = vunpack.c.l.b16 %v1868
    %v4941 = vunpack.c.l.b16 %v1869
    %v4942 = vunpack.c.l.b16 %v1870
    %v4943 = vunpack.c.l.b16 %v1871
    %v4944 = vunpack.c.l.b16 %v1872
    %v4945 = vunpack.c.l.b16 %v1873
    %v4946 = vunpack.c.l.b16 %v1874
    %v4947 = vunpack.c.l.b16 %v1875
    %v4948 = vunpack.c.l.b16 %v1876
    %v4949 = vunpack.c.l.b16 %v1877
    %v4950 = vunpack.c.l.b16 %v1878
    %v4951 = vunpack.c.l.b16 %v1879
    %v4952 = vunpack.c.l.b16 %v1880
    %v4953 = vunpack.c.l.b16 %v1881
    %v4954 = vunpack.c.l.b16 %v1882
    %v4955 = vunpack.c.l.b16 %v1883
    %v4956 = vunpack.c.l.b16 %v1884
    %v4957 = vunpack.c.l.b16 %v1885
    %v4958 = vunpack.c.l.b16 %v1886
    %v4959 = vunpack.c.l.b16 %v1887
    %v4960 = vunpack.c.l.b16 %v1888
    %v4961 = vunpack.c.l.b16 %v1889
    %v4962 = vunpack.c.l.b16 %v1890
    %v4963 = vunpack.c.l.b16 %v1891
    %v4964 = vunpack.c.l.b16 %v1892
    %v4965 = vunpack.c.l.b16 %v1893
    %v4966 = vunpack.c.l.b16 %v1894
    %v4967 = vunpack.c.l.b16 %v1895
    %v4968 = vunpack.c.l.b16 %v1896
    %v4969 = vunpack.c.l.b16 %v1897
    %v4970 = vunpack.c.l.b16 %v1898
    %v4971 = vunpack.c.l.b16 %v1899
    %v4972 = vunpack.c.l.b16 %v1900
    %v4973 = vunpack.c.l.b16 %v1901
    %v4974 = vunpack.c.l.b16 %v1902
    %v4975 = vunpack.c.l.b16 %v1903
    %v4976 = vunpack.c.l.b16 %v1904
    %v4977 = vunpack.c.l.b16 %v1905
    %v4978 = vunpack.c.l.b16 %v1906
    %v4979 = vunpack.c.l.b16 %v1907
    %v4980 = vunpack.c.l.b16 %v1908
    %v4981 = vunpack.c.l.b16 %v1909
    %v4982 = vunpack.c.l.b16 %v1910
    %v4983 = vunpack.c.l.b16 %v1911
    %v4984 = vunpack.c.l.b16 %v1912
    %v4985 = vunpack.c.l.b16 %v1913
    %v4986 = vunpack.c.l.b16 %v1914
    %v4987 = vunpack.c.l.b16 %v1915
    %v4988 = vunpack.c.l.b16 %v1916
    %v4989 = vunpack.c.l.b16 %v1917
    %v4990 = vunpack.c.l.b16 %v1918
    %v4991 = vunpack.c.l.b16 %v1919
    %v4992 = vunpack.c.l.b16 %v1920
    %v4993 = vunpack.c.l.b16 %v1921
    %v4994 = vunpack.c.l.b16 %v1922
    %v4995 = vunpack.c.l.b16 %v1923
    %v4996 = vunpack.c.l.b16 %v1924
    %v4997 = vunpack.c.l.b16 %v1925
    %v4998 = vunpack.c.l.b16 %v1926
    %v4999 = vunpack.c.l.b16 %v1927
    %v5000 = vunpack.c.l.b16 %v1928
    %v5001 = vunpack.c.l.b16 %v1929
    %v5002 = vunpack.c.l.b16 %v1930
    %v5003 = vunpack.c.l.b16 %v1931
    %v5004 = vunpack.c.l.b16 %v1932
    %v5005 = vunpack.c.l.b16 %v1933
    %v5006 = vunpack.c.l.b16 %v1934
    %v5007 = vunpack.c.l.b16 %v1935
    %v5008 = vunpack.c.l.b16 %v1936
    %v5009 = vunpack.c.l.b16 %v1937
    %v5010 = vunpack.c.l.b16 %v1938
    %v5011 = vunpack.c.l.b16 %v1939
    %v5012 = vunpack.c.l.b16 %v1940
    %v5013 = vunpack.c.l.b16 %v1941
    %v5014 = vunpack.c.l.b16 %v1942
    %v5015 = vunpack.c.l.b16 %v1943
    %v5016 = vunpack.c.l.b16 %v1944
    %v5017 = vunpack.c.l.b16 %v1945
    %v5018 = vunpack.c.l.b16 %v1946
    %v5019 = vunpack.c.l.b16 %v1947
    %v5020 = vunpack.c.l.b16 %v1948
    %v5021 = vunpack.c.l.b16 %v1949
    %v5022 = vunpack.c.l.b16 %v1950
    %v5023 = vunpack.c.l.b16 %v1951
    %v5024 = vunpack.c.l.b16 %v1952
    %v5025 = vunpack.c.l.b16 %v1953
    %v5026 = vunpack.c.l.b16 %v1954
    %v5027 = vunpack.c.l.b16 %v1955
    %v5028 = vunpack.c.l.b16 %v1956
    %v5029 = vunpack.c.l.b16 %v1957
    %v5030 = vunpack.c.l.b16 %v1958
    %v5031 = vunpack.c.l.b16 %v1959
    %v5032 = vunpack.c.l.b16 %v1960
    %v5033 = vunpack.c.l.b16 %v1961
    %v5034 = vunpack.c.l.b16 %v1962
    %v5035 = vunpack.c.l.b16 %v1963
    %v5036 = vunpack.c.l.b16 %v1964
    %v5037 = vunpack.c.l.b16 %v1965
    %v5038 = vunpack.c.l.b16 %v1966
    %v5039 = vunpack.c.l.b16 %v1967
    %v5040 = vunpack.c.l.b16 %v1968
    %v5041 = vunpack.c.l.b16 %v1969
    %v5042 = vunpack.c.l.b16 %v1970
    %v5043 = vunpack.c.l.b16 %v1971
    %v5044 = vunpack.c.l.b16 %v1972
    %v5045 = vunpack.c.l.b16 %v1973
    %v5046 = vunpack.c.l.b16 %v1974
    %v5047 = vunpack.c.l.b16 %v1975
    %v5048 = vunpack.c.l.b16 %v1976
    %v5049 = vunpack.c.l.b16 %v1977
    %v5050 = vunpack.c.l.b16 %v1978
    %v5051 = vunpack.c.l.b16 %v1979
    %v5052 = vunpack.c.l.b16 %v1980
    %v5053 = vunpack.c.l.b16 %v1981
    %v5054 = vunpack.c.l.b16 %v1982
    %v5055 = vunpack.c.l.b16 %v1983
    %v5056 = vunpack.c.l.b16 %v1984
    %v5057 = vunpack.c.l.b16 %v1985
    %v5058 = vunpack.c.l.b16 %v1986
    %v5059 = vunpack.c.l.b16 %v1987
    %v5060 = vunpack.c.l.b16 %v1988
    %v5061 = vunpack.c.l.b16 %v1989
    %v5062 = vunpack.c.l.b16 %v1990
    %v5063 = vunpack.c.l.b16 %v1991
    %v5064 = vunpack.c.l.b16 %v1992
    %v5065 = vunpack.c.l.b16 %v1993
    %v5066 = vunpack.c.l.b16 %v1994
    %v5067 = vunpack.c.l.b16 %v1995
    %v5068 = vunpack.c.l.b16 %v1996
    %v5069 = vunpack.c.l.b16 %v1997
    %v5070 = vunpack.c.l.b16 %v1998
    %v5071 = vunpack.c.l.b16 %v1999
    %v5072 = vunpack.c.l.b16 %v2000
    %v5073 = vunpack.c.l.b16 %v2001
    %v5074 = vunpack.c.l.b16 %v2002
    %v5075 = vunpack.c.l.b16 %v2003
    %v5076 = vunpack.c.l.b16 %v2004
    %v5077 = vunpack.c.l.b16 %v2005
    %v5078 = vunpack.c.l.b16 %v2006
    %v5079 = vunpack.c.l.b16 %v2007
    %v5080 = vunpack.c.l.b16 %v2008
    %v5081 = vunpack.c.l.b16 %v2009
    %v5082 = vunpack.c.l.b16 %v2010
    %v5083 = vunpack.c.l.b16 %v2011
    %v5084 = vunpack.c.l.b16 %v2012
    %v5085 = vunpack.c.l.b16 %v2013
    %v5086 = vunpack.c.l.b16 %v2014
    %v5087 = vunpack.c.l.b16 %v2015
    %v5088 = vunpack.c.l.b16 %v2016
    %v5089 = vunpack.c.l.b16 %v2017
    %v5090 = vunpack.c.l.b16 %v2018
    %v5091 = vunpack.c.l.b16 %v2019
    %v5092 = vunpack.c.l.b16 %v2020
    %v5093 = vunpack.c.l.b16 %v2021
    %v5094 = vunpack.c.l.b16 %v2022
    %v5095 = vunpack.c.l.b16 %v2023
    %v5096 = vunpack.c.l.b16 %v2024
    %v5097 = vunpack.c.l.b16 %v2025
    %v5098 = vunpack.c.l.b16 %v2026
    %v5099 = vunpack.c.l.b16 %v2027
    %v5100 = vunpack.c.l.b16 %v2028
    %v5101 = vunpack.c.l.b16 %v2029
    %v5102 = vunpack.c.l.b16 %v2030
    %v5103 = vunpack.c.l.b16 %v2031
    %v5104 = vunpack.c.l.b16 %v2032
    %v5105 = vunpack.c.l.b16 %v2033
    %v5106 = vunpack.c.l.b16 %v2034
    %v5107 = vunpack.c.l.b16 %v2035
    %v5108 = vunpack.c.l.b16 %v2036
    %v5109 = vunpack.c.l.b16 %v2037
    %v5110 = vunpack.c.l.b16 %v2038
    %v5111 = vunpack.c.l.b16 %v2039
    %v5112 = vunpack.c.l.b16 %v2040
    %v5113 = vunpack.c.l.b16 %v2041
    %v5114 = vunpack.c.l.b16 %v2042
    %v5115 = vunpack.c.l.b16 %v2043
    %v5116 = vunpack.c.l.b16 %v2044
    %v5117 = vunpack.c.l.b16 %v2045
    %v5118 = vunpack.c.l.b16 %v2046
    %v5119 = vunpack.c.l.b16 %v2047
    %v5120 = vunpack.c.l.b16 %v2048
    %v5121 = vunpack.c.l.b16 %v2049
    %v5122 = vunpack.c.l.b16 %v2050
    %v5123 = vunpack.c.l.b16 %v2051
    %v5124 = vunpack.c.l.b16 %v2052
    %v5125 = vunpack.c.l.b16 %v2053
    %v5126 = vunpack.c.l.b16 %v2054
    %v5127 = vunpack.c.l.b16 %v2055
    %v5128 = vunpack.c.l.b16 %v2056
    %v5129 = vunpack.c.l.b16 %v2057
    %v5130 = vunpack.c.l.b16 %v2058
    %v5131 = vunpack.c.l.b16 %v2059
    %v5132 = vunpack.c.l.b16 %v2060
    %v5133 = vunpack.c.l.b16 %v2061
    %v5134 = vunpack.c.l.b16 %v2062
    %v5135 = vunpack.c.l.b16 %v2063
    %v5136 = vunpack.c.l.b16 %v2064
    %v5137 = vunpack.c.l.b16 %v2065
    %v5138 = vunpack.c.l.b16 %v2066
    %v5139 = vunpack.c.l.b16 %v2067
    %v5140 = vunpack.c.l.b16 %v2068
    %v5141 = vunpack.c.l.b16 %v2069
    %v5142 = vunpack.c.l.b16 %v2070
    %v5143 = vunpack.c.l.b16 %v2071
    %v5144 = vunpack.c.l.b16 %v2072
    %v5145 = vunpack.c.l.b16 %v2073
    %v5146 = vunpack.c.l.b16 %v2074
    %v5147 = vunpack.c.l.b16 %v2075
    %v5148 = vunpack.c.l.b16 %v2076
    %v5149 = vunpack.c.l.b16 %v2077
    %v5150 = vunpack.c.l.b16 %v2078
    %v5151 = vunpack.c.l.b16 %v2079
    %v5152 = vunpack.c.l.b16 %v2080
    %v5153 = vunpack.c.l.b16 %v2081
    %v5154 = vunpack.c.l.b16 %v2082
    %v5155 = vunpack.c.l.b16 %v2083
    %v5156 = vunpack.c.l.b16 %v2084
    %v5157 = vunpack.c.l.b16 %v2085
    %v5158 = vunpack.c.l.b16 %v2086
    %v5159 = vunpack.c.l.b16 %v2087
    %v5160 = vunpack.c.l.b16 %v2088
    %v5161 = vunpack.c.l.b16 %v2089
    %v5162 = vunpack.c.l.b16 %v2090
    %v5163 = vunpack.c.l.b16 %v2091
    %v5164 = vunpack.c.l.b16 %v2092
    %v5165 = vunpack.c.l.b16 %v2093
    %v5166 = vunpack.c.l.b16 %v2094
    %v5167 = vunpack.c.l.b16 %v2095
    %v5168 = vunpack.c.l.b16 %v2096
    %v5169 = vunpack.c.l.b16 %v2097
    %v5170 = vunpack.c.l.b16 %v2098
    %v5171 = vunpack.c.l.b16 %v2099
    %v5172 = vunpack.c.l.b16 %v2100
    %v5173 = vunpack.c.l.b16 %v2101
    %v5174 = vunpack.c.l.b16 %v2102
    %v5175 = vunpack.c.l.b16 %v2103
    %v5176 = vunpack.c.l.b16 %v2104
    %v5177 = vunpack.c.l.b16 %v2105
    %v5178 = vunpack.c.l.b16 %v2106
    %v5179 = vunpack.c.l.b16 %v2107
    %v5180 = vunpack.c.l.b16 %v2108
    %v5181 = vunpack.c.l.b16 %v2109
    %v5182 = vunpack.c.l.b16 %v2110
    %v5183 = vunpack.c.l.b16 %v2111
    %v5184 = vunpack.c.l.b16 %v2112
    %v5185 = vunpack.c.l.b16 %v2113
    %v5186 = vunpack.c.l.b16 %v2114
    %v5187 = vunpack.c.l.b16 %v2115
    %v5188 = vunpack.c.l.b16 %v2116
    %v5189 = vunpack.c.l.b16 %v2117
    %v5190 = vunpack.c.l.b16 %v2118
    %v5191 = vunpack.c.l.b16 %v2119
    %v5192 = vunpack.c.l.b16 %v2120
    %v5193 = vunpack.c.l.b16 %v2121
    %v5194 = vunpack.c.l.b16 %v2122
    %v5195 = vunpack.c.l.b16 %v2123
    %v5196 = vunpack.c.l.b16 %v2124
    %v5197 = vunpack.c.l.b16 %v2125
    %v5198 = vunpack.c.l.b16 %v2126
    %v5199 = vunpack.c.l.b16 %v2127
    %v5200 = vunpack.c.l.b16 %v2128
    %v5201 = vunpack.c.l.b16 %v2129
    %v5202 = vunpack.c.l.b16 %v2130
    %v5203 = vunpack.c.l.b16 %v2131
    %v5204 = vunpack.c.l.b16 %v2132
    %v5205 = vunpack.c.l.b16 %v2133
    %v5206 = vunpack.c.l.b16 %v2134
    %v5207 = vunpack.c.l.b16 %v2135
    %v5208 = vunpack.c.l.b16 %v2136
    %v5209 = vunpack.c.l.b16 %v2137
    %v5210 = vunpack.c.l.b16 %v2138
    %v5211 = vunpack.c.l.b16 %v2139
    %v5212 = vunpack.c.l.b16 %v2140
    %v5213 = vunpack.c.l.b16 %v2141
    %v5214 = vunpack.c.l.b16 %v2142
    %v5215 = vunpack.c.l.b16 %v2143
    %v5216 = vunpack.c.l.b16 %v2144
    %v5217 = vunpack.c.l.b16 %v2145
    %v5218 = vunpack.c.l.b16 %v2146
    %v5219 = vunpack.c.l.b16 %v2147
    %v5220 = vunpack.c.l.b16 %v2148
    %v5221 = vunpack.c.l.b16 %v2149
    %v5222 = vunpack.c.l.b16 %v2150
    %v5223 = vunpack.c.l.b16 %v2151
    %v5224 = vunpack.c.l.b16 %v2152
    %v5225 = vunpack.c.l.b16 %v2153
    %v5226 = vunpack.c.l.b16 %v2154
    %v5227 = vunpack.c.l.b16 %v2155
    %v5228 = vunpack.c.l.b16 %v2156
    %v5229 = vunpack.c.l.b16 %v2157
    %v5230 = vunpack.c.l.b16 %v2158
    %v5231 = vunpack.c.l.b16 %v2159
    %v5232 = vunpack.c.l.b16 %v2160
    %v5233 = vunpack.c.l.b16 %v2161
    %v5234 = vunpack.c.l.b16 %v2162
    %v5235 = vunpack.c.l.b16 %v2163
    %v5236 = vunpack.c.l.b16 %v2164
    %v5237 = vunpack.c.l.b16 %v2165
    %v5238 = vunpack.c.l.b16 %v2166
    %v5239 = vunpack.c.l.b16 %v2167
    %v5240 = vunpack.c.l.b16 %v2168
    %v5241 = vunpack.c.l.b16 %v2169
    %v5242 = vunpack.c.l.b16 %v2170
    %v5243 = vunpack.c.l.b16 %v2171
    %v5244 = vunpack.c.l.b16 %v2172
    %v5245 = vunpack.c.l.b16 %v2173
    %v5246 = vunpack.c.l.b16 %v2174
    %v5247 = vunpack.c.l.b16 %v2175
    %v5248 = vunpack.c.l.b16 %v2176
    %v5249 = vunpack.c.l.b16 %v2177
    %v5250 = vunpack.c.l.b16 %v2178
    %v5251 = vunpack.c.l.b16 %v2179
    %v5252 = vunpack.c.l.b16 %v2180
    %v5253 = vunpack.c.l.b16 %v2181
    %v5254 = vunpack.c.l.b16 %v2182
    %v5255 = vunpack.c.l.b16 %v2183
    %v5256 = vunpack.c.l.b16 %v2184
    %v5257 = vunpack.c.l.b16 %v2185
    %v5258 = vunpack.c.l.b16 %v2186
    %v5259 = vunpack.c.l.b16 %v2187
    %v5260 = vunpack.c.l.b16 %v2188
    %v5261 = vunpack.c.l.b16 %v2189
    %v5262 = vunpack.c.l.b16 %v2190
    %v5263 = vunpack.c.l.b16 %v2191
    %v5264 = vunpack.c.l.b16 %v2192
    %v5265 = vunpack.c.l.b16 %v2193
    %v5266 = vunpack.c.l.b16 %v2194
    %v5267 = vunpack.c.l.b16 %v2195
    %v5268 = vunpack.c.l.b16 %v2196
    %v5269 = vunpack.c.l.b16 %v2197
    %v5270 = vunpack.c.l.b16 %v2198
    %v5271 = vunpack.c.l.b16 %v2199
    %v5272 = vunpack.c.l.b16 %v2200
    %v5273 = vunpack.c.l.b16 %v2201
    %v5274 = vunpack.c.l.b16 %v2202
    %v5275 = vunpack.c.l.b16 %v2203
    %v5276 = vunpack.c.l.b16 %v2204
    %v5277 = vunpack.c.l.b16 %v2205
    %v5278 = vunpack.c.l.b16 %v2206
    %v5279 = vunpack.c.l.b16 %v2207
    %v5280 = vunpack.c.l.b16 %v2208
    %v5281 = vunpack.c.l.b16 %v2209
    %v5282 = vunpack.c.l.b16 %v2210
    %v5283 = vunpack.c.l.b16 %v2211
    %v5284 = vunpack.c.l.b16 %v2212
    %v5285 = vunpack.c.l.b16 %v2213
    %v5286 = vunpack.c.l.b16 %v2214
    %v5287 = vunpack.c.l.b16 %v2215
    %v5288 = vunpack.c.l.b16 %v2216
    %v5289 = vunpack.c.l.b16 %v2217
    %v5290 = vunpack.c.l.b16 %v2218
    %v5291 = vunpack.c.l.b16 %v2219
    %v5292 = vunpack.c.l.b16 %v2220
    %v5293 = vunpack.c.l.b16 %v2221
    %v5294 = vunpack.c.l.b16 %v2222
    %v5295 = vunpack.c.l.b16 %v2223
    %v5296 = vunpack.c.l.b16 %v2224
    %v5297 = vunpack.c.l.b16 %v2225
    %v5298 = vunpack.c.l.b16 %v2226
    %v5299 = vunpack.c.l.b16 %v2227
    %v5300 = vunpack.c.l.b16 %v2228
    %v5301 = vunpack.c.l.b16 %v2229
    %v5302 = vunpack.c.l.b16 %v2230
    %v5303 = vunpack.c.l.b16 %v2231
    %v5304 = vunpack.c.l.b16 %v2232
    %v5305 = vunpack.c.l.b16 %v2233
    %v5306 = vunpack.c.l.b16 %v2234
    %v5307 = vunpack.c.l.b16 %v2235
    %v5308 = vunpack.c.l.b16 %v2236
    %v5309 = vunpack.c.l.b16 %v2237
    %v5310 = vunpack.c.l.b16 %v2238
    %v5311 = vunpack.c.l.b16 %v2239
    %v5312 = vunpack.c.l.b16 %v2240
    %v5313 = vunpack.c.l.b16 %v2241
    %v5314 = vunpack.c.l.b16 %v2242
    %v5315 = vunpack.c.l.b16 %v2243
    %v5316 = vunpack.c.l.b16 %v2244
    %v5317 = vunpack.c.l.b16 %v2245
    %v5318 = vunpack.c.l.b16 %v2246
    %v5319 = vunpack.c.l.b16 %v2247
    %v5320 = vunpack.c.l.b16 %v2248
    %v5321 = vunpack.c.l.b16 %v2249
    %v5322 = vunpack.c.l.b16 %v2250
    %v5323 = vunpack.c.l.b16 %v2251
    %v5324 = vunpack.c.l.b16 %v2252
    %v5325 = vunpack.c.l.b16 %v2253
    %v5326 = vunpack.c.l.b16 %v2254
    %v5327 = vunpack.c.l.b16 %v2255
    %v5328 = vunpack.c.l.b16 %v2256
    %v5329 = vunpack.c.l.b16 %v2257
    %v5330 = vunpack.c.l.b16 %v2258
    %v5331 = vunpack.c.l.b16 %v2259
    %v5332 = vunpack.c.l.b16 %v2260
    %v5333 = vunpack.c.l.b16 %v2261
    %v5334 = vunpack.c.l.b16 %v2262
    %v5335 = vunpack.c.l.b16 %v2263
    %v5336 = vunpack.c.l.b16 %v2264
    %v5337 = vunpack.c.l.b16 %v2265
    %v5338 = vunpack.c.l.b16 %v2266
    %v5339 = vunpack.c.l.b16 %v2267
    %v5340 = vunpack.c.l.b16 %v2268
    %v5341 = vunpack.c.l.b16 %v2269
    %v5342 = vunpack.c.l.b16 %v2270
    %v5343 = vunpack.c.l.b16 %v2271
    %v5344 = vunpack.c.l.b16 %v2272
    %v5345 = vunpack.c.l.b16 %v2273
    %v5346 = vunpack.c.l.b16 %v2274
    %v5347 = vunpack.c.l.b16 %v2275
    %v5348 = vunpack.c.l.b16 %v2276
    %v5349 = vunpack.c.l.b16 %v2277
    %v5350 = vunpack.c.l.b16 %v2278
    %v5351 = vunpack.c.l.b16 %v2279
    %v5352 = vunpack.c.l.b16 %v2280
    %v5353 = vunpack.c.l.b16 %v2281
    %v5354 = vunpack.c.l.b16 %v2282
    %v5355 = vunpack.c.l.b16 %v2283
    %v5356 = vunpack.c.l.b16 %v2284
    %v5357 = vunpack.c.l.b16 %v2285
    %v5358 = vunpack.c.l.b16 %v2286
    %v5359 = vunpack.c.l.b16 %v2287
    %v5360 = vunpack.c.l.b16 %v2288
    %v5361 = vunpack.c.l.b16 %v2289
    %v5362 = vunpack.c.l.b16 %v2290
    %v5363 = vunpack.c.l.b16 %v2291
    %v5364 = vunpack.c.l.b16 %v2292
    %v5365 = vunpack.c.l.b16 %v2293
    %v5366 = vunpack.c.l.b16 %v2294
    %v5367 = vunpack.c.l.b16 %v2295
    %v5368 = vunpack.c.l.b16 %v2296
    %v5369 = vunpack.c.l.b16 %v2297
    %v5370 = vunpack.c.l.b16 %v2298
    %v5371 = vpack.c.b16 %v3836, %v3835
    %v5372 = vpack.c.b16 %v3838, %v3837
    %v5373 = vpack.c.b16 %v3840, %v3839
    %v5374 = vpack.c.b16 %v3842, %v3841
    %v5375 = vpack.c.b16 %v3844, %v3843
    %v5376 = vpack.c.b16 %v3846, %v3845
    %v5377 = vpack.c.b16 %v3848, %v3847
    %v5378 = vpack.c.b16 %v3850, %v3849
    %v5379 = vpack.c.b16 %v3852, %v3851
    %v5380 = vpack.c.b16 %v3854, %v3853
    %v5381 = vpack.c.b16 %v3856, %v3855
    %v5382 = vpack.c.b16 %v3858, %v3857
    %v5383 = vpack.c.b16 %v3860, %v3859
    %v5384 = vpack.c.b16 %v3862, %v3861
    %v5385 = vpack.c.b16 %v3864, %v3863
    %v5386 = vpack.c.b16 %v3866, %v3865
    %v5387 = vpack.c.b16 %v3868, %v3867
    %v5388 = vpack.c.b16 %v3870, %v3869
    %v5389 = vpack.c.b16 %v3872, %v3871
    %v5390 = vpack.c.b16 %v3874, %v3873
    %v5391 = vpack.c.b16 %v3876, %v3875
    %v5392 = vpack.c.b16 %v3878, %v3877
    %v5393 = vpack.c.b16 %v3880, %v3879
    %v5394 = vpack.c.b16 %v3882, %v3881
    %v5395 = vpack.c.b16 %v3884, %v3883
    %v5396 = vpack.c.b16 %v3886, %v3885
    %v5397 = vpack.c.b16 %v3888, %v3887
    %v5398 = vpack.c.b16 %v3890, %v3889
    %v5399 = vpack.c.b16 %v3892, %v3891
    %v5400 = vpack.c.b16 %v3894, %v3893
    %v5401 = vpack.c.b16 %v3896, %v3895
    %v5402 = vpack.c.b16 %v3898, %v3897
    %v5403 = vpack.c.b16 %v3900, %v3899
    %v5404 = vpack.c.b16 %v3902, %v3901
    %v5405 = vpack.c.b16 %v3904, %v3903
    %v5406 = vpack.c.b16 %v3906, %v3905
    %v5407 = vpack.c.b16 %v3908, %v3907
    %v5408 = vpack.c.b16 %v3910, %v3909
    %v5409 = vpack.c.b16 %v3912, %v3911
    %v5410 = vpack.c.b16 %v3914, %v3913
    %v5411 = vpack.c.b16 %v3916, %v3915
    %v5412 = vpack.c.b16 %v3918, %v3917
    %v5413 = vpack.c.b16 %v3920, %v3919
    %v5414 = vpack.c.b16 %v3922, %v3921
    %v5415 = vpack.c.b16 %v3924, %v3923
    %v5416 = vpack.c.b16 %v3926, %v3925
    %v5417 = vpack.c.b16 %v3928, %v3927
    %v5418 = vpack.c.b16 %v3930, %v3929
    %v5419 = vpack.c.b16 %v3932, %v3931
    %v5420 = vpack.c.b16 %v3934, %v3933
    %v5421 = vpack.c.b16 %v3936, %v3935
    %v5422 = vpack.c.b16 %v3938, %v3937
    %v5423 = vpack.c.b16 %v3940, %v3939
    %v5424 = vpack.c.b16 %v3942, %v3941
    %v5425 = vpack.c.b16 %v3944, %v3943
    %v5426 = vpack.c.b16 %v3946, %v3945
    %v5427 = vpack.c.b16 %v3948, %v3947
    %v5428 = vpack.c.b16 %v3950, %v3949
    %v5429 = vpack.c.b16 %v3952, %v3951
    %v5430 = vpack.c.b16 %v3954, %v3953
    %v5431 = vpack.c.b16 %v3956, %v3955
    %v5432 = vpack.c.b16 %v3958, %v3957
    %v5433 = vpack.c.b16 %v3960, %v3959
    %v5434 = vpack.c.b16 %v3962, %v3961
    %v5435 = vpack.c.b16 %v3964, %v3963
    %v5436 = vpack.c.b16 %v3966, %v3965
    %v5437 = vpack.c.b16 %v3968, %v3967
    %v5438 = vpack.c.b16 %v3970, %v3969
    %v5439 = vpack.c.b16 %v3972, %v3971
    %v5440 = vpack.c.b16 %v3974, %v3973
    %v5441 = vpack.c.b16 %v3976, %v3975
    %v5442 = vpack.c.b16 %v3978, %v3977
    %v5443 = vpack.c.b16 %v3980, %v3979
    %v5444 = vpack.c.b16 %v3982, %v3981
    %v5445 = vpack.c.b16 %v3984, %v3983
    %v5446 = vpack.c.b16 %v3986, %v3985
    %v5447 = vpack.c.b16 %v3988, %v3987
    %v5448 = vpack.c.b16 %v3990, %v3989
    %v5449 = vpack.c.b16 %v3992, %v3991
    %v5450 = vpack.c.b16 %v3994, %v3993
    %v5451 = vpack.c.b16 %v3996, %v3995
    %v5452 = vpack.c.b16 %v3998, %v3997
    %v5453 = vpack.c.b16 %v4000, %v3999
    %v5454 = vpack.c.b16 %v4002, %v4001
    %v5455 = vpack.c.b16 %v4004, %v4003
    %v5456 = vpack.c.b16 %v4006, %v4005
    %v5457 = vpack.c.b16 %v4008, %v4007
    %v5458 = vpack.c.b16 %v4010, %v4009
    %v5459 = vpack.c.b16 %v4012, %v4011
    %v5460 = vpack.c.b16 %v4014, %v4013
    %v5461 = vpack.c.b16 %v4016, %v4015
    %v5462 = vpack.c.b16 %v4018, %v4017
    %v5463 = vpack.c.b16 %v4020, %v4019
    %v5464 = vpack.c.b16 %v4022, %v4021
    %v5465 = vpack.c.b16 %v4024, %v4023
    %v5466 = vpack.c.b16 %v4026, %v4025
    %v5467 = vpack.c.b16 %v4028, %v4027
    %v5468 = vpack.c.b16 %v4030, %v4029
    %v5469 = vpack.c.b16 %v4032, %v4031
    %v5470 = vpack.c.b16 %v4034, %v4033
    %v5471 = vpack.c.b16 %v4036, %v4035
    %v5472 = vpack.c.b16 %v4038, %v4037
    %v5473 = vpack.c.b16 %v4040, %v4039
    %v5474 = vpack.c.b16 %v4042, %v4041
    %v5475 = vpack.c.b16 %v4044, %v4043
    %v5476 = vpack.c.b16 %v4046, %v4045
    %v5477 = vpack.c.b16 %v4048, %v4047
    %v5478 = vpack.c.b16 %v4050, %v4049
    %v5479 = vpack.c.b16 %v4052, %v4051
    %v5480 = vpack.c.b16 %v4054, %v4053
    %v5481 = vpack.c.b16 %v4056, %v4055
    %v5482 = vpack.c.b16 %v4058, %v4057
    %v5483 = vpack.c.b16 %v4060, %v4059
    %v5484 = vpack.c.b16 %v4062, %v4061
    %v5485 = vpack.c.b16 %v4064, %v4063
    %v5486 = vpack.c.b16 %v4066, %v4065
    %v5487 = vpack.c.b16 %v4068, %v4067
    %v5488 = vpack.c.b16 %v4070, %v4069
    %v5489 = vpack.c.b16 %v4072, %v4071
    %v5490 = vpack.c.b16 %v4074, %v4073
    %v5491 = vpack.c.b16 %v4076, %v4075
    %v5492 = vpack.c.b16 %v4078, %v4077
    %v5493 = vpack.c.b16 %v4080, %v4079
    %v5494 = vpack.c.b16 %v4082, %v4081
    %v5495 = vpack.c.b16 %v4084, %v4083
    %v5496 = vpack.c.b16 %v4086, %v4085
    %v5497 = vpack.c.b16 %v4088, %v4087
    %v5498 = vpack.c.b16 %v4090, %v4089
    %v5499 = vpack.c.b16 %v4092, %v4091
    %v5500 = vpack.c.b16 %v4094, %v4093
    %v5501 = vpack.c.b16 %v4096, %v4095
    %v5502 = vpack.c.b16 %v4098, %v4097
    %v5503 = vpack.c.b16 %v4100, %v4099
    %v5504 = vpack.c.b16 %v4102, %v4101
    %v5505 = vpack.c.b16 %v4104, %v4103
    %v5506 = vpack.c.b16 %v4106, %v4105
    %v5507 = vpack.c.b16 %v4108, %v4107
    %v5508 = vpack.c.b16 %v4110, %v4109
    %v5509 = vpack.c.b16 %v4112, %v4111
    %v5510 = vpack.c.b16 %v4114, %v4113
    %v5511 = vpack.c.b16 %v4116, %v4115
    %v5512 = vpack.c.b16 %v4118, %v4117
    %v5513 = vpack.c.b16 %v4120, %v4119
    %v5514 = vpack.c.b16 %v4122, %v4121
    %v5515 = vpack.c.b16 %v4124, %v4123
    %v5516 = vpack.c.b16 %v4126, %v4125
    %v5517 = vpack.c.b16 %v4128, %v4127
    %v5518 = vpack.c.b16 %v4130, %v4129
    %v5519 = vpack.c.b16 %v4132, %v4131
    %v5520 = vpack.c.b16 %v4134, %v4133
    %v5521 = vpack.c.b16 %v4136, %v4135
    %v5522 = vpack.c.b16 %v4138, %v4137
    %v5523 = vpack.c.b16 %v4140, %v4139
    %v5524 = vpack.c.b16 %v4142, %v4141
    %v5525 = vpack.c.b16 %v4144, %v4143
    %v5526 = vpack.c.b16 %v4146, %v4145
    %v5527 = vpack.c.b16 %v4148, %v4147
    %v5528 = vpack.c.b16 %v4150, %v4149
    %v5529 = vpack.c.b16 %v4152, %v4151
    %v5530 = vpack.c.b16 %v4154, %v4153
    %v5531 = vpack.c.b16 %v4156, %v4155
    %v5532 = vpack.c.b16 %v4158, %v4157
    %v5533 = vpack.c.b16 %v4160, %v4159
    %v5534 = vpack.c.b16 %v4162, %v4161
    %v5535 = vpack.c.b16 %v4164, %v4163
    %v5536 = vpack.c.b16 %v4166, %v4165
    %v5537 = vpack.c.b16 %v4168, %v4167
    %v5538 = vpack.c.b16 %v4170, %v4169
    %v5539 = vpack.c.b16 %v4172, %v4171
    %v5540 = vpack.c.b16 %v4174, %v4173
    %v5541 = vpack.c.b16 %v4176, %v4175
    %v5542 = vpack.c.b16 %v4178, %v4177
    %v5543 = vpack.c.b16 %v4180, %v4179
    %v5544 = vpack.c.b16 %v4182, %v4181
    %v5545 = vpack.c.b16 %v4184, %v4183
    %v5546 = vpack.c.b16 %v4186, %v4185
    %v5547 = vpack.c.b16 %v4188, %v4187
    %v5548 = vpack.c.b16 %v4190, %v4189
    %v5549 = vpack.c.b16 %v4192, %v4191
    %v5550 = vpack.c.b16 %v4194, %v4193
    %v5551 = vpack.c.b16 %v4196, %v4195
    %v5552 = vpack.c.b16 %v4198, %v4197
    %v5553 = vpack.c.b16 %v4200, %v4199
    %v5554 = vpack.c.b16 %v4202, %v4201
    %v5555 = vpack.c.b16 %v4204, %v4203
    %v5556 = vpack.c.b16 %v4206, %v4205
    %v5557 = vpack.c.b16 %v4208, %v4207
    %v5558 = vpack.c.b16 %v4210, %v4209
    %v5559 = vpack.c.b16 %v4212, %v4211
    %v5560 = vpack.c.b16 %v4214, %v4213
    %v5561 = vpack.c.b16 %v4216, %v4215
    %v5562 = vpack.c.b16 %v4218, %v4217
    %v5563 = vpack.c.b16 %v4220, %v4219
    %v5564 = vpack.c.b16 %v4222, %v4221
    %v5565 = vpack.c.b16 %v4224, %v4223
    %v5566 = vpack.c.b16 %v4226, %v4225
    %v5567 = vpack.c.b16 %v4228, %v4227
    %v5568 = vpack.c.b16 %v4230, %v4229
    %v5569 = vpack.c.b16 %v4232, %v4231
    %v5570 = vpack.c.b16 %v4234, %v4233
    %v5571 = vpack.c.b16 %v4236, %v4235
    %v5572 = vpack.c.b16 %v4238, %v4237
    %v5573 = vpack.c.b16 %v4240, %v4239
    %v5574 = vpack.c.b16 %v4242, %v4241
    %v5575 = vpack.c.b16 %v4244, %v4243
    %v5576 = vpack.c.b16 %v4246, %v4245
    %v5577 = vpack.c.b16 %v4248, %v4247
    %v5578 = vpack.c.b16 %v4250, %v4249
    %v5579 = vpack.c.b16 %v4252, %v4251
    %v5580 = vpack.c.b16 %v4254, %v4253
    %v5581 = vpack.c.b16 %v4256, %v4255
    %v5582 = vpack.c.b16 %v4258, %v4257
    %v5583 = vpack.c.b16 %v4260, %v4259
    %v5584 = vpack.c.b16 %v4262, %v4261
    %v5585 = vpack.c.b16 %v4264, %v4263
    %v5586 = vpack.c.b16 %v4266, %v4265
    %v5587 = vpack.c.b16 %v4268, %v4267
    %v5588 = vpack.c.b16 %v4270, %v4269
    %v5589 = vpack.c.b16 %v4272, %v4271
    %v5590 = vpack.c.b16 %v4274, %v4273
    %v5591 = vpack.c.b16 %v4276, %v4275
    %v5592 = vpack.c.b16 %v4278, %v4277
    %v5593 = vpack.c.b16 %v4280, %v4279
    %v5594 = vpack.c.b16 %v4282, %v4281
    %v5595 = vpack.c.b16 %v4284, %v4283
    %v5596 = vpack.c.b16 %v4286, %v4285
    %v5597 = vpack.c.b16 %v4288, %v4287
    %v5598 = vpack.c.b16 %v4290, %v4289
    %v5599 = vpack.c.b16 %v4292, %v4291
    %v5600 = vpack.c.b16 %v4294, %v4293
    %v5601 = vpack.c.b16 %v4296, %v4295
    %v5602 = vpack.c.b16 %v4298, %v4297
    %v5603 = vpack.c.b16 %v4300, %v4299
    %v5604 = vpack.c.b16 %v4302, %v4301
    %v5605 = vpack.c.b16 %v4304, %v4303
    %v5606 = vpack.c.b16 %v4306, %v4305
    %v5607 = vpack.c.b16 %v4308, %v4307
    %v5608 = vpack.c.b16 %v4310, %v4309
    %v5609 = vpack.c.b16 %v4312, %v4311
    %v5610 = vpack.c.b16 %v4314, %v4313
    %v5611 = vpack.c.b16 %v4316, %v4315
    %v5612 = vpack.c.b16 %v4318, %v4317
    %v5613 = vpack.c.b16 %v4320, %v4319
    %v5614 = vpack.c.b16 %v4322, %v4321
    %v5615 = vpack.c.b16 %v4324, %v4323
    %v5616 = vpack.c.b16 %v4326, %v4325
    %v5617 = vpack.c.b16 %v4328, %v4327
    %v5618 = vpack.c.b16 %v4330, %v4329
    %v5619 = vpack.c.b16 %v4332, %v4331
    %v5620 = vpack.c.b16 %v4334, %v4333
    %v5621 = vpack.c.b16 %v4336, %v4335
    %v5622 = vpack.c.b16 %v4338, %v4337
    %v5623 = vpack.c.b16 %v4340, %v4339
    %v5624 = vpack.c.b16 %v4342, %v4341
    %v5625 = vpack.c.b16 %v4344, %v4343
    %v5626 = vpack.c.b16 %v4346, %v4345
    %v5627 = vpack.c.b16 %v4348, %v4347
    %v5628 = vpack.c.b16 %v4350, %v4349
    %v5629 = vpack.c.b16 %v4352, %v4351
    %v5630 = vpack.c.b16 %v4354, %v4353
    %v5631 = vpack.c.b16 %v4356, %v4355
    %v5632 = vpack.c.b16 %v4358, %v4357
    %v5633 = vpack.c.b16 %v4360, %v4359
    %v5634 = vpack.c.b16 %v4362, %v4361
    %v5635 = vpack.c.b16 %v4364, %v4363
    %v5636 = vpack.c.b16 %v4366, %v4365
    %v5637 = vpack.c.b16 %v4368, %v4367
    %v5638 = vpack.c.b16 %v4370, %v4369
    %v5639 = vpack.c.b16 %v4372, %v4371
    %v5640 = vpack.c.b16 %v4374, %v4373
    %v5641 = vpack.c.b16 %v4376, %v4375
    %v5642 = vpack.c.b16 %v4378, %v4377
    %v5643 = vpack.c.b16 %v4380, %v4379
    %v5644 = vpack.c.b16 %v4382, %v4381
    %v5645 = vpack.c.b16 %v4384, %v4383
    %v5646 = vpack.c.b16 %v4386, %v4385
    %v5647 = vpack.c.b16 %v4388, %v4387
    %v5648 = vpack.c.b16 %v4390, %v4389
    %v5649 = vpack.c.b16 %v4392, %v4391
    %v5650 = vpack.c.b16 %v4394, %v4393
    %v5651 = vpack.c.b16 %v4396, %v4395
    %v5652 = vpack.c.b16 %v4398, %v4397
    %v5653 = vpack.c.b16 %v4400, %v4399
    %v5654 = vpack.c.b16 %v4402, %v4401
    %v5655 = vpack.c.b16 %v4404, %v4403
    %v5656 = vpack.c.b16 %v4406, %v4405
    %v5657 = vpack.c.b16 %v4408, %v4407
    %v5658 = vpack.c.b16 %v4410, %v4409
    %v5659 = vpack.c.b16 %v4412, %v4411
    %v5660 = vpack.c.b16 %v4414, %v4413
    %v5661 = vpack.c.b16 %v4416, %v4415
    %v5662 = vpack.c.b16 %v4418, %v4417
    %v5663 = vpack.c.b16 %v4420, %v4419
    %v5664 = vpack.c.b16 %v4422, %v4421
    %v5665 = vpack.c.b16 %v4424, %v4423
    %v5666 = vpack.c.b16 %v4426, %v4425
    %v5667 = vpack.c.b16 %v4428, %v4427
    %v5668 = vpack.c.b16 %v4430, %v4429
    %v5669 = vpack.c.b16 %v4432, %v4431
    %v5670 = vpack.c.b16 %v4434, %v4433
    %v5671 = vpack.c.b16 %v4436, %v4435
    %v5672 = vpack.c.b16 %v4438, %v4437
    %v5673 = vpack.c.b16 %v4440, %v4439
    %v5674 = vpack.c.b16 %v4442, %v4441
    %v5675 = vpack.c.b16 %v4444, %v4443
    %v5676 = vpack.c.b16 %v4446, %v4445
    %v5677 = vpack.c.b16 %v4448, %v4447
    %v5678 = vpack.c.b16 %v4450, %v4449
    %v5679 = vpack.c.b16 %v4452, %v4451
    %v5680 = vpack.c.b16 %v4454, %v4453
    %v5681 = vpack.c.b16 %v4456, %v4455
    %v5682 = vpack.c.b16 %v4458, %v4457
    %v5683 = vpack.c.b16 %v4460, %v4459
    %v5684 = vpack.c.b16 %v4462, %v4461
    %v5685 = vpack.c.b16 %v4464, %v4463
    %v5686 = vpack.c.b16 %v4466, %v4465
    %v5687 = vpack.c.b16 %v4468, %v4467
    %v5688 = vpack.c.b16 %v4470, %v4469
    %v5689 = vpack.c.b16 %v4472, %v4471
    %v5690 = vpack.c.b16 %v4474, %v4473
    %v5691 = vpack.c.b16 %v4476, %v4475
    %v5692 = vpack.c.b16 %v4478, %v4477
    %v5693 = vpack.c.b16 %v4480, %v4479
    %v5694 = vpack.c.b16 %v4482, %v4481
    %v5695 = vpack.c.b16 %v4484, %v4483
    %v5696 = vpack.c.b16 %v4486, %v4485
    %v5697 = vpack.c.b16 %v4488, %v4487
    %v5698 = vpack.c.b16 %v4490, %v4489
    %v5699 = vpack.c.b16 %v4492, %v4491
    %v5700 = vpack.c.b16 %v4494, %v4493
    %v5701 = vpack.c.b16 %v4496, %v4495
    %v5702 = vpack.c.b16 %v4498, %v4497
    %v5703 = vpack.c.b16 %v4500, %v4499
    %v5704 = vpack.c.b16 %v4502, %v4501
    %v5705 = vpack.c.b16 %v4504, %v4503
    %v5706 = vpack.c.b16 %v4506, %v4505
    %v5707 = vpack.c.b16 %v4508, %v4507
    %v5708 = vpack.c.b16 %v4510, %v4509
    %v5709 = vpack.c.b16 %v4512, %v4511
    %v5710 = vpack.c.b16 %v4514, %v4513
    %v5711 = vpack.c.b16 %v4516, %v4515
    %v5712 = vpack.c.b16 %v4518, %v4517
    %v5713 = vpack.c.b16 %v4520, %v4519
    %v5714 = vpack.c.b16 %v4522, %v4521
    %v5715 = vpack.c.b16 %v4524, %v4523
    %v5716 = vpack.c.b16 %v4526, %v4525
    %v5717 = vpack.c.b16 %v4528, %v4527
    %v5718 = vpack.c.b16 %v4530, %v4529
    %v5719 = vpack.c.b16 %v4532, %v4531
    %v5720 = vpack.c.b16 %v4534, %v4533
    %v5721 = vpack.c.b16 %v4536, %v4535
    %v5722 = vpack.c.b16 %v4538, %v4537
    %v5723 = vpack.c.b16 %v4540, %v4539
    %v5724 = vpack.c.b16 %v4542, %v4541
    %v5725 = vpack.c.b16 %v4544, %v4543
    %v5726 = vpack.c.b16 %v4546, %v4545
    %v5727 = vpack.c.b16 %v4548, %v4547
    %v5728 = vpack.c.b16 %v4550, %v4549
    %v5729 = vpack.c.b16 %v4552, %v4551
    %v5730 = vpack.c.b16 %v4554, %v4553
    %v5731 = vpack.c.b16 %v4556, %v4555
    %v5732 = vpack.c.b16 %v4558, %v4557
    %v5733 = vpack.c.b16 %v4560, %v4559
    %v5734 = vpack.c.b16 %v4562, %v4561
    %v5735 = vpack.c.b16 %v4564, %v4563
    %v5736 = vpack.c.b16 %v4566, %v4565
    %v5737 = vpack.c.b16 %v4568, %v4567
    %v5738 = vpack.c.b16 %v4570, %v4569
    %v5739 = vpack.c.b16 %v4572, %v4571
    %v5740 = vpack.c.b16 %v4574, %v4573
    %v5741 = vpack.c.b16 %v4576, %v4575
    %v5742 = vpack.c.b16 %v4578, %v4577
    %v5743 = vpack.c.b16 %v4580, %v4579
    %v5744 = vpack.c.b16 %v4582, %v4581
    %v5745 = vpack.c.b16 %v4584, %v4583
    %v5746 = vpack.c.b16 %v4586, %v4585
    %v5747 = vpack.c.b16 %v4588, %v4587
    %v5748 = vpack.c.b16 %v4590, %v4589
    %v5749 = vpack.c.b16 %v4592, %v4591
    %v5750 = vpack.c.b16 %v4594, %v4593
    %v5751 = vpack.c.b16 %v4596, %v4595
    %v5752 = vpack.c.b16 %v4598, %v4597
    %v5753 = vpack.c.b16 %v4600, %v4599
    %v5754 = vpack.c.b16 %v4602, %v4601
    %v5755 = vpack.c.b16 %v4604, %v4603
    %v5756 = vpack.c.b16 %v4606, %v4605
    %v5757 = vpack.c.b16 %v4608, %v4607
    %v5758 = vpack.c.b16 %v4610, %v4609
    %v5759 = vpack.c.b16 %v4612, %v4611
    %v5760 = vpack.c.b16 %v4614, %v4613
    %v5761 = vpack.c.b16 %v4616, %v4615
    %v5762 = vpack.c.b16 %v4618, %v4617
    %v5763 = vpack.c.b16 %v4620, %v4619
    %v5764 = vpack.c.b16 %v4622, %v4621
    %v5765 = vpack.c.b16 %v4624, %v4623
    %v5766 = vpack.c.b16 %v4626, %v4625
    %v5767 = vpack.c.b16 %v4628, %v4627
    %v5768 = vpack.c.b16 %v4630, %v4629
    %v5769 = vpack.c.b16 %v4632, %v4631
    %v5770 = vpack.c.b16 %v4634, %v4633
    %v5771 = vpack.c.b16 %v4636, %v4635
    %v5772 = vpack.c.b16 %v4638, %v4637
    %v5773 = vpack.c.b16 %v4640, %v4639
    %v5774 = vpack.c.b16 %v4642, %v4641
    %v5775 = vpack.c.b16 %v4644, %v4643
    %v5776 = vpack.c.b16 %v4646, %v4645
    %v5777 = vpack.c.b16 %v4648, %v4647
    %v5778 = vpack.c.b16 %v4650, %v4649
    %v5779 = vpack.c.b16 %v4652, %v4651
    %v5780 = vpack.c.b16 %v4654, %v4653
    %v5781 = vpack.c.b16 %v4656, %v4655
    %v5782 = vpack.c.b16 %v4658, %v4657
    %v5783 = vpack.c.b16 %v4660, %v4659
    %v5784 = vpack.c.b16 %v4662, %v4661
    %v5785 = vpack.c.b16 %v4664, %v4663
    %v5786 = vpack.c.b16 %v4666, %v4665
    %v5787 = vpack.c.b16 %v4668, %v4667
    %v5788 = vpack.c.b16 %v4670, %v4669
    %v5789 = vpack.c.b16 %v4672, %v4671
    %v5790 = vpack.c.b16 %v4674, %v4673
    %v5791 = vpack.c.b16 %v4676, %v4675
    %v5792 = vpack.c.b16 %v4678, %v4677
    %v5793 = vpack.c.b16 %v4680, %v4679
    %v5794 = vpack.c.b16 %v4682, %v4681
    %v5795 = vpack.c.b16 %v4684, %v4683
    %v5796 = vpack.c.b16 %v4686, %v4685
    %v5797 = vpack.c.b16 %v4688, %v4687
    %v5798 = vpack.c.b16 %v4690, %v4689
    %v5799 = vpack.c.b16 %v4692, %v4691
    %v5800 = vpack.c.b16 %v4694, %v4693
    %v5801 = vpack.c.b16 %v4696, %v4695
    %v5802 = vpack.c.b16 %v4698, %v4697
    %v5803 = vpack.c.b16 %v4700, %v4699
    %v5804 = vpack.c.b16 %v4702, %v4701
    %v5805 = vpack.c.b16 %v4704, %v4703
    %v5806 = vpack.c.b16 %v4706, %v4705
    %v5807 = vpack.c.b16 %v4708, %v4707
    %v5808 = vpack.c.b16 %v4710, %v4709
    %v5809 = vpack.c.b16 %v4712, %v4711
    %v5810 = vpack.c.b16 %v4714, %v4713
    %v5811 = vpack.c.b16 %v4716, %v4715
    %v5812 = vpack.c.b16 %v4718, %v4717
    %v5813 = vpack.c.b16 %v4720, %v4719
    %v5814 = vpack.c.b16 %v4722, %v4721
    %v5815 = vpack.c.b16 %v4724, %v4723
    %v5816 = vpack.c.b16 %v4726, %v4725
    %v5817 = vpack.c.b16 %v4728, %v4727
    %v5818 = vpack.c.b16 %v4730, %v4729
    %v5819 = vpack.c.b16 %v4732, %v4731
    %v5820 = vpack.c.b16 %v4734, %v4733
    %v5821 = vpack.c.b16 %v4736, %v4735
    %v5822 = vpack.c.b16 %v4738, %v4737
    %v5823 = vpack.c.b16 %v4740, %v4739
    %v5824 = vpack.c.b16 %v4742, %v4741
    %v5825 = vpack.c.b16 %v4744, %v4743
    %v5826 = vpack.c.b16 %v4746, %v4745
    %v5827 = vpack.c.b16 %v4748, %v4747
    %v5828 = vpack.c.b16 %v4750, %v4749
    %v5829 = vpack.c.b16 %v4752, %v4751
    %v5830 = vpack.c.b16 %v4754, %v4753
    %v5831 = vpack.c.b16 %v4756, %v4755
    %v5832 = vpack.c.b16 %v4758, %v4757
    %v5833 = vpack.c.b16 %v4760, %v4759
    %v5834 = vpack.c.b16 %v4762, %v4761
    %v5835 = vpack.c.b16 %v4764, %v4763
    %v5836 = vpack.c.b16 %v4766, %v4765
    %v5837 = vpack.c.b16 %v4768, %v4767
    %v5838 = vpack.c.b16 %v4770, %v4769
    %v5839 = vpack.c.b16 %v4772, %v4771
    %v5840 = vpack.c.b16 %v4774, %v4773
    %v5841 = vpack.c.b16 %v4776, %v4775
    %v5842 = vpack.c.b16 %v4778, %v4777
    %v5843 = vpack.c.b16 %v4780, %v4779
    %v5844 = vpack.c.b16 %v4782, %v4781
    %v5845 = vpack.c.b16 %v4784, %v4783
    %v5846 = vpack.c.b16 %v4786, %v4785
    %v5847 = vpack.c.b16 %v4788, %v4787
    %v5848 = vpack.c.b16 %v4790, %v4789
    %v5849 = vpack.c.b16 %v4792, %v4791
    %v5850 = vpack.c.b16 %v4794, %v4793
    %v5851 = vpack.c.b16 %v4796, %v4795
    %v5852 = vpack.c.b16 %v4798, %v4797
    %v5853 = vpack.c.b16 %v4800, %v4799
    %v5854 = vpack.c.b16 %v4802, %v4801
    %v5855 = vpack.c.b16 %v4804, %v4803
    %v5856 = vpack.c.b16 %v4806, %v4805
    %v5857 = vpack.c.b16 %v4808, %v4807
    %v5858 = vpack.c.b16 %v4810, %v4809
    %v5859 = vpack.c.b16 %v4812, %v4811
    %v5860 = vpack.c.b16 %v4814, %v4813
    %v5861 = vpack.c.b16 %v4816, %v4815
    %v5862 = vpack.c.b16 %v4818, %v4817
    %v5863 = vpack.c.b16 %v4820, %v4819
    %v5864 = vpack.c.b16 %v4822, %v4821
    %v5865 = vpack.c.b16 %v4824, %v4823
    %v5866 = vpack.c.b16 %v4826, %v4825
    %v5867 = vpack.c.b16 %v4828, %v4827
    %v5868 = vpack.c.b16 %v4830, %v4829
    %v5869 = vpack.c.b16 %v4832, %v4831
    %v5870 = vpack.c.b16 %v4834, %v4833
    %v5871 = vpack.c.b16 %v4836, %v4835
    %v5872 = vpack.c.b16 %v4838, %v4837
    %v5873 = vpack.c.b16 %v4840, %v4839
    %v5874 = vpack.c.b16 %v4842, %v4841
    %v5875 = vpack.c.b16 %v4844, %v4843
    %v5876 = vpack.c.b16 %v4846, %v4845
    %v5877 = vpack.c.b16 %v4848, %v4847
    %v5878 = vpack.c.b16 %v4850, %v4849
    %v5879 = vpack.c.b16 %v4852, %v4851
    %v5880 = vpack.c.b16 %v4854, %v4853
    %v5881 = vpack.c.b16 %v4856, %v4855
    %v5882 = vpack.c.b16 %v4858, %v4857
    %v5883 = vpack.c.b16 %v4860, %v4859
    %v5884 = vpack.c.b16 %v4862, %v4861
    %v5885 = vpack.c.b16 %v4864, %v4863
    %v5886 = vpack.c.b16 %v4866, %v4865
    %v5887 = vpack.c.b16 %v4868, %v4867
    %v5888 = vpack.c.b16 %v4870, %v4869
    %v5889 = vpack.c.b16 %v4872, %v4871
    %v5890 = vpack.c.b16 %v4874, %v4873
    %v5891 = vpack.c.b16 %v4876, %v4875
    %v5892 = vpack.c.b16 %v4878, %v4877
    %v5893 = vpack.c.b16 %v4880, %v4879
    %v5894 = vpack.c.b16 %v4882, %v4881
    %v5895 = vpack.c.b16 %v4884, %v4883
    %v5896 = vpack.c.b16 %v4886, %v4885
    %v5897 = vpack.c.b16 %v4888, %v4887
    %v5898 = vpack.c.b16 %v4890, %v4889
    %v5899 = vpack.c.b16 %v4892, %v4891
    %v5900 = vpack.c.b16 %v4894, %v4893
    %v5901 = vpack.c.b16 %v4896, %v4895
    %v5902 = vpack.c.b16 %v4898, %v4897
    %v5903 = vpack.c.b16 %v4900, %v4899
    %v5904 = vpack.c.b16 %v4902, %v4901
    %v5905 = vpack.c.b16 %v4904, %v4903
    %v5906 = vpack.c.b16 %v4906, %v4905
    %v5907 = vpack.c.b16 %v4908, %v4907
    %v5908 = vpack.c.b16 %v4910, %v4909
    %v5909 = vpack.c.b16 %v4912, %v4911
    %v5910 = vpack.c.b16 %v4914, %v4913
    %v5911 = vpack.c.b16 %v4916, %v4915
    %v5912 = vpack.c.b16 %v4918, %v4917
    %v5913 = vpack.c.b16 %v4920, %v4919
    %v5914 = vpack.c.b16 %v4922, %v4921
    %v5915 = vpack.c.b16 %v4924, %v4923
    %v5916 = vpack.c.b16 %v4926, %v4925
    %v5917 = vpack.c.b16 %v4928, %v4927
    %v5918 = vpack.c.b16 %v4930, %v4929
    %v5919 = vpack.c.b16 %v4932, %v4931
    %v5920 = vpack.c.b16 %v4934, %v4933
    %v5921 = vpack.c.b16 %v4936, %v4935
    %v5922 = vpack.c.b16 %v4938, %v4937
    %v5923 = vpack.c.b16 %v4940, %v4939
    %v5924 = vpack.c.b16 %v4942, %v4941
    %v5925 = vpack.c.b16 %v4944, %v4943
    %v5926 = vpack.c.b16 %v4946, %v4945
    %v5927 = vpack.c.b16 %v4948, %v4947
    %v5928 = vpack.c.b16 %v4950, %v4949
    %v5929 = vpack.c.b16 %v4952, %v4951
    %v5930 = vpack.c.b16 %v4954, %v4953
    %v5931 = vpack.c.b16 %v4956, %v4955
    %v5932 = vpack.c.b16 %v4958, %v4957
    %v5933 = vpack.c.b16 %v4960, %v4959
    %v5934 = vpack.c.b16 %v4962, %v4961
    %v5935 = vpack.c.b16 %v4964, %v4963
    %v5936 = vpack.c.b16 %v4966, %v4965
    %v5937 = vpack.c.b16 %v4968, %v4967
    %v5938 = vpack.c.b16 %v4970, %v4969
    %v5939 = vpack.c.b16 %v4972, %v4971
    %v5940 = vpack.c.b16 %v4974, %v4973
    %v5941 = vpack.c.b16 %v4976, %v4975
    %v5942 = vpack.c.b16 %v4978, %v4977
    %v5943 = vpack.c.b16 %v4980, %v4979
    %v5944 = vpack.c.b16 %v4982, %v4981
    %v5945 = vpack.c.b16 %v4984, %v4983
    %v5946 = vpack.c.b16 %v4986, %v4985
    %v5947 = vpack.c.b16 %v4988, %v4987
    %v5948 = vpack.c.b16 %v4990, %v4989
    %v5949 = vpack.c.b16 %v4992, %v4991
    %v5950 = vpack.c.b16 %v4994, %v4993
    %v5951 = vpack.c.b16 %v4996, %v4995
    %v5952 = vpack.c.b16 %v4998, %v4997
    %v5953 = vpack.c.b16 %v5000, %v4999
    %v5954 = vpack.c.b16 %v5002, %v5001
    %v5955 = vpack.c.b16 %v5004, %v5003
    %v5956 = vpack.c.b16 %v5006, %v5005
    %v5957 = vpack.c.b16 %v5008, %v5007
    %v5958 = vpack.c.b16 %v5010, %v5009
    %v5959 = vpack.c.b16 %v5012, %v5011
    %v5960 = vpack.c.b16 %v5014, %v5013
    %v5961 = vpack.c.b16 %v5016, %v5015
    %v5962 = vpack.c.b16 %v5018, %v5017
    %v5963 = vpack.c.b16 %v5020, %v5019
    %v5964 = vpack.c.b16 %v5022, %v5021
    %v5965 = vpack.c.b16 %v5024, %v5023
    %v5966 = vpack.c.b16 %v5026, %v5025
    %v5967 = vpack.c.b16 %v5028, %v5027
    %v5968 = vpack.c.b16 %v5030, %v5029
    %v5969 = vpack.c.b16 %v5032, %v5031
    %v5970 = vpack.c.b16 %v5034, %v5033
    %v5971 = vpack.c.b16 %v5036, %v5035
    %v5972 = vpack.c.b16 %v5038, %v5037
    %v5973 = vpack.c.b16 %v5040, %v5039
    %v5974 = vpack.c.b16 %v5042, %v5041
    %v5975 = vpack.c.b16 %v5044, %v5043
    %v5976 = vpack.c.b16 %v5046, %v5045
    %v5977 = vpack.c.b16 %v5048, %v5047
    %v5978 = vpack.c.b16 %v5050, %v5049
    %v5979 = vpack.c.b16 %v5052, %v5051
    %v5980 = vpack.c.b16 %v5054, %v5053
    %v5981 = vpack.c.b16 %v5056, %v5055
    %v5982 = vpack.c.b16 %v5058, %v5057
    %v5983 = vpack.c.b16 %v5060, %v5059
    %v5984 = vpack.c.b16 %v5062, %v5061
    %v5985 = vpack.c.b16 %v5064, %v5063
    %v5986 = vpack.c.b16 %v5066, %v5065
    %v5987 = vpack.c.b16 %v5068, %v5067
    %v5988 = vpack.c.b16 %v5070, %v5069
    %v5989 = vpack.c.b16 %v5072, %v5071
    %v5990 = vpack.c.b16 %v5074, %v5073
    %v5991 = vpack.c.b16 %v5076, %v5075
    %v5992 = vpack.c.b16 %v5078, %v5077
    %v5993 = vpack.c.b16 %v5080, %v5079
    %v5994 = vpack.c.b16 %v5082, %v5081
    %v5995 = vpack.c.b16 %v5084, %v5083
    %v5996 = vpack.c.b16 %v5086, %v5085
    %v5997 = vpack.c.b16 %v5088, %v5087
    %v5998 = vpack.c.b16 %v5090, %v5089
    %v5999 = vpack.c.b16 %v5092, %v5091
    %v6000 = vpack.c.b16 %v5094, %v5093
    %v6001 = vpack.c.b16 %v5096, %v5095
    %v6002 = vpack.c.b16 %v5098, %v5097
    %v6003 = vpack.c.b16 %v5100, %v5099
    %v6004 = vpack.c.b16 %v5102, %v5101
    %v6005 = vpack.c.b16 %v5104, %v5103
    %v6006 = vpack.c.b16 %v5106, %v5105
    %v6007 = vpack.c.b16 %v5108, %v5107
    %v6008 = vpack.c.b16 %v5110, %v5109
    %v6009 = vpack.c.b16 %v5112, %v5111
    %v6010 = vpack.c.b16 %v5114, %v5113
    %v6011 = vpack.c.b16 %v5116, %v5115
    %v6012 = vpack.c.b16 %v5118, %v5117
    %v6013 = vpack.c.b16 %v5120, %v5119
    %v6014 = vpack.c.b16 %v5122, %v5121
    %v6015 = vpack.c.b16 %v5124, %v5123
    %v6016 = vpack.c.b16 %v5126, %v5125
    %v6017 = vpack.c.b16 %v5128, %v5127
    %v6018 = vpack.c.b16 %v5130, %v5129
    %v6019 = vpack.c.b16 %v5132, %v5131
    %v6020 = vpack.c.b16 %v5134, %v5133
    %v6021 = vpack.c.b16 %v5136, %v5135
    %v6022 = vpack.c.b16 %v5138, %v5137
    %v6023 = vpack.c.b16 %v5140, %v5139
    %v6024 = vpack.c.b16 %v5142, %v5141
    %v6025 = vpack.c.b16 %v5144, %v5143
    %v6026 = vpack.c.b16 %v5146, %v5145
    %v6027 = vpack.c.b16 %v5148, %v5147
    %v6028 = vpack.c.b16 %v5150, %v5149
    %v6029 = vpack.c.b16 %v5152, %v5151
    %v6030 = vpack.c.b16 %v5154, %v5153
    %v6031 = vpack.c.b16 %v5156, %v5155
    %v6032 = vpack.c.b16 %v5158, %v5157
    %v6033 = vpack.c.b16 %v5160, %v5159
    %v6034 = vpack.c.b16 %v5162, %v5161
    %v6035 = vpack.c.b16 %v5164, %v5163
    %v6036 = vpack.c.b16 %v5166, %v5165
    %v6037 = vpack.c.b16 %v5168, %v5167
    %v6038 = vpack.c.b16 %v5170, %v5169
    %v6039 = vpack.c.b16 %v5172, %v5171
    %v6040 = vpack.c.b16 %v5174, %v5173
    %v6041 = vpack.c.b16 %v5176, %v5175
    %v6042 = vpack.c.b16 %v5178, %v5177
    %v6043 = vpack.c.b16 %v5180, %v5179
    %v6044 = vpack.c.b16 %v5182, %v5181
    %v6045 = vpack.c.b16 %v5184, %v5183
    %v6046 = vpack.c.b16 %v5186, %v5185
    %v6047 = vpack.c.b16 %v5188, %v5187
    %v6048 = vpack.c.b16 %v5190, %v5189
    %v6049 = vpack.c.b16 %v5192, %v5191
    %v6050 = vpack.c.b16 %v5194, %v5193
    %v6051 = vpack.c.b16 %v5196, %v5195
    %v6052 = vpack.c.b16 %v5198, %v5197
    %v6053 = vpack.c.b16 %v5200, %v5199
    %v6054 = vpack.c.b16 %v5202, %v5201
    %v6055 = vpack.c.b16 %v5204, %v5203
    %v6056 = vpack.c.b16 %v5206, %v5205
    %v6057 = vpack.c.b16 %v5208, %v5207
    %v6058 = vpack.c.b16 %v5210, %v5209
    %v6059 = vpack.c.b16 %v5212, %v5211
    %v6060 = vpack.c.b16 %v5214, %v5213
    %v6061 = vpack.c.b16 %v5216, %v5215
    %v6062 = vpack.c.b16 %v5218, %v5217
    %v6063 = vpack.c.b16 %v5220, %v5219
    %v6064 = vpack.c.b16 %v5222, %v5221
    %v6065 = vpack.c.b16 %v5224, %v5223
    %v6066 = vpack.c.b16 %v5226, %v5225
    %v6067 = vpack.c.b16 %v5228, %v5227
    %v6068 = vpack.c.b16 %v5230, %v5229
    %v6069 = vpack.c.b16 %v5232, %v5231
    %v6070 = vpack.c.b16 %v5234, %v5233
    %v6071 = vpack.c.b16 %v5236, %v5235
    %v6072 = vpack.c.b16 %v5238, %v5237
    %v6073 = vpack.c.b16 %v5240, %v5239
    %v6074 = vpack.c.b16 %v5242, %v5241
    %v6075 = vpack.c.b16 %v5244, %v5243
    %v6076 = vpack.c.b16 %v5246, %v5245
    %v6077 = vpack.c.b16 %v5248, %v5247
    %v6078 = vpack.c.b16 %v5250, %v5249
    %v6079 = vpack.c.b16 %v5252, %v5251
    %v6080 = vpack.c.b16 %v5254, %v5253
    %v6081 = vpack.c.b16 %v5256, %v5255
    %v6082 = vpack.c.b16 %v5258, %v5257
    %v6083 = vpack.c.b16 %v5260, %v5259
    %v6084 = vpack.c.b16 %v5262, %v5261
    %v6085 = vpack.c.b16 %v5264, %v5263
    %v6086 = vpack.c.b16 %v5266, %v5265
    %v6087 = vpack.c.b16 %v5268, %v5267
    %v6088 = vpack.c.b16 %v5270, %v5269
    %v6089 = vpack.c.b16 %v5272, %v5271
    %v6090 = vpack.c.b16 %v5274, %v5273
    %v6091 = vpack.c.b16 %v5276, %v5275
    %v6092 = vpack.c.b16 %v5278, %v5277
    %v6093 = vpack.c.b16 %v5280, %v5279
    %v6094 = vpack.c.b16 %v5282, %v5281
    %v6095 = vpack.c.b16 %v5284, %v5283
    %v6096 = vpack.c.b16 %v5286, %v5285
    %v6097 = vpack.c.b16 %v5288, %v5287
    %v6098 = vpack.c.b16 %v5290, %v5289
    %v6099 = vpack.c.b16 %v5292, %v5291
    %v6100 = vpack.c.b16 %v5294, %v5293
    %v6101 = vpack.c.b16 %v5296, %v5295
    %v6102 = vpack.c.b16 %v5298, %v5297
    %v6103 = vpack.c.b16 %v5300, %v5299
    %v6104 = vpack.c.b16 %v5302, %v5301
    %v6105 = vpack.c.b16 %v5304, %v5303
    %v6106 = vpack.c.b16 %v5306, %v5305
    %v6107 = vpack.c.b16 %v5308, %v5307
    %v6108 = vpack.c.b16 %v5310, %v5309
    %v6109 = vpack.c.b16 %v5312, %v5311
    %v6110 = vpack.c.b16 %v5314, %v5313
    %v6111 = vpack.c.b16 %v5316, %v5315
    %v6112 = vpack.c.b16 %v5318, %v5317
    %v6113 = vpack.c.b16 %v5320, %v5319
    %v6114 = vpack.c.b16 %v5322, %v5321
    %v6115 = vpack.c.b16 %v5324, %v5323
    %v6116 = vpack.c.b16 %v5326, %v5325
    %v6117 = vpack.c.b16 %v5328, %v5327
    %v6118 = vpack.c.b16 %v5330, %v5329
    %v6119 = vpack.c.b16 %v5332, %v5331
    %v6120 = vpack.c.b16 %v5334, %v5333
    %v6121 = vpack.c.b16 %v5336, %v5335
    %v6122 = vpack.c.b16 %v5338, %v5337
    %v6123 = vpack.c.b16 %v5340, %v5339
    %v6124 = vpack.c.b16 %v5342, %v5341
    %v6125 = vpack.c.b16 %v5344, %v5343
    %v6126 = vpack.c.b16 %v5346, %v5345
    %v6127 = vpack.c.b16 %v5348, %v5347
    %v6128 = vpack.c.b16 %v5350, %v5349
    %v6129 = vpack.c.b16 %v5352, %v5351
    %v6130 = vpack.c.b16 %v5354, %v5353
    %v6131 = vpack.c.b16 %v5356, %v5355
    %v6132 = vpack.c.b16 %v5358, %v5357
    %v6133 = vpack.c.b16 %v5360, %v5359
    %v6134 = vpack.c.b16 %v5362, %v5361
    %v6135 = vpack.c.b16 %v5364, %v5363
    %v6136 = vpack.c.b16 %v5366, %v5365
    %v6137 = vpack.c.b16 %v5368, %v5367
    %v6138 = vpack.c.b16 %v5370, %v5369
    %6907 = vmatprep.subr.bf16.mxu0 0
    %6908 = vmatpush1.bf16.msra.mxu0 %v5371
    %6909 = vmatprep.subr.bf16.mxu0 0
    %6910 = vmatpush1.bf16.msra.mxu0 %v5372
    %6911 = vmatprep.subr.bf16.mxu0 0
    %6912 = vmatpush1.bf16.msra.mxu0 %v5373
    %6913 = vmatprep.subr.bf16.mxu0 0
    %6914 = vmatpush1.bf16.msra.mxu0 %v5374
    %6915 = vmatprep.subr.bf16.mxu0 0
    %6916 = vmatpush1.bf16.msra.mxu0 %v5375
    %6917 = vmatprep.subr.bf16.mxu0 0
    %6918 = vmatpush1.bf16.msra.mxu0 %v5376
    %6919 = vmatprep.subr.bf16.mxu0 0
    %6920 = vmatpush1.bf16.msra.mxu0 %v5377
    %6921 = vmatprep.subr.bf16.mxu0 0
    %6922 = vmatpush1.bf16.msra.mxu0 %v5378
    %6923 = vmatprep.subr.bf16.mxu0 0
    %6924 = vmatpush1.bf16.msra.mxu0 %v5379
    %6925 = vmatprep.subr.bf16.mxu0 0
    %6926 = vmatpush1.bf16.msra.mxu0 %v5380
    %6927 = vmatprep.subr.bf16.mxu0 0
    %6928 = vmatpush1.bf16.msra.mxu0 %v5381
    %6929 = vmatprep.subr.bf16.mxu0 0
    %6930 = vmatpush1.bf16.msra.mxu0 %v5382
    %6931 = vmatprep.subr.bf16.mxu0 0
    %6932 = vmatpush1.bf16.msra.mxu0 %v5383
    %6933 = vmatprep.subr.bf16.mxu0 0
    %6934 = vmatpush1.bf16.msra.mxu0 %v5384
    %6935 = vmatprep.subr.bf16.mxu0 0
    %6936 = vmatpush1.bf16.msra.mxu0 %v5385
    %6937 = vmatprep.subr.bf16.mxu0 0
    %6938 = vmatpush1.bf16.msra.mxu0 %v5386
    %6939 = vmatprep.mubr.bf16.mxu0 %v667
    %6940 = vmatmul.mubr.bf16.gmra.mrb[0].mxu0 %v666
    %v6941 = vpop.f32.mrb[0].mxu0
    %v6942 = vadd.f32 0.0, %v6941
    %v6943 = vpop.f32.mrb[0].mxu0
    %v6944 = vpop.f32.mrb[0].mxu0
    %v6945 = vpop.f32.mrb[0].mxu0
    %6946 = vdwg.mxu0
    %6947 = vmatprep.subr.bf16.mxu0 0
    %6948 = vmatpush1.bf16.msra.mxu0 %v5387
    %6949 = vmatprep.subr.bf16.mxu0 0
    %6950 = vmatpush1.bf16.msra.mxu0 %v5388
    %6951 = vmatprep.subr.bf16.mxu0 0
    %6952 = vmatpush1.bf16.msra.mxu0 %v5389
    %6953 = vmatprep.subr.bf16.mxu0 0
    %6954 = vmatpush1.bf16.msra.mxu0 %v5390
    %6955 = vmatprep.subr.bf16.mxu0 0
    %6956 = vmatpush1.bf16.msra.mxu0 %v5391
    %6957 = vmatprep.subr.bf16.mxu0 0
    %6958 = vmatpush1.bf16.msra.mxu0 %v5392
    %6959 = vmatprep.subr.bf16.mxu0 0
    %6960 = vmatpush1.bf16.msra.mxu0 %v5393
    %6961 = vmatprep.subr.bf16.mxu0 0
    %6962 = vmatpush1.bf16.msra.mxu0 %v5394
    %6963 = vmatprep.subr.bf16.mxu0 0
    %6964 = vmatpush1.bf16.msra.mxu0 %v5395
    %6965 = vmatprep.subr.bf16.mxu0 0
    %6966 = vmatpush1.bf16.msra.mxu0 %v5396
    %6967 = vmatprep.subr.bf16.mxu0 0
    %6968 = vmatpush1.bf16.msra.mxu0 %v5397
    %6969 = vmatprep.subr.bf16.mxu0 0
    %6970 = vmatpush1.bf16.msra.mxu0 %v5398
    %6971 = vmatprep.subr.bf16.mxu0 0
    %6972 = vmatpush1.bf16.msra.mxu0 %v5399
    %6973 = vmatprep.subr.bf16.mxu0 0
    %6974 = vmatpush1.bf16.msra.mxu0 %v5400
    %6975 = vmatprep.subr.bf16.mxu0 0
    %6976 = vmatpush1.bf16.msra.mxu0 %v5401
    %6977 = vmatprep.subr.bf16.mxu0 0
    %6978 = vmatpush1.bf16.msra.mxu0 %v5402
    %6979 = vmatprep.mubr.bf16.mxu0 %v669
    %6980 = vmatmul.mubr.bf16.gmra.mrb[0].mxu0 %v668
    %v6981 = vpop.f32.mrb[0].mxu0
    %v6982 = vadd.f32 %v6942, %v6981
    %v6983 = vpop.f32.mrb[0].mxu0
    %v6984 = vpop.f32.mrb[0].mxu0
    %v6985 = vpop.f32.mrb[0].mxu0
    %6986 = vdwg.mxu0
    %6987 = vmatprep.subr.bf16.mxu0 0
    %6988 = vmatpush1.bf16.msra.mxu0 %v5403
    %6989 = vmatprep.subr.bf16.mxu0 0
    %6990 = vmatpush1.bf16.msra.mxu0 %v5404
    %6991 = vmatprep.subr.bf16.mxu0 0
    %6992 = vmatpush1.bf16.msra.mxu0 %v5405
    %6993 = vmatprep.subr.bf16.mxu0 0
    %6994 = vmatpush1.bf16.msra.mxu0 %v5406
    %6995 = vmatprep.subr.bf16.mxu0 0
    %6996 = vmatpush1.bf16.msra.mxu0 %v5407
    %6997 = vmatprep.subr.bf16.mxu0 0
    %6998 = vmatpush1.bf16.msra.mxu0 %v5408
    %6999 = vmatprep.subr.bf16.mxu0 0
    %7000 = vmatpush1.bf16.msra.mxu0 %v5409
    %7001 = vmatprep.subr.bf16.mxu0 0
    %7002 = vmatpush1.bf16.msra.mxu0 %v5410
    %7003 = vmatprep.subr.bf16.mxu0 0
    %7004 = vmatpush1.bf16.msra.mxu0 %v5411
    %7005 = vmatprep.subr.bf16.mxu0 0
    %7006 = vmatpush1.bf16.msra.mxu0 %v5412
    %7007 = vmatprep.subr.bf16.mxu0 0
    %7008 = vmatpush1.bf16.msra.mxu0 %v5413
    %7009 = vmatprep.subr.bf16.mxu0 0
    %7010 = vmatpush1.bf16.msra.mxu0 %v5414
    %7011 = vmatprep.subr.bf16.mxu0 0
    %7012 = vmatpush1.bf16.msra.mxu0 %v5415
    %7013 = vmatprep.subr.bf16.mxu0 0
    %7014 = vmatpush1.bf16.msra.mxu0 %v5416
    %7015 = vmatprep.subr.bf16.mxu0 0
    %7016 = vmatpush1.bf16.msra.mxu0 %v5417
    %7017 = vmatprep.subr.bf16.mxu0 0
    %7018 = vmatpush1.bf16.msra.mxu0 %v5418
    %7019 = vmatprep.mubr.bf16.mxu0 %v671
    %7020 = vmatmul.mubr.bf16.gmra.mrb[0].mxu0 %v670
    %v7021 = vpop.f32.mrb[0].mxu0
    %v7022 = vadd.f32 %v6982, %v7021
    %v7023 = vpop.f32.mrb[0].mxu0
    %v7024 = vpop.f32.mrb[0].mxu0
    %v7025 = vpop.f32.mrb[0].mxu0
    %7026 = vdwg.mxu0
    %7027 = vmatprep.subr.bf16.mxu0 0
    %7028 = vmatpush1.bf16.msra.mxu0 %v5419
    %7029 = vmatprep.subr.bf16.mxu0 0
    %7030 = vmatpush1.bf16.msra.mxu0 %v5420
    %7031 = vmatprep.subr.bf16.mxu0 0
    %7032 = vmatpush1.bf16.msra.mxu0 %v5421
    %7033 = vmatprep.subr.bf16.mxu0 0
    %7034 = vmatpush1.bf16.msra.mxu0 %v5422
    %7035 = vmatprep.subr.bf16.mxu0 0
    %7036 = vmatpush1.bf16.msra.mxu0 %v5423
    %7037 = vmatprep.subr.bf16.mxu0 0
    %7038 = vmatpush1.bf16.msra.mxu0 %v5424
    %7039 = vmatprep.subr.bf16.mxu0 0
    %7040 = vmatpush1.bf16.msra.mxu0 %v5425
    %7041 = vmatprep.subr.bf16.mxu0 0
    %7042 = vmatpush1.bf16.msra.mxu0 %v5426
    %7043 = vmatprep.subr.bf16.mxu0 0
    %7044 = vmatpush1.bf16.msra.mxu0 %v5427
    %7045 = vmatprep.subr.bf16.mxu0 0
    %7046 = vmatpush1.bf16.msra.mxu0 %v5428
    %7047 = vmatprep.subr.bf16.mxu0 0
    %7048 = vmatpush1.bf16.msra.mxu0 %v5429
    %7049 = vmatprep.subr.bf16.mxu0 0
    %7050 = vmatpush1.bf16.msra.mxu0 %v5430
    %7051 = vmatprep.subr.bf16.mxu0 0
    %7052 = vmatpush1.bf16.msra.mxu0 %v5431
    %7053 = vmatprep.subr.bf16.mxu0 0
    %7054 = vmatpush1.bf16.msra.mxu0 %v5432
    %7055 = vmatprep.subr.bf16.mxu0 0
    %7056 = vmatpush1.bf16.msra.mxu0 %v5433
    %7057 = vmatprep.subr.bf16.mxu0 0
    %7058 = vmatpush1.bf16.msra.mxu0 %v5434
    %7059 = vmatprep.mubr.bf16.mxu0 %v673
    %7060 = vmatmul.mubr.bf16.gmra.mrb[0].mxu0 %v672
    %v7061 = vpop.f32.mrb[0].mxu0
    %v7062 = vadd.f32 %v7022, %v7061
    %v7063 = vpop.f32.mrb[0].mxu0
    %v7064 = vpop.f32.mrb[0].mxu0
    %v7065 = vpop.f32.mrb[0].mxu0
    %7066 = vdwg.mxu0
    %7067 = vmatprep.subr.bf16.mxu0 0
    %7068 = vmatpush1.bf16.msra.mxu0 %v5435
    %7069 = vmatprep.subr.bf16.mxu0 0
    %7070 = vmatpush1.bf16.msra.mxu0 %v5436
    %7071 = vmatprep.subr.bf16.mxu0 0
    %7072 = vmatpush1.bf16.msra.mxu0 %v5437
    %7073 = vmatprep.subr.bf16.mxu0 0
    %7074 = vmatpush1.bf16.msra.mxu0 %v5438
    %7075 = vmatprep.subr.bf16.mxu0 0
    %7076 = vmatpush1.bf16.msra.mxu0 %v5439
    %7077 = vmatprep.subr.bf16.mxu0 0
    %7078 = vmatpush1.bf16.msra.mxu0 %v5440
    %7079 = vmatprep.subr.bf16.mxu0 0
    %7080 = vmatpush1.bf16.msra.mxu0 %v5441
    %7081 = vmatprep.subr.bf16.mxu0 0
    %7082 = vmatpush1.bf16.msra.mxu0 %v5442
    %7083 = vmatprep.subr.bf16.mxu0 0
    %7084 = vmatpush1.bf16.msra.mxu0 %v5443
    %7085 = vmatprep.subr.bf16.mxu0 0
    %7086 = vmatpush1.bf16.msra.mxu0 %v5444
    %7087 = vmatprep.subr.bf16.mxu0 0
    %7088 = vmatpush1.bf16.msra.mxu0 %v5445
    %7089 = vmatprep.subr.bf16.mxu0 0
    %7090 = vmatpush1.bf16.msra.mxu0 %v5446
    %7091 = vmatprep.subr.bf16.mxu0 0
    %7092 = vmatpush1.bf16.msra.mxu0 %v5447
    %7093 = vmatprep.subr.bf16.mxu0 0
    %7094 = vmatpush1.bf16.msra.mxu0 %v5448
    %7095 = vmatprep.subr.bf16.mxu0 0
    %7096 = vmatpush1.bf16.msra.mxu0 %v5449
    %7097 = vmatprep.subr.bf16.mxu0 0
    %7098 = vmatpush1.bf16.msra.mxu0 %v5450
    %7099 = vmatprep.mubr.bf16.mxu0 %v675
    %7100 = vmatmul.mubr.bf16.gmra.mrb[0].mxu0 %v674
    %v7101 = vpop.f32.mrb[0].mxu0
    %v7102 = vadd.f32 %v7062, %v7101
    %v7103 = vpop.f32.mrb[0].mxu0
    %v7104 = vpop.f32.mrb[0].mxu0
    %v7105 = vpop.f32.mrb[0].mxu0
    %7106 = vdwg.mxu0
    %7107 = vmatprep.subr.bf16.mxu0 0
    %7108 = vmatpush1.bf16.msra.mxu0 %v5451
    %7109 = vmatprep.subr.bf16.mxu0 0
    %7110 = vmatpush1.bf16.msra.mxu0 %v5452
    %7111 = vmatprep.subr.bf16.mxu0 0
    %7112 = vmatpush1.bf16.msra.mxu0 %v5453
    %7113 = vmatprep.subr.bf16.mxu0 0
    %7114 = vmatpush1.bf16.msra.mxu0 %v5454
    %7115 = vmatprep.subr.bf16.mxu0 0
    %7116 = vmatpush1.bf16.msra.mxu0 %v5455
    %7117 = vmatprep.subr.bf16.mxu0 0
    %7118 = vmatpush1.bf16.msra.mxu0 %v5456
    %7119 = vmatprep.subr.bf16.mxu0 0
    %7120 = vmatpush1.bf16.msra.mxu0 %v5457
    %7121 = vmatprep.subr.bf16.mxu0 0
    %7122 = vmatpush1.bf16.msra.mxu0 %v5458
    %7123 = vmatprep.subr.bf16.mxu0 0
    %7124 = vmatpush1.bf16.msra.mxu0 %v5459
    %7125 = vmatprep.subr.bf16.mxu0 0
    %7126 = vmatpush1.bf16.msra.mxu0 %v5460
    %7127 = vmatprep.subr.bf16.mxu0 0
    %7128 = vmatpush1.bf16.msra.mxu0 %v5461
    %7129 = vmatprep.subr.bf16.mxu0 0
    %7130 = vmatpush1.bf16.msra.mxu0 %v5462
    %7131 = vmatprep.subr.bf16.mxu0 0
    %7132 = vmatpush1.bf16.msra.mxu0 %v5463
    %7133 = vmatprep.subr.bf16.mxu0 0
    %7134 = vmatpush1.bf16.msra.mxu0 %v5464
    %7135 = vmatprep.subr.bf16.mxu0 0
    %7136 = vmatpush1.bf16.msra.mxu0 %v5465
    %7137 = vmatprep.subr.bf16.mxu0 0
    %7138 = vmatpush1.bf16.msra.mxu0 %v5466
    %7139 = vmatprep.mubr.bf16.mxu0 %v677
    %7140 = vmatmul.mubr.bf16.gmra.mrb[0].mxu0 %v676
    %v7141 = vpop.f32.mrb[0].mxu0
    %v7142 = vadd.f32 %v7102, %v7141
    %v7143 = vpop.f32.mrb[0].mxu0
    %v7144 = vpop.f32.mrb[0].mxu0
    %v7145 = vpop.f32.mrb[0].mxu0
    %7146 = vdwg.mxu0
    %7147 = vmatprep.subr.bf16.mxu0 0
    %7148 = vmatpush1.bf16.msra.mxu0 %v5467
    %7149 = vmatprep.subr.bf16.mxu0 0
    %7150 = vmatpush1.bf16.msra.mxu0 %v5468
    %7151 = vmatprep.subr.bf16.mxu0 0
    %7152 = vmatpush1.bf16.msra.mxu0 %v5469
    %7153 = vmatprep.subr.bf16.mxu0 0
    %7154 = vmatpush1.bf16.msra.mxu0 %v5470
    %7155 = vmatprep.subr.bf16.mxu0 0
    %7156 = vmatpush1.bf16.msra.mxu0 %v5471
    %7157 = vmatprep.subr.bf16.mxu0 0
    %7158 = vmatpush1.bf16.msra.mxu0 %v5472
    %7159 = vmatprep.subr.bf16.mxu0 0
    %7160 = vmatpush1.bf16.msra.mxu0 %v5473
    %7161 = vmatprep.subr.bf16.mxu0 0
    %7162 = vmatpush1.bf16.msra.mxu0 %v5474
    %7163 = vmatprep.subr.bf16.mxu0 0
    %7164 = vmatpush1.bf16.msra.mxu0 %v5475
    %7165 = vmatprep.subr.bf16.mxu0 0
    %7166 = vmatpush1.bf16.msra.mxu0 %v5476
    %7167 = vmatprep.subr.bf16.mxu0 0
    %7168 = vmatpush1.bf16.msra.mxu0 %v5477
    %7169 = vmatprep.subr.bf16.mxu0 0
    %7170 = vmatpush1.bf16.msra.mxu0 %v5478
    %7171 = vmatprep.subr.bf16.mxu0 0
    %7172 = vmatpush1.bf16.msra.mxu0 %v5479
    %7173 = vmatprep.subr.bf16.mxu0 0
    %7174 = vmatpush1.bf16.msra.mxu0 %v5480
    %7175 = vmatprep.subr.bf16.mxu0 0
    %7176 = vmatpush1.bf16.msra.mxu0 %v5481
    %7177 = vmatprep.subr.bf16.mxu0 0
    %7178 = vmatpush1.bf16.msra.mxu0 %v5482
    %7179 = vmatprep.mubr.bf16.mxu0 %v679
    %7180 = vmatmul.mubr.bf16.gmra.mrb[0].mxu0 %v678
    %v7181 = vpop.f32.mrb[0].mxu0
    %v7182 = vadd.f32 %v7142, %v7181
    %v7183 = vpop.f32.mrb[0].mxu0
    %v7184 = vpop.f32.mrb[0].mxu0
    %v7185 = vpop.f32.mrb[0].mxu0
    %7186 = vdwg.mxu0
    %7187 = vmatprep.subr.bf16.mxu0 0
    %7188 = vmatpush1.bf16.msra.mxu0 %v5483
    %7189 = vmatprep.subr.bf16.mxu0 0
    %7190 = vmatpush1.bf16.msra.mxu0 %v5484
    %7191 = vmatprep.subr.bf16.mxu0 0
    %7192 = vmatpush1.bf16.msra.mxu0 %v5485
    %7193 = vmatprep.subr.bf16.mxu0 0
    %7194 = vmatpush1.bf16.msra.mxu0 %v5486
    %7195 = vmatprep.subr.bf16.mxu0 0
    %7196 = vmatpush1.bf16.msra.mxu0 %v5487
    %7197 = vmatprep.subr.bf16.mxu0 0
    %7198 = vmatpush1.bf16.msra.mxu0 %v5488
    %7199 = vmatprep.subr.bf16.mxu0 0
    %7200 = vmatpush1.bf16.msra.mxu0 %v5489
    %7201 = vmatprep.subr.bf16.mxu0 0
    %7202 = vmatpush1.bf16.msra.mxu0 %v5490
    %7203 = vmatprep.subr.bf16.mxu0 0
    %7204 = vmatpush1.bf16.msra.mxu0 %v5491
    %7205 = vmatprep.subr.bf16.mxu0 0
    %7206 = vmatpush1.bf16.msra.mxu0 %v5492
    %7207 = vmatprep.subr.bf16.mxu0 0
    %7208 = vmatpush1.bf16.msra.mxu0 %v5493
    %7209 = vmatprep.subr.bf16.mxu0 0
    %7210 = vmatpush1.bf16.msra.mxu0 %v5494
    %7211 = vmatprep.subr.bf16.mxu0 0
    %7212 = vmatpush1.bf16.msra.mxu0 %v5495
    %7213 = vmatprep.subr.bf16.mxu0 0
    %7214 = vmatpush1.bf16.msra.mxu0 %v5496
    %7215 = vmatprep.subr.bf16.mxu0 0
    %7216 = vmatpush1.bf16.msra.mxu0 %v5497
    %7217 = vmatprep.subr.bf16.mxu0 0
    %7218 = vmatpush1.bf16.msra.mxu0 %v5498
    %7219 = vmatprep.mubr.bf16.mxu0 %v681
    %7220 = vmatmul.mubr.bf16.gmra.mrb[0].mxu0 %v680
    %v7221 = vpop.f32.mrb[0].mxu0
    %v7222 = vadd.f32 %v7182, %v7221
    %v7223 = vpop.f32.mrb[0].mxu0
    %v7224 = vpop.f32.mrb[0].mxu0
    %v7225 = vpop.f32.mrb[0].mxu0
    %7226 = vdwg.mxu0
    %7227 = vmatprep.subr.bf16.mxu0 0
    %7228 = vmatpush1.bf16.msra.mxu0 %v5499
    %7229 = vmatprep.subr.bf16.mxu0 0
    %7230 = vmatpush1.bf16.msra.mxu0 %v5500
    %7231 = vmatprep.subr.bf16.mxu0 0
    %7232 = vmatpush1.bf16.msra.mxu0 %v5501
    %7233 = vmatprep.subr.bf16.mxu0 0
    %7234 = vmatpush1.bf16.msra.mxu0 %v5502
    %7235 = vmatprep.subr.bf16.mxu0 0
    %7236 = vmatpush1.bf16.msra.mxu0 %v5503
    %7237 = vmatprep.subr.bf16.mxu0 0
    %7238 = vmatpush1.bf16.msra.mxu0 %v5504
    %7239 = vmatprep.subr.bf16.mxu0 0
    %7240 = vmatpush1.bf16.msra.mxu0 %v5505
    %7241 = vmatprep.subr.bf16.mxu0 0
    %7242 = vmatpush1.bf16.msra.mxu0 %v5506
    %7243 = vmatprep.subr.bf16.mxu0 0
    %7244 = vmatpush1.bf16.msra.mxu0 %v5507
    %7245 = vmatprep.subr.bf16.mxu0 0
    %7246 = vmatpush1.bf16.msra.mxu0 %v5508
    %7247 = vmatprep.subr.bf16.mxu0 0
    %7248 = vmatpush1.bf16.msra.mxu0 %v5509
    %7249 = vmatprep.subr.bf16.mxu0 0
    %7250 = vmatpush1.bf16.msra.mxu0 %v5510
    %7251 = vmatprep.subr.bf16.mxu0 0
    %7252 = vmatpush1.bf16.msra.mxu0 %v5511
    %7253 = vmatprep.subr.bf16.mxu0 0
    %7254 = vmatpush1.bf16.msra.mxu0 %v5512
    %7255 = vmatprep.subr.bf16.mxu0 0
    %7256 = vmatpush1.bf16.msra.mxu0 %v5513
    %7257 = vmatprep.subr.bf16.mxu0 0
    %7258 = vmatpush1.bf16.msra.mxu0 %v5514
    %7259 = vmatprep.mubr.bf16.mxu0 %v683
    %7260 = vmatmul.mubr.bf16.gmra.mrb[0].mxu0 %v682
    %v7261 = vpop.f32.mrb[0].mxu0
    %v7262 = vadd.f32 %v7222, %v7261
    %v7263 = vpop.f32.mrb[0].mxu0
    %v7264 = vpop.f32.mrb[0].mxu0
    %v7265 = vpop.f32.mrb[0].mxu0
    %7266 = vdwg.mxu0
    %7267 = vmatprep.subr.bf16.mxu0 0
    %7268 = vmatpush1.bf16.msra.mxu0 %v5515
    %7269 = vmatprep.subr.bf16.mxu0 0
    %7270 = vmatpush1.bf16.msra.mxu0 %v5516
    %7271 = vmatprep.subr.bf16.mxu0 0
    %7272 = vmatpush1.bf16.msra.mxu0 %v5517
    %7273 = vmatprep.subr.bf16.mxu0 0
    %7274 = vmatpush1.bf16.msra.mxu0 %v5518
    %7275 = vmatprep.subr.bf16.mxu0 0
    %7276 = vmatpush1.bf16.msra.mxu0 %v5519
    %7277 = vmatprep.subr.bf16.mxu0 0
    %7278 = vmatpush1.bf16.msra.mxu0 %v5520
    %7279 = vmatprep.subr.bf16.mxu0 0
    %7280 = vmatpush1.bf16.msra.mxu0 %v5521
    %7281 = vmatprep.subr.bf16.mxu0 0
    %7282 = vmatpush1.bf16.msra.mxu0 %v5522
    %7283 = vmatprep.subr.bf16.mxu0 0
    %7284 = vmatpush1.bf16.msra.mxu0 %v5523
    %7285 = vmatprep.subr.bf16.mxu0 0
    %7286 = vmatpush1.bf16.msra.mxu0 %v5524
    %7287 = vmatprep.subr.bf16.mxu0 0
    %7288 = vmatpush1.bf16.msra.mxu0 %v5525
    %7289 = vmatprep.subr.bf16.mxu0 0
    %7290 = vmatpush1.bf16.msra.mxu0 %v5526
    %7291 = vmatprep.subr.bf16.mxu0 0
    %7292 = vmatpush1.bf16.msra.mxu0 %v5527
    %7293 = vmatprep.subr.bf16.mxu0 0
    %7294 = vmatpush1.bf16.msra.mxu0 %v5528
    %7295 = vmatprep.subr.bf16.mxu0 0
    %7296 = vmatpush1.bf16.msra.mxu0 %v5529
    %7297 = vmatprep.subr.bf16.mxu0 0
    %7298 = vmatpush1.bf16.msra.mxu0 %v5530
    %7299 = vmatprep.mubr.bf16.mxu0 %v685
    %7300 = vmatmul.mubr.bf16.gmra.mrb[0].mxu0 %v684
    %v7301 = vpop.f32.mrb[0].mxu0
    %v7302 = vadd.f32 %v7262, %v7301
    %v7303 = vpop.f32.mrb[0].mxu0
    %v7304 = vpop.f32.mrb[0].mxu0
    %v7305 = vpop.f32.mrb[0].mxu0
    %7306 = vdwg.mxu0
    %7307 = vmatprep.subr.bf16.mxu0 0
    %7308 = vmatpush1.bf16.msra.mxu0 %v5531
    %7309 = vmatprep.subr.bf16.mxu0 0
    %7310 = vmatpush1.bf16.msra.mxu0 %v5532
    %7311 = vmatprep.subr.bf16.mxu0 0
    %7312 = vmatpush1.bf16.msra.mxu0 %v5533
    %7313 = vmatprep.subr.bf16.mxu0 0
    %7314 = vmatpush1.bf16.msra.mxu0 %v5534
    %7315 = vmatprep.subr.bf16.mxu0 0
    %7316 = vmatpush1.bf16.msra.mxu0 %v5535
    %7317 = vmatprep.subr.bf16.mxu0 0
    %7318 = vmatpush1.bf16.msra.mxu0 %v5536
    %7319 = vmatprep.subr.bf16.mxu0 0
    %7320 = vmatpush1.bf16.msra.mxu0 %v5537
    %7321 = vmatprep.subr.bf16.mxu0 0
    %7322 = vmatpush1.bf16.msra.mxu0 %v5538
    %7323 = vmatprep.subr.bf16.mxu0 0
    %7324 = vmatpush1.bf16.msra.mxu0 %v5539
    %7325 = vmatprep.subr.bf16.mxu0 0
    %7326 = vmatpush1.bf16.msra.mxu0 %v5540
    %7327 = vmatprep.subr.bf16.mxu0 0
    %7328 = vmatpush1.bf16.msra.mxu0 %v5541
    %7329 = vmatprep.subr.bf16.mxu0 0
    %7330 = vmatpush1.bf16.msra.mxu0 %v5542
    %7331 = vmatprep.subr.bf16.mxu0 0
    %7332 = vmatpush1.bf16.msra.mxu0 %v5543
    %7333 = vmatprep.subr.bf16.mxu0 0
    %7334 = vmatpush1.bf16.msra.mxu0 %v5544
    %7335 = vmatprep.subr.bf16.mxu0 0
    %7336 = vmatpush1.bf16.msra.mxu0 %v5545
    %7337 = vmatprep.subr.bf16.mxu0 0
    %7338 = vmatpush1.bf16.msra.mxu0 %v5546
    %7339 = vmatprep.mubr.bf16.mxu0 %v687
    %7340 = vmatmul.mubr.bf16.gmra.mrb[0].mxu0 %v686
    %v7341 = vpop.f32.mrb[0].mxu0
    %v7342 = vadd.f32 %v7302, %v7341
    %v7343 = vpop.f32.mrb[0].mxu0
    %v7344 = vpop.f32.mrb[0].mxu0
    %v7345 = vpop.f32.mrb[0].mxu0
    %7346 = vdwg.mxu0
    %7347 = vmatprep.subr.bf16.mxu0 0
    %7348 = vmatpush1.bf16.msra.mxu0 %v5547
    %7349 = vmatprep.subr.bf16.mxu0 0
    %7350 = vmatpush1.bf16.msra.mxu0 %v5548
    %7351 = vmatprep.subr.bf16.mxu0 0
    %7352 = vmatpush1.bf16.msra.mxu0 %v5549
    %7353 = vmatprep.subr.bf16.mxu0 0
    %7354 = vmatpush1.bf16.msra.mxu0 %v5550
    %7355 = vmatprep.subr.bf16.mxu0 0
    %7356 = vmatpush1.bf16.msra.mxu0 %v5551
    %7357 = vmatprep.subr.bf16.mxu0 0
    %7358 = vmatpush1.bf16.msra.mxu0 %v5552
    %7359 = vmatprep.subr.bf16.mxu0 0
    %7360 = vmatpush1.bf16.msra.mxu0 %v5553
    %7361 = vmatprep.subr.bf16.mxu0 0
    %7362 = vmatpush1.bf16.msra.mxu0 %v5554
    %7363 = vmatprep.subr.bf16.mxu0 0
    %7364 = vmatpush1.bf16.msra.mxu0 %v5555
    %7365 = vmatprep.subr.bf16.mxu0 0
    %7366 = vmatpush1.bf16.msra.mxu0 %v5556
    %7367 = vmatprep.subr.bf16.mxu0 0
    %7368 = vmatpush1.bf16.msra.mxu0 %v5557
    %7369 = vmatprep.subr.bf16.mxu0 0
    %7370 = vmatpush1.bf16.msra.mxu0 %v5558
    %7371 = vmatprep.subr.bf16.mxu0 0
    %7372 = vmatpush1.bf16.msra.mxu0 %v5559
    %7373 = vmatprep.subr.bf16.mxu0 0
    %7374 = vmatpush1.bf16.msra.mxu0 %v5560
    %7375 = vmatprep.subr.bf16.mxu0 0
    %7376 = vmatpush1.bf16.msra.mxu0 %v5561
    %7377 = vmatprep.subr.bf16.mxu0 0
    %7378 = vmatpush1.bf16.msra.mxu0 %v5562
    %7379 = vmatprep.mubr.bf16.mxu0 %v689
    %7380 = vmatmul.mubr.bf16.gmra.mrb[0].mxu0 %v688
    %v7381 = vpop.f32.mrb[0].mxu0
    %v7382 = vadd.f32 %v7342, %v7381
    %v7383 = vpop.f32.mrb[0].mxu0
    %v7384 = vpop.f32.mrb[0].mxu0
    %v7385 = vpop.f32.mrb[0].mxu0
    %7386 = vdwg.mxu0
    %7387 = vmatprep.subr.bf16.mxu0 0
    %7388 = vmatpush1.bf16.msra.mxu0 %v5563
    %7389 = vmatprep.subr.bf16.mxu0 0
    %7390 = vmatpush1.bf16.msra.mxu0 %v5564
    %7391 = vmatprep.subr.bf16.mxu0 0
    %7392 = vmatpush1.bf16.msra.mxu0 %v5565
    %7393 = vmatprep.subr.bf16.mxu0 0
    %7394 = vmatpush1.bf16.msra.mxu0 %v5566
    %7395 = vmatprep.subr.bf16.mxu0 0
    %7396 = vmatpush1.bf16.msra.mxu0 %v5567
    %7397 = vmatprep.subr.bf16.mxu0 0
    %7398 = vmatpush1.bf16.msra.mxu0 %v5568
    %7399 = vmatprep.subr.bf16.mxu0 0
    %7400 = vmatpush1.bf16.msra.mxu0 %v5569
    %7401 = vmatprep.subr.bf16.mxu0 0
    %7402 = vmatpush1.bf16.msra.mxu0 %v5570
    %7403 = vmatprep.subr.bf16.mxu0 0
    %7404 = vmatpush1.bf16.msra.mxu0 %v5571
    %7405 = vmatprep.subr.bf16.mxu0 0
    %7406 = vmatpush1.bf16.msra.mxu0 %v5572
    %7407 = vmatprep.subr.bf16.mxu0 0
    %7408 = vmatpush1.bf16.msra.mxu0 %v5573
    %7409 = vmatprep.subr.bf16.mxu0 0
    %7410 = vmatpush1.bf16.msra.mxu0 %v5574
    %7411 = vmatprep.subr.bf16.mxu0 0
    %7412 = vmatpush1.bf16.msra.mxu0 %v5575
    %7413 = vmatprep.subr.bf16.mxu0 0
    %7414 = vmatpush1.bf16.msra.mxu0 %v5576
    %7415 = vmatprep.subr.bf16.mxu0 0
    %7416 = vmatpush1.bf16.msra.mxu0 %v5577
    %7417 = vmatprep.subr.bf16.mxu0 0
    %7418 = vmatpush1.bf16.msra.mxu0 %v5578
    %7419 = vmatprep.mubr.bf16.mxu0 %v691
    %7420 = vmatmul.mubr.bf16.gmra.mrb[0].mxu0 %v690
    %v7421 = vpop.f32.mrb[0].mxu0
    %v7422 = vadd.f32 %v7382, %v7421
    %v7423 = vpop.f32.mrb[0].mxu0
    %v7424 = vpop.f32.mrb[0].mxu0
    %v7425 = vpop.f32.mrb[0].mxu0
    %7426 = vdwg.mxu0
    %7427 = vmatprep.subr.bf16.mxu0 0
    %7428 = vmatpush1.bf16.msra.mxu0 %v5579
    %7429 = vmatprep.subr.bf16.mxu0 0
    %7430 = vmatpush1.bf16.msra.mxu0 %v5580
    %7431 = vmatprep.subr.bf16.mxu0 0
    %7432 = vmatpush1.bf16.msra.mxu0 %v5581
    %7433 = vmatprep.subr.bf16.mxu0 0
    %7434 = vmatpush1.bf16.msra.mxu0 %v5582
    %7435 = vmatprep.subr.bf16.mxu0 0
    %7436 = vmatpush1.bf16.msra.mxu0 %v5583
    %7437 = vmatprep.subr.bf16.mxu0 0
    %7438 = vmatpush1.bf16.msra.mxu0 %v5584
    %7439 = vmatprep.subr.bf16.mxu0 0
    %7440 = vmatpush1.bf16.msra.mxu0 %v5585
    %7441 = vmatprep.subr.bf16.mxu0 0
    %7442 = vmatpush1.bf16.msra.mxu0 %v5586
    %7443 = vmatprep.subr.bf16.mxu0 0
    %7444 = vmatpush1.bf16.msra.mxu0 %v5587
    %7445 = vmatprep.subr.bf16.mxu0 0
    %7446 = vmatpush1.bf16.msra.mxu0 %v5588
    %7447 = vmatprep.subr.bf16.mxu0 0
    %7448 = vmatpush1.bf16.msra.mxu0 %v5589
    %7449 = vmatprep.subr.bf16.mxu0 0
    %7450 = vmatpush1.bf16.msra.mxu0 %v5590
    %7451 = vmatprep.subr.bf16.mxu0 0
    %7452 = vmatpush1.bf16.msra.mxu0 %v5591
    %7453 = vmatprep.subr.bf16.mxu0 0
    %7454 = vmatpush1.bf16.msra.mxu0 %v5592
    %7455 = vmatprep.subr.bf16.mxu0 0
    %7456 = vmatpush1.bf16.msra.mxu0 %v5593
    %7457 = vmatprep.subr.bf16.mxu0 0
    %7458 = vmatpush1.bf16.msra.mxu0 %v5594
    %7459 = vmatprep.mubr.bf16.mxu0 %v693
    %7460 = vmatmul.mubr.bf16.gmra.mrb[0].mxu0 %v692
    %v7461 = vpop.f32.mrb[0].mxu0
    %v7462 = vadd.f32 %v7422, %v7461
    %v7463 = vpop.f32.mrb[0].mxu0
    %v7464 = vpop.f32.mrb[0].mxu0
    %v7465 = vpop.f32.mrb[0].mxu0
    %7466 = vdwg.mxu0
    %7467 = vmatprep.subr.bf16.mxu0 0
    %7468 = vmatpush1.bf16.msra.mxu0 %v5595
    %7469 = vmatprep.subr.bf16.mxu0 0
    %7470 = vmatpush1.bf16.msra.mxu0 %v5596
    %7471 = vmatprep.subr.bf16.mxu0 0
    %7472 = vmatpush1.bf16.msra.mxu0 %v5597
    %7473 = vmatprep.subr.bf16.mxu0 0
    %7474 = vmatpush1.bf16.msra.mxu0 %v5598
    %7475 = vmatprep.subr.bf16.mxu0 0
    %7476 = vmatpush1.bf16.msra.mxu0 %v5599
    %7477 = vmatprep.subr.bf16.mxu0 0
    %7478 = vmatpush1.bf16.msra.mxu0 %v5600
    %7479 = vmatprep.subr.bf16.mxu0 0
    %7480 = vmatpush1.bf16.msra.mxu0 %v5601
    %7481 = vmatprep.subr.bf16.mxu0 0
    %7482 = vmatpush1.bf16.msra.mxu0 %v5602
    %7483 = vmatprep.subr.bf16.mxu0 0
    %7484 = vmatpush1.bf16.msra.mxu0 %v5603
    %7485 = vmatprep.subr.bf16.mxu0 0
    %7486 = vmatpush1.bf16.msra.mxu0 %v5604
    %7487 = vmatprep.subr.bf16.mxu0 0
    %7488 = vmatpush1.bf16.msra.mxu0 %v5605
    %7489 = vmatprep.subr.bf16.mxu0 0
    %7490 = vmatpush1.bf16.msra.mxu0 %v5606
    %7491 = vmatprep.subr.bf16.mxu0 0
    %7492 = vmatpush1.bf16.msra.mxu0 %v5607
    %7493 = vmatprep.subr.bf16.mxu0 0
    %7494 = vmatpush1.bf16.msra.mxu0 %v5608
    %7495 = vmatprep.subr.bf16.mxu0 0
    %7496 = vmatpush1.bf16.msra.mxu0 %v5609
    %7497 = vmatprep.subr.bf16.mxu0 0
    %7498 = vmatpush1.bf16.msra.mxu0 %v5610
    %7499 = vmatprep.mubr.bf16.mxu0 %v695
    %7500 = vmatmul.mubr.bf16.gmra.mrb[0].mxu0 %v694
    %v7501 = vpop.f32.mrb[0].mxu0
    %v7502 = vadd.f32 %v7462, %v7501
    %v7503 = vpop.f32.mrb[0].mxu0
    %v7504 = vpop.f32.mrb[0].mxu0
    %v7505 = vpop.f32.mrb[0].mxu0
    %7506 = vdwg.mxu0
    %7507 = vmatprep.subr.bf16.mxu0 0
    %7508 = vmatpush1.bf16.msra.mxu0 %v5611
    %7509 = vmatprep.subr.bf16.mxu0 0
    %7510 = vmatpush1.bf16.msra.mxu0 %v5612
    %7511 = vmatprep.subr.bf16.mxu0 0
    %7512 = vmatpush1.bf16.msra.mxu0 %v5613
    %7513 = vmatprep.subr.bf16.mxu0 0
    %7514 = vmatpush1.bf16.msra.mxu0 %v5614
    %7515 = vmatprep.subr.bf16.mxu0 0
    %7516 = vmatpush1.bf16.msra.mxu0 %v5615
    %7517 = vmatprep.subr.bf16.mxu0 0
    %7518 = vmatpush1.bf16.msra.mxu0 %v5616
    %7519 = vmatprep.subr.bf16.mxu0 0
    %7520 = vmatpush1.bf16.msra.mxu0 %v5617
    %7521 = vmatprep.subr.bf16.mxu0 0
    %7522 = vmatpush1.bf16.msra.mxu0 %v5618
    %7523 = vmatprep.subr.bf16.mxu0 0
    %7524 = vmatpush1.bf16.msra.mxu0 %v5619
    %7525 = vmatprep.subr.bf16.mxu0 0
    %7526 = vmatpush1.bf16.msra.mxu0 %v5620
    %7527 = vmatprep.subr.bf16.mxu0 0
    %7528 = vmatpush1.bf16.msra.mxu0 %v5621
    %7529 = vmatprep.subr.bf16.mxu0 0
    %7530 = vmatpush1.bf16.msra.mxu0 %v5622
    %7531 = vmatprep.subr.bf16.mxu0 0
    %7532 = vmatpush1.bf16.msra.mxu0 %v5623
    %7533 = vmatprep.subr.bf16.mxu0 0
    %7534 = vmatpush1.bf16.msra.mxu0 %v5624
    %7535 = vmatprep.subr.bf16.mxu0 0
    %7536 = vmatpush1.bf16.msra.mxu0 %v5625
    %7537 = vmatprep.subr.bf16.mxu0 0
    %7538 = vmatpush1.bf16.msra.mxu0 %v5626
    %7539 = vmatprep.mubr.bf16.mxu0 %v697
    %7540 = vmatmul.mubr.bf16.gmra.mrb[0].mxu0 %v696
    %v7541 = vpop.f32.mrb[0].mxu0
    %v7542 = vadd.f32 %v7502, %v7541
    %v7543 = vpop.f32.mrb[0].mxu0
    %v7544 = vpop.f32.mrb[0].mxu0
    %v7545 = vpop.f32.mrb[0].mxu0
    %7546 = vdwg.mxu0
    %7547 = vmatprep.subr.bf16.mxu0 0
    %7548 = vmatpush1.bf16.msra.mxu0 %v5627
    %7549 = vmatprep.subr.bf16.mxu0 0
    %7550 = vmatpush1.bf16.msra.mxu0 %v5628
    %7551 = vmatprep.subr.bf16.mxu0 0
    %7552 = vmatpush1.bf16.msra.mxu0 %v5629
    %7553 = vmatprep.subr.bf16.mxu0 0
    %7554 = vmatpush1.bf16.msra.mxu0 %v5630
    %7555 = vmatprep.subr.bf16.mxu0 0
    %7556 = vmatpush1.bf16.msra.mxu0 %v5631
    %7557 = vmatprep.subr.bf16.mxu0 0
    %7558 = vmatpush1.bf16.msra.mxu0 %v5632
    %7559 = vmatprep.subr.bf16.mxu0 0
    %7560 = vmatpush1.bf16.msra.mxu0 %v5633
    %7561 = vmatprep.subr.bf16.mxu0 0
    %7562 = vmatpush1.bf16.msra.mxu0 %v5634
    %7563 = vmatprep.subr.bf16.mxu0 0
    %7564 = vmatpush1.bf16.msra.mxu0 %v5635
    %7565 = vmatprep.subr.bf16.mxu0 0
    %7566 = vmatpush1.bf16.msra.mxu0 %v5636
    %7567 = vmatprep.subr.bf16.mxu0 0
    %7568 = vmatpush1.bf16.msra.mxu0 %v5637
    %7569 = vmatprep.subr.bf16.mxu0 0
    %7570 = vmatpush1.bf16.msra.mxu0 %v5638
    %7571 = vmatprep.subr.bf16.mxu0 0
    %7572 = vmatpush1.bf16.msra.mxu0 %v5639
    %7573 = vmatprep.subr.bf16.mxu0 0
    %7574 = vmatpush1.bf16.msra.mxu0 %v5640
    %7575 = vmatprep.subr.bf16.mxu0 0
    %7576 = vmatpush1.bf16.msra.mxu0 %v5641
    %7577 = vmatprep.subr.bf16.mxu0 0
    %7578 = vmatpush1.bf16.msra.mxu0 %v5642
    %7579 = vmatprep.mubr.bf16.mxu0 %v699
    %7580 = vmatmul.mubr.bf16.gmra.mrb[0].mxu0 %v698
    %v7581 = vpop.f32.mrb[0].mxu0
    %v7582 = vadd.f32 %v7542, %v7581
    %v7583 = vpop.f32.mrb[0].mxu0
    %v7584 = vpop.f32.mrb[0].mxu0
    %v7585 = vpop.f32.mrb[0].mxu0
    %7586 = vdwg.mxu0
    %7587 = vmatprep.subr.bf16.mxu0 0
    %7588 = vmatpush1.bf16.msra.mxu0 %v5643
    %7589 = vmatprep.subr.bf16.mxu0 0
    %7590 = vmatpush1.bf16.msra.mxu0 %v5644
    %7591 = vmatprep.subr.bf16.mxu0 0
    %7592 = vmatpush1.bf16.msra.mxu0 %v5645
    %7593 = vmatprep.subr.bf16.mxu0 0
    %7594 = vmatpush1.bf16.msra.mxu0 %v5646
    %7595 = vmatprep.subr.bf16.mxu0 0
    %7596 = vmatpush1.bf16.msra.mxu0 %v5647
    %7597 = vmatprep.subr.bf16.mxu0 0
    %7598 = vmatpush1.bf16.msra.mxu0 %v5648
    %7599 = vmatprep.subr.bf16.mxu0 0
    %7600 = vmatpush1.bf16.msra.mxu0 %v5649
    %7601 = vmatprep.subr.bf16.mxu0 0
    %7602 = vmatpush1.bf16.msra.mxu0 %v5650
    %7603 = vmatprep.subr.bf16.mxu0 0
    %7604 = vmatpush1.bf16.msra.mxu0 %v5651
    %7605 = vmatprep.subr.bf16.mxu0 0
    %7606 = vmatpush1.bf16.msra.mxu0 %v5652
    %7607 = vmatprep.subr.bf16.mxu0 0
    %7608 = vmatpush1.bf16.msra.mxu0 %v5653
    %7609 = vmatprep.subr.bf16.mxu0 0
    %7610 = vmatpush1.bf16.msra.mxu0 %v5654
    %7611 = vmatprep.subr.bf16.mxu0 0
    %7612 = vmatpush1.bf16.msra.mxu0 %v5655
    %7613 = vmatprep.subr.bf16.mxu0 0
    %7614 = vmatpush1.bf16.msra.mxu0 %v5656
    %7615 = vmatprep.subr.bf16.mxu0 0
    %7616 = vmatpush1.bf16.msra.mxu0 %v5657
    %7617 = vmatprep.subr.bf16.mxu0 0
    %7618 = vmatpush1.bf16.msra.mxu0 %v5658
    %7619 = vmatprep.mubr.bf16.mxu0 %v701
    %7620 = vmatmul.mubr.bf16.gmra.mrb[0].mxu0 %v700
    %v7621 = vpop.f32.mrb[0].mxu0
    %v7622 = vadd.f32 %v7582, %v7621
    %v7623 = vpop.f32.mrb[0].mxu0
    %v7624 = vpop.f32.mrb[0].mxu0
    %v7625 = vpop.f32.mrb[0].mxu0
    %7626 = vdwg.mxu0
    %7627 = vmatprep.subr.bf16.mxu0 0
    %7628 = vmatpush1.bf16.msra.mxu0 %v5659
    %7629 = vmatprep.subr.bf16.mxu0 0
    %7630 = vmatpush1.bf16.msra.mxu0 %v5660
    %7631 = vmatprep.subr.bf16.mxu0 0
    %7632 = vmatpush1.bf16.msra.mxu0 %v5661
    %7633 = vmatprep.subr.bf16.mxu0 0
    %7634 = vmatpush1.bf16.msra.mxu0 %v5662
    %7635 = vmatprep.subr.bf16.mxu0 0
    %7636 = vmatpush1.bf16.msra.mxu0 %v5663
    %7637 = vmatprep.subr.bf16.mxu0 0
    %7638 = vmatpush1.bf16.msra.mxu0 %v5664
    %7639 = vmatprep.subr.bf16.mxu0 0
    %7640 = vmatpush1.bf16.msra.mxu0 %v5665
    %7641 = vmatprep.subr.bf16.mxu0 0
    %7642 = vmatpush1.bf16.msra.mxu0 %v5666
    %7643 = vmatprep.subr.bf16.mxu0 0
    %7644 = vmatpush1.bf16.msra.mxu0 %v5667
    %7645 = vmatprep.subr.bf16.mxu0 0
    %7646 = vmatpush1.bf16.msra.mxu0 %v5668
    %7647 = vmatprep.subr.bf16.mxu0 0
    %7648 = vmatpush1.bf16.msra.mxu0 %v5669
    %7649 = vmatprep.subr.bf16.mxu0 0
    %7650 = vmatpush1.bf16.msra.mxu0 %v5670
    %7651 = vmatprep.subr.bf16.mxu0 0
    %7652 = vmatpush1.bf16.msra.mxu0 %v5671
    %7653 = vmatprep.subr.bf16.mxu0 0
    %7654 = vmatpush1.bf16.msra.mxu0 %v5672
    %7655 = vmatprep.subr.bf16.mxu0 0
    %7656 = vmatpush1.bf16.msra.mxu0 %v5673
    %7657 = vmatprep.subr.bf16.mxu0 0
    %7658 = vmatpush1.bf16.msra.mxu0 %v5674
    %7659 = vmatprep.mubr.bf16.mxu0 %v703
    %7660 = vmatmul.mubr.bf16.gmra.mrb[0].mxu0 %v702
    %v7661 = vpop.f32.mrb[0].mxu0
    %v7662 = vadd.f32 %v7622, %v7661
    %v7663 = vpop.f32.mrb[0].mxu0
    %v7664 = vpop.f32.mrb[0].mxu0
    %v7665 = vpop.f32.mrb[0].mxu0
    %7666 = vdwg.mxu0
    %7667 = vmatprep.subr.bf16.mxu0 0
    %7668 = vmatpush1.bf16.msra.mxu0 %v5675
    %7669 = vmatprep.subr.bf16.mxu0 0
    %7670 = vmatpush1.bf16.msra.mxu0 %v5676
    %7671 = vmatprep.subr.bf16.mxu0 0
    %7672 = vmatpush1.bf16.msra.mxu0 %v5677
    %7673 = vmatprep.subr.bf16.mxu0 0
    %7674 = vmatpush1.bf16.msra.mxu0 %v5678
    %7675 = vmatprep.subr.bf16.mxu0 0
    %7676 = vmatpush1.bf16.msra.mxu0 %v5679
    %7677 = vmatprep.subr.bf16.mxu0 0
    %7678 = vmatpush1.bf16.msra.mxu0 %v5680
    %7679 = vmatprep.subr.bf16.mxu0 0
    %7680 = vmatpush1.bf16.msra.mxu0 %v5681
    %7681 = vmatprep.subr.bf16.mxu0 0
    %7682 = vmatpush1.bf16.msra.mxu0 %v5682
    %7683 = vmatprep.subr.bf16.mxu0 0
    %7684 = vmatpush1.bf16.msra.mxu0 %v5683
    %7685 = vmatprep.subr.bf16.mxu0 0
    %7686 = vmatpush1.bf16.msra.mxu0 %v5684
    %7687 = vmatprep.subr.bf16.mxu0 0
    %7688 = vmatpush1.bf16.msra.mxu0 %v5685
    %7689 = vmatprep.subr.bf16.mxu0 0
    %7690 = vmatpush1.bf16.msra.mxu0 %v5686
    %7691 = vmatprep.subr.bf16.mxu0 0
    %7692 = vmatpush1.bf16.msra.mxu0 %v5687
    %7693 = vmatprep.subr.bf16.mxu0 0
    %7694 = vmatpush1.bf16.msra.mxu0 %v5688
    %7695 = vmatprep.subr.bf16.mxu0 0
    %7696 = vmatpush1.bf16.msra.mxu0 %v5689
    %7697 = vmatprep.subr.bf16.mxu0 0
    %7698 = vmatpush1.bf16.msra.mxu0 %v5690
    %7699 = vmatprep.mubr.bf16.mxu0 %v705
    %7700 = vmatmul.mubr.bf16.gmra.mrb[0].mxu0 %v704
    %v7701 = vpop.f32.mrb[0].mxu0
    %v7702 = vadd.f32 %v7662, %v7701
    %v7703 = vpop.f32.mrb[0].mxu0
    %v7704 = vpop.f32.mrb[0].mxu0
    %v7705 = vpop.f32.mrb[0].mxu0
    %7706 = vdwg.mxu0
    %7707 = vmatprep.subr.bf16.mxu0 0
    %7708 = vmatpush1.bf16.msra.mxu0 %v5691
    %7709 = vmatprep.subr.bf16.mxu0 0
    %7710 = vmatpush1.bf16.msra.mxu0 %v5692
    %7711 = vmatprep.subr.bf16.mxu0 0
    %7712 = vmatpush1.bf16.msra.mxu0 %v5693
    %7713 = vmatprep.subr.bf16.mxu0 0
    %7714 = vmatpush1.bf16.msra.mxu0 %v5694
    %7715 = vmatprep.subr.bf16.mxu0 0
    %7716 = vmatpush1.bf16.msra.mxu0 %v5695
    %7717 = vmatprep.subr.bf16.mxu0 0
    %7718 = vmatpush1.bf16.msra.mxu0 %v5696
    %7719 = vmatprep.subr.bf16.mxu0 0
    %7720 = vmatpush1.bf16.msra.mxu0 %v5697
    %7721 = vmatprep.subr.bf16.mxu0 0
    %7722 = vmatpush1.bf16.msra.mxu0 %v5698
    %7723 = vmatprep.subr.bf16.mxu0 0
    %7724 = vmatpush1.bf16.msra.mxu0 %v5699
    %7725 = vmatprep.subr.bf16.mxu0 0
    %7726 = vmatpush1.bf16.msra.mxu0 %v5700
    %7727 = vmatprep.subr.bf16.mxu0 0
    %7728 = vmatpush1.bf16.msra.mxu0 %v5701
    %7729 = vmatprep.subr.bf16.mxu0 0
    %7730 = vmatpush1.bf16.msra.mxu0 %v5702
    %7731 = vmatprep.subr.bf16.mxu0 0
    %7732 = vmatpush1.bf16.msra.mxu0 %v5703
    %7733 = vmatprep.subr.bf16.mxu0 0
    %7734 = vmatpush1.bf16.msra.mxu0 %v5704
    %7735 = vmatprep.subr.bf16.mxu0 0
    %7736 = vmatpush1.bf16.msra.mxu0 %v5705
    %7737 = vmatprep.subr.bf16.mxu0 0
    %7738 = vmatpush1.bf16.msra.mxu0 %v5706
    %7739 = vmatprep.mubr.bf16.mxu0 %v707
    %7740 = vmatmul.mubr.bf16.gmra.mrb[0].mxu0 %v706
    %v7741 = vpop.f32.mrb[0].mxu0
    %v7742 = vadd.f32 %v7702, %v7741
    %v7743 = vpop.f32.mrb[0].mxu0
    %v7744 = vpop.f32.mrb[0].mxu0
    %v7745 = vpop.f32.mrb[0].mxu0
    %7746 = vdwg.mxu0
    %7747 = vmatprep.subr.bf16.mxu0 0
    %7748 = vmatpush1.bf16.msra.mxu0 %v5707
    %7749 = vmatprep.subr.bf16.mxu0 0
    %7750 = vmatpush1.bf16.msra.mxu0 %v5708
    %7751 = vmatprep.subr.bf16.mxu0 0
    %7752 = vmatpush1.bf16.msra.mxu0 %v5709
    %7753 = vmatprep.subr.bf16.mxu0 0
    %7754 = vmatpush1.bf16.msra.mxu0 %v5710
    %7755 = vmatprep.subr.bf16.mxu0 0
    %7756 = vmatpush1.bf16.msra.mxu0 %v5711
    %7757 = vmatprep.subr.bf16.mxu0 0
    %7758 = vmatpush1.bf16.msra.mxu0 %v5712
    %7759 = vmatprep.subr.bf16.mxu0 0
    %7760 = vmatpush1.bf16.msra.mxu0 %v5713
    %7761 = vmatprep.subr.bf16.mxu0 0
    %7762 = vmatpush1.bf16.msra.mxu0 %v5714
    %7763 = vmatprep.subr.bf16.mxu0 0
    %7764 = vmatpush1.bf16.msra.mxu0 %v5715
    %7765 = vmatprep.subr.bf16.mxu0 0
    %7766 = vmatpush1.bf16.msra.mxu0 %v5716
    %7767 = vmatprep.subr.bf16.mxu0 0
    %7768 = vmatpush1.bf16.msra.mxu0 %v5717
    %7769 = vmatprep.subr.bf16.mxu0 0
    %7770 = vmatpush1.bf16.msra.mxu0 %v5718
    %7771 = vmatprep.subr.bf16.mxu0 0
    %7772 = vmatpush1.bf16.msra.mxu0 %v5719
    %7773 = vmatprep.subr.bf16.mxu0 0
    %7774 = vmatpush1.bf16.msra.mxu0 %v5720
    %7775 = vmatprep.subr.bf16.mxu0 0
    %7776 = vmatpush1.bf16.msra.mxu0 %v5721
    %7777 = vmatprep.subr.bf16.mxu0 0
    %7778 = vmatpush1.bf16.msra.mxu0 %v5722
    %7779 = vmatprep.mubr.bf16.mxu0 %v709
    %7780 = vmatmul.mubr.bf16.gmra.mrb[0].mxu0 %v708
    %v7781 = vpop.f32.mrb[0].mxu0
    %v7782 = vadd.f32 %v7742, %v7781
    %v7783 = vpop.f32.mrb[0].mxu0
    %v7784 = vpop.f32.mrb[0].mxu0
    %v7785 = vpop.f32.mrb[0].mxu0
    %7786 = vdwg.mxu0
    %7787 = vmatprep.subr.bf16.mxu0 0
    %7788 = vmatpush1.bf16.msra.mxu0 %v5723
    %7789 = vmatprep.subr.bf16.mxu0 0
    %7790 = vmatpush1.bf16.msra.mxu0 %v5724
    %7791 = vmatprep.subr.bf16.mxu0 0
    %7792 = vmatpush1.bf16.msra.mxu0 %v5725
    %7793 = vmatprep.subr.bf16.mxu0 0
    %7794 = vmatpush1.bf16.msra.mxu0 %v5726
    %7795 = vmatprep.subr.bf16.mxu0 0
    %7796 = vmatpush1.bf16.msra.mxu0 %v5727
    %7797 = vmatprep.subr.bf16.mxu0 0
    %7798 = vmatpush1.bf16.msra.mxu0 %v5728
    %7799 = vmatprep.subr.bf16.mxu0 0
    %7800 = vmatpush1.bf16.msra.mxu0 %v5729
    %7801 = vmatprep.subr.bf16.mxu0 0
    %7802 = vmatpush1.bf16.msra.mxu0 %v5730
    %7803 = vmatprep.subr.bf16.mxu0 0
    %7804 = vmatpush1.bf16.msra.mxu0 %v5731
    %7805 = vmatprep.subr.bf16.mxu0 0
    %7806 = vmatpush1.bf16.msra.mxu0 %v5732
    %7807 = vmatprep.subr.bf16.mxu0 0
    %7808 = vmatpush1.bf16.msra.mxu0 %v5733
    %7809 = vmatprep.subr.bf16.mxu0 0
    %7810 = vmatpush1.bf16.msra.mxu0 %v5734
    %7811 = vmatprep.subr.bf16.mxu0 0
    %7812 = vmatpush1.bf16.msra.mxu0 %v5735
    %7813 = vmatprep.subr.bf16.mxu0 0
    %7814 = vmatpush1.bf16.msra.mxu0 %v5736
    %7815 = vmatprep.subr.bf16.mxu0 0
    %7816 = vmatpush1.bf16.msra.mxu0 %v5737
    %7817 = vmatprep.subr.bf16.mxu0 0
    %7818 = vmatpush1.bf16.msra.mxu0 %v5738
    %7819 = vmatprep.mubr.bf16.mxu0 %v711
    %7820 = vmatmul.mubr.bf16.gmra.mrb[0].mxu0 %v710
    %v7821 = vpop.f32.mrb[0].mxu0
    %v7822 = vadd.f32 %v7782, %v7821
    %v7823 = vpop.f32.mrb[0].mxu0
    %v7824 = vpop.f32.mrb[0].mxu0
    %v7825 = vpop.f32.mrb[0].mxu0
    %7826 = vdwg.mxu0
    %7827 = vmatprep.subr.bf16.mxu0 0
    %7828 = vmatpush1.bf16.msra.mxu0 %v5739
    %7829 = vmatprep.subr.bf16.mxu0 0
    %7830 = vmatpush1.bf16.msra.mxu0 %v5740
    %7831 = vmatprep.subr.bf16.mxu0 0
    %7832 = vmatpush1.bf16.msra.mxu0 %v5741
    %7833 = vmatprep.subr.bf16.mxu0 0
    %7834 = vmatpush1.bf16.msra.mxu0 %v5742
    %7835 = vmatprep.subr.bf16.mxu0 0
    %7836 = vmatpush1.bf16.msra.mxu0 %v5743
    %7837 = vmatprep.subr.bf16.mxu0 0
    %7838 = vmatpush1.bf16.msra.mxu0 %v5744
    %7839 = vmatprep.subr.bf16.mxu0 0
    %7840 = vmatpush1.bf16.msra.mxu0 %v5745
    %7841 = vmatprep.subr.bf16.mxu0 0
    %7842 = vmatpush1.bf16.msra.mxu0 %v5746
    %7843 = vmatprep.subr.bf16.mxu0 0
    %7844 = vmatpush1.bf16.msra.mxu0 %v5747
    %7845 = vmatprep.subr.bf16.mxu0 0
    %7846 = vmatpush1.bf16.msra.mxu0 %v5748
    %7847 = vmatprep.subr.bf16.mxu0 0
    %7848 = vmatpush1.bf16.msra.mxu0 %v5749
    %7849 = vmatprep.subr.bf16.mxu0 0
    %7850 = vmatpush1.bf16.msra.mxu0 %v5750
    %7851 = vmatprep.subr.bf16.mxu0 0
    %7852 = vmatpush1.bf16.msra.mxu0 %v5751
    %7853 = vmatprep.subr.bf16.mxu0 0
    %7854 = vmatpush1.bf16.msra.mxu0 %v5752
    %7855 = vmatprep.subr.bf16.mxu0 0
    %7856 = vmatpush1.bf16.msra.mxu0 %v5753
    %7857 = vmatprep.subr.bf16.mxu0 0
    %7858 = vmatpush1.bf16.msra.mxu0 %v5754
    %7859 = vmatprep.mubr.bf16.mxu0 %v713
    %7860 = vmatmul.mubr.bf16.gmra.mrb[0].mxu0 %v712
    %v7861 = vpop.f32.mrb[0].mxu0
    %v7862 = vadd.f32 %v7822, %v7861
    %v7863 = vpop.f32.mrb[0].mxu0
    %v7864 = vpop.f32.mrb[0].mxu0
    %v7865 = vpop.f32.mrb[0].mxu0
    %7866 = vdwg.mxu0
    %7867 = vmatprep.subr.bf16.mxu0 0
    %7868 = vmatpush1.bf16.msra.mxu0 %v5755
    %7869 = vmatprep.subr.bf16.mxu0 0
    %7870 = vmatpush1.bf16.msra.mxu0 %v5756
    %7871 = vmatprep.subr.bf16.mxu0 0
    %7872 = vmatpush1.bf16.msra.mxu0 %v5757
    %7873 = vmatprep.subr.bf16.mxu0 0
    %7874 = vmatpush1.bf16.msra.mxu0 %v5758
    %7875 = vmatprep.subr.bf16.mxu0 0
    %7876 = vmatpush1.bf16.msra.mxu0 %v5759
    %7877 = vmatprep.subr.bf16.mxu0 0
    %7878 = vmatpush1.bf16.msra.mxu0 %v5760
    %7879 = vmatprep.subr.bf16.mxu0 0
    %7880 = vmatpush1.bf16.msra.mxu0 %v5761
    %7881 = vmatprep.subr.bf16.mxu0 0
    %7882 = vmatpush1.bf16.msra.mxu0 %v5762
    %7883 = vmatprep.subr.bf16.mxu0 0
    %7884 = vmatpush1.bf16.msra.mxu0 %v5763
    %7885 = vmatprep.subr.bf16.mxu0 0
    %7886 = vmatpush1.bf16.msra.mxu0 %v5764
    %7887 = vmatprep.subr.bf16.mxu0 0
    %7888 = vmatpush1.bf16.msra.mxu0 %v5765
    %7889 = vmatprep.subr.bf16.mxu0 0
    %7890 = vmatpush1.bf16.msra.mxu0 %v5766
    %7891 = vmatprep.subr.bf16.mxu0 0
    %7892 = vmatpush1.bf16.msra.mxu0 %v5767
    %7893 = vmatprep.subr.bf16.mxu0 0
    %7894 = vmatpush1.bf16.msra.mxu0 %v5768
    %7895 = vmatprep.subr.bf16.mxu0 0
    %7896 = vmatpush1.bf16.msra.mxu0 %v5769
    %7897 = vmatprep.subr.bf16.mxu0 0
    %7898 = vmatpush1.bf16.msra.mxu0 %v5770
    %7899 = vmatprep.mubr.bf16.mxu0 %v715
    %7900 = vmatmul.mubr.bf16.gmra.mrb[0].mxu0 %v714
    %v7901 = vpop.f32.mrb[0].mxu0
    %v7902 = vadd.f32 %v7862, %v7901
    %v7903 = vpop.f32.mrb[0].mxu0
    %v7904 = vpop.f32.mrb[0].mxu0
    %v7905 = vpop.f32.mrb[0].mxu0
    %7906 = vdwg.mxu0
    %7907 = vmatprep.subr.bf16.mxu0 0
    %7908 = vmatpush1.bf16.msra.mxu0 %v5771
    %7909 = vmatprep.subr.bf16.mxu0 0
    %7910 = vmatpush1.bf16.msra.mxu0 %v5772
    %7911 = vmatprep.subr.bf16.mxu0 0
    %7912 = vmatpush1.bf16.msra.mxu0 %v5773
    %7913 = vmatprep.subr.bf16.mxu0 0
    %7914 = vmatpush1.bf16.msra.mxu0 %v5774
    %7915 = vmatprep.subr.bf16.mxu0 0
    %7916 = vmatpush1.bf16.msra.mxu0 %v5775
    %7917 = vmatprep.subr.bf16.mxu0 0
    %7918 = vmatpush1.bf16.msra.mxu0 %v5776
    %7919 = vmatprep.subr.bf16.mxu0 0
    %7920 = vmatpush1.bf16.msra.mxu0 %v5777
    %7921 = vmatprep.subr.bf16.mxu0 0
    %7922 = vmatpush1.bf16.msra.mxu0 %v5778
    %7923 = vmatprep.subr.bf16.mxu0 0
    %7924 = vmatpush1.bf16.msra.mxu0 %v5779
    %7925 = vmatprep.subr.bf16.mxu0 0
    %7926 = vmatpush1.bf16.msra.mxu0 %v5780
    %7927 = vmatprep.subr.bf16.mxu0 0
    %7928 = vmatpush1.bf16.msra.mxu0 %v5781
    %7929 = vmatprep.subr.bf16.mxu0 0
    %7930 = vmatpush1.bf16.msra.mxu0 %v5782
    %7931 = vmatprep.subr.bf16.mxu0 0
    %7932 = vmatpush1.bf16.msra.mxu0 %v5783
    %7933 = vmatprep.subr.bf16.mxu0 0
    %7934 = vmatpush1.bf16.msra.mxu0 %v5784
    %7935 = vmatprep.subr.bf16.mxu0 0
    %7936 = vmatpush1.bf16.msra.mxu0 %v5785
    %7937 = vmatprep.subr.bf16.mxu0 0
    %7938 = vmatpush1.bf16.msra.mxu0 %v5786
    %7939 = vmatprep.mubr.bf16.mxu0 %v717
    %7940 = vmatmul.mubr.bf16.gmra.mrb[0].mxu0 %v716
    %v7941 = vpop.f32.mrb[0].mxu0
    %v7942 = vadd.f32 %v7902, %v7941
    %v7943 = vpop.f32.mrb[0].mxu0
    %v7944 = vpop.f32.mrb[0].mxu0
    %v7945 = vpop.f32.mrb[0].mxu0
    %7946 = vdwg.mxu0
    %7947 = vmatprep.subr.bf16.mxu0 0
    %7948 = vmatpush1.bf16.msra.mxu0 %v5787
    %7949 = vmatprep.subr.bf16.mxu0 0
    %7950 = vmatpush1.bf16.msra.mxu0 %v5788
    %7951 = vmatprep.subr.bf16.mxu0 0
    %7952 = vmatpush1.bf16.msra.mxu0 %v5789
    %7953 = vmatprep.subr.bf16.mxu0 0
    %7954 = vmatpush1.bf16.msra.mxu0 %v5790
    %7955 = vmatprep.subr.bf16.mxu0 0
    %7956 = vmatpush1.bf16.msra.mxu0 %v5791
    %7957 = vmatprep.subr.bf16.mxu0 0
    %7958 = vmatpush1.bf16.msra.mxu0 %v5792
    %7959 = vmatprep.subr.bf16.mxu0 0
    %7960 = vmatpush1.bf16.msra.mxu0 %v5793
    %7961 = vmatprep.subr.bf16.mxu0 0
    %7962 = vmatpush1.bf16.msra.mxu0 %v5794
    %7963 = vmatprep.subr.bf16.mxu0 0
    %7964 = vmatpush1.bf16.msra.mxu0 %v5795
    %7965 = vmatprep.subr.bf16.mxu0 0
    %7966 = vmatpush1.bf16.msra.mxu0 %v5796
    %7967 = vmatprep.subr.bf16.mxu0 0
    %7968 = vmatpush1.bf16.msra.mxu0 %v5797
    %7969 = vmatprep.subr.bf16.mxu0 0
    %7970 = vmatpush1.bf16.msra.mxu0 %v5798
    %7971 = vmatprep.subr.bf16.mxu0 0
    %7972 = vmatpush1.bf16.msra.mxu0 %v5799
    %7973 = vmatprep.subr.bf16.mxu0 0
    %7974 = vmatpush1.bf16.msra.mxu0 %v5800
    %7975 = vmatprep.subr.bf16.mxu0 0
    %7976 = vmatpush1.bf16.msra.mxu0 %v5801
    %7977 = vmatprep.subr.bf16.mxu0 0
    %7978 = vmatpush1.bf16.msra.mxu0 %v5802
    %7979 = vmatprep.mubr.bf16.mxu0 %v719
    %7980 = vmatmul.mubr.bf16.gmra.mrb[0].mxu0 %v718
    %v7981 = vpop.f32.mrb[0].mxu0
    %v7982 = vadd.f32 %v7942, %v7981
    %v7983 = vpop.f32.mrb[0].mxu0
    %v7984 = vpop.f32.mrb[0].mxu0
    %v7985 = vpop.f32.mrb[0].mxu0
    %7986 = vdwg.mxu0
    %7987 = vmatprep.subr.bf16.mxu0 0
    %7988 = vmatpush1.bf16.msra.mxu0 %v5803
    %7989 = vmatprep.subr.bf16.mxu0 0
    %7990 = vmatpush1.bf16.msra.mxu0 %v5804
    %7991 = vmatprep.subr.bf16.mxu0 0
    %7992 = vmatpush1.bf16.msra.mxu0 %v5805
    %7993 = vmatprep.subr.bf16.mxu0 0
    %7994 = vmatpush1.bf16.msra.mxu0 %v5806
    %7995 = vmatprep.subr.bf16.mxu0 0
    %7996 = vmatpush1.bf16.msra.mxu0 %v5807
    %7997 = vmatprep.subr.bf16.mxu0 0
    %7998 = vmatpush1.bf16.msra.mxu0 %v5808
    %7999 = vmatprep.subr.bf16.mxu0 0
    %8000 = vmatpush1.bf16.msra.mxu0 %v5809
    %8001 = vmatprep.subr.bf16.mxu0 0
    %8002 = vmatpush1.bf16.msra.mxu0 %v5810
    %8003 = vmatprep.subr.bf16.mxu0 0
    %8004 = vmatpush1.bf16.msra.mxu0 %v5811
    %8005 = vmatprep.subr.bf16.mxu0 0
    %8006 = vmatpush1.bf16.msra.mxu0 %v5812
    %8007 = vmatprep.subr.bf16.mxu0 0
    %8008 = vmatpush1.bf16.msra.mxu0 %v5813
    %8009 = vmatprep.subr.bf16.mxu0 0
    %8010 = vmatpush1.bf16.msra.mxu0 %v5814
    %8011 = vmatprep.subr.bf16.mxu0 0
    %8012 = vmatpush1.bf16.msra.mxu0 %v5815
    %8013 = vmatprep.subr.bf16.mxu0 0
    %8014 = vmatpush1.bf16.msra.mxu0 %v5816
    %8015 = vmatprep.subr.bf16.mxu0 0
    %8016 = vmatpush1.bf16.msra.mxu0 %v5817
    %8017 = vmatprep.subr.bf16.mxu0 0
    %8018 = vmatpush1.bf16.msra.mxu0 %v5818
    %8019 = vmatprep.mubr.bf16.mxu0 %v721
    %8020 = vmatmul.mubr.bf16.gmra.mrb[0].mxu0 %v720
    %v8021 = vpop.f32.mrb[0].mxu0
    %v8022 = vadd.f32 %v7982, %v8021
    %v8023 = vpop.f32.mrb[0].mxu0
    %v8024 = vpop.f32.mrb[0].mxu0
    %v8025 = vpop.f32.mrb[0].mxu0
    %8026 = vdwg.mxu0
    %8027 = vmatprep.subr.bf16.mxu0 0
    %8028 = vmatpush1.bf16.msra.mxu0 %v5819
    %8029 = vmatprep.subr.bf16.mxu0 0
    %8030 = vmatpush1.bf16.msra.mxu0 %v5820
    %8031 = vmatprep.subr.bf16.mxu0 0
    %8032 = vmatpush1.bf16.msra.mxu0 %v5821
    %8033 = vmatprep.subr.bf16.mxu0 0
    %8034 = vmatpush1.bf16.msra.mxu0 %v5822
    %8035 = vmatprep.subr.bf16.mxu0 0
    %8036 = vmatpush1.bf16.msra.mxu0 %v5823
    %8037 = vmatprep.subr.bf16.mxu0 0
    %8038 = vmatpush1.bf16.msra.mxu0 %v5824
    %8039 = vmatprep.subr.bf16.mxu0 0
    %8040 = vmatpush1.bf16.msra.mxu0 %v5825
    %8041 = vmatprep.subr.bf16.mxu0 0
    %8042 = vmatpush1.bf16.msra.mxu0 %v5826
    %8043 = vmatprep.subr.bf16.mxu0 0
    %8044 = vmatpush1.bf16.msra.mxu0 %v5827
    %8045 = vmatprep.subr.bf16.mxu0 0
    %8046 = vmatpush1.bf16.msra.mxu0 %v5828
    %8047 = vmatprep.subr.bf16.mxu0 0
    %8048 = vmatpush1.bf16.msra.mxu0 %v5829
    %8049 = vmatprep.subr.bf16.mxu0 0
    %8050 = vmatpush1.bf16.msra.mxu0 %v5830
    %8051 = vmatprep.subr.bf16.mxu0 0
    %8052 = vmatpush1.bf16.msra.mxu0 %v5831
    %8053 = vmatprep.subr.bf16.mxu0 0
    %8054 = vmatpush1.bf16.msra.mxu0 %v5832
    %8055 = vmatprep.subr.bf16.mxu0 0
    %8056 = vmatpush1.bf16.msra.mxu0 %v5833
    %8057 = vmatprep.subr.bf16.mxu0 0
    %8058 = vmatpush1.bf16.msra.mxu0 %v5834
    %8059 = vmatprep.mubr.bf16.mxu0 %v723
    %8060 = vmatmul.mubr.bf16.gmra.mrb[0].mxu0 %v722
    %v8061 = vpop.f32.mrb[0].mxu0
    %v8062 = vadd.f32 %v8022, %v8061
    %v8063 = vpop.f32.mrb[0].mxu0
    %v8064 = vpop.f32.mrb[0].mxu0
    %v8065 = vpop.f32.mrb[0].mxu0
    %8066 = vdwg.mxu0
    %8067 = vmatprep.subr.bf16.mxu0 0
    %8068 = vmatpush1.bf16.msra.mxu0 %v5835
    %8069 = vmatprep.subr.bf16.mxu0 0
    %8070 = vmatpush1.bf16.msra.mxu0 %v5836
    %8071 = vmatprep.subr.bf16.mxu0 0
    %8072 = vmatpush1.bf16.msra.mxu0 %v5837
    %8073 = vmatprep.subr.bf16.mxu0 0
    %8074 = vmatpush1.bf16.msra.mxu0 %v5838
    %8075 = vmatprep.subr.bf16.mxu0 0
    %8076 = vmatpush1.bf16.msra.mxu0 %v5839
    %8077 = vmatprep.subr.bf16.mxu0 0
    %8078 = vmatpush1.bf16.msra.mxu0 %v5840
    %8079 = vmatprep.subr.bf16.mxu0 0
    %8080 = vmatpush1.bf16.msra.mxu0 %v5841
    %8081 = vmatprep.subr.bf16.mxu0 0
    %8082 = vmatpush1.bf16.msra.mxu0 %v5842
    %8083 = vmatprep.subr.bf16.mxu0 0
    %8084 = vmatpush1.bf16.msra.mxu0 %v5843
    %8085 = vmatprep.subr.bf16.mxu0 0
    %8086 = vmatpush1.bf16.msra.mxu0 %v5844
    %8087 = vmatprep.subr.bf16.mxu0 0
    %8088 = vmatpush1.bf16.msra.mxu0 %v5845
    %8089 = vmatprep.subr.bf16.mxu0 0
    %8090 = vmatpush1.bf16.msra.mxu0 %v5846
    %8091 = vmatprep.subr.bf16.mxu0 0
    %8092 = vmatpush1.bf16.msra.mxu0 %v5847
    %8093 = vmatprep.subr.bf16.mxu0 0
    %8094 = vmatpush1.bf16.msra.mxu0 %v5848
    %8095 = vmatprep.subr.bf16.mxu0 0
    %8096 = vmatpush1.bf16.msra.mxu0 %v5849
    %8097 = vmatprep.subr.bf16.mxu0 0
    %8098 = vmatpush1.bf16.msra.mxu0 %v5850
    %8099 = vmatprep.mubr.bf16.mxu0 %v725
    %8100 = vmatmul.mubr.bf16.gmra.mrb[0].mxu0 %v724
    %v8101 = vpop.f32.mrb[0].mxu0
    %v8102 = vadd.f32 %v8062, %v8101
    %v8103 = vpop.f32.mrb[0].mxu0
    %v8104 = vpop.f32.mrb[0].mxu0
    %v8105 = vpop.f32.mrb[0].mxu0
    %8106 = vdwg.mxu0
    %8107 = vmatprep.subr.bf16.mxu0 0
    %8108 = vmatpush1.bf16.msra.mxu0 %v5851
    %8109 = vmatprep.subr.bf16.mxu0 0
    %8110 = vmatpush1.bf16.msra.mxu0 %v5852
    %8111 = vmatprep.subr.bf16.mxu0 0
    %8112 = vmatpush1.bf16.msra.mxu0 %v5853
    %8113 = vmatprep.subr.bf16.mxu0 0
    %8114 = vmatpush1.bf16.msra.mxu0 %v5854
    %8115 = vmatprep.subr.bf16.mxu0 0
    %8116 = vmatpush1.bf16.msra.mxu0 %v5855
    %8117 = vmatprep.subr.bf16.mxu0 0
    %8118 = vmatpush1.bf16.msra.mxu0 %v5856
    %8119 = vmatprep.subr.bf16.mxu0 0
    %8120 = vmatpush1.bf16.msra.mxu0 %v5857
    %8121 = vmatprep.subr.bf16.mxu0 0
    %8122 = vmatpush1.bf16.msra.mxu0 %v5858
    %8123 = vmatprep.subr.bf16.mxu0 0
    %8124 = vmatpush1.bf16.msra.mxu0 %v5859
    %8125 = vmatprep.subr.bf16.mxu0 0
    %8126 = vmatpush1.bf16.msra.mxu0 %v5860
    %8127 = vmatprep.subr.bf16.mxu0 0
    %8128 = vmatpush1.bf16.msra.mxu0 %v5861
    %8129 = vmatprep.subr.bf16.mxu0 0
    %8130 = vmatpush1.bf16.msra.mxu0 %v5862
    %8131 = vmatprep.subr.bf16.mxu0 0
    %8132 = vmatpush1.bf16.msra.mxu0 %v5863
    %8133 = vmatprep.subr.bf16.mxu0 0
    %8134 = vmatpush1.bf16.msra.mxu0 %v5864
    %8135 = vmatprep.subr.bf16.mxu0 0
    %8136 = vmatpush1.bf16.msra.mxu0 %v5865
    %8137 = vmatprep.subr.bf16.mxu0 0
    %8138 = vmatpush1.bf16.msra.mxu0 %v5866
    %8139 = vmatprep.mubr.bf16.mxu0 %v727
    %8140 = vmatmul.mubr.bf16.gmra.mrb[0].mxu0 %v726
    %v8141 = vpop.f32.mrb[0].mxu0
    %v8142 = vadd.f32 %v8102, %v8141
    %v8143 = vpop.f32.mrb[0].mxu0
    %v8144 = vpop.f32.mrb[0].mxu0
    %v8145 = vpop.f32.mrb[0].mxu0
    %8146 = vdwg.mxu0
    %8147 = vmatprep.subr.bf16.mxu0 0
    %8148 = vmatpush1.bf16.msra.mxu0 %v5867
    %8149 = vmatprep.subr.bf16.mxu0 0
    %8150 = vmatpush1.bf16.msra.mxu0 %v5868
    %8151 = vmatprep.subr.bf16.mxu0 0
    %8152 = vmatpush1.bf16.msra.mxu0 %v5869
    %8153 = vmatprep.subr.bf16.mxu0 0
    %8154 = vmatpush1.bf16.msra.mxu0 %v5870
    %8155 = vmatprep.subr.bf16.mxu0 0
    %8156 = vmatpush1.bf16.msra.mxu0 %v5871
    %8157 = vmatprep.subr.bf16.mxu0 0
    %8158 = vmatpush1.bf16.msra.mxu0 %v5872
    %8159 = vmatprep.subr.bf16.mxu0 0
    %8160 = vmatpush1.bf16.msra.mxu0 %v5873
    %8161 = vmatprep.subr.bf16.mxu0 0
    %8162 = vmatpush1.bf16.msra.mxu0 %v5874
    %8163 = vmatprep.subr.bf16.mxu0 0
    %8164 = vmatpush1.bf16.msra.mxu0 %v5875
    %8165 = vmatprep.subr.bf16.mxu0 0
    %8166 = vmatpush1.bf16.msra.mxu0 %v5876
    %8167 = vmatprep.subr.bf16.mxu0 0
    %8168 = vmatpush1.bf16.msra.mxu0 %v5877
    %8169 = vmatprep.subr.bf16.mxu0 0
    %8170 = vmatpush1.bf16.msra.mxu0 %v5878
    %8171 = vmatprep.subr.bf16.mxu0 0
    %8172 = vmatpush1.bf16.msra.mxu0 %v5879
    %8173 = vmatprep.subr.bf16.mxu0 0
    %8174 = vmatpush1.bf16.msra.mxu0 %v5880
    %8175 = vmatprep.subr.bf16.mxu0 0
    %8176 = vmatpush1.bf16.msra.mxu0 %v5881
    %8177 = vmatprep.subr.bf16.mxu0 0
    %8178 = vmatpush1.bf16.msra.mxu0 %v5882
    %8179 = vmatprep.mubr.bf16.mxu0 %v729
    %8180 = vmatmul.mubr.bf16.gmra.mrb[0].mxu0 %v728
    %v8181 = vpop.f32.mrb[0].mxu0
    %v8182 = vadd.f32 %v8142, %v8181
    %v8183 = vpop.f32.mrb[0].mxu0
    %v8184 = vpop.f32.mrb[0].mxu0
    %v8185 = vpop.f32.mrb[0].mxu0
    %8186 = vdwg.mxu0
    %8187 = vmatprep.subr.bf16.mxu0 0
    %8188 = vmatpush1.bf16.msra.mxu0 %v5883
    %8189 = vmatprep.subr.bf16.mxu0 0
    %8190 = vmatpush1.bf16.msra.mxu0 %v5884
    %8191 = vmatprep.subr.bf16.mxu0 0
    %8192 = vmatpush1.bf16.msra.mxu0 %v5885
    %8193 = vmatprep.subr.bf16.mxu0 0
    %8194 = vmatpush1.bf16.msra.mxu0 %v5886
    %8195 = vmatprep.subr.bf16.mxu0 0
    %8196 = vmatpush1.bf16.msra.mxu0 %v5887
    %8197 = vmatprep.subr.bf16.mxu0 0
    %8198 = vmatpush1.bf16.msra.mxu0 %v5888
    %8199 = vmatprep.subr.bf16.mxu0 0
    %8200 = vmatpush1.bf16.msra.mxu0 %v5889
    %8201 = vmatprep.subr.bf16.mxu0 0
    %8202 = vmatpush1.bf16.msra.mxu0 %v5890
    %8203 = vmatprep.subr.bf16.mxu0 0
    %8204 = vmatpush1.bf16.msra.mxu0 %v5891
    %8205 = vmatprep.subr.bf16.mxu0 0
    %8206 = vmatpush1.bf16.msra.mxu0 %v5892
    %8207 = vmatprep.subr.bf16.mxu0 0
    %8208 = vmatpush1.bf16.msra.mxu0 %v5893
    %8209 = vmatprep.subr.bf16.mxu0 0
    %8210 = vmatpush1.bf16.msra.mxu0 %v5894
    %8211 = vmatprep.subr.bf16.mxu0 0
    %8212 = vmatpush1.bf16.msra.mxu0 %v5895
    %8213 = vmatprep.subr.bf16.mxu0 0
    %8214 = vmatpush1.bf16.msra.mxu0 %v5896
    %8215 = vmatprep.subr.bf16.mxu0 0
    %8216 = vmatpush1.bf16.msra.mxu0 %v5897
    %8217 = vmatprep.subr.bf16.mxu0 0
    %8218 = vmatpush1.bf16.msra.mxu0 %v5898
    %8219 = vmatprep.mubr.bf16.mxu0 %v731
    %8220 = vmatmul.mubr.bf16.gmra.mrb[0].mxu0 %v730
    %v8221 = vpop.f32.mrb[0].mxu0
    %v8222 = vadd.f32 %v8182, %v8221
    %v8223 = vpop.f32.mrb[0].mxu0
    %v8224 = vpop.f32.mrb[0].mxu0
    %v8225 = vpop.f32.mrb[0].mxu0
    %8226 = vdwg.mxu0
    %8227 = vmatprep.subr.bf16.mxu0 0
    %8228 = vmatpush1.bf16.msra.mxu0 %v5899
    %8229 = vmatprep.subr.bf16.mxu0 0
    %8230 = vmatpush1.bf16.msra.mxu0 %v5900
    %8231 = vmatprep.subr.bf16.mxu0 0
    %8232 = vmatpush1.bf16.msra.mxu0 %v5901
    %8233 = vmatprep.subr.bf16.mxu0 0
    %8234 = vmatpush1.bf16.msra.mxu0 %v5902
    %8235 = vmatprep.subr.bf16.mxu0 0
    %8236 = vmatpush1.bf16.msra.mxu0 %v5903
    %8237 = vmatprep.subr.bf16.mxu0 0
    %8238 = vmatpush1.bf16.msra.mxu0 %v5904
    %8239 = vmatprep.subr.bf16.mxu0 0
    %8240 = vmatpush1.bf16.msra.mxu0 %v5905
    %8241 = vmatprep.subr.bf16.mxu0 0
    %8242 = vmatpush1.bf16.msra.mxu0 %v5906
    %8243 = vmatprep.subr.bf16.mxu0 0
    %8244 = vmatpush1.bf16.msra.mxu0 %v5907
    %8245 = vmatprep.subr.bf16.mxu0 0
    %8246 = vmatpush1.bf16.msra.mxu0 %v5908
    %8247 = vmatprep.subr.bf16.mxu0 0
    %8248 = vmatpush1.bf16.msra.mxu0 %v5909
    %8249 = vmatprep.subr.bf16.mxu0 0
    %8250 = vmatpush1.bf16.msra.mxu0 %v5910
    %8251 = vmatprep.subr.bf16.mxu0 0
    %8252 = vmatpush1.bf16.msra.mxu0 %v5911
    %8253 = vmatprep.subr.bf16.mxu0 0
    %8254 = vmatpush1.bf16.msra.mxu0 %v5912
    %8255 = vmatprep.subr.bf16.mxu0 0
    %8256 = vmatpush1.bf16.msra.mxu0 %v5913
    %8257 = vmatprep.subr.bf16.mxu0 0
    %8258 = vmatpush1.bf16.msra.mxu0 %v5914
    %8259 = vmatprep.mubr.bf16.mxu0 %v733
    %8260 = vmatmul.mubr.bf16.gmra.mrb[0].mxu0 %v732
    %v8261 = vpop.f32.mrb[0].mxu0
    %v8262 = vadd.f32 %v8222, %v8261
    %v8263 = vpop.f32.mrb[0].mxu0
    %v8264 = vpop.f32.mrb[0].mxu0
    %v8265 = vpop.f32.mrb[0].mxu0
    %8266 = vdwg.mxu0
    %8267 = vmatprep.subr.bf16.mxu0 0
    %8268 = vmatpush1.bf16.msra.mxu0 %v5915
    %8269 = vmatprep.subr.bf16.mxu0 0
    %8270 = vmatpush1.bf16.msra.mxu0 %v5916
    %8271 = vmatprep.subr.bf16.mxu0 0
    %8272 = vmatpush1.bf16.msra.mxu0 %v5917
    %8273 = vmatprep.subr.bf16.mxu0 0
    %8274 = vmatpush1.bf16.msra.mxu0 %v5918
    %8275 = vmatprep.subr.bf16.mxu0 0
    %8276 = vmatpush1.bf16.msra.mxu0 %v5919
    %8277 = vmatprep.subr.bf16.mxu0 0
    %8278 = vmatpush1.bf16.msra.mxu0 %v5920
    %8279 = vmatprep.subr.bf16.mxu0 0
    %8280 = vmatpush1.bf16.msra.mxu0 %v5921
    %8281 = vmatprep.subr.bf16.mxu0 0
    %8282 = vmatpush1.bf16.msra.mxu0 %v5922
    %8283 = vmatprep.subr.bf16.mxu0 0
    %8284 = vmatpush1.bf16.msra.mxu0 %v5923
    %8285 = vmatprep.subr.bf16.mxu0 0
    %8286 = vmatpush1.bf16.msra.mxu0 %v5924
    %8287 = vmatprep.subr.bf16.mxu0 0
    %8288 = vmatpush1.bf16.msra.mxu0 %v5925
    %8289 = vmatprep.subr.bf16.mxu0 0
    %8290 = vmatpush1.bf16.msra.mxu0 %v5926
    %8291 = vmatprep.subr.bf16.mxu0 0
    %8292 = vmatpush1.bf16.msra.mxu0 %v5927
    %8293 = vmatprep.subr.bf16.mxu0 0
    %8294 = vmatpush1.bf16.msra.mxu0 %v5928
    %8295 = vmatprep.subr.bf16.mxu0 0
    %8296 = vmatpush1.bf16.msra.mxu0 %v5929
    %8297 = vmatprep.subr.bf16.mxu0 0
    %8298 = vmatpush1.bf16.msra.mxu0 %v5930
    %8299 = vmatprep.mubr.bf16.mxu0 %v735
    %8300 = vmatmul.mubr.bf16.gmra.mrb[0].mxu0 %v734
    %v8301 = vpop.f32.mrb[0].mxu0
    %v8302 = vadd.f32 %v8262, %v8301
    %v8303 = vpop.f32.mrb[0].mxu0
    %v8304 = vpop.f32.mrb[0].mxu0
    %v8305 = vpop.f32.mrb[0].mxu0
    %8306 = vdwg.mxu0
    %8307 = vmatprep.subr.bf16.mxu0 0
    %8308 = vmatpush1.bf16.msra.mxu0 %v5931
    %8309 = vmatprep.subr.bf16.mxu0 0
    %8310 = vmatpush1.bf16.msra.mxu0 %v5932
    %8311 = vmatprep.subr.bf16.mxu0 0
    %8312 = vmatpush1.bf16.msra.mxu0 %v5933
    %8313 = vmatprep.subr.bf16.mxu0 0
    %8314 = vmatpush1.bf16.msra.mxu0 %v5934
    %8315 = vmatprep.subr.bf16.mxu0 0
    %8316 = vmatpush1.bf16.msra.mxu0 %v5935
    %8317 = vmatprep.subr.bf16.mxu0 0
    %8318 = vmatpush1.bf16.msra.mxu0 %v5936
    %8319 = vmatprep.subr.bf16.mxu0 0
    %8320 = vmatpush1.bf16.msra.mxu0 %v5937
    %8321 = vmatprep.subr.bf16.mxu0 0
    %8322 = vmatpush1.bf16.msra.mxu0 %v5938
    %8323 = vmatprep.subr.bf16.mxu0 0
    %8324 = vmatpush1.bf16.msra.mxu0 %v5939
    %8325 = vmatprep.subr.bf16.mxu0 0
    %8326 = vmatpush1.bf16.msra.mxu0 %v5940
    %8327 = vmatprep.subr.bf16.mxu0 0
    %8328 = vmatpush1.bf16.msra.mxu0 %v5941
    %8329 = vmatprep.subr.bf16.mxu0 0
    %8330 = vmatpush1.bf16.msra.mxu0 %v5942
    %8331 = vmatprep.subr.bf16.mxu0 0
    %8332 = vmatpush1.bf16.msra.mxu0 %v5943
    %8333 = vmatprep.subr.bf16.mxu0 0
    %8334 = vmatpush1.bf16.msra.mxu0 %v5944
    %8335 = vmatprep.subr.bf16.mxu0 0
    %8336 = vmatpush1.bf16.msra.mxu0 %v5945
    %8337 = vmatprep.subr.bf16.mxu0 0
    %8338 = vmatpush1.bf16.msra.mxu0 %v5946
    %8339 = vmatprep.mubr.bf16.mxu0 %v737
    %8340 = vmatmul.mubr.bf16.gmra.mrb[0].mxu0 %v736
    %v8341 = vpop.f32.mrb[0].mxu0
    %v8342 = vadd.f32 %v8302, %v8341
    %v8343 = vpop.f32.mrb[0].mxu0
    %v8344 = vpop.f32.mrb[0].mxu0
    %v8345 = vpop.f32.mrb[0].mxu0
    %8346 = vdwg.mxu0
    %8347 = vmatprep.subr.bf16.mxu0 0
    %8348 = vmatpush1.bf16.msra.mxu0 %v5947
    %8349 = vmatprep.subr.bf16.mxu0 0
    %8350 = vmatpush1.bf16.msra.mxu0 %v5948
    %8351 = vmatprep.subr.bf16.mxu0 0
    %8352 = vmatpush1.bf16.msra.mxu0 %v5949
    %8353 = vmatprep.subr.bf16.mxu0 0
    %8354 = vmatpush1.bf16.msra.mxu0 %v5950
    %8355 = vmatprep.subr.bf16.mxu0 0
    %8356 = vmatpush1.bf16.msra.mxu0 %v5951
    %8357 = vmatprep.subr.bf16.mxu0 0
    %8358 = vmatpush1.bf16.msra.mxu0 %v5952
    %8359 = vmatprep.subr.bf16.mxu0 0
    %8360 = vmatpush1.bf16.msra.mxu0 %v5953
    %8361 = vmatprep.subr.bf16.mxu0 0
    %8362 = vmatpush1.bf16.msra.mxu0 %v5954
    %8363 = vmatprep.subr.bf16.mxu0 0
    %8364 = vmatpush1.bf16.msra.mxu0 %v5955
    %8365 = vmatprep.subr.bf16.mxu0 0
    %8366 = vmatpush1.bf16.msra.mxu0 %v5956
    %8367 = vmatprep.subr.bf16.mxu0 0
    %8368 = vmatpush1.bf16.msra.mxu0 %v5957
    %8369 = vmatprep.subr.bf16.mxu0 0
    %8370 = vmatpush1.bf16.msra.mxu0 %v5958
    %8371 = vmatprep.subr.bf16.mxu0 0
    %8372 = vmatpush1.bf16.msra.mxu0 %v5959
    %8373 = vmatprep.subr.bf16.mxu0 0
    %8374 = vmatpush1.bf16.msra.mxu0 %v5960
    %8375 = vmatprep.subr.bf16.mxu0 0
    %8376 = vmatpush1.bf16.msra.mxu0 %v5961
    %8377 = vmatprep.subr.bf16.mxu0 0
    %8378 = vmatpush1.bf16.msra.mxu0 %v5962
    %8379 = vmatprep.mubr.bf16.mxu0 %v739
    %8380 = vmatmul.mubr.bf16.gmra.mrb[0].mxu0 %v738
    %v8381 = vpop.f32.mrb[0].mxu0
    %v8382 = vadd.f32 %v8342, %v8381
    %v8383 = vpop.f32.mrb[0].mxu0
    %v8384 = vpop.f32.mrb[0].mxu0
    %v8385 = vpop.f32.mrb[0].mxu0
    %8386 = vdwg.mxu0
    %8387 = vmatprep.subr.bf16.mxu0 0
    %8388 = vmatpush1.bf16.msra.mxu0 %v5963
    %8389 = vmatprep.subr.bf16.mxu0 0
    %8390 = vmatpush1.bf16.msra.mxu0 %v5964
    %8391 = vmatprep.subr.bf16.mxu0 0
    %8392 = vmatpush1.bf16.msra.mxu0 %v5965
    %8393 = vmatprep.subr.bf16.mxu0 0
    %8394 = vmatpush1.bf16.msra.mxu0 %v5966
    %8395 = vmatprep.subr.bf16.mxu0 0
    %8396 = vmatpush1.bf16.msra.mxu0 %v5967
    %8397 = vmatprep.subr.bf16.mxu0 0
    %8398 = vmatpush1.bf16.msra.mxu0 %v5968
    %8399 = vmatprep.subr.bf16.mxu0 0
    %8400 = vmatpush1.bf16.msra.mxu0 %v5969
    %8401 = vmatprep.subr.bf16.mxu0 0
    %8402 = vmatpush1.bf16.msra.mxu0 %v5970
    %8403 = vmatprep.subr.bf16.mxu0 0
    %8404 = vmatpush1.bf16.msra.mxu0 %v5971
    %8405 = vmatprep.subr.bf16.mxu0 0
    %8406 = vmatpush1.bf16.msra.mxu0 %v5972
    %8407 = vmatprep.subr.bf16.mxu0 0
    %8408 = vmatpush1.bf16.msra.mxu0 %v5973
    %8409 = vmatprep.subr.bf16.mxu0 0
    %8410 = vmatpush1.bf16.msra.mxu0 %v5974
    %8411 = vmatprep.subr.bf16.mxu0 0
    %8412 = vmatpush1.bf16.msra.mxu0 %v5975
    %8413 = vmatprep.subr.bf16.mxu0 0
    %8414 = vmatpush1.bf16.msra.mxu0 %v5976
    %8415 = vmatprep.subr.bf16.mxu0 0
    %8416 = vmatpush1.bf16.msra.mxu0 %v5977
    %8417 = vmatprep.subr.bf16.mxu0 0
    %8418 = vmatpush1.bf16.msra.mxu0 %v5978
    %8419 = vmatprep.mubr.bf16.mxu0 %v741
    %8420 = vmatmul.mubr.bf16.gmra.mrb[0].mxu0 %v740
    %v8421 = vpop.f32.mrb[0].mxu0
    %v8422 = vadd.f32 %v8382, %v8421
    %v8423 = vpop.f32.mrb[0].mxu0
    %v8424 = vpop.f32.mrb[0].mxu0
    %v8425 = vpop.f32.mrb[0].mxu0
    %8426 = vdwg.mxu0
    %8427 = vmatprep.subr.bf16.mxu0 0
    %8428 = vmatpush1.bf16.msra.mxu0 %v5979
    %8429 = vmatprep.subr.bf16.mxu0 0
    %8430 = vmatpush1.bf16.msra.mxu0 %v5980
    %8431 = vmatprep.subr.bf16.mxu0 0
    %8432 = vmatpush1.bf16.msra.mxu0 %v5981
    %8433 = vmatprep.subr.bf16.mxu0 0
    %8434 = vmatpush1.bf16.msra.mxu0 %v5982
    %8435 = vmatprep.subr.bf16.mxu0 0
    %8436 = vmatpush1.bf16.msra.mxu0 %v5983
    %8437 = vmatprep.subr.bf16.mxu0 0
    %8438 = vmatpush1.bf16.msra.mxu0 %v5984
    %8439 = vmatprep.subr.bf16.mxu0 0
    %8440 = vmatpush1.bf16.msra.mxu0 %v5985
    %8441 = vmatprep.subr.bf16.mxu0 0
    %8442 = vmatpush1.bf16.msra.mxu0 %v5986
    %8443 = vmatprep.subr.bf16.mxu0 0
    %8444 = vmatpush1.bf16.msra.mxu0 %v5987
    %8445 = vmatprep.subr.bf16.mxu0 0
    %8446 = vmatpush1.bf16.msra.mxu0 %v5988
    %8447 = vmatprep.subr.bf16.mxu0 0
    %8448 = vmatpush1.bf16.msra.mxu0 %v5989
    %8449 = vmatprep.subr.bf16.mxu0 0
    %8450 = vmatpush1.bf16.msra.mxu0 %v5990
    %8451 = vmatprep.subr.bf16.mxu0 0
    %8452 = vmatpush1.bf16.msra.mxu0 %v5991
    %8453 = vmatprep.subr.bf16.mxu0 0
    %8454 = vmatpush1.bf16.msra.mxu0 %v5992
    %8455 = vmatprep.subr.bf16.mxu0 0
    %8456 = vmatpush1.bf16.msra.mxu0 %v5993
    %8457 = vmatprep.subr.bf16.mxu0 0
    %8458 = vmatpush1.bf16.msra.mxu0 %v5994
    %8459 = vmatprep.mubr.bf16.mxu0 %v743
    %8460 = vmatmul.mubr.bf16.gmra.mrb[0].mxu0 %v742
    %v8461 = vpop.f32.mrb[0].mxu0
    %v8462 = vadd.f32 %v8422, %v8461
    %v8463 = vpop.f32.mrb[0].mxu0
    %v8464 = vpop.f32.mrb[0].mxu0
    %v8465 = vpop.f32.mrb[0].mxu0
    %8466 = vdwg.mxu0
    %8467 = vmatprep.subr.bf16.mxu0 0
    %8468 = vmatpush1.bf16.msra.mxu0 %v5995
    %8469 = vmatprep.subr.bf16.mxu0 0
    %8470 = vmatpush1.bf16.msra.mxu0 %v5996
    %8471 = vmatprep.subr.bf16.mxu0 0
    %8472 = vmatpush1.bf16.msra.mxu0 %v5997
    %8473 = vmatprep.subr.bf16.mxu0 0
    %8474 = vmatpush1.bf16.msra.mxu0 %v5998
    %8475 = vmatprep.subr.bf16.mxu0 0
    %8476 = vmatpush1.bf16.msra.mxu0 %v5999
    %8477 = vmatprep.subr.bf16.mxu0 0
    %8478 = vmatpush1.bf16.msra.mxu0 %v6000
    %8479 = vmatprep.subr.bf16.mxu0 0
    %8480 = vmatpush1.bf16.msra.mxu0 %v6001
    %8481 = vmatprep.subr.bf16.mxu0 0
    %8482 = vmatpush1.bf16.msra.mxu0 %v6002
    %8483 = vmatprep.subr.bf16.mxu0 0
    %8484 = vmatpush1.bf16.msra.mxu0 %v6003
    %8485 = vmatprep.subr.bf16.mxu0 0
    %8486 = vmatpush1.bf16.msra.mxu0 %v6004
    %8487 = vmatprep.subr.bf16.mxu0 0
    %8488 = vmatpush1.bf16.msra.mxu0 %v6005
    %8489 = vmatprep.subr.bf16.mxu0 0
    %8490 = vmatpush1.bf16.msra.mxu0 %v6006
    %8491 = vmatprep.subr.bf16.mxu0 0
    %8492 = vmatpush1.bf16.msra.mxu0 %v6007
    %8493 = vmatprep.subr.bf16.mxu0 0
    %8494 = vmatpush1.bf16.msra.mxu0 %v6008
    %8495 = vmatprep.subr.bf16.mxu0 0
    %8496 = vmatpush1.bf16.msra.mxu0 %v6009
    %8497 = vmatprep.subr.bf16.mxu0 0
    %8498 = vmatpush1.bf16.msra.mxu0 %v6010
    %8499 = vmatprep.mubr.bf16.mxu0 %v745
    %8500 = vmatmul.mubr.bf16.gmra.mrb[0].mxu0 %v744
    %v8501 = vpop.f32.mrb[0].mxu0
    %v8502 = vadd.f32 %v8462, %v8501
    %v8503 = vpop.f32.mrb[0].mxu0
    %v8504 = vpop.f32.mrb[0].mxu0
    %v8505 = vpop.f32.mrb[0].mxu0
    %8506 = vdwg.mxu0
    %8507 = vmatprep.subr.bf16.mxu0 0
    %8508 = vmatpush1.bf16.msra.mxu0 %v6011
    %8509 = vmatprep.subr.bf16.mxu0 0
    %8510 = vmatpush1.bf16.msra.mxu0 %v6012
    %8511 = vmatprep.subr.bf16.mxu0 0
    %8512 = vmatpush1.bf16.msra.mxu0 %v6013
    %8513 = vmatprep.subr.bf16.mxu0 0
    %8514 = vmatpush1.bf16.msra.mxu0 %v6014
    %8515 = vmatprep.subr.bf16.mxu0 0
    %8516 = vmatpush1.bf16.msra.mxu0 %v6015
    %8517 = vmatprep.subr.bf16.mxu0 0
    %8518 = vmatpush1.bf16.msra.mxu0 %v6016
    %8519 = vmatprep.subr.bf16.mxu0 0
    %8520 = vmatpush1.bf16.msra.mxu0 %v6017
    %8521 = vmatprep.subr.bf16.mxu0 0
    %8522 = vmatpush1.bf16.msra.mxu0 %v6018
    %8523 = vmatprep.subr.bf16.mxu0 0
    %8524 = vmatpush1.bf16.msra.mxu0 %v6019
    %8525 = vmatprep.subr.bf16.mxu0 0
    %8526 = vmatpush1.bf16.msra.mxu0 %v6020
    %8527 = vmatprep.subr.bf16.mxu0 0
    %8528 = vmatpush1.bf16.msra.mxu0 %v6021
    %8529 = vmatprep.subr.bf16.mxu0 0
    %8530 = vmatpush1.bf16.msra.mxu0 %v6022
    %8531 = vmatprep.subr.bf16.mxu0 0
    %8532 = vmatpush1.bf16.msra.mxu0 %v6023
    %8533 = vmatprep.subr.bf16.mxu0 0
    %8534 = vmatpush1.bf16.msra.mxu0 %v6024
    %8535 = vmatprep.subr.bf16.mxu0 0
    %8536 = vmatpush1.bf16.msra.mxu0 %v6025
    %8537 = vmatprep.subr.bf16.mxu0 0
    %8538 = vmatpush1.bf16.msra.mxu0 %v6026
    %8539 = vmatprep.mubr.bf16.mxu0 %v747
    %8540 = vmatmul.mubr.bf16.gmra.mrb[0].mxu0 %v746
    %v8541 = vpop.f32.mrb[0].mxu0
    %v8542 = vadd.f32 %v8502, %v8541
    %v8543 = vpop.f32.mrb[0].mxu0
    %v8544 = vpop.f32.mrb[0].mxu0
    %v8545 = vpop.f32.mrb[0].mxu0
    %8546 = vdwg.mxu0
    %8547 = vmatprep.subr.bf16.mxu0 0
    %8548 = vmatpush1.bf16.msra.mxu0 %v6027
    %8549 = vmatprep.subr.bf16.mxu0 0
    %8550 = vmatpush1.bf16.msra.mxu0 %v6028
    %8551 = vmatprep.subr.bf16.mxu0 0
    %8552 = vmatpush1.bf16.msra.mxu0 %v6029
    %8553 = vmatprep.subr.bf16.mxu0 0
    %8554 = vmatpush1.bf16.msra.mxu0 %v6030
    %8555 = vmatprep.subr.bf16.mxu0 0
    %8556 = vmatpush1.bf16.msra.mxu0 %v6031
    %8557 = vmatprep.subr.bf16.mxu0 0
    %8558 = vmatpush1.bf16.msra.mxu0 %v6032
    %8559 = vmatprep.subr.bf16.mxu0 0
    %8560 = vmatpush1.bf16.msra.mxu0 %v6033
    %8561 = vmatprep.subr.bf16.mxu0 0
    %8562 = vmatpush1.bf16.msra.mxu0 %v6034
    %8563 = vmatprep.subr.bf16.mxu0 0
    %8564 = vmatpush1.bf16.msra.mxu0 %v6035
    %8565 = vmatprep.subr.bf16.mxu0 0
    %8566 = vmatpush1.bf16.msra.mxu0 %v6036
    %8567 = vmatprep.subr.bf16.mxu0 0
    %8568 = vmatpush1.bf16.msra.mxu0 %v6037
    %8569 = vmatprep.subr.bf16.mxu0 0
    %8570 = vmatpush1.bf16.msra.mxu0 %v6038
    %8571 = vmatprep.subr.bf16.mxu0 0
    %8572 = vmatpush1.bf16.msra.mxu0 %v6039
    %8573 = vmatprep.subr.bf16.mxu0 0
    %8574 = vmatpush1.bf16.msra.mxu0 %v6040
    %8575 = vmatprep.subr.bf16.mxu0 0
    %8576 = vmatpush1.bf16.msra.mxu0 %v6041
    %8577 = vmatprep.subr.bf16.mxu0 0
    %8578 = vmatpush1.bf16.msra.mxu0 %v6042
    %8579 = vmatprep.mubr.bf16.mxu0 %v749
    %8580 = vmatmul.mubr.bf16.gmra.mrb[0].mxu0 %v748
    %v8581 = vpop.f32.mrb[0].mxu0
    %v8582 = vadd.f32 %v8542, %v8581
    %v8583 = vpop.f32.mrb[0].mxu0
    %v8584 = vpop.f32.mrb[0].mxu0
    %v8585 = vpop.f32.mrb[0].mxu0
    %8586 = vdwg.mxu0
    %8587 = vmatprep.subr.bf16.mxu0 0
    %8588 = vmatpush1.bf16.msra.mxu0 %v6043
    %8589 = vmatprep.subr.bf16.mxu0 0
    %8590 = vmatpush1.bf16.msra.mxu0 %v6044
    %8591 = vmatprep.subr.bf16.mxu0 0
    %8592 = vmatpush1.bf16.msra.mxu0 %v6045
    %8593 = vmatprep.subr.bf16.mxu0 0
    %8594 = vmatpush1.bf16.msra.mxu0 %v6046
    %8595 = vmatprep.subr.bf16.mxu0 0
    %8596 = vmatpush1.bf16.msra.mxu0 %v6047
    %8597 = vmatprep.subr.bf16.mxu0 0
    %8598 = vmatpush1.bf16.msra.mxu0 %v6048
    %8599 = vmatprep.subr.bf16.mxu0 0
    %8600 = vmatpush1.bf16.msra.mxu0 %v6049
    %8601 = vmatprep.subr.bf16.mxu0 0
    %8602 = vmatpush1.bf16.msra.mxu0 %v6050
    %8603 = vmatprep.subr.bf16.mxu0 0
    %8604 = vmatpush1.bf16.msra.mxu0 %v6051
    %8605 = vmatprep.subr.bf16.mxu0 0
    %8606 = vmatpush1.bf16.msra.mxu0 %v6052
    %8607 = vmatprep.subr.bf16.mxu0 0
    %8608 = vmatpush1.bf16.msra.mxu0 %v6053
    %8609 = vmatprep.subr.bf16.mxu0 0
    %8610 = vmatpush1.bf16.msra.mxu0 %v6054
    %8611 = vmatprep.subr.bf16.mxu0 0
    %8612 = vmatpush1.bf16.msra.mxu0 %v6055
    %8613 = vmatprep.subr.bf16.mxu0 0
    %8614 = vmatpush1.bf16.msra.mxu0 %v6056
    %8615 = vmatprep.subr.bf16.mxu0 0
    %8616 = vmatpush1.bf16.msra.mxu0 %v6057
    %8617 = vmatprep.subr.bf16.mxu0 0
    %8618 = vmatpush1.bf16.msra.mxu0 %v6058
    %8619 = vmatprep.mubr.bf16.mxu0 %v751
    %8620 = vmatmul.mubr.bf16.gmra.mrb[0].mxu0 %v750
    %v8621 = vpop.f32.mrb[0].mxu0
    %v8622 = vadd.f32 %v8582, %v8621
    %v8623 = vpop.f32.mrb[0].mxu0
    %v8624 = vpop.f32.mrb[0].mxu0
    %v8625 = vpop.f32.mrb[0].mxu0
    %8626 = vdwg.mxu0
    %8627 = vmatprep.subr.bf16.mxu0 0
    %8628 = vmatpush1.bf16.msra.mxu0 %v6059
    %8629 = vmatprep.subr.bf16.mxu0 0
    %8630 = vmatpush1.bf16.msra.mxu0 %v6060
    %8631 = vmatprep.subr.bf16.mxu0 0
    %8632 = vmatpush1.bf16.msra.mxu0 %v6061
    %8633 = vmatprep.subr.bf16.mxu0 0
    %8634 = vmatpush1.bf16.msra.mxu0 %v6062
    %8635 = vmatprep.subr.bf16.mxu0 0
    %8636 = vmatpush1.bf16.msra.mxu0 %v6063
    %8637 = vmatprep.subr.bf16.mxu0 0
    %8638 = vmatpush1.bf16.msra.mxu0 %v6064
    %8639 = vmatprep.subr.bf16.mxu0 0
    %8640 = vmatpush1.bf16.msra.mxu0 %v6065
    %8641 = vmatprep.subr.bf16.mxu0 0
    %8642 = vmatpush1.bf16.msra.mxu0 %v6066
    %8643 = vmatprep.subr.bf16.mxu0 0
    %8644 = vmatpush1.bf16.msra.mxu0 %v6067
    %8645 = vmatprep.subr.bf16.mxu0 0
    %8646 = vmatpush1.bf16.msra.mxu0 %v6068
    %8647 = vmatprep.subr.bf16.mxu0 0
    %8648 = vmatpush1.bf16.msra.mxu0 %v6069
    %8649 = vmatprep.subr.bf16.mxu0 0
    %8650 = vmatpush1.bf16.msra.mxu0 %v6070
    %8651 = vmatprep.subr.bf16.mxu0 0
    %8652 = vmatpush1.bf16.msra.mxu0 %v6071
    %8653 = vmatprep.subr.bf16.mxu0 0
    %8654 = vmatpush1.bf16.msra.mxu0 %v6072
    %8655 = vmatprep.subr.bf16.mxu0 0
    %8656 = vmatpush1.bf16.msra.mxu0 %v6073
    %8657 = vmatprep.subr.bf16.mxu0 0
    %8658 = vmatpush1.bf16.msra.mxu0 %v6074
    %8659 = vmatprep.mubr.bf16.mxu0 %v753
    %8660 = vmatmul.mubr.bf16.gmra.mrb[0].mxu0 %v752
    %v8661 = vpop.f32.mrb[0].mxu0
    %v8662 = vadd.f32 %v8622, %v8661
    %v8663 = vpop.f32.mrb[0].mxu0
    %v8664 = vpop.f32.mrb[0].mxu0
    %v8665 = vpop.f32.mrb[0].mxu0
    %8666 = vdwg.mxu0
    %8667 = vmatprep.subr.bf16.mxu0 0
    %8668 = vmatpush1.bf16.msra.mxu0 %v6075
    %8669 = vmatprep.subr.bf16.mxu0 0
    %8670 = vmatpush1.bf16.msra.mxu0 %v6076
    %8671 = vmatprep.subr.bf16.mxu0 0
    %8672 = vmatpush1.bf16.msra.mxu0 %v6077
    %8673 = vmatprep.subr.bf16.mxu0 0
    %8674 = vmatpush1.bf16.msra.mxu0 %v6078
    %8675 = vmatprep.subr.bf16.mxu0 0
    %8676 = vmatpush1.bf16.msra.mxu0 %v6079
    %8677 = vmatprep.subr.bf16.mxu0 0
    %8678 = vmatpush1.bf16.msra.mxu0 %v6080
    %8679 = vmatprep.subr.bf16.mxu0 0
    %8680 = vmatpush1.bf16.msra.mxu0 %v6081
    %8681 = vmatprep.subr.bf16.mxu0 0
    %8682 = vmatpush1.bf16.msra.mxu0 %v6082
    %8683 = vmatprep.subr.bf16.mxu0 0
    %8684 = vmatpush1.bf16.msra.mxu0 %v6083
    %8685 = vmatprep.subr.bf16.mxu0 0
    %8686 = vmatpush1.bf16.msra.mxu0 %v6084
    %8687 = vmatprep.subr.bf16.mxu0 0
    %8688 = vmatpush1.bf16.msra.mxu0 %v6085
    %8689 = vmatprep.subr.bf16.mxu0 0
    %8690 = vmatpush1.bf16.msra.mxu0 %v6086
    %8691 = vmatprep.subr.bf16.mxu0 0
    %8692 = vmatpush1.bf16.msra.mxu0 %v6087
    %8693 = vmatprep.subr.bf16.mxu0 0
    %8694 = vmatpush1.bf16.msra.mxu0 %v6088
    %8695 = vmatprep.subr.bf16.mxu0 0
    %8696 = vmatpush1.bf16.msra.mxu0 %v6089
    %8697 = vmatprep.subr.bf16.mxu0 0
    %8698 = vmatpush1.bf16.msra.mxu0 %v6090
    %8699 = vmatprep.mubr.bf16.mxu0 %v755
    %8700 = vmatmul.mubr.bf16.gmra.mrb[0].mxu0 %v754
    %v8701 = vpop.f32.mrb[0].mxu0
    %v8702 = vadd.f32 %v8662, %v8701
    %v8703 = vpop.f32.mrb[0].mxu0
    %v8704 = vpop.f32.mrb[0].mxu0
    %v8705 = vpop.f32.mrb[0].mxu0
    %8706 = vdwg.mxu0
    %8707 = vmatprep.subr.bf16.mxu0 0
    %8708 = vmatpush1.bf16.msra.mxu0 %v6091
    %8709 = vmatprep.subr.bf16.mxu0 0
    %8710 = vmatpush1.bf16.msra.mxu0 %v6092
    %8711 = vmatprep.subr.bf16.mxu0 0
    %8712 = vmatpush1.bf16.msra.mxu0 %v6093
    %8713 = vmatprep.subr.bf16.mxu0 0
    %8714 = vmatpush1.bf16.msra.mxu0 %v6094
    %8715 = vmatprep.subr.bf16.mxu0 0
    %8716 = vmatpush1.bf16.msra.mxu0 %v6095
    %8717 = vmatprep.subr.bf16.mxu0 0
    %8718 = vmatpush1.bf16.msra.mxu0 %v6096
    %8719 = vmatprep.subr.bf16.mxu0 0
    %8720 = vmatpush1.bf16.msra.mxu0 %v6097
    %8721 = vmatprep.subr.bf16.mxu0 0
    %8722 = vmatpush1.bf16.msra.mxu0 %v6098
    %8723 = vmatprep.subr.bf16.mxu0 0
    %8724 = vmatpush1.bf16.msra.mxu0 %v6099
    %8725 = vmatprep.subr.bf16.mxu0 0
    %8726 = vmatpush1.bf16.msra.mxu0 %v6100
    %8727 = vmatprep.subr.bf16.mxu0 0
    %8728 = vmatpush1.bf16.msra.mxu0 %v6101
    %8729 = vmatprep.subr.bf16.mxu0 0
    %8730 = vmatpush1.bf16.msra.mxu0 %v6102
    %8731 = vmatprep.subr.bf16.mxu0 0
    %8732 = vmatpush1.bf16.msra.mxu0 %v6103
    %8733 = vmatprep.subr.bf16.mxu0 0
    %8734 = vmatpush1.bf16.msra.mxu0 %v6104
    %8735 = vmatprep.subr.bf16.mxu0 0
    %8736 = vmatpush1.bf16.msra.mxu0 %v6105
    %8737 = vmatprep.subr.bf16.mxu0 0
    %8738 = vmatpush1.bf16.msra.mxu0 %v6106
    %8739 = vmatprep.mubr.bf16.mxu0 %v757
    %8740 = vmatmul.mubr.bf16.gmra.mrb[0].mxu0 %v756
    %v8741 = vpop.f32.mrb[0].mxu0
    %v8742 = vadd.f32 %v8702, %v8741
    %v8743 = vpop.f32.mrb[0].mxu0
    %v8744 = vpop.f32.mrb[0].mxu0
    %v8745 = vpop.f32.mrb[0].mxu0
    %8746 = vdwg.mxu0
    %8747 = vmatprep.subr.bf16.mxu0 0
    %8748 = vmatpush1.bf16.msra.mxu0 %v6107
    %8749 = vmatprep.subr.bf16.mxu0 0
    %8750 = vmatpush1.bf16.msra.mxu0 %v6108
    %8751 = vmatprep.subr.bf16.mxu0 0
    %8752 = vmatpush1.bf16.msra.mxu0 %v6109
    %8753 = vmatprep.subr.bf16.mxu0 0
    %8754 = vmatpush1.bf16.msra.mxu0 %v6110
    %8755 = vmatprep.subr.bf16.mxu0 0
    %8756 = vmatpush1.bf16.msra.mxu0 %v6111
    %8757 = vmatprep.subr.bf16.mxu0 0
    %8758 = vmatpush1.bf16.msra.mxu0 %v6112
    %8759 = vmatprep.subr.bf16.mxu0 0
    %8760 = vmatpush1.bf16.msra.mxu0 %v6113
    %8761 = vmatprep.subr.bf16.mxu0 0
    %8762 = vmatpush1.bf16.msra.mxu0 %v6114
    %8763 = vmatprep.subr.bf16.mxu0 0
    %8764 = vmatpush1.bf16.msra.mxu0 %v6115
    %8765 = vmatprep.subr.bf16.mxu0 0
    %8766 = vmatpush1.bf16.msra.mxu0 %v6116
    %8767 = vmatprep.subr.bf16.mxu0 0
    %8768 = vmatpush1.bf16.msra.mxu0 %v6117
    %8769 = vmatprep.subr.bf16.mxu0 0
    %8770 = vmatpush1.bf16.msra.mxu0 %v6118
    %8771 = vmatprep.subr.bf16.mxu0 0
    %8772 = vmatpush1.bf16.msra.mxu0 %v6119
    %8773 = vmatprep.subr.bf16.mxu0 0
    %8774 = vmatpush1.bf16.msra.mxu0 %v6120
    %8775 = vmatprep.subr.bf16.mxu0 0
    %8776 = vmatpush1.bf16.msra.mxu0 %v6121
    %8777 = vmatprep.subr.bf16.mxu0 0
    %8778 = vmatpush1.bf16.msra.mxu0 %v6122
    %8779 = vmatprep.mubr.bf16.mxu0 %v759
    %8780 = vmatmul.mubr.bf16.gmra.mrb[0].mxu0 %v758
    %v8781 = vpop.f32.mrb[0].mxu0
    %v8782 = vadd.f32 %v8742, %v8781
    %v8783 = vpop.f32.mrb[0].mxu0
    %v8784 = vpop.f32.mrb[0].mxu0
    %v8785 = vpop.f32.mrb[0].mxu0
    %8786 = vdwg.mxu0
    %8787 = vmatprep.subr.bf16.mxu0 0
    %8788 = vmatpush1.bf16.msra.mxu0 %v6123
    %8789 = vmatprep.subr.bf16.mxu0 0
    %8790 = vmatpush1.bf16.msra.mxu0 %v6124
    %8791 = vmatprep.subr.bf16.mxu0 0
    %8792 = vmatpush1.bf16.msra.mxu0 %v6125
    %8793 = vmatprep.subr.bf16.mxu0 0
    %8794 = vmatpush1.bf16.msra.mxu0 %v6126
    %8795 = vmatprep.subr.bf16.mxu0 0
    %8796 = vmatpush1.bf16.msra.mxu0 %v6127
    %8797 = vmatprep.subr.bf16.mxu0 0
    %8798 = vmatpush1.bf16.msra.mxu0 %v6128
    %8799 = vmatprep.subr.bf16.mxu0 0
    %8800 = vmatpush1.bf16.msra.mxu0 %v6129
    %8801 = vmatprep.subr.bf16.mxu0 0
    %8802 = vmatpush1.bf16.msra.mxu0 %v6130
    %8803 = vmatprep.subr.bf16.mxu0 0
    %8804 = vmatpush1.bf16.msra.mxu0 %v6131
    %8805 = vmatprep.subr.bf16.mxu0 0
    %8806 = vmatpush1.bf16.msra.mxu0 %v6132
    %8807 = vmatprep.subr.bf16.mxu0 0
    %8808 = vmatpush1.bf16.msra.mxu0 %v6133
    %8809 = vmatprep.subr.bf16.mxu0 0
    %8810 = vmatpush1.bf16.msra.mxu0 %v6134
    %8811 = vmatprep.subr.bf16.mxu0 0
    %8812 = vmatpush1.bf16.msra.mxu0 %v6135
    %8813 = vmatprep.subr.bf16.mxu0 0
    %8814 = vmatpush1.bf16.msra.mxu0 %v6136
    %8815 = vmatprep.subr.bf16.mxu0 0
    %8816 = vmatpush1.bf16.msra.mxu0 %v6137
    %8817 = vmatprep.subr.bf16.mxu0 0
    %8818 = vmatpush1.bf16.msra.mxu0 %v6138
    %8819 = vmatprep.mubr.bf16.mxu0 %v761
    %8820 = vmatmul.mubr.bf16.gmra.mrb[0].mxu0 %v760
    %v8821 = vpop.f32.mrb[0].mxu0
    %v8822 = vadd.f32 %v8782, %v8821
    %v8823 = vpop.f32.mrb[0].mxu0
    %v8824 = vpop.f32.mrb[0].mxu0
    %v8825 = vpop.f32.mrb[0].mxu0
    %8826 = vdwg.mxu0
    %v8827 = vadd.f32 %v762, %v8822
    %8828 = vst [vmem:[#allocation2] sm:$0x3] %v8827
    // Predicated region
    $region58: #{tpu_custom_call.1} parent=1 // pred_check
      %p8829 = pneg %p102
    $region59: #{tpu_custom_call.1} parent=1 // pred_check_branch
      %8831 = sbr.rel (%p8829) target = $region61
    $region60: #{tpu_custom_call.1} parent=1 // pred_region
      %v8832 = vld [vmem:[#allocation2] sm:$0x3]
      %v8833 = vmax.f32 %v8832, 0.0
      %v8834 = vpack.c.bf16 %v8833, %v8833
      %v8835 = vld [vmem:[#allocation9] sm:$0xff]
      %v8836 = vld [vmem:[#allocation9 + $0x8] sm:$0xff]
      %v8837 = vld [vmem:[#allocation9 + $0x10] sm:$0xff]
      %v8838 = vld [vmem:[#allocation9 + $0x18] sm:$0xff]
      %v8839 = vld [vmem:[#allocation9 + $0x20] sm:$0xff]
      %v8840 = vld [vmem:[#allocation9 + $0x28] sm:$0xff]
      %v8841 = vld [vmem:[#allocation9 + $0x30] sm:$0xff]
      %v8842 = vld [vmem:[#allocation9 + $0x38] sm:$0xff]
      %v8843 = vld [vmem:[#allocation9 + $0x40] sm:$0xff]
      %v8844 = vld [vmem:[#allocation9 + $0x48] sm:$0xff]
      %v8845 = vld [vmem:[#allocation9 + $0x50] sm:$0xff]
      %v8846 = vld [vmem:[#allocation9 + $0x58] sm:$0xff]
      %v8847 = vld [vmem:[#allocation9 + $0x60] sm:$0xff]
      %v8848 = vld [vmem:[#allocation9 + $0x68] sm:$0xff]
      %v8849 = vld [vmem:[#allocation9 + $0x70] sm:$0xff]
      %v8850 = vld [vmem:[#allocation9 + $0x78] sm:$0xff]
      %v8851 = vld [vmem:[#allocation11] sm:$0x3]
      %v8853 = vlaneseq
      %v8854 = vshrl.u32 %v8853, 7
      %v8855 = vsub.s32 0, %v8854
      %v8856 = vrot.slane %v8851, %v8855
      %v8857 = vlaneseq
      %v8858 = vshrl.u32 %v8857, 7
      %v8859 = vsub.s32 1, %v8858
      %v8860 = vrot.slane %v8851, %v8859
      %v8879 = vunpack.c.l.b16 %v8835
      %v8880 = vunpack.c.h.b16 %v8835
      %v8881 = vunpack.c.l.b16 %v8836
      %v8882 = vunpack.c.h.b16 %v8836
      %v8883 = vunpack.c.l.b16 %v8837
      %v8884 = vunpack.c.h.b16 %v8837
      %v8885 = vunpack.c.l.b16 %v8838
      %v8886 = vunpack.c.h.b16 %v8838
      %v8887 = vunpack.c.l.b16 %v8839
      %v8888 = vunpack.c.h.b16 %v8839
      %v8889 = vunpack.c.l.b16 %v8840
      %v8890 = vunpack.c.h.b16 %v8840
      %v8891 = vunpack.c.l.b16 %v8841
      %v8892 = vunpack.c.h.b16 %v8841
      %v8893 = vunpack.c.l.b16 %v8842
      %v8894 = vunpack.c.h.b16 %v8842
      %v8895 = vunpack.c.l.b16 %v8843
      %v8896 = vunpack.c.h.b16 %v8843
      %v8897 = vunpack.c.l.b16 %v8844
      %v8898 = vunpack.c.h.b16 %v8844
      %v8899 = vunpack.c.l.b16 %v8845
      %v8900 = vunpack.c.h.b16 %v8845
      %v8901 = vunpack.c.l.b16 %v8846
      %v8902 = vunpack.c.h.b16 %v8846
      %v8903 = vunpack.c.l.b16 %v8847
      %v8904 = vunpack.c.h.b16 %v8847
      %v8905 = vunpack.c.l.b16 %v8848
      %v8906 = vunpack.c.h.b16 %v8848
      %v8907 = vunpack.c.l.b16 %v8849
      %v8908 = vunpack.c.h.b16 %v8849
      %v8909 = vunpack.c.l.b16 %v8850
      %v8910 = vunpack.c.h.b16 %v8850
      %v8911 = vpack.c.b16 %v8881, %v8879
      %v8912 = vpack.c.b16 %v8882, %v8880
      %v8913 = vpack.c.b16 %v8885, %v8883
      %v8914 = vpack.c.b16 %v8886, %v8884
      %v8915 = vpack.c.b16 %v8889, %v8887
      %v8916 = vpack.c.b16 %v8890, %v8888
      %v8917 = vpack.c.b16 %v8893, %v8891
      %v8918 = vpack.c.b16 %v8894, %v8892
      %v8919 = vpack.c.b16 %v8897, %v8895
      %v8920 = vpack.c.b16 %v8898, %v8896
      %v8921 = vpack.c.b16 %v8901, %v8899
      %v8922 = vpack.c.b16 %v8902, %v8900
      %v8923 = vpack.c.b16 %v8905, %v8903
      %v8924 = vpack.c.b16 %v8906, %v8904
      %v8925 = vpack.c.b16 %v8909, %v8907
      %v8926 = vpack.c.b16 %v8910, %v8908
      %8943 = vmatprep.subr.bf16.mxu0 %v8912
      %8944 = vmatpush1.bf16.msra.mxu0 %v8911
      %8945 = vmatprep.subr.bf16.mxu0 %v8914
      %8946 = vmatpush1.bf16.msra.mxu0 %v8913
      %8947 = vmatprep.subr.bf16.mxu0 %v8916
      %8948 = vmatpush1.bf16.msra.mxu0 %v8915
      %8949 = vmatprep.subr.bf16.mxu0 %v8918
      %8950 = vmatpush1.bf16.msra.mxu0 %v8917
      %8951 = vmatprep.subr.bf16.mxu0 %v8920
      %8952 = vmatpush1.bf16.msra.mxu0 %v8919
      %8953 = vmatprep.subr.bf16.mxu0 %v8922
      %8954 = vmatpush1.bf16.msra.mxu0 %v8921
      %8955 = vmatprep.subr.bf16.mxu0 %v8924
      %8956 = vmatpush1.bf16.msra.mxu0 %v8923
      %8957 = vmatprep.subr.bf16.mxu0 %v8926
      %8958 = vmatpush1.bf16.msra.mxu0 %v8925
      %8959 = vmatprep.subr.bf16.mxu0 0
      %8960 = vmatpush1.bf16.msra.mxu0 0
      %8961 = vmatprep.subr.bf16.mxu0 0
      %8962 = vmatpush1.bf16.msra.mxu0 0
      %8963 = vmatprep.subr.bf16.mxu0 0
      %8964 = vmatpush1.bf16.msra.mxu0 0
      %8965 = vmatprep.subr.bf16.mxu0 0
      %8966 = vmatpush1.bf16.msra.mxu0 0
      %8967 = vmatprep.subr.bf16.mxu0 0
      %8968 = vmatpush1.bf16.msra.mxu0 0
      %8969 = vmatprep.subr.bf16.mxu0 0
      %8970 = vmatpush1.bf16.msra.mxu0 0
      %8971 = vmatprep.subr.bf16.mxu0 0
      %8972 = vmatpush1.bf16.msra.mxu0 0
      %8973 = vmatprep.subr.bf16.mxu0 0
      %8974 = vmatpush1.bf16.msra.mxu0 0
      %8975 = vmatprep.mubr.bf16.mxu0 0
      %8976 = vmatmul.mubr.bf16.gmra.mrb[0].mxu0 %v8834
      %v8977 = vpop.f32.mrb[0].mxu0
      %v8978 = vadd.f32 %v8856, %v8977
      %v8979 = vpop.f32.mrb[0].mxu0
      %v8980 = vadd.f32 %v8860, %v8979
      %v8981 = vpop.f32.mrb[0].mxu0
      %v8982 = vpop.f32.mrb[0].mxu0
      %8983 = vdwg.mxu0
      %v8984 = vmax.f32 %v8978, 0.0
      %v8985 = vmax.f32 %v8980, 0.0
      %v8986 = vpack.c.bf16 %v8984, %v8984
      %v8987 = vpack.c.bf16 %v8985, %v8985
      %v8988 = vld [vmem:[%s5] sm:$0xf]
      %v8989 = vld [vmem:[%s5 + $0x4] sm:$0xf]
      %v8990 = vld [vmem:[%s5 + $0x8] sm:$0xf]
      %v8991 = vld [vmem:[%s5 + $0xc] sm:$0xf]
      %v8992 = vld [vmem:[%s5 + $0x10] sm:$0xf]
      %v8993 = vld [vmem:[%s5 + $0x14] sm:$0xf]
      %v8994 = vld [vmem:[%s5 + $0x18] sm:$0xf]
      %v8995 = vld [vmem:[%s5 + $0x1c] sm:$0xf]
      %v8996 = vld [vmem:[%s5 + $0x20] sm:$0xf]
      %v8997 = vld [vmem:[%s5 + $0x24] sm:$0xf]
      %v8998 = vld [vmem:[%s5 + $0x28] sm:$0xf]
      %v8999 = vld [vmem:[%s5 + $0x2c] sm:$0xf]
      %v9000 = vld [vmem:[%s5 + $0x30] sm:$0xf]
      %v9001 = vld [vmem:[%s5 + $0x34] sm:$0xf]
      %v9002 = vld [vmem:[%s5 + $0x38] sm:$0xf]
      %v9003 = vld [vmem:[%s5 + $0x3c] sm:$0xf]
      %v9004 = vld [vmem:[%s5 + $0x40] sm:$0xf]
      %v9005 = vld [vmem:[%s5 + $0x44] sm:$0xf]
      %v9006 = vld [vmem:[%s5 + $0x48] sm:$0xf]
      %v9007 = vld [vmem:[%s5 + $0x4c] sm:$0xf]
      %v9008 = vld [vmem:[%s5 + $0x50] sm:$0xf]
      %v9009 = vld [vmem:[%s5 + $0x54] sm:$0xf]
      %v9010 = vld [vmem:[%s5 + $0x58] sm:$0xf]
      %v9011 = vld [vmem:[%s5 + $0x5c] sm:$0xf]
      %v9012 = vld [vmem:[%s5 + $0x60] sm:$0xf]
      %v9013 = vld [vmem:[%s5 + $0x64] sm:$0xf]
      %v9014 = vld [vmem:[%s5 + $0x68] sm:$0xf]
      %v9015 = vld [vmem:[%s5 + $0x6c] sm:$0xf]
      %v9016 = vld [vmem:[%s5 + $0x70] sm:$0xf]
      %v9017 = vld [vmem:[%s5 + $0x74] sm:$0xf]
      %v9018 = vld [vmem:[%s5 + $0x78] sm:$0xf]
      %v9019 = vld [vmem:[%s5 + $0x7c] sm:$0xf]
      %v9020 = vld [vmem:[#allocation12] sm:$0x1]
      %v9022 = vlaneseq
      %v9023 = vshrl.u32 %v9022, 7
      %v9024 = vsub.s32 0, %v9023
      %v9025 = vrot.slane %v9020, %v9024
      %v9059 = vunpack.c.l.b16 %v8988
      %v9060 = vunpack.c.l.b16 %v8989
      %v9061 = vunpack.c.l.b16 %v8990
      %v9062 = vunpack.c.l.b16 %v8991
      %v9063 = vunpack.c.l.b16 %v8992
      %v9064 = vunpack.c.l.b16 %v8993
      %v9065 = vunpack.c.l.b16 %v8994
      %v9066 = vunpack.c.l.b16 %v8995
      %v9067 = vunpack.c.l.b16 %v8996
      %v9068 = vunpack.c.l.b16 %v8997
      %v9069 = vunpack.c.l.b16 %v8998
      %v9070 = vunpack.c.l.b16 %v8999
      %v9071 = vunpack.c.l.b16 %v9000
      %v9072 = vunpack.c.l.b16 %v9001
      %v9073 = vunpack.c.l.b16 %v9002
      %v9074 = vunpack.c.l.b16 %v9003
      %v9075 = vunpack.c.l.b16 %v9004
      %v9076 = vunpack.c.l.b16 %v9005
      %v9077 = vunpack.c.l.b16 %v9006
      %v9078 = vunpack.c.l.b16 %v9007
      %v9079 = vunpack.c.l.b16 %v9008
      %v9080 = vunpack.c.l.b16 %v9009
      %v9081 = vunpack.c.l.b16 %v9010
      %v9082 = vunpack.c.l.b16 %v9011
      %v9083 = vunpack.c.l.b16 %v9012
      %v9084 = vunpack.c.l.b16 %v9013
      %v9085 = vunpack.c.l.b16 %v9014
      %v9086 = vunpack.c.l.b16 %v9015
      %v9087 = vunpack.c.l.b16 %v9016
      %v9088 = vunpack.c.l.b16 %v9017
      %v9089 = vunpack.c.l.b16 %v9018
      %v9090 = vunpack.c.l.b16 %v9019
      %v9091 = vpack.c.b16 %v9060, %v9059
      %v9092 = vpack.c.b16 %v9062, %v9061
      %v9093 = vpack.c.b16 %v9064, %v9063
      %v9094 = vpack.c.b16 %v9066, %v9065
      %v9095 = vpack.c.b16 %v9068, %v9067
      %v9096 = vpack.c.b16 %v9070, %v9069
      %v9097 = vpack.c.b16 %v9072, %v9071
      %v9098 = vpack.c.b16 %v9074, %v9073
      %v9099 = vpack.c.b16 %v9076, %v9075
      %v9100 = vpack.c.b16 %v9078, %v9077
      %v9101 = vpack.c.b16 %v9080, %v9079
      %v9102 = vpack.c.b16 %v9082, %v9081
      %v9103 = vpack.c.b16 %v9084, %v9083
      %v9104 = vpack.c.b16 %v9086, %v9085
      %v9105 = vpack.c.b16 %v9088, %v9087
      %v9106 = vpack.c.b16 %v9090, %v9089
      %9123 = vmatprep.subr.bf16.mxu0 0
      %9124 = vmatpush1.bf16.msra.mxu0 %v9091
      %9125 = vmatprep.subr.bf16.mxu0 0
      %9126 = vmatpush1.bf16.msra.mxu0 %v9092
      %9127 = vmatprep.subr.bf16.mxu0 0
      %9128 = vmatpush1.bf16.msra.mxu0 %v9093
      %9129 = vmatprep.subr.bf16.mxu0 0
      %9130 = vmatpush1.bf16.msra.mxu0 %v9094
      %9131 = vmatprep.subr.bf16.mxu0 0
      %9132 = vmatpush1.bf16.msra.mxu0 %v9095
      %9133 = vmatprep.subr.bf16.mxu0 0
      %9134 = vmatpush1.bf16.msra.mxu0 %v9096
      %9135 = vmatprep.subr.bf16.mxu0 0
      %9136 = vmatpush1.bf16.msra.mxu0 %v9097
      %9137 = vmatprep.subr.bf16.mxu0 0
      %9138 = vmatpush1.bf16.msra.mxu0 %v9098
      %9139 = vmatprep.subr.bf16.mxu0 0
      %9140 = vmatpush1.bf16.msra.mxu0 %v9099
      %9141 = vmatprep.subr.bf16.mxu0 0
      %9142 = vmatpush1.bf16.msra.mxu0 %v9100
      %9143 = vmatprep.subr.bf16.mxu0 0
      %9144 = vmatpush1.bf16.msra.mxu0 %v9101
      %9145 = vmatprep.subr.bf16.mxu0 0
      %9146 = vmatpush1.bf16.msra.mxu0 %v9102
      %9147 = vmatprep.subr.bf16.mxu0 0
      %9148 = vmatpush1.bf16.msra.mxu0 %v9103
      %9149 = vmatprep.subr.bf16.mxu0 0
      %9150 = vmatpush1.bf16.msra.mxu0 %v9104
      %9151 = vmatprep.subr.bf16.mxu0 0
      %9152 = vmatpush1.bf16.msra.mxu0 %v9105
      %9153 = vmatprep.subr.bf16.mxu0 0
      %9154 = vmatpush1.bf16.msra.mxu0 %v9106
      %9155 = vmatprep.mubr.bf16.mxu0 %v8987
      %9156 = vmatmul.mubr.bf16.gmra.mrb[0].mxu0 %v8986
      %v9157 = vpop.f32.mrb[0].mxu0
      %v9158 = vadd.f32 %v9025, %v9157
      %v9159 = vpop.f32.mrb[0].mxu0
      %v9160 = vpop.f32.mrb[0].mxu0
      %v9161 = vpop.f32.mrb[0].mxu0
      %9162 = vdwg.mxu0
      %vm9163 = vcmask 779264
      %9164 = vst.msk [vmem:[#allocation14] sm:$0x3] %vm9163, %v9158
    $region61: #{tpu_custom_call.1} parent=1 // pred_fallthru
      _
    // Predicated region
    $region62: #{tpu_custom_call.1} parent=1 // pred_check
      _
    $region63: #{tpu_custom_call.1} parent=1 // pred_check_branch
      %9166 = sbr.rel (0) target = $region65
    $region64: #{tpu_custom_call.1} parent=1 // pred_region
      %s9168 = ssub.s32 32, 32
      %9169 = vsyncadd [#allocation5], %s9168
      %s9171 = sshll.u32 [#allocation14], 4
      %s9172 = int_to_ptr.vmem [resolvable:$true] %s9171
      %9174 = dma.vmem_to_hbm [thread:$0]  %s9172, 32, %s7, [#allocation5]
    $region65: #{tpu_custom_call.1} parent=1 // pred_fallthru
      _
    // Predicated region
    $region66: #{tpu_custom_call.1} parent=1 // pred_check
      _
    $region67: #{tpu_custom_call.1} parent=1 // pred_check_branch
      %9176 = sbr.rel (0) target = $region69
    $region68: #{tpu_custom_call.1} parent=1 // pred_region
      %9177 = dma.done [#allocation5], 32
    $region69: #{tpu_custom_call.1} parent=1 // pred_fallthru
      _
    %9178 = vsyncpa [#allocation4], 1
    %9179 = vsyncpa [#allocation7], 1
    %9180 = vsyncpa [#allocation10], 1
    %9181 = vsyncpa [#allocation13], 1
    %9182 = vsyncpa [#allocation5], 1

</llo_original>
